<compile_context>
chip_gen: v7x
topology: tpu7x:2x2x1
jax: 0.10.0
libtpu: 0.0.40
codegen_flags: <defaults>
</compile_context>

<pallas_src>
import functools

import numpy as np
import jax
import jax.numpy as jnp
from jax.experimental import pallas as pl
from jax.experimental.pallas import tpu as pltpu


# ----------------------------------------------------------------------------
# Fused Pallas kernel (B images per grid step, batched along the lane axis)
# ----------------------------------------------------------------------------
def _grad_block_kernel(x_ref, y_ref, masks_ref, phiA_ref, phiB_ref,
                       w_ref, b_ref, o_ref,
                       slab_ref, act_ref, blk_ref,
                       *, H, W, B, dim, CP, bh, bw, mm_dtype):
    f32 = jnp.float32
    HW = H * W
    L = B * HW                       # lane extent (B images side by side)
    P = bh * bw                      # measurement blocks per image

    def conv3x3(x8, k):
        """3x3 'same' conv on the lane-batched flat image, one MXU matmul.

        x8: (CP, L) f32 value, rows >= Cin are zero.  Each of the 9 shifted
        taps is built with pltpu.roll (XLU), masked (VPU) and stored into the
        8-sublane-aligned slab scratch; the conv is then a single
        (CP, 9*CP) x (9*CP, L) contraction against zero-padded weights.
        """
        t = 0
        for dy in (-1, 0, 1):
            for dx in (-1, 0, 1):
                d = dy * W + dx
                if d == 0:
                    v = x8                                   # centre tap, mask == 1
                else:
                    # s[:, p] = x8[:, p + d]; halo mask zeroes every invalid
                    # (wrapped or cross-image) value.
                    v = pltpu.roll(x8, (-d) % L, axis=1) * masks_ref[t]
                slab_ref[t * CP:(t + 1) * CP, :] = v         # 8-aligned store
                t += 1
        out = jnp.dot(w_ref[k], slab_ref[...].astype(mm_dtype),
                      preferred_element_type=f32)            # (CP, L)
        return out + b_ref[k]                                # bias bcast over lanes

    # ---- stage the zero-padded input activation: (CP, B*HW) ------------------
    act_ref[...] = jnp.zeros_like(act_ref)
    for b in range(B):
        act_ref[0:dim, b * HW:(b + 1) * HW] = x_ref[b].astype(f32)

    # ---- grad[0]: Conv2d(dim, 1, 3, padding=1) --------------------------------
    xp = conv3x3(act_ref[...], 0)                            # row 0 = x_pixel

    # ---- Phi measurement: fold into stride-32 blocks (B*P, 1024) -------------
    if bh == 1 and bw == 1:
        for b in range(B):                                   # lane-aligned row stores
            blk_ref[b:b + 1, :] = xp[0:1, b * HW:(b + 1) * HW]
    else:
        # TODO(synk): only taken for H,W > 32 - validate on device and replace
        # the swapaxes relayout with a block-major image layout for large images.
        blk_ref[...] = jnp.swapaxes(
            xp[0:1, :].reshape(B * bh, 32, bw, 32), 1, 2).reshape(B * P, 1024)

    # Phi / PhiT path kept in f32 (tiny matmuls, accuracy-critical residual).
    phix = jnp.dot(blk_ref[...], phiA_ref[...],
                   preferred_element_type=f32)               # (B*P, M)
    delta = y_ref[0] - phix                                  # (B*P, M)
    proj = jnp.dot(delta, phiB_ref[...],
                   preferred_element_type=f32)               # (B*P, 1024)

    # ---- PhiT back-projection + PixelShuffle(32): back to (CP, B*HW) ---------
    act_ref[...] = jnp.zeros_like(act_ref)
    if bh == 1 and bw == 1:
        for b in range(B):
            act_ref[0:1, b * HW:(b + 1) * HW] = proj[b:b + 1, :]
    else:
        act_ref[0:1, :] = jnp.swapaxes(
            proj.reshape(B * bh, bw, 32, 32), 1, 2).reshape(1, L)

    # ---- grad[1]: Conv2d(1, dim, 3, padding=1) --------------------------------
    xd = conv3x3(act_ref[...], 1)                            # (CP, L), rows>=dim zero

    # ---- grad[2]: ResBlock(dim) = x + conv(relu(conv(x))) ---------------------
    r = jnp.maximum(conv3x3(xd, 2), 0.0)
    r = conv3x3(r, 3)
    out = xd + r

    for b in range(B):
        o_ref[b] = out[0:dim, b * HW:(b + 1) * HW].astype(o_ref.dtype)


# ----------------------------------------------------------------------------
# Host-side helpers + pallas_call wrapper
# ----------------------------------------------------------------------------
def _halo_masks(H, W, B, CP):
    """(9, CP, B*HW) f32 tap-validity masks, pre-broadcast to slab layout."""
    ii = np.arange(H)[:, None]
    jj = np.arange(W)[None, :]
    ms = []
    for dy in (-1, 0, 1):
        for dx in (-1, 0, 1):
            ok = ((ii + dy >= 0) & (ii + dy < H) &
                  (jj + dx >= 0) & (jj + dx < W))
            ms.append(ok.reshape(H * W))
    m = np.stack(ms).astype(np.float32)                      # (9, HW)
    m = np.tile(m, (1, B))                                   # (9, B*HW)
    m = np.broadcast_to(m[:, None, :], (9, CP, B * H * W))
    return jnp.asarray(np.ascontiguousarray(m))


def _w_slab(w_oihw, CP):
    """OIHW (Cout,Cin,3,3) -> (CP, 9*CP); col = t*CP + ci, zero-padded."""
    cout, cin, kh, kw = w_oihw.shape
    w = jnp.transpose(w_oihw, (0, 2, 3, 1)).reshape(cout, kh * kw, cin)
    w = jnp.pad(w, ((0, CP - cout), (0, 0), (0, CP - cin)))
    return w.reshape(CP, kh * kw * CP)


def _b_pad(b, CP):
    return jnp.pad(b.astype(jnp.float32), (0, CP - b.shape[0]))


def grad_block_pallas(x, y, Phi, PhiT, p, *, images_per_step=None,
                      matmul_dtype=jnp.float32):
    """x: (N, dim, H, W); y: (N, M, H/32, W/32); Phi: (M,1,32,32); PhiT: (1024,M,1,1)."""
    N, dim, H, W = x.shape
    M = Phi.shape[0]
    assert H % 32 == 0 and W % 32 == 0
    bh, bw = H // 32, W // 32
    P, HW = bh * bw, H * W
    CP = ((max(dim, 1) + 7) // 8) * 8                        # sublane-padded channels

    # Images per grid step (lane batching).  Bounded so the per-step working
    # set (tap slab + masks + activations + pipelined I/O) stays far under
    # v7x's 64 MiB VMEM.  On v7x pass images_per_step=N//2 so the "parallel"
    # grid axis splits across both TensorCores.
    per_img = (2 * 9 * CP + 6 * CP + 4 * dim) * HW * 4       # bytes, rough
    if images_per_step is None:
        budget = 24 * 1024 * 1024
        B = 1
        for cand in range(1, N + 1):
            if N % cand == 0 and cand * per_img <= budget:
                B = cand
    else:
        B = int(images_per_step)
    assert N % B == 0, (N, B)
    assert B * per_img < 40 * 1024 * 1024, "reduce images_per_step (VMEM)"
    G = N // B
    L = B * HW

    # ---- host-side packing (layout plumbing only, no math hoisted) -----------
    x_flat = x.reshape(N, dim, HW)                           # contiguous NCHW -> free
    y_g = jnp.transpose(y, (0, 2, 3, 1)).reshape(G, B * P, M).astype(jnp.float32)
    phiA = jnp.transpose(Phi.reshape(M, 32 * 32)).astype(jnp.float32)   # (1024, M)
    phiB = jnp.transpose(PhiT.reshape(32 * 32, M)).astype(jnp.float32)  # (M, 1024)
    masks = _halo_masks(H, W, B, CP)                         # (9, CP, L)

    w_all = jnp.stack([_w_slab(p['w0'], CP), _w_slab(p['w1'], CP),
                       _w_slab(p['wa'], CP), _w_slab(p['wb'], CP)]
                      ).astype(matmul_dtype)                 # (4, CP, 9*CP)
    b_all = jnp.stack([_b_pad(p['b0'], CP), _b_pad(p['b1'], CP),
                       _b_pad(p['ba'], CP), _b_pad(p['bb'], CP)])[:, :, None]

    kernel = functools.partial(_grad_block_kernel, H=H, W=W, B=B, dim=dim,
                               CP=CP, bh=bh, bw=bw, mm_dtype=matmul_dtype)

    out_flat = pl.pallas_call(
        kernel,
        out_shape=jax.ShapeDtypeStruct((N, dim, HW), x.dtype),
        grid=(G,),
        in_specs=[
            pl.BlockSpec((B, dim, HW), lambda g: (g, 0, 0)),      # x  (lane-dense)
            pl.BlockSpec((1, B * P, M), lambda g: (g, 0, 0)),     # y  (block-major)
            pl.BlockSpec((9, CP, L), lambda g: (0, 0, 0)),        # halo masks (resident)
            pl.BlockSpec((32 * 32, M), lambda g: (0, 0)),         # Phi^T      (resident)
            pl.BlockSpec((M, 32 * 32), lambda g: (0, 0)),         # PhiT^T     (resident)
            pl.BlockSpec((4, CP, 9 * CP), lambda g: (0, 0, 0)),   # packed conv weights
            pl.BlockSpec((4, CP, 1), lambda g: (0, 0, 0)),        # packed biases
        ],
        out_specs=pl.BlockSpec((B, dim, HW), lambda g: (g, 0, 0)),
        scratch_shapes=[
            pltpu.VMEM((9 * CP, L), jnp.float32),                 # aligned tap slab
            pltpu.VMEM((CP, L), jnp.float32),                     # padded activation stage
            pltpu.VMEM((B * P, 32 * 32), jnp.float32),            # measurement blocks
        ],
        compiler_params=pltpu.CompilerParams(
            dimension_semantics=("parallel",),
            vmem_limit_bytes=48 * 1024 * 1024),
    )(x_flat, y_g, masks, phiA, phiB, w_all, b_all)

    return out_flat.reshape(N, dim, H, W)


# ----------------------------------------------------------------------------
# Pure-JAX reference (mirrors the PyTorch module exactly)
# ----------------------------------------------------------------------------
def _conv_ref(x, w, b=None, stride=1, padding=0):
    out = jax.lax.conv_general_dilated(
        x, w, (stride, stride), [(padding, padding), (padding, padding)],
        dimension_numbers=('NCHW', 'OIHW', 'NCHW'))
    if b is not None:
        out = out + b[None, :, None, None]
    return out


def _pixel_shuffle(x, r):
    N, C, h, w = x.shape
    Cout = C // (r * r)
    x = x.reshape(N, Cout, r, r, h, w)
    x = x.transpose(0, 1, 4, 2, 5, 3)
    return x.reshape(N, Cout, h * r, w * r)


def grad_block_reference(x, y, Phi, PhiT, p):
    x_pixel = _conv_ref(x, p['w0'], p['b0'], padding=1)
    Phix = _conv_ref(x_pixel, Phi, None, stride=32, padding=0)
    delta = y - Phix
    x_pixel = _pixel_shuffle(_conv_ref(delta, PhiT, None, padding=0), 32)
    x_delta = _conv_ref(x_pixel, p['w1'], p['b1'], padding=1)
    r = _conv_ref(x_delta, p['wa'], p['ba'], padding=1)
    r = jnp.maximum(r, 0.0)
    r = _conv_ref(r, p['wb'], p['bb'], padding=1)
    return x_delta + r


# ----------------------------------------------------------------------------
# Main
# ----------------------------------------------------------------------------
if __name__ == "__main__":
    N, dim, H, W, M = 2, 4, 32, 32, 16   # H, W must be multiples of 32

    key = jax.random.PRNGKey(0)
    ks = jax.random.split(key, 12)
    nrm = lambda k, s, sc: (sc * jax.random.normal(k, s)).astype(jnp.float32)

    params = {
        'w0': nrm(ks[0], (1, dim, 3, 3), 0.1), 'b0': nrm(ks[1], (1,), 0.1),
        'w1': nrm(ks[2], (dim, 1, 3, 3), 0.1), 'b1': nrm(ks[3], (dim,), 0.1),
        'wa': nrm(ks[4], (dim, dim, 3, 3), 0.1), 'ba': nrm(ks[5], (dim,), 0.1),
        'wb': nrm(ks[6], (dim, dim, 3, 3), 0.1), 'bb': nrm(ks[7], (dim,), 0.1),
    }
    Phi = nrm(ks[8], (M, 1, 32, 32), 1.0 / 32.0)
    PhiT = nrm(ks[9], (32 * 32, M, 1, 1), 1.0 / 32.0)
    x = nrm(ks[10], (N, dim, H, W), 1.0)
    y = nrm(ks[11], (N, M, H // 32, W // 32), 1.0)

    ref = jax.block_until_ready(grad_block_reference(x, y, Phi, PhiT, params))

    # f32 path (exact semantics).
    fwd = jax.jit(grad_block_pallas)
    out = jax.block_until_ready(fwd(x, y, Phi, PhiT, params))
    assert out.shape == (N, dim, H, W), out.shape
    max_err = float(jnp.max(jnp.abs(out - ref)))
    assert jnp.allclose(out, ref, rtol=1e-3, atol=1e-3), max_err

    # bf16-at-the-dot path (v6e/v7x full-rate MXU); loose tolerance by design.
    fwd_bf16 = jax.jit(functools.partial(grad_block_pallas,
                                         matmul_dtype=jnp.bfloat16))
    out_bf16 = jax.block_until_ready(fwd_bf16(x, y, Phi, PhiT, params))
    bf16_err = float(jnp.max(jnp.abs(out_bf16 - ref)))
    assert bf16_err < 5e-2, bf16_err

    print("KERNEL_OK")
</pallas_src>

<mosaic_0001>
module attributes {stable_mosaic.version = 11 : i64} {
  func.func @_grad_block_kernel(%arg0: i32, %arg1: memref<2x4x1024xf32, #tpu.memory_space<vmem>>, %arg2: memref<1x2x16xf32, #tpu.memory_space<vmem>>, %arg3: memref<9x8x2048xf32, #tpu.memory_space<vmem>>, %arg4: memref<1024x16xf32, #tpu.memory_space<vmem>>, %arg5: memref<16x1024xf32, #tpu.memory_space<vmem>>, %arg6: memref<4x8x72xf32, #tpu.memory_space<vmem>>, %arg7: memref<4x8x1xf32, #tpu.memory_space<vmem>>, %arg8: memref<2x4x1024xf32, #tpu.memory_space<vmem>>, %arg9: memref<72x2048xf32, #tpu.memory_space<vmem>>, %arg10: memref<8x2048xf32, #tpu.memory_space<vmem>>, %arg11: memref<2x1024xf32, #tpu.memory_space<vmem>>) attributes {dimension_semantics = [#tpu.dimension_semantics<parallel>], iteration_bounds = array<i64: 1>, scalar_prefetch = 0 : i64, scratch_operands = 3 : i64, tpu.core_type = #tpu.core_type<tc>, window_params = [{transform_indices = @transform_0, window_bounds = array<i64: 2, 4, 1024>}, {transform_indices = @transform_1, window_bounds = array<i64: 1, 2, 16>}, {pipeline_mode = #tpu.pipeline_mode<synchronous>, transform_indices = @transform_2, window_bounds = array<i64: 9, 8, 2048>}, {pipeline_mode = #tpu.pipeline_mode<synchronous>, transform_indices = @transform_3, window_bounds = array<i64: 1024, 16>}, {pipeline_mode = #tpu.pipeline_mode<synchronous>, transform_indices = @transform_4, window_bounds = array<i64: 16, 1024>}, {pipeline_mode = #tpu.pipeline_mode<synchronous>, transform_indices = @transform_5, window_bounds = array<i64: 4, 8, 72>}, {pipeline_mode = #tpu.pipeline_mode<synchronous>, transform_indices = @transform_6, window_bounds = array<i64: 4, 8, 1>}, {transform_indices = @transform_7, window_bounds = array<i64: 2, 4, 1024>}]} {
    %cst = arith.constant 0.000000e+00 : f32
    %0 = vector.broadcast %cst : f32 to vector<8x2048xf32>
    %c0 = arith.constant 0 : index
    %c0_0 = arith.constant 0 : index
    %1 = vector.load %arg10[%c0, %c0_0] : memref<8x2048xf32, #tpu.memory_space<vmem>>, vector<8x2048xf32>
    tpu.vector_store %arg10[%c0, %c0_0], %0 {strides = array<i32>} : memref<8x2048xf32, #tpu.memory_space<vmem>>, vector<8x2048xf32>,
    %c0_1 = arith.constant 0 : index
    %c0_2 = arith.constant 0 : index
    %c0_3 = arith.constant 0 : index
    %2 = vector.load %arg1[%c0_1, %c0_2, %c0_3] : memref<2x4x1024xf32, #tpu.memory_space<vmem>>, vector<1x4x1024xf32>
    %3 = vector.shape_cast %2 : vector<1x4x1024xf32> to vector<4x1024xf32>
    %c0_4 = arith.constant 0 : index
    %c0_5 = arith.constant 0 : index
    %4 = vector.load %arg10[%c0_4, %c0_5] : memref<8x2048xf32, #tpu.memory_space<vmem>>, vector<4x1024xf32>
    tpu.vector_store %arg10[%c0_4, %c0_5], %3 {strides = array<i32>} : memref<8x2048xf32, #tpu.memory_space<vmem>>, vector<4x1024xf32>,
    %c1 = arith.constant 1 : index
    %c0_6 = arith.constant 0 : index
    %c0_7 = arith.constant 0 : index
    %5 = vector.load %arg1[%c1, %c0_6, %c0_7] : memref<2x4x1024xf32, #tpu.memory_space<vmem>>, vector<1x4x1024xf32>
    %6 = vector.shape_cast %5 : vector<1x4x1024xf32> to vector<4x1024xf32>
    %c0_8 = arith.constant 0 : index
    %c1024 = arith.constant 1024 : index
    %7 = vector.load %arg10[%c0_8, %c1024] : memref<8x2048xf32, #tpu.memory_space<vmem>>, vector<4x1024xf32>
    tpu.vector_store %arg10[%c0_8, %c1024], %6 {strides = array<i32>} : memref<8x2048xf32, #tpu.memory_space<vmem>>, vector<4x1024xf32>,
    %c0_9 = arith.constant 0 : index
    %c0_10 = arith.constant 0 : index
    %8 = vector.load %arg10[%c0_9, %c0_10] : memref<8x2048xf32, #tpu.memory_space<vmem>>, vector<8x2048xf32>
    %c33_i32 = arith.constant 33 : i32
    %9 = tpu.dynamic_rotate %8 by %c33_i32 dim 1 : vector<8x2048xf32>, i32 -> vector<8x2048xf32>
    %c0_11 = arith.constant 0 : index
    %c0_12 = arith.constant 0 : index
    %c0_13 = arith.constant 0 : index
    %10 = vector.load %arg3[%c0_11, %c0_12, %c0_13] : memref<9x8x2048xf32, #tpu.memory_space<vmem>>, vector<1x8x2048xf32>
    %11 = vector.shape_cast %10 : vector<1x8x2048xf32> to vector<8x2048xf32>
    %12 = arith.mulf %9, %11 : vector<8x2048xf32>
    %c0_14 = arith.constant 0 : index
    %c0_15 = arith.constant 0 : index
    %13 = vector.load %arg9[%c0_14, %c0_15] : memref<72x2048xf32, #tpu.memory_space<vmem>>, vector<8x2048xf32>
    tpu.vector_store %arg9[%c0_14, %c0_15], %12 {strides = array<i32>} : memref<72x2048xf32, #tpu.memory_space<vmem>>, vector<8x2048xf32>,
    %c32_i32 = arith.constant 32 : i32
    %14 = tpu.dynamic_rotate %8 by %c32_i32 dim 1 : vector<8x2048xf32>, i32 -> vector<8x2048xf32>
    %c1_16 = arith.constant 1 : index
    %c0_17 = arith.constant 0 : index
    %c0_18 = arith.constant 0 : index
    %15 = vector.load %arg3[%c1_16, %c0_17, %c0_18] : memref<9x8x2048xf32, #tpu.memory_space<vmem>>, vector<1x8x2048xf32>
    %16 = vector.shape_cast %15 : vector<1x8x2048xf32> to vector<8x2048xf32>
    %17 = arith.mulf %14, %16 : vector<8x2048xf32>
    %c8 = arith.constant 8 : index
    %c0_19 = arith.constant 0 : index
    %18 = vector.load %arg9[%c8, %c0_19] : memref<72x2048xf32, #tpu.memory_space<vmem>>, vector<8x2048xf32>
    tpu.vector_store %arg9[%c8, %c0_19], %17 {strides = array<i32>} : memref<72x2048xf32, #tpu.memory_space<vmem>>, vector<8x2048xf32>,
    %c31_i32 = arith.constant 31 : i32
    %19 = tpu.dynamic_rotate %8 by %c31_i32 dim 1 : vector<8x2048xf32>, i32 -> vector<8x2048xf32>
    %c2 = arith.constant 2 : index
    %c0_20 = arith.constant 0 : index
    %c0_21 = arith.constant 0 : index
    %20 = vector.load %arg3[%c2, %c0_20, %c0_21] : memref<9x8x2048xf32, #tpu.memory_space<vmem>>, vector<1x8x2048xf32>
    %21 = vector.shape_cast %20 : vector<1x8x2048xf32> to vector<8x2048xf32>
    %22 = arith.mulf %19, %21 : vector<8x2048xf32>
    %c16 = arith.constant 16 : index
    %c0_22 = arith.constant 0 : index
    %23 = vector.load %arg9[%c16, %c0_22] : memref<72x2048xf32, #tpu.memory_space<vmem>>, vector<8x2048xf32>
    tpu.vector_store %arg9[%c16, %c0_22], %22 {strides = array<i32>} : memref<72x2048xf32, #tpu.memory_space<vmem>>, vector<8x2048xf32>,
    %c1_i32 = arith.constant 1 : i32
    %24 = tpu.dynamic_rotate %8 by %c1_i32 dim 1 : vector<8x2048xf32>, i32 -> vector<8x2048xf32>
    %c3 = arith.constant 3 : index
    %c0_23 = arith.constant 0 : index
    %c0_24 = arith.constant 0 : index
    %25 = vector.load %arg3[%c3, %c0_23, %c0_24] : memref<9x8x2048xf32, #tpu.memory_space<vmem>>, vector<1x8x2048xf32>
    %26 = vector.shape_cast %25 : vector<1x8x2048xf32> to vector<8x2048xf32>
    %27 = arith.mulf %24, %26 : vector<8x2048xf32>
    %c24 = arith.constant 24 : index
    %c0_25 = arith.constant 0 : index
    %28 = vector.load %arg9[%c24, %c0_25] : memref<72x2048xf32, #tpu.memory_space<vmem>>, vector<8x2048xf32>
    tpu.vector_store %arg9[%c24, %c0_25], %27 {strides = array<i32>} : memref<72x2048xf32, #tpu.memory_space<vmem>>, vector<8x2048xf32>,
    %c32 = arith.constant 32 : index
    %c0_26 = arith.constant 0 : index
    %29 = vector.load %arg9[%c32, %c0_26] : memref<72x2048xf32, #tpu.memory_space<vmem>>, vector<8x2048xf32>
    tpu.vector_store %arg9[%c32, %c0_26], %8 {strides = array<i32>} : memref<72x2048xf32, #tpu.memory_space<vmem>>, vector<8x2048xf32>,
    %c2047_i32 = arith.constant 2047 : i32
    %30 = tpu.dynamic_rotate %8 by %c2047_i32 dim 1 : vector<8x2048xf32>, i32 -> vector<8x2048xf32>
    %c5 = arith.constant 5 : index
    %c0_27 = arith.constant 0 : index
    %c0_28 = arith.constant 0 : index
    %31 = vector.load %arg3[%c5, %c0_27, %c0_28] : memref<9x8x2048xf32, #tpu.memory_space<vmem>>, vector<1x8x2048xf32>
    %32 = vector.shape_cast %31 : vector<1x8x2048xf32> to vector<8x2048xf32>
    %33 = arith.mulf %30, %32 : vector<8x2048xf32>
    %c40 = arith.constant 40 : index
    %c0_29 = arith.constant 0 : index
    %34 = vector.load %arg9[%c40, %c0_29] : memref<72x2048xf32, #tpu.memory_space<vmem>>, vector<8x2048xf32>
    tpu.vector_store %arg9[%c40, %c0_29], %33 {strides = array<i32>} : memref<72x2048xf32, #tpu.memory_space<vmem>>, vector<8x2048xf32>,
    %c2017_i32 = arith.constant 2017 : i32
    %35 = tpu.dynamic_rotate %8 by %c2017_i32 dim 1 : vector<8x2048xf32>, i32 -> vector<8x2048xf32>
    %c6 = arith.constant 6 : index
    %c0_30 = arith.constant 0 : index
    %c0_31 = arith.constant 0 : index
    %36 = vector.load %arg3[%c6, %c0_30, %c0_31] : memref<9x8x2048xf32, #tpu.memory_space<vmem>>, vector<1x8x2048xf32>
    %37 = vector.shape_cast %36 : vector<1x8x2048xf32> to vector<8x2048xf32>
    %38 = arith.mulf %35, %37 : vector<8x2048xf32>
    %c48 = arith.constant 48 : index
    %c0_32 = arith.constant 0 : index
    %39 = vector.load %arg9[%c48, %c0_32] : memref<72x2048xf32, #tpu.memory_space<vmem>>, vector<8x2048xf32>
    tpu.vector_store %arg9[%c48, %c0_32], %38 {strides = array<i32>} : memref<72x2048xf32, #tpu.memory_space<vmem>>, vector<8x2048xf32>,
    %c2016_i32 = arith.constant 2016 : i32
    %40 = tpu.dynamic_rotate %8 by %c2016_i32 dim 1 : vector<8x2048xf32>, i32 -> vector<8x2048xf32>
    %c7 = arith.constant 7 : index
    %c0_33 = arith.constant 0 : index
    %c0_34 = arith.constant 0 : index
    %41 = vector.load %arg3[%c7, %c0_33, %c0_34] : memref<9x8x2048xf32, #tpu.memory_space<vmem>>, vector<1x8x2048xf32>
    %42 = vector.shape_cast %41 : vector<1x8x2048xf32> to vector<8x2048xf32>
    %43 = arith.mulf %40, %42 : vector<8x2048xf32>
    %c56 = arith.constant 56 : index
    %c0_35 = arith.constant 0 : index
    %44 = vector.load %arg9[%c56, %c0_35] : memref<72x2048xf32, #tpu.memory_space<vmem>>, vector<8x2048xf32>
    tpu.vector_store %arg9[%c56, %c0_35], %43 {strides = array<i32>} : memref<72x2048xf32, #tpu.memory_space<vmem>>, vector<8x2048xf32>,
    %c2015_i32 = arith.constant 2015 : i32
    %45 = tpu.dynamic_rotate %8 by %c2015_i32 dim 1 : vector<8x2048xf32>, i32 -> vector<8x2048xf32>
    %c8_36 = arith.constant 8 : index
    %c0_37 = arith.constant 0 : index
    %c0_38 = arith.constant 0 : index
    %46 = vector.load %arg3[%c8_36, %c0_37, %c0_38] : memref<9x8x2048xf32, #tpu.memory_space<vmem>>, vector<1x8x2048xf32>
    %47 = vector.shape_cast %46 : vector<1x8x2048xf32> to vector<8x2048xf32>
    %48 = arith.mulf %45, %47 : vector<8x2048xf32>
    %c64 = arith.constant 64 : index
    %c0_39 = arith.constant 0 : index
    %49 = vector.load %arg9[%c64, %c0_39] : memref<72x2048xf32, #tpu.memory_space<vmem>>, vector<8x2048xf32>
    tpu.vector_store %arg9[%c64, %c0_39], %48 {strides = array<i32>} : memref<72x2048xf32, #tpu.memory_space<vmem>>, vector<8x2048xf32>,
    %c0_40 = arith.constant 0 : index
    %c0_41 = arith.constant 0 : index
    %c0_42 = arith.constant 0 : index
    %50 = vector.load %arg6[%c0_40, %c0_41, %c0_42] : memref<4x8x72xf32, #tpu.memory_space<vmem>>, vector<1x8x72xf32>
    %51 = vector.shape_cast %50 : vector<1x8x72xf32> to vector<8x72xf32>
    %c0_43 = arith.constant 0 : index
    %c0_44 = arith.constant 0 : index
    %52 = vector.load %arg9[%c0_43, %c0_44] : memref<72x2048xf32, #tpu.memory_space<vmem>>, vector<72x2048xf32>
    %cst_45 = arith.constant dense<0.000000e+00> : vector<8x2048xf32>
    %53 = tpu.matmul %51, %52, %cst_45 {dimension_numbers = #tpu.dot_dimension_numbers<[1], [0], [0], [1], [0, 0, 1, 1], [], []>} : vector<8x72xf32>, vector<72x2048xf32>, vector<8x2048xf32> -> vector<8x2048xf32>
    %c0_46 = arith.constant 0 : index
    %c0_47 = arith.constant 0 : index
    %c0_48 = arith.constant 0 : index
    %54 = vector.load %arg7[%c0_46, %c0_47, %c0_48] : memref<4x8x1xf32, #tpu.memory_space<vmem>>, vector<1x8x1xf32>
    %55 = vector.shape_cast %54 : vector<1x8x1xf32> to vector<8x1xf32>
    %56 = vector.broadcast %55 : vector<8x1xf32> to vector<8x2048xf32>
    %57 = arith.addf %53, %56 : vector<8x2048xf32>
    %58 = vector.extract_strided_slice %57 {offsets = [0, 0], sizes = [1, 1024], strides = [1, 1]} : vector<8x2048xf32> to vector<1x1024xf32>
    %c0_49 = arith.constant 0 : index
    %c0_50 = arith.constant 0 : index
    %59 = vector.load %arg11[%c0_49, %c0_50] : memref<2x1024xf32, #tpu.memory_space<vmem>>, vector<1x1024xf32>
    tpu.vector_store %arg11[%c0_49, %c0_50], %58 {strides = array<i32>} : memref<2x1024xf32, #tpu.memory_space<vmem>>, vector<1x1024xf32>,
    %60 = vector.extract_strided_slice %57 {offsets = [0, 1024], sizes = [1, 1024], strides = [1, 1]} : vector<8x2048xf32> to vector<1x1024xf32>
    %c1_51 = arith.constant 1 : index
    %c0_52 = arith.constant 0 : index
    %61 = vector.load %arg11[%c1_51, %c0_52] : memref<2x1024xf32, #tpu.memory_space<vmem>>, vector<1x1024xf32>
    tpu.vector_store %arg11[%c1_51, %c0_52], %60 {strides = array<i32>} : memref<2x1024xf32, #tpu.memory_space<vmem>>, vector<1x1024xf32>,
    %c0_53 = arith.constant 0 : index
    %c0_54 = arith.constant 0 : index
    %62 = vector.load %arg11[%c0_53, %c0_54] : memref<2x1024xf32, #tpu.memory_space<vmem>>, vector<2x1024xf32>
    %c0_55 = arith.constant 0 : index
    %c0_56 = arith.constant 0 : index
    %63 = vector.load %arg4[%c0_55, %c0_56] : memref<1024x16xf32, #tpu.memory_space<vmem>>, vector<1024x16xf32>
    %cst_57 = arith.constant dense<0.000000e+00> : vector<2x16xf32>
    %64 = tpu.matmul %62, %63, %cst_57 {dimension_numbers = #tpu.dot_dimension_numbers<[1], [0], [0], [1], [0, 0, 1, 1], [], []>} : vector<2x1024xf32>, vector<1024x16xf32>, vector<2x16xf32> -> vector<2x16xf32>
    %c0_58 = arith.constant 0 : index
    %c0_59 = arith.constant 0 : index
    %c0_60 = arith.constant 0 : index
    %65 = vector.load %arg2[%c0_58, %c0_59, %c0_60] : memref<1x2x16xf32, #tpu.memory_space<vmem>>, vector<1x2x16xf32>
    %66 = vector.shape_cast %65 : vector<1x2x16xf32> to vector<2x16xf32>
    %67 = arith.subf %66, %64 : vector<2x16xf32>
    %c0_61 = arith.constant 0 : index
    %c0_62 = arith.constant 0 : index
    %68 = vector.load %arg5[%c0_61, %c0_62] : memref<16x1024xf32, #tpu.memory_space<vmem>>, vector<16x1024xf32>
    %cst_63 = arith.constant dense<0.000000e+00> : vector<2x1024xf32>
    %69 = tpu.matmul %67, %68, %cst_63 {dimension_numbers = #tpu.dot_dimension_numbers<[1], [0], [0], [1], [0, 0, 1, 1], [], []>} : vector<2x16xf32>, vector<16x1024xf32>, vector<2x1024xf32> -> vector<2x1024xf32>
    %cst_64 = arith.constant 0.000000e+00 : f32
    %70 = vector.broadcast %cst_64 : f32 to vector<8x2048xf32>
    %c0_65 = arith.constant 0 : index
    %c0_66 = arith.constant 0 : index
    %71 = vector.load %arg10[%c0_65, %c0_66] : memref<8x2048xf32, #tpu.memory_space<vmem>>, vector<8x2048xf32>
    tpu.vector_store %arg10[%c0_65, %c0_66], %70 {strides = array<i32>} : memref<8x2048xf32, #tpu.memory_space<vmem>>, vector<8x2048xf32>,
    %72 = vector.extract_strided_slice %69 {offsets = [0, 0], sizes = [1, 1024], strides = [1, 1]} : vector<2x1024xf32> to vector<1x1024xf32>
    %c0_67 = arith.constant 0 : index
    %c0_68 = arith.constant 0 : index
    %73 = vector.load %arg10[%c0_67, %c0_68] : memref<8x2048xf32, #tpu.memory_space<vmem>>, vector<1x1024xf32>
    tpu.vector_store %arg10[%c0_67, %c0_68], %72 {strides = array<i32>} : memref<8x2048xf32, #tpu.memory_space<vmem>>, vector<1x1024xf32>,
    %74 = vector.extract_strided_slice %69 {offsets = [1, 0], sizes = [1, 1024], strides = [1, 1]} : vector<2x1024xf32> to vector<1x1024xf32>
    %c0_69 = arith.constant 0 : index
    %c1024_70 = arith.constant 1024 : index
    %75 = vector.load %arg10[%c0_69, %c1024_70] : memref<8x2048xf32, #tpu.memory_space<vmem>>, vector<1x1024xf32>
    tpu.vector_store %arg10[%c0_69, %c1024_70], %74 {strides = array<i32>} : memref<8x2048xf32, #tpu.memory_space<vmem>>, vector<1x1024xf32>,
    %c0_71 = arith.constant 0 : index
    %c0_72 = arith.constant 0 : index
    %76 = vector.load %arg10[%c0_71, %c0_72] : memref<8x2048xf32, #tpu.memory_space<vmem>>, vector<8x2048xf32>
    %c33_i32_73 = arith.constant 33 : i32
    %77 = tpu.dynamic_rotate %76 by %c33_i32_73 dim 1 : vector<8x2048xf32>, i32 -> vector<8x2048xf32>
    %c0_74 = arith.constant 0 : index
    %c0_75 = arith.constant 0 : index
    %c0_76 = arith.constant 0 : index
    %78 = vector.load %arg3[%c0_74, %c0_75, %c0_76] : memref<9x8x2048xf32, #tpu.memory_space<vmem>>, vector<1x8x2048xf32>
    %79 = vector.shape_cast %78 : vector<1x8x2048xf32> to vector<8x2048xf32>
    %80 = arith.mulf %77, %79 : vector<8x2048xf32>
    %c0_77 = arith.constant 0 : index
    %c0_78 = arith.constant 0 : index
    %81 = vector.load %arg9[%c0_77, %c0_78] : memref<72x2048xf32, #tpu.memory_space<vmem>>, vector<8x2048xf32>
    tpu.vector_store %arg9[%c0_77, %c0_78], %80 {strides = array<i32>} : memref<72x2048xf32, #tpu.memory_space<vmem>>, vector<8x2048xf32>,
    %c32_i32_79 = arith.constant 32 : i32
    %82 = tpu.dynamic_rotate %76 by %c32_i32_79 dim 1 : vector<8x2048xf32>, i32 -> vector<8x2048xf32>
    %c1_80 = arith.constant 1 : index
    %c0_81 = arith.constant 0 : index
    %c0_82 = arith.constant 0 : index
    %83 = vector.load %arg3[%c1_80, %c0_81, %c0_82] : memref<9x8x2048xf32, #tpu.memory_space<vmem>>, vector<1x8x2048xf32>
    %84 = vector.shape_cast %83 : vector<1x8x2048xf32> to vector<8x2048xf32>
    %85 = arith.mulf %82, %84 : vector<8x2048xf32>
    %c8_83 = arith.constant 8 : index
    %c0_84 = arith.constant 0 : index
    %86 = vector.load %arg9[%c8_83, %c0_84] : memref<72x2048xf32, #tpu.memory_space<vmem>>, vector<8x2048xf32>
    tpu.vector_store %arg9[%c8_83, %c0_84], %85 {strides = array<i32>} : memref<72x2048xf32, #tpu.memory_space<vmem>>, vector<8x2048xf32>,
    %c31_i32_85 = arith.constant 31 : i32
    %87 = tpu.dynamic_rotate %76 by %c31_i32_85 dim 1 : vector<8x2048xf32>, i32 -> vector<8x2048xf32>
    %c2_86 = arith.constant 2 : index
    %c0_87 = arith.constant 0 : index
    %c0_88 = arith.constant 0 : index
    %88 = vector.load %arg3[%c2_86, %c0_87, %c0_88] : memref<9x8x2048xf32, #tpu.memory_space<vmem>>, vector<1x8x2048xf32>
    %89 = vector.shape_cast %88 : vector<1x8x2048xf32> to vector<8x2048xf32>
    %90 = arith.mulf %87, %89 : vector<8x2048xf32>
    %c16_89 = arith.constant 16 : index
    %c0_90 = arith.constant 0 : index
    %91 = vector.load %arg9[%c16_89, %c0_90] : memref<72x2048xf32, #tpu.memory_space<vmem>>, vector<8x2048xf32>
    tpu.vector_store %arg9[%c16_89, %c0_90], %90 {strides = array<i32>} : memref<72x2048xf32, #tpu.memory_space<vmem>>, vector<8x2048xf32>,
    %c1_i32_91 = arith.constant 1 : i32
    %92 = tpu.dynamic_rotate %76 by %c1_i32_91 dim 1 : vector<8x2048xf32>, i32 -> vector<8x2048xf32>
    %c3_92 = arith.constant 3 : index
    %c0_93 = arith.constant 0 : index
    %c0_94 = arith.constant 0 : index
    %93 = vector.load %arg3[%c3_92, %c0_93, %c0_94] : memref<9x8x2048xf32, #tpu.memory_space<vmem>>, vector<1x8x2048xf32>
    %94 = vector.shape_cast %93 : vector<1x8x2048xf32> to vector<8x2048xf32>
    %95 = arith.mulf %92, %94 : vector<8x2048xf32>
    %c24_95 = arith.constant 24 : index
    %c0_96 = arith.constant 0 : index
    %96 = vector.load %arg9[%c24_95, %c0_96] : memref<72x2048xf32, #tpu.memory_space<vmem>>, vector<8x2048xf32>
    tpu.vector_store %arg9[%c24_95, %c0_96], %95 {strides = array<i32>} : memref<72x2048xf32, #tpu.memory_space<vmem>>, vector<8x2048xf32>,
    %c32_97 = arith.constant 32 : index
    %c0_98 = arith.constant 0 : index
    %97 = vector.load %arg9[%c32_97, %c0_98] : memref<72x2048xf32, #tpu.memory_space<vmem>>, vector<8x2048xf32>
    tpu.vector_store %arg9[%c32_97, %c0_98], %76 {strides = array<i32>} : memref<72x2048xf32, #tpu.memory_space<vmem>>, vector<8x2048xf32>,
    %c2047_i32_99 = arith.constant 2047 : i32
    %98 = tpu.dynamic_rotate %76 by %c2047_i32_99 dim 1 : vector<8x2048xf32>, i32 -> vector<8x2048xf32>
    %c5_100 = arith.constant 5 : index
    %c0_101 = arith.constant 0 : index
    %c0_102 = arith.constant 0 : index
    %99 = vector.load %arg3[%c5_100, %c0_101, %c0_102] : memref<9x8x2048xf32, #tpu.memory_space<vmem>>, vector<1x8x2048xf32>
    %100 = vector.shape_cast %99 : vector<1x8x2048xf32> to vector<8x2048xf32>
    %101 = arith.mulf %98, %100 : vector<8x2048xf32>
    %c40_103 = arith.constant 40 : index
    %c0_104 = arith.constant 0 : index
    %102 = vector.load %arg9[%c40_103, %c0_104] : memref<72x2048xf32, #tpu.memory_space<vmem>>, vector<8x2048xf32>
    tpu.vector_store %arg9[%c40_103, %c0_104], %101 {strides = array<i32>} : memref<72x2048xf32, #tpu.memory_space<vmem>>, vector<8x2048xf32>,
    %c2017_i32_105 = arith.constant 2017 : i32
    %103 = tpu.dynamic_rotate %76 by %c2017_i32_105 dim 1 : vector<8x2048xf32>, i32 -> vector<8x2048xf32>
    %c6_106 = arith.constant 6 : index
    %c0_107 = arith.constant 0 : index
    %c0_108 = arith.constant 0 : index
    %104 = vector.load %arg3[%c6_106, %c0_107, %c0_108] : memref<9x8x2048xf32, #tpu.memory_space<vmem>>, vector<1x8x2048xf32>
    %105 = vector.shape_cast %104 : vector<1x8x2048xf32> to vector<8x2048xf32>
    %106 = arith.mulf %103, %105 : vector<8x2048xf32>
    %c48_109 = arith.constant 48 : index
    %c0_110 = arith.constant 0 : index
    %107 = vector.load %arg9[%c48_109, %c0_110] : memref<72x2048xf32, #tpu.memory_space<vmem>>, vector<8x2048xf32>
    tpu.vector_store %arg9[%c48_109, %c0_110], %106 {strides = array<i32>} : memref<72x2048xf32, #tpu.memory_space<vmem>>, vector<8x2048xf32>,
    %c2016_i32_111 = arith.constant 2016 : i32
    %108 = tpu.dynamic_rotate %76 by %c2016_i32_111 dim 1 : vector<8x2048xf32>, i32 -> vector<8x2048xf32>
    %c7_112 = arith.constant 7 : index
    %c0_113 = arith.constant 0 : index
    %c0_114 = arith.constant 0 : index
    %109 = vector.load %arg3[%c7_112, %c0_113, %c0_114] : memref<9x8x2048xf32, #tpu.memory_space<vmem>>, vector<1x8x2048xf32>
    %110 = vector.shape_cast %109 : vector<1x8x2048xf32> to vector<8x2048xf32>
    %111 = arith.mulf %108, %110 : vector<8x2048xf32>
    %c56_115 = arith.constant 56 : index
    %c0_116 = arith.constant 0 : index
    %112 = vector.load %arg9[%c56_115, %c0_116] : memref<72x2048xf32, #tpu.memory_space<vmem>>, vector<8x2048xf32>
    tpu.vector_store %arg9[%c56_115, %c0_116], %111 {strides = array<i32>} : memref<72x2048xf32, #tpu.memory_space<vmem>>, vector<8x2048xf32>,
    %c2015_i32_117 = arith.constant 2015 : i32
    %113 = tpu.dynamic_rotate %76 by %c2015_i32_117 dim 1 : vector<8x2048xf32>, i32 -> vector<8x2048xf32>
    %c8_118 = arith.constant 8 : index
    %c0_119 = arith.constant 0 : index
    %c0_120 = arith.constant 0 : index
    %114 = vector.load %arg3[%c8_118, %c0_119, %c0_120] : memref<9x8x2048xf32, #tpu.memory_space<vmem>>, vector<1x8x2048xf32>
    %115 = vector.shape_cast %114 : vector<1x8x2048xf32> to vector<8x2048xf32>
    %116 = arith.mulf %113, %115 : vector<8x2048xf32>
    %c64_121 = arith.constant 64 : index
    %c0_122 = arith.constant 0 : index
    %117 = vector.load %arg9[%c64_121, %c0_122] : memref<72x2048xf32, #tpu.memory_space<vmem>>, vector<8x2048xf32>
    tpu.vector_store %arg9[%c64_121, %c0_122], %116 {strides = array<i32>} : memref<72x2048xf32, #tpu.memory_space<vmem>>, vector<8x2048xf32>,
    %c1_123 = arith.constant 1 : index
    %c0_124 = arith.constant 0 : index
    %c0_125 = arith.constant 0 : index
    %118 = vector.load %arg6[%c1_123, %c0_124, %c0_125] : memref<4x8x72xf32, #tpu.memory_space<vmem>>, vector<1x8x72xf32>
    %119 = vector.shape_cast %118 : vector<1x8x72xf32> to vector<8x72xf32>
    %c0_126 = arith.constant 0 : index
    %c0_127 = arith.constant 0 : index
    %120 = vector.load %arg9[%c0_126, %c0_127] : memref<72x2048xf32, #tpu.memory_space<vmem>>, vector<72x2048xf32>
    %cst_128 = arith.constant dense<0.000000e+00> : vector<8x2048xf32>
    %121 = tpu.matmul %119, %120, %cst_128 {dimension_numbers = #tpu.dot_dimension_numbers<[1], [0], [0], [1], [0, 0, 1, 1], [], []>} : vector<8x72xf32>, vector<72x2048xf32>, vector<8x2048xf32> -> vector<8x2048xf32>
    %c1_129 = arith.constant 1 : index
    %c0_130 = arith.constant 0 : index
    %c0_131 = arith.constant 0 : index
    %122 = vector.load %arg7[%c1_129, %c0_130, %c0_131] : memref<4x8x1xf32, #tpu.memory_space<vmem>>, vector<1x8x1xf32>
    %123 = vector.shape_cast %122 : vector<1x8x1xf32> to vector<8x1xf32>
    %124 = vector.broadcast %123 : vector<8x1xf32> to vector<8x2048xf32>
    %125 = arith.addf %121, %124 : vector<8x2048xf32>
    %c33_i32_132 = arith.constant 33 : i32
    %126 = tpu.dynamic_rotate %125 by %c33_i32_132 dim 1 : vector<8x2048xf32>, i32 -> vector<8x2048xf32>
    %c0_133 = arith.constant 0 : index
    %c0_134 = arith.constant 0 : index
    %c0_135 = arith.constant 0 : index
    %127 = vector.load %arg3[%c0_133, %c0_134, %c0_135] : memref<9x8x2048xf32, #tpu.memory_space<vmem>>, vector<1x8x2048xf32>
    %128 = vector.shape_cast %127 : vector<1x8x2048xf32> to vector<8x2048xf32>
    %129 = arith.mulf %126, %128 : vector<8x2048xf32>
    %c0_136 = arith.constant 0 : index
    %c0_137 = arith.constant 0 : index
    %130 = vector.load %arg9[%c0_136, %c0_137] : memref<72x2048xf32, #tpu.memory_space<vmem>>, vector<8x2048xf32>
    tpu.vector_store %arg9[%c0_136, %c0_137], %129 {strides = array<i32>} : memref<72x2048xf32, #tpu.memory_space<vmem>>, vector<8x2048xf32>,
    %c32_i32_138 = arith.constant 32 : i32
    %131 = tpu.dynamic_rotate %125 by %c32_i32_138 dim 1 : vector<8x2048xf32>, i32 -> vector<8x2048xf32>
    %c1_139 = arith.constant 1 : index
    %c0_140 = arith.constant 0 : index
    %c0_141 = arith.constant 0 : index
    %132 = vector.load %arg3[%c1_139, %c0_140, %c0_141] : memref<9x8x2048xf32, #tpu.memory_space<vmem>>, vector<1x8x2048xf32>
    %133 = vector.shape_cast %132 : vector<1x8x2048xf32> to vector<8x2048xf32>
    %134 = arith.mulf %131, %133 : vector<8x2048xf32>
    %c8_142 = arith.constant 8 : index
    %c0_143 = arith.constant 0 : index
    %135 = vector.load %arg9[%c8_142, %c0_143] : memref<72x2048xf32, #tpu.memory_space<vmem>>, vector<8x2048xf32>
    tpu.vector_store %arg9[%c8_142, %c0_143], %134 {strides = array<i32>} : memref<72x2048xf32, #tpu.memory_space<vmem>>, vector<8x2048xf32>,
    %c31_i32_144 = arith.constant 31 : i32
    %136 = tpu.dynamic_rotate %125 by %c31_i32_144 dim 1 : vector<8x2048xf32>, i32 -> vector<8x2048xf32>
    %c2_145 = arith.constant 2 : index
    %c0_146 = arith.constant 0 : index
    %c0_147 = arith.constant 0 : index
    %137 = vector.load %arg3[%c2_145, %c0_146, %c0_147] : memref<9x8x2048xf32, #tpu.memory_space<vmem>>, vector<1x8x2048xf32>
    %138 = vector.shape_cast %137 : vector<1x8x2048xf32> to vector<8x2048xf32>
    %139 = arith.mulf %136, %138 : vector<8x2048xf32>
    %c16_148 = arith.constant 16 : index
    %c0_149 = arith.constant 0 : index
    %140 = vector.load %arg9[%c16_148, %c0_149] : memref<72x2048xf32, #tpu.memory_space<vmem>>, vector<8x2048xf32>
    tpu.vector_store %arg9[%c16_148, %c0_149], %139 {strides = array<i32>} : memref<72x2048xf32, #tpu.memory_space<vmem>>, vector<8x2048xf32>,
    %c1_i32_150 = arith.constant 1 : i32
    %141 = tpu.dynamic_rotate %125 by %c1_i32_150 dim 1 : vector<8x2048xf32>, i32 -> vector<8x2048xf32>
    %c3_151 = arith.constant 3 : index
    %c0_152 = arith.constant 0 : index
    %c0_153 = arith.constant 0 : index
    %142 = vector.load %arg3[%c3_151, %c0_152, %c0_153] : memref<9x8x2048xf32, #tpu.memory_space<vmem>>, vector<1x8x2048xf32>
    %143 = vector.shape_cast %142 : vector<1x8x2048xf32> to vector<8x2048xf32>
    %144 = arith.mulf %141, %143 : vector<8x2048xf32>
    %c24_154 = arith.constant 24 : index
    %c0_155 = arith.constant 0 : index
    %145 = vector.load %arg9[%c24_154, %c0_155] : memref<72x2048xf32, #tpu.memory_space<vmem>>, vector<8x2048xf32>
    tpu.vector_store %arg9[%c24_154, %c0_155], %144 {strides = array<i32>} : memref<72x2048xf32, #tpu.memory_space<vmem>>, vector<8x2048xf32>,
    %c32_156 = arith.constant 32 : index
    %c0_157 = arith.constant 0 : index
    %146 = vector.load %arg9[%c32_156, %c0_157] : memref<72x2048xf32, #tpu.memory_space<vmem>>, vector<8x2048xf32>
    tpu.vector_store %arg9[%c32_156, %c0_157], %125 {strides = array<i32>} : memref<72x2048xf32, #tpu.memory_space<vmem>>, vector<8x2048xf32>,
    %c2047_i32_158 = arith.constant 2047 : i32
    %147 = tpu.dynamic_rotate %125 by %c2047_i32_158 dim 1 : vector<8x2048xf32>, i32 -> vector<8x2048xf32>
    %c5_159 = arith.constant 5 : index
    %c0_160 = arith.constant 0 : index
    %c0_161 = arith.constant 0 : index
    %148 = vector.load %arg3[%c5_159, %c0_160, %c0_161] : memref<9x8x2048xf32, #tpu.memory_space<vmem>>, vector<1x8x2048xf32>
    %149 = vector.shape_cast %148 : vector<1x8x2048xf32> to vector<8x2048xf32>
    %150 = arith.mulf %147, %149 : vector<8x2048xf32>
    %c40_162 = arith.constant 40 : index
    %c0_163 = arith.constant 0 : index
    %151 = vector.load %arg9[%c40_162, %c0_163] : memref<72x2048xf32, #tpu.memory_space<vmem>>, vector<8x2048xf32>
    tpu.vector_store %arg9[%c40_162, %c0_163], %150 {strides = array<i32>} : memref<72x2048xf32, #tpu.memory_space<vmem>>, vector<8x2048xf32>,
    %c2017_i32_164 = arith.constant 2017 : i32
    %152 = tpu.dynamic_rotate %125 by %c2017_i32_164 dim 1 : vector<8x2048xf32>, i32 -> vector<8x2048xf32>
    %c6_165 = arith.constant 6 : index
    %c0_166 = arith.constant 0 : index
    %c0_167 = arith.constant 0 : index
    %153 = vector.load %arg3[%c6_165, %c0_166, %c0_167] : memref<9x8x2048xf32, #tpu.memory_space<vmem>>, vector<1x8x2048xf32>
    %154 = vector.shape_cast %153 : vector<1x8x2048xf32> to vector<8x2048xf32>
    %155 = arith.mulf %152, %154 : vector<8x2048xf32>
    %c48_168 = arith.constant 48 : index
    %c0_169 = arith.constant 0 : index
    %156 = vector.load %arg9[%c48_168, %c0_169] : memref<72x2048xf32, #tpu.memory_space<vmem>>, vector<8x2048xf32>
    tpu.vector_store %arg9[%c48_168, %c0_169], %155 {strides = array<i32>} : memref<72x2048xf32, #tpu.memory_space<vmem>>, vector<8x2048xf32>,
    %c2016_i32_170 = arith.constant 2016 : i32
    %157 = tpu.dynamic_rotate %125 by %c2016_i32_170 dim 1 : vector<8x2048xf32>, i32 -> vector<8x2048xf32>
    %c7_171 = arith.constant 7 : index
    %c0_172 = arith.constant 0 : index
    %c0_173 = arith.constant 0 : index
    %158 = vector.load %arg3[%c7_171, %c0_172, %c0_173] : memref<9x8x2048xf32, #tpu.memory_space<vmem>>, vector<1x8x2048xf32>
    %159 = vector.shape_cast %158 : vector<1x8x2048xf32> to vector<8x2048xf32>
    %160 = arith.mulf %157, %159 : vector<8x2048xf32>
    %c56_174 = arith.constant 56 : index
    %c0_175 = arith.constant 0 : index
    %161 = vector.load %arg9[%c56_174, %c0_175] : memref<72x2048xf32, #tpu.memory_space<vmem>>, vector<8x2048xf32>
    tpu.vector_store %arg9[%c56_174, %c0_175], %160 {strides = array<i32>} : memref<72x2048xf32, #tpu.memory_space<vmem>>, vector<8x2048xf32>,
    %c2015_i32_176 = arith.constant 2015 : i32
    %162 = tpu.dynamic_rotate %125 by %c2015_i32_176 dim 1 : vector<8x2048xf32>, i32 -> vector<8x2048xf32>
    %c8_177 = arith.constant 8 : index
    %c0_178 = arith.constant 0 : index
    %c0_179 = arith.constant 0 : index
    %163 = vector.load %arg3[%c8_177, %c0_178, %c0_179] : memref<9x8x2048xf32, #tpu.memory_space<vmem>>, vector<1x8x2048xf32>
    %164 = vector.shape_cast %163 : vector<1x8x2048xf32> to vector<8x2048xf32>
    %165 = arith.mulf %162, %164 : vector<8x2048xf32>
    %c64_180 = arith.constant 64 : index
    %c0_181 = arith.constant 0 : index
    %166 = vector.load %arg9[%c64_180, %c0_181] : memref<72x2048xf32, #tpu.memory_space<vmem>>, vector<8x2048xf32>
    tpu.vector_store %arg9[%c64_180, %c0_181], %165 {strides = array<i32>} : memref<72x2048xf32, #tpu.memory_space<vmem>>, vector<8x2048xf32>,
    %c2_182 = arith.constant 2 : index
    %c0_183 = arith.constant 0 : index
    %c0_184 = arith.constant 0 : index
    %167 = vector.load %arg6[%c2_182, %c0_183, %c0_184] : memref<4x8x72xf32, #tpu.memory_space<vmem>>, vector<1x8x72xf32>
    %168 = vector.shape_cast %167 : vector<1x8x72xf32> to vector<8x72xf32>
    %c0_185 = arith.constant 0 : index
    %c0_186 = arith.constant 0 : index
    %169 = vector.load %arg9[%c0_185, %c0_186] : memref<72x2048xf32, #tpu.memory_space<vmem>>, vector<72x2048xf32>
    %cst_187 = arith.constant dense<0.000000e+00> : vector<8x2048xf32>
    %170 = tpu.matmul %168, %169, %cst_187 {dimension_numbers = #tpu.dot_dimension_numbers<[1], [0], [0], [1], [0, 0, 1, 1], [], []>} : vector<8x72xf32>, vector<72x2048xf32>, vector<8x2048xf32> -> vector<8x2048xf32>
    %c2_188 = arith.constant 2 : index
    %c0_189 = arith.constant 0 : index
    %c0_190 = arith.constant 0 : index
    %171 = vector.load %arg7[%c2_188, %c0_189, %c0_190] : memref<4x8x1xf32, #tpu.memory_space<vmem>>, vector<1x8x1xf32>
    %172 = vector.shape_cast %171 : vector<1x8x1xf32> to vector<8x1xf32>
    %173 = vector.broadcast %172 : vector<8x1xf32> to vector<8x2048xf32>
    %174 = arith.addf %170, %173 : vector<8x2048xf32>
    %cst_191 = arith.constant 0.000000e+00 : f32
    %175 = vector.broadcast %cst_191 : f32 to vector<8x2048xf32>
    %176 = arith.maximumf %174, %175 : vector<8x2048xf32>
    %c33_i32_192 = arith.constant 33 : i32
    %177 = tpu.dynamic_rotate %176 by %c33_i32_192 dim 1 : vector<8x2048xf32>, i32 -> vector<8x2048xf32>
    %c0_193 = arith.constant 0 : index
    %c0_194 = arith.constant 0 : index
    %c0_195 = arith.constant 0 : index
    %178 = vector.load %arg3[%c0_193, %c0_194, %c0_195] : memref<9x8x2048xf32, #tpu.memory_space<vmem>>, vector<1x8x2048xf32>
    %179 = vector.shape_cast %178 : vector<1x8x2048xf32> to vector<8x2048xf32>
    %180 = arith.mulf %177, %179 : vector<8x2048xf32>
    %c0_196 = arith.constant 0 : index
    %c0_197 = arith.constant 0 : index
    %181 = vector.load %arg9[%c0_196, %c0_197] : memref<72x2048xf32, #tpu.memory_space<vmem>>, vector<8x2048xf32>
    tpu.vector_store %arg9[%c0_196, %c0_197], %180 {strides = array<i32>} : memref<72x2048xf32, #tpu.memory_space<vmem>>, vector<8x2048xf32>,
    %c32_i32_198 = arith.constant 32 : i32
    %182 = tpu.dynamic_rotate %176 by %c32_i32_198 dim 1 : vector<8x2048xf32>, i32 -> vector<8x2048xf32>
    %c1_199 = arith.constant 1 : index
    %c0_200 = arith.constant 0 : index
    %c0_201 = arith.constant 0 : index
    %183 = vector.load %arg3[%c1_199, %c0_200, %c0_201] : memref<9x8x2048xf32, #tpu.memory_space<vmem>>, vector<1x8x2048xf32>
    %184 = vector.shape_cast %183 : vector<1x8x2048xf32> to vector<8x2048xf32>
    %185 = arith.mulf %182, %184 : vector<8x2048xf32>
    %c8_202 = arith.constant 8 : index
    %c0_203 = arith.constant 0 : index
    %186 = vector.load %arg9[%c8_202, %c0_203] : memref<72x2048xf32, #tpu.memory_space<vmem>>, vector<8x2048xf32>
    tpu.vector_store %arg9[%c8_202, %c0_203], %185 {strides = array<i32>} : memref<72x2048xf32, #tpu.memory_space<vmem>>, vector<8x2048xf32>,
    %c31_i32_204 = arith.constant 31 : i32
    %187 = tpu.dynamic_rotate %176 by %c31_i32_204 dim 1 : vector<8x2048xf32>, i32 -> vector<8x2048xf32>
    %c2_205 = arith.constant 2 : index
    %c0_206 = arith.constant 0 : index
    %c0_207 = arith.constant 0 : index
    %188 = vector.load %arg3[%c2_205, %c0_206, %c0_207] : memref<9x8x2048xf32, #tpu.memory_space<vmem>>, vector<1x8x2048xf32>
    %189 = vector.shape_cast %188 : vector<1x8x2048xf32> to vector<8x2048xf32>
    %190 = arith.mulf %187, %189 : vector<8x2048xf32>
    %c16_208 = arith.constant 16 : index
    %c0_209 = arith.constant 0 : index
    %191 = vector.load %arg9[%c16_208, %c0_209] : memref<72x2048xf32, #tpu.memory_space<vmem>>, vector<8x2048xf32>
    tpu.vector_store %arg9[%c16_208, %c0_209], %190 {strides = array<i32>} : memref<72x2048xf32, #tpu.memory_space<vmem>>, vector<8x2048xf32>,
    %c1_i32_210 = arith.constant 1 : i32
    %192 = tpu.dynamic_rotate %176 by %c1_i32_210 dim 1 : vector<8x2048xf32>, i32 -> vector<8x2048xf32>
    %c3_211 = arith.constant 3 : index
    %c0_212 = arith.constant 0 : index
    %c0_213 = arith.constant 0 : index
    %193 = vector.load %arg3[%c3_211, %c0_212, %c0_213] : memref<9x8x2048xf32, #tpu.memory_space<vmem>>, vector<1x8x2048xf32>
    %194 = vector.shape_cast %193 : vector<1x8x2048xf32> to vector<8x2048xf32>
    %195 = arith.mulf %192, %194 : vector<8x2048xf32>
    %c24_214 = arith.constant 24 : index
    %c0_215 = arith.constant 0 : index
    %196 = vector.load %arg9[%c24_214, %c0_215] : memref<72x2048xf32, #tpu.memory_space<vmem>>, vector<8x2048xf32>
    tpu.vector_store %arg9[%c24_214, %c0_215], %195 {strides = array<i32>} : memref<72x2048xf32, #tpu.memory_space<vmem>>, vector<8x2048xf32>,
    %c32_216 = arith.constant 32 : index
    %c0_217 = arith.constant 0 : index
    %197 = vector.load %arg9[%c32_216, %c0_217] : memref<72x2048xf32, #tpu.memory_space<vmem>>, vector<8x2048xf32>
    tpu.vector_store %arg9[%c32_216, %c0_217], %176 {strides = array<i32>} : memref<72x2048xf32, #tpu.memory_space<vmem>>, vector<8x2048xf32>,
    %c2047_i32_218 = arith.constant 2047 : i32
    %198 = tpu.dynamic_rotate %176 by %c2047_i32_218 dim 1 : vector<8x2048xf32>, i32 -> vector<8x2048xf32>
    %c5_219 = arith.constant 5 : index
    %c0_220 = arith.constant 0 : index
    %c0_221 = arith.constant 0 : index
    %199 = vector.load %arg3[%c5_219, %c0_220, %c0_221] : memref<9x8x2048xf32, #tpu.memory_space<vmem>>, vector<1x8x2048xf32>
    %200 = vector.shape_cast %199 : vector<1x8x2048xf32> to vector<8x2048xf32>
    %201 = arith.mulf %198, %200 : vector<8x2048xf32>
    %c40_222 = arith.constant 40 : index
    %c0_223 = arith.constant 0 : index
    %202 = vector.load %arg9[%c40_222, %c0_223] : memref<72x2048xf32, #tpu.memory_space<vmem>>, vector<8x2048xf32>
    tpu.vector_store %arg9[%c40_222, %c0_223], %201 {strides = array<i32>} : memref<72x2048xf32, #tpu.memory_space<vmem>>, vector<8x2048xf32>,
    %c2017_i32_224 = arith.constant 2017 : i32
    %203 = tpu.dynamic_rotate %176 by %c2017_i32_224 dim 1 : vector<8x2048xf32>, i32 -> vector<8x2048xf32>
    %c6_225 = arith.constant 6 : index
    %c0_226 = arith.constant 0 : index
    %c0_227 = arith.constant 0 : index
    %204 = vector.load %arg3[%c6_225, %c0_226, %c0_227] : memref<9x8x2048xf32, #tpu.memory_space<vmem>>, vector<1x8x2048xf32>
    %205 = vector.shape_cast %204 : vector<1x8x2048xf32> to vector<8x2048xf32>
    %206 = arith.mulf %203, %205 : vector<8x2048xf32>
    %c48_228 = arith.constant 48 : index
    %c0_229 = arith.constant 0 : index
    %207 = vector.load %arg9[%c48_228, %c0_229] : memref<72x2048xf32, #tpu.memory_space<vmem>>, vector<8x2048xf32>
    tpu.vector_store %arg9[%c48_228, %c0_229], %206 {strides = array<i32>} : memref<72x2048xf32, #tpu.memory_space<vmem>>, vector<8x2048xf32>,
    %c2016_i32_230 = arith.constant 2016 : i32
    %208 = tpu.dynamic_rotate %176 by %c2016_i32_230 dim 1 : vector<8x2048xf32>, i32 -> vector<8x2048xf32>
    %c7_231 = arith.constant 7 : index
    %c0_232 = arith.constant 0 : index
    %c0_233 = arith.constant 0 : index
    %209 = vector.load %arg3[%c7_231, %c0_232, %c0_233] : memref<9x8x2048xf32, #tpu.memory_space<vmem>>, vector<1x8x2048xf32>
    %210 = vector.shape_cast %209 : vector<1x8x2048xf32> to vector<8x2048xf32>
    %211 = arith.mulf %208, %210 : vector<8x2048xf32>
    %c56_234 = arith.constant 56 : index
    %c0_235 = arith.constant 0 : index
    %212 = vector.load %arg9[%c56_234, %c0_235] : memref<72x2048xf32, #tpu.memory_space<vmem>>, vector<8x2048xf32>
    tpu.vector_store %arg9[%c56_234, %c0_235], %211 {strides = array<i32>} : memref<72x2048xf32, #tpu.memory_space<vmem>>, vector<8x2048xf32>,
    %c2015_i32_236 = arith.constant 2015 : i32
    %213 = tpu.dynamic_rotate %176 by %c2015_i32_236 dim 1 : vector<8x2048xf32>, i32 -> vector<8x2048xf32>
    %c8_237 = arith.constant 8 : index
    %c0_238 = arith.constant 0 : index
    %c0_239 = arith.constant 0 : index
    %214 = vector.load %arg3[%c8_237, %c0_238, %c0_239] : memref<9x8x2048xf32, #tpu.memory_space<vmem>>, vector<1x8x2048xf32>
    %215 = vector.shape_cast %214 : vector<1x8x2048xf32> to vector<8x2048xf32>
    %216 = arith.mulf %213, %215 : vector<8x2048xf32>
    %c64_240 = arith.constant 64 : index
    %c0_241 = arith.constant 0 : index
    %217 = vector.load %arg9[%c64_240, %c0_241] : memref<72x2048xf32, #tpu.memory_space<vmem>>, vector<8x2048xf32>
    tpu.vector_store %arg9[%c64_240, %c0_241], %216 {strides = array<i32>} : memref<72x2048xf32, #tpu.memory_space<vmem>>, vector<8x2048xf32>,
    %c3_242 = arith.constant 3 : index
    %c0_243 = arith.constant 0 : index
    %c0_244 = arith.constant 0 : index
    %218 = vector.load %arg6[%c3_242, %c0_243, %c0_244] : memref<4x8x72xf32, #tpu.memory_space<vmem>>, vector<1x8x72xf32>
    %219 = vector.shape_cast %218 : vector<1x8x72xf32> to vector<8x72xf32>
    %c0_245 = arith.constant 0 : index
    %c0_246 = arith.constant 0 : index
    %220 = vector.load %arg9[%c0_245, %c0_246] : memref<72x2048xf32, #tpu.memory_space<vmem>>, vector<72x2048xf32>
    %cst_247 = arith.constant dense<0.000000e+00> : vector<8x2048xf32>
    %221 = tpu.matmul %219, %220, %cst_247 {dimension_numbers = #tpu.dot_dimension_numbers<[1], [0], [0], [1], [0, 0, 1, 1], [], []>} : vector<8x72xf32>, vector<72x2048xf32>, vector<8x2048xf32> -> vector<8x2048xf32>
    %c3_248 = arith.constant 3 : index
    %c0_249 = arith.constant 0 : index
    %c0_250 = arith.constant 0 : index
    %222 = vector.load %arg7[%c3_248, %c0_249, %c0_250] : memref<4x8x1xf32, #tpu.memory_space<vmem>>, vector<1x8x1xf32>
    %223 = vector.shape_cast %222 : vector<1x8x1xf32> to vector<8x1xf32>
    %224 = vector.broadcast %223 : vector<8x1xf32> to vector<8x2048xf32>
    %225 = arith.addf %221, %224 : vector<8x2048xf32>
    %226 = arith.addf %125, %225 : vector<8x2048xf32>
    %227 = vector.extract_strided_slice %226 {offsets = [0, 0], sizes = [4, 1024], strides = [1, 1]} : vector<8x2048xf32> to vector<4x1024xf32>
    %c0_251 = arith.constant 0 : index
    %c0_252 = arith.constant 0 : index
    %c0_253 = arith.constant 0 : index
    %228 = vector.load %arg8[%c0_251, %c0_252, %c0_253] : memref<2x4x1024xf32, #tpu.memory_space<vmem>>, vector<1x4x1024xf32>
    %229 = vector.shape_cast %228 : vector<1x4x1024xf32> to vector<4x1024xf32>
    %230 = vector.shape_cast %227 : vector<4x1024xf32> to vector<1x4x1024xf32>
    tpu.vector_store %arg8[%c0_251, %c0_252, %c0_253], %230 {strides = array<i32>} : memref<2x4x1024xf32, #tpu.memory_space<vmem>>, vector<1x4x1024xf32>,
    %231 = vector.extract_strided_slice %226 {offsets = [0, 1024], sizes = [4, 1024], strides = [1, 1]} : vector<8x2048xf32> to vector<4x1024xf32>
    %c1_254 = arith.constant 1 : index
    %c0_255 = arith.constant 0 : index
    %c0_256 = arith.constant 0 : index
    %232 = vector.load %arg8[%c1_254, %c0_255, %c0_256] : memref<2x4x1024xf32, #tpu.memory_space<vmem>>, vector<1x4x1024xf32>
    %233 = vector.shape_cast %232 : vector<1x4x1024xf32> to vector<4x1024xf32>
    %234 = vector.shape_cast %231 : vector<4x1024xf32> to vector<1x4x1024xf32>
    tpu.vector_store %arg8[%c1_254, %c0_255, %c0_256], %234 {strides = array<i32>} : memref<2x4x1024xf32, #tpu.memory_space<vmem>>, vector<1x4x1024xf32>,
    return
  }
  func.func @transform_0(%arg0: i32) -> (i32, i32, i32) {
    %c0_i32 = arith.constant 0 : i32
    %c0_i32_0 = arith.constant 0 : i32
    %c0_i32_1 = arith.constant 0 : i32
    return %arg0, %c0_i32, %c0_i32_0 : i32, i32, i32
  }
  func.func @transform_1(%arg0: i32) -> (i32, i32, i32) {
    %c0_i32 = arith.constant 0 : i32
    %c0_i32_0 = arith.constant 0 : i32
    %c0_i32_1 = arith.constant 0 : i32
    return %arg0, %c0_i32, %c0_i32_0 : i32, i32, i32
  }
  func.func @transform_2(%arg0: i32) -> (i32, i32, i32) {
    %c0_i32 = arith.constant 0 : i32
    %c0_i32_0 = arith.constant 0 : i32
    %c0_i32_1 = arith.constant 0 : i32
    %c0_i32_2 = arith.constant 0 : i32
    return %c0_i32, %c0_i32_0, %c0_i32_1 : i32, i32, i32
  }
  func.func @transform_3(%arg0: i32) -> (i32, i32) {
    %c0_i32 = arith.constant 0 : i32
    %c0_i32_0 = arith.constant 0 : i32
    %c0_i32_1 = arith.constant 0 : i32
    return %c0_i32, %c0_i32_0 : i32, i32
  }
  func.func @transform_4(%arg0: i32) -> (i32, i32) {
    %c0_i32 = arith.constant 0 : i32
    %c0_i32_0 = arith.constant 0 : i32
    %c0_i32_1 = arith.constant 0 : i32
    return %c0_i32, %c0_i32_0 : i32, i32
  }
  func.func @transform_5(%arg0: i32) -> (i32, i32, i32) {
    %c0_i32 = arith.constant 0 : i32
    %c0_i32_0 = arith.constant 0 : i32
    %c0_i32_1 = arith.constant 0 : i32
    %c0_i32_2 = arith.constant 0 : i32
    return %c0_i32, %c0_i32_0, %c0_i32_1 : i32, i32, i32
  }
  func.func @transform_6(%arg0: i32) -> (i32, i32, i32) {
    %c0_i32 = arith.constant 0 : i32
    %c0_i32_0 = arith.constant 0 : i32
    %c0_i32_1 = arith.constant 0 : i32
    %c0_i32_2 = arith.constant 0 : i32
    return %c0_i32, %c0_i32_0, %c0_i32_1 : i32, i32, i32
  }
  func.func @transform_7(%arg0: i32) -> (i32, i32, i32) {
    %c0_i32 = arith.constant 0 : i32
    %c0_i32_0 = arith.constant 0 : i32
    %c0_i32_1 = arith.constant 0 : i32
    return %arg0, %c0_i32, %c0_i32_0 : i32, i32, i32
  }
}

</mosaic_0001>

<llo_original>
// kernel: grad_block_pallas.1
$region0: #{grad_block_pallas.1}
  #allocation0 [shape = 'u32[]', space=smem, size = 0x4, offset = 0x4, fixed_abs, tag = 'smem constant byte address 0x4 - core index']
  #allocation1 [shape = 'u32[144,128]{1,0:T(1,128)}', space=vmem, size = 0x12000, scoped, tag = 'internal scratch']
  #allocation2 [shape = 'f32[72,2048]{1,0:T(8,128)}', space=vmem, size = 0x90000, scoped, tag = 'scratch operand']
  #allocation3 [shape = 'f32[8,2048]{1,0:T(8,128)}', space=vmem, size = 0x10000, scoped, tag = 'scratch operand']
  #allocation4 [shape = 'f32[2,1024]{1,0:T(2,128)}', space=vmem, size = 0x2000, scoped, tag = 'scratch operand']
  %s0 = inlined_call_operand.vmem [shape: f32[2,4,1024], index: 0, kind: input, shape index: {}]
  %s1 = inlined_call_operand.vmem [shape: f32[1,2,16], index: 1, kind: input, shape index: {}]
  %s2 = inlined_call_operand.vmem [shape: f32[9,8,2048], index: 2, kind: input, shape index: {}]
  %s3 = inlined_call_operand.vmem [shape: f32[1024,16], index: 3, kind: input, shape index: {}]
  %s4 = inlined_call_operand.vmem [shape: f32[16,1024], index: 4, kind: input, shape index: {}]
  %s5 = inlined_call_operand.vmem [shape: f32[4,8,72], index: 5, kind: input, shape index: {}]
  %s6 = inlined_call_operand.vmem [shape: f32[4,8,1], index: 6, kind: input, shape index: {}]
  %s7 = inlined_call_operand.vmem [shape: f32[2,4,1024], index: 7, kind: output, shape index: {}]
  %s8 = sld [smem:[#allocation0]]
  $region38: #{grad_block_pallas.1} parent=0
    _
  %s10 = ssub.s32 1, %s8
  %s11 = scalar_select 0, %s10, %s8
  // Predicated region
  $region2: #{grad_block_pallas.1} parent=0 // pred_check
    _
  $region3: #{grad_block_pallas.1} parent=0 // pred_check_branch
    %13 = sbr.rel (0) target = $region5
  $region4: #{grad_block_pallas.1} parent=0 // pred_region
    _
  $region5: #{grad_block_pallas.1} parent=0 // pred_fallthru
    _
  // Predicated region
  $region6: #{grad_block_pallas.1} parent=0 // pred_check
    _
  $region7: #{grad_block_pallas.1} parent=0 // pred_check_branch
    %15 = sbr.rel (0) target = $region9
  $region8: #{grad_block_pallas.1} parent=0 // pred_region
    _
  $region9: #{grad_block_pallas.1} parent=0 // pred_fallthru
    _
  // Predicated region
  $region10: #{grad_block_pallas.1} parent=0 // pred_check
    _
  $region11: #{grad_block_pallas.1} parent=0 // pred_check_branch
    %17 = sbr.rel (0) target = $region13
  $region12: #{grad_block_pallas.1} parent=0 // pred_region
    _
  $region13: #{grad_block_pallas.1} parent=0 // pred_fallthru
    _
  // Predicated region
  $region14: #{grad_block_pallas.1} parent=0 // pred_check
    _
  $region15: #{grad_block_pallas.1} parent=0 // pred_check_branch
    %19 = sbr.rel (0) target = $region17
  $region16: #{grad_block_pallas.1} parent=0 // pred_region
    _
  $region17: #{grad_block_pallas.1} parent=0 // pred_fallthru
    _
  // Predicated region
  $region18: #{grad_block_pallas.1} parent=0 // pred_check
    _
  $region19: #{grad_block_pallas.1} parent=0 // pred_check_branch
    %21 = sbr.rel (0) target = $region21
  $region20: #{grad_block_pallas.1} parent=0 // pred_region
    _
  $region21: #{grad_block_pallas.1} parent=0 // pred_fallthru
    _
  // Predicated region
  $region22: #{grad_block_pallas.1} parent=0 // pred_check
    _
  $region23: #{grad_block_pallas.1} parent=0 // pred_check_branch
    %23 = sbr.rel (0) target = $region25
  $region24: #{grad_block_pallas.1} parent=0 // pred_region
    _
  $region25: #{grad_block_pallas.1} parent=0 // pred_fallthru
    _
  // Predicated region
  $region26: #{grad_block_pallas.1} parent=0 // pred_check
    _
  $region27: #{grad_block_pallas.1} parent=0 // pred_check_branch
    %25 = sbr.rel (0) target = $region29
  $region28: #{grad_block_pallas.1} parent=0 // pred_region
    _
  $region29: #{grad_block_pallas.1} parent=0 // pred_fallthru
    _
  %26 = vst [vmem:[#allocation3] sm:$0xff] 0.0
  %27 = vst [vmem:[#allocation3 + $0x8] sm:$0xff] 0.0
  %28 = vst [vmem:[#allocation3 + $0x10] sm:$0xff] 0.0
  %29 = vst [vmem:[#allocation3 + $0x18] sm:$0xff] 0.0
  %30 = vst [vmem:[#allocation3 + $0x20] sm:$0xff] 0.0
  %31 = vst [vmem:[#allocation3 + $0x28] sm:$0xff] 0.0
  %32 = vst [vmem:[#allocation3 + $0x30] sm:$0xff] 0.0
  %33 = vst [vmem:[#allocation3 + $0x38] sm:$0xff] 0.0
  %34 = vst [vmem:[#allocation3 + $0x40] sm:$0xff] 0.0
  %35 = vst [vmem:[#allocation3 + $0x48] sm:$0xff] 0.0
  %36 = vst [vmem:[#allocation3 + $0x50] sm:$0xff] 0.0
  %37 = vst [vmem:[#allocation3 + $0x58] sm:$0xff] 0.0
  %38 = vst [vmem:[#allocation3 + $0x60] sm:$0xff] 0.0
  %39 = vst [vmem:[#allocation3 + $0x68] sm:$0xff] 0.0
  %40 = vst [vmem:[#allocation3 + $0x70] sm:$0xff] 0.0
  %41 = vst [vmem:[#allocation3 + $0x78] sm:$0xff] 0.0
  %v42 = vld [vmem:[%s0] sm:$0xff]
  %v43 = vld [vmem:[%s0 + $0x8] sm:$0xff]
  %v44 = vld [vmem:[%s0 + $0x10] sm:$0xff]
  %v45 = vld [vmem:[%s0 + $0x18] sm:$0xff]
  %v50 = vcombine.high %v42, %v42
  %v51 = vcombine.high %v43, %v43
  %v52 = vcombine.high %v44, %v44
  %v53 = vcombine.high %v45, %v45
  %58 = vst [vmem:[#allocation3] sm:$0xf] %v42
  %59 = vst [vmem:[#allocation3 + $0x8] sm:$0xf] %v50
  %60 = vst [vmem:[#allocation3 + $0x10] sm:$0xf] %v43
  %61 = vst [vmem:[#allocation3 + $0x18] sm:$0xf] %v51
  %62 = vst [vmem:[#allocation3 + $0x20] sm:$0xf] %v44
  %63 = vst [vmem:[#allocation3 + $0x28] sm:$0xf] %v52
  %64 = vst [vmem:[#allocation3 + $0x30] sm:$0xf] %v45
  %65 = vst [vmem:[#allocation3 + $0x38] sm:$0xf] %v53
  %s66 = scalar_lea.vmem %s0, 32
  %v67 = vld [vmem:[%s66] sm:$0xff]
  %v68 = vld [vmem:[%s66 + $0x8] sm:$0xff]
  %v69 = vld [vmem:[%s66 + $0x10] sm:$0xff]
  %v70 = vld [vmem:[%s66 + $0x18] sm:$0xff]
  %v75 = vcombine.high %v67, %v67
  %v76 = vcombine.high %v68, %v68
  %v77 = vcombine.high %v69, %v69
  %v78 = vcombine.high %v70, %v70
  %83 = vst [vmem:[#allocation3 + $0x40] sm:$0xf] %v67
  %84 = vst [vmem:[#allocation3 + $0x48] sm:$0xf] %v75
  %85 = vst [vmem:[#allocation3 + $0x50] sm:$0xf] %v68
  %86 = vst [vmem:[#allocation3 + $0x58] sm:$0xf] %v76
  %87 = vst [vmem:[#allocation3 + $0x60] sm:$0xf] %v69
  %88 = vst [vmem:[#allocation3 + $0x68] sm:$0xf] %v77
  %89 = vst [vmem:[#allocation3 + $0x70] sm:$0xf] %v70
  %90 = vst [vmem:[#allocation3 + $0x78] sm:$0xf] %v78
  %v91 = vld [vmem:[#allocation3] sm:$0xff]
  %v92 = vld [vmem:[#allocation3 + $0x8] sm:$0xff]
  %v93 = vld [vmem:[#allocation3 + $0x10] sm:$0xff]
  %v94 = vld [vmem:[#allocation3 + $0x18] sm:$0xff]
  %v95 = vld [vmem:[#allocation3 + $0x20] sm:$0xff]
  %v96 = vld [vmem:[#allocation3 + $0x28] sm:$0xff]
  %v97 = vld [vmem:[#allocation3 + $0x30] sm:$0xff]
  %v98 = vld [vmem:[#allocation3 + $0x38] sm:$0xff]
  %v99 = vld [vmem:[#allocation3 + $0x40] sm:$0xff]
  %v100 = vld [vmem:[#allocation3 + $0x48] sm:$0xff]
  %v101 = vld [vmem:[#allocation3 + $0x50] sm:$0xff]
  %v102 = vld [vmem:[#allocation3 + $0x58] sm:$0xff]
  %v103 = vld [vmem:[#allocation3 + $0x60] sm:$0xff]
  %v104 = vld [vmem:[#allocation3 + $0x68] sm:$0xff]
  %v105 = vld [vmem:[#allocation3 + $0x70] sm:$0xff]
  %v106 = vld [vmem:[#allocation3 + $0x78] sm:$0xff]
  %107 = vrot.lane.b32.xlu0 %v91, 33
  %v108 = vpop.permute.xlu0 %107
  %109 = vrot.lane.b32.xlu0 %v92, 33
  %v110 = vpop.permute.xlu0 %109
  %111 = vrot.lane.b32.xlu0 %v93, 33
  %v112 = vpop.permute.xlu0 %111
  %113 = vrot.lane.b32.xlu0 %v94, 33
  %v114 = vpop.permute.xlu0 %113
  %115 = vrot.lane.b32.xlu0 %v95, 33
  %v116 = vpop.permute.xlu0 %115
  %117 = vrot.lane.b32.xlu0 %v96, 33
  %v118 = vpop.permute.xlu0 %117
  %119 = vrot.lane.b32.xlu0 %v97, 33
  %v120 = vpop.permute.xlu0 %119
  %121 = vrot.lane.b32.xlu0 %v98, 33
  %v122 = vpop.permute.xlu0 %121
  %123 = vrot.lane.b32.xlu0 %v99, 33
  %v124 = vpop.permute.xlu0 %123
  %125 = vrot.lane.b32.xlu0 %v100, 33
  %v126 = vpop.permute.xlu0 %125
  %127 = vrot.lane.b32.xlu0 %v101, 33
  %v128 = vpop.permute.xlu0 %127
  %129 = vrot.lane.b32.xlu0 %v102, 33
  %v130 = vpop.permute.xlu0 %129
  %131 = vrot.lane.b32.xlu0 %v103, 33
  %v132 = vpop.permute.xlu0 %131
  %133 = vrot.lane.b32.xlu0 %v104, 33
  %v134 = vpop.permute.xlu0 %133
  %135 = vrot.lane.b32.xlu0 %v105, 33
  %v136 = vpop.permute.xlu0 %135
  %137 = vrot.lane.b32.xlu0 %v106, 33
  %v138 = vpop.permute.xlu0 %137
  %v139 = vlaneseq
  %v140 = vand.u32 %v139, 127
  %vm141 = vcmp.lt.s32.totalorder %v140, 33
  %v142 = vsel %vm141, %v136, %v138
  %v143 = vsel %vm141, %v134, %v136
  %v144 = vsel %vm141, %v132, %v134
  %v145 = vsel %vm141, %v130, %v132
  %v146 = vsel %vm141, %v128, %v130
  %v147 = vsel %vm141, %v126, %v128
  %v148 = vsel %vm141, %v124, %v126
  %v149 = vsel %vm141, %v122, %v124
  %v150 = vsel %vm141, %v120, %v122
  %v151 = vsel %vm141, %v118, %v120
  %v152 = vsel %vm141, %v116, %v118
  %v153 = vsel %vm141, %v114, %v116
  %v154 = vsel %vm141, %v112, %v114
  %v155 = vsel %vm141, %v110, %v112
  %v156 = vsel %vm141, %v108, %v110
  %v157 = vsel %vm141, %v138, %v108
  %v158 = vld [vmem:[%s2] sm:$0xff]
  %v159 = vld [vmem:[%s2 + $0x8] sm:$0xff]
  %v160 = vld [vmem:[%s2 + $0x10] sm:$0xff]
  %v161 = vld [vmem:[%s2 + $0x18] sm:$0xff]
  %v162 = vld [vmem:[%s2 + $0x20] sm:$0xff]
  %v163 = vld [vmem:[%s2 + $0x28] sm:$0xff]
  %v164 = vld [vmem:[%s2 + $0x30] sm:$0xff]
  %v165 = vld [vmem:[%s2 + $0x38] sm:$0xff]
  %v166 = vld [vmem:[%s2 + $0x40] sm:$0xff]
  %v167 = vld [vmem:[%s2 + $0x48] sm:$0xff]
  %v168 = vld [vmem:[%s2 + $0x50] sm:$0xff]
  %v169 = vld [vmem:[%s2 + $0x58] sm:$0xff]
  %v170 = vld [vmem:[%s2 + $0x60] sm:$0xff]
  %v171 = vld [vmem:[%s2 + $0x68] sm:$0xff]
  %v172 = vld [vmem:[%s2 + $0x70] sm:$0xff]
  %v173 = vld [vmem:[%s2 + $0x78] sm:$0xff]
  %v174 = vmul.f32 %v157, %v158
  %v175 = vmul.f32 %v156, %v159
  %v176 = vmul.f32 %v155, %v160
  %v177 = vmul.f32 %v154, %v161
  %v178 = vmul.f32 %v153, %v162
  %v179 = vmul.f32 %v152, %v163
  %v180 = vmul.f32 %v151, %v164
  %v181 = vmul.f32 %v150, %v165
  %v182 = vmul.f32 %v149, %v166
  %v183 = vmul.f32 %v148, %v167
  %v184 = vmul.f32 %v147, %v168
  %v185 = vmul.f32 %v146, %v169
  %v186 = vmul.f32 %v145, %v170
  %v187 = vmul.f32 %v144, %v171
  %v188 = vmul.f32 %v143, %v172
  %v189 = vmul.f32 %v142, %v173
  %190 = vst [vmem:[#allocation2] sm:$0xff] %v174
  %191 = vst [vmem:[#allocation2 + $0x8] sm:$0xff] %v175
  %192 = vst [vmem:[#allocation2 + $0x10] sm:$0xff] %v176
  %193 = vst [vmem:[#allocation2 + $0x18] sm:$0xff] %v177
  %194 = vst [vmem:[#allocation2 + $0x20] sm:$0xff] %v178
  %195 = vst [vmem:[#allocation2 + $0x28] sm:$0xff] %v179
  %196 = vst [vmem:[#allocation2 + $0x30] sm:$0xff] %v180
  %197 = vst [vmem:[#allocation2 + $0x38] sm:$0xff] %v181
  %198 = vst [vmem:[#allocation2 + $0x40] sm:$0xff] %v182
  %199 = vst [vmem:[#allocation2 + $0x48] sm:$0xff] %v183
  %200 = vst [vmem:[#allocation2 + $0x50] sm:$0xff] %v184
  %201 = vst [vmem:[#allocation2 + $0x58] sm:$0xff] %v185
  %202 = vst [vmem:[#allocation2 + $0x60] sm:$0xff] %v186
  %203 = vst [vmem:[#allocation2 + $0x68] sm:$0xff] %v187
  %204 = vst [vmem:[#allocation2 + $0x70] sm:$0xff] %v188
  %205 = vst [vmem:[#allocation2 + $0x78] sm:$0xff] %v189
  %206 = vrot.lane.b32.xlu0 %v91, 32
  %v207 = vpop.permute.xlu0 %206
  %208 = vrot.lane.b32.xlu0 %v92, 32
  %v209 = vpop.permute.xlu0 %208
  %210 = vrot.lane.b32.xlu0 %v93, 32
  %v211 = vpop.permute.xlu0 %210
  %212 = vrot.lane.b32.xlu0 %v94, 32
  %v213 = vpop.permute.xlu0 %212
  %214 = vrot.lane.b32.xlu0 %v95, 32
  %v215 = vpop.permute.xlu0 %214
  %216 = vrot.lane.b32.xlu0 %v96, 32
  %v217 = vpop.permute.xlu0 %216
  %218 = vrot.lane.b32.xlu0 %v97, 32
  %v219 = vpop.permute.xlu0 %218
  %220 = vrot.lane.b32.xlu0 %v98, 32
  %v221 = vpop.permute.xlu0 %220
  %222 = vrot.lane.b32.xlu0 %v99, 32
  %v223 = vpop.permute.xlu0 %222
  %224 = vrot.lane.b32.xlu0 %v100, 32
  %v225 = vpop.permute.xlu0 %224
  %226 = vrot.lane.b32.xlu0 %v101, 32
  %v227 = vpop.permute.xlu0 %226
  %228 = vrot.lane.b32.xlu0 %v102, 32
  %v229 = vpop.permute.xlu0 %228
  %230 = vrot.lane.b32.xlu0 %v103, 32
  %v231 = vpop.permute.xlu0 %230
  %232 = vrot.lane.b32.xlu0 %v104, 32
  %v233 = vpop.permute.xlu0 %232
  %234 = vrot.lane.b32.xlu0 %v105, 32
  %v235 = vpop.permute.xlu0 %234
  %236 = vrot.lane.b32.xlu0 %v106, 32
  %v237 = vpop.permute.xlu0 %236
  %vm238 = vcmp.lt.s32.totalorder %v140, 32
  %v239 = vsel %vm238, %v235, %v237
  %v240 = vsel %vm238, %v233, %v235
  %v241 = vsel %vm238, %v231, %v233
  %v242 = vsel %vm238, %v229, %v231
  %v243 = vsel %vm238, %v227, %v229
  %v244 = vsel %vm238, %v225, %v227
  %v245 = vsel %vm238, %v223, %v225
  %v246 = vsel %vm238, %v221, %v223
  %v247 = vsel %vm238, %v219, %v221
  %v248 = vsel %vm238, %v217, %v219
  %v249 = vsel %vm238, %v215, %v217
  %v250 = vsel %vm238, %v213, %v215
  %v251 = vsel %vm238, %v211, %v213
  %v252 = vsel %vm238, %v209, %v211
  %v253 = vsel %vm238, %v207, %v209
  %v254 = vsel %vm238, %v237, %v207
  %s255 = scalar_lea.vmem %s2, 128
  %v256 = vld [vmem:[%s255] sm:$0xff]
  %v257 = vld [vmem:[%s255 + $0x8] sm:$0xff]
  %v258 = vld [vmem:[%s255 + $0x10] sm:$0xff]
  %v259 = vld [vmem:[%s255 + $0x18] sm:$0xff]
  %v260 = vld [vmem:[%s255 + $0x20] sm:$0xff]
  %v261 = vld [vmem:[%s255 + $0x28] sm:$0xff]
  %v262 = vld [vmem:[%s255 + $0x30] sm:$0xff]
  %v263 = vld [vmem:[%s255 + $0x38] sm:$0xff]
  %v264 = vld [vmem:[%s255 + $0x40] sm:$0xff]
  %v265 = vld [vmem:[%s255 + $0x48] sm:$0xff]
  %v266 = vld [vmem:[%s255 + $0x50] sm:$0xff]
  %v267 = vld [vmem:[%s255 + $0x58] sm:$0xff]
  %v268 = vld [vmem:[%s255 + $0x60] sm:$0xff]
  %v269 = vld [vmem:[%s255 + $0x68] sm:$0xff]
  %v270 = vld [vmem:[%s255 + $0x70] sm:$0xff]
  %v271 = vld [vmem:[%s255 + $0x78] sm:$0xff]
  %v272 = vmul.f32 %v254, %v256
  %v273 = vmul.f32 %v253, %v257
  %v274 = vmul.f32 %v252, %v258
  %v275 = vmul.f32 %v251, %v259
  %v276 = vmul.f32 %v250, %v260
  %v277 = vmul.f32 %v249, %v261
  %v278 = vmul.f32 %v248, %v262
  %v279 = vmul.f32 %v247, %v263
  %v280 = vmul.f32 %v246, %v264
  %v281 = vmul.f32 %v245, %v265
  %v282 = vmul.f32 %v244, %v266
  %v283 = vmul.f32 %v243, %v267
  %v284 = vmul.f32 %v242, %v268
  %v285 = vmul.f32 %v241, %v269
  %v286 = vmul.f32 %v240, %v270
  %v287 = vmul.f32 %v239, %v271
  %288 = vst [vmem:[#allocation2 + $0x80] sm:$0xff] %v272
  %289 = vst [vmem:[#allocation2 + $0x88] sm:$0xff] %v273
  %290 = vst [vmem:[#allocation2 + $0x90] sm:$0xff] %v274
  %291 = vst [vmem:[#allocation2 + $0x98] sm:$0xff] %v275
  %292 = vst [vmem:[#allocation2 + $0xa0] sm:$0xff] %v276
  %293 = vst [vmem:[#allocation2 + $0xa8] sm:$0xff] %v277
  %294 = vst [vmem:[#allocation2 + $0xb0] sm:$0xff] %v278
  %295 = vst [vmem:[#allocation2 + $0xb8] sm:$0xff] %v279
  %296 = vst [vmem:[#allocation2 + $0xc0] sm:$0xff] %v280
  %297 = vst [vmem:[#allocation2 + $0xc8] sm:$0xff] %v281
  %298 = vst [vmem:[#allocation2 + $0xd0] sm:$0xff] %v282
  %299 = vst [vmem:[#allocation2 + $0xd8] sm:$0xff] %v283
  %300 = vst [vmem:[#allocation2 + $0xe0] sm:$0xff] %v284
  %301 = vst [vmem:[#allocation2 + $0xe8] sm:$0xff] %v285
  %302 = vst [vmem:[#allocation2 + $0xf0] sm:$0xff] %v286
  %303 = vst [vmem:[#allocation2 + $0xf8] sm:$0xff] %v287
  %304 = vrot.lane.b32.xlu0 %v91, 31
  %v305 = vpop.permute.xlu0 %304
  %306 = vrot.lane.b32.xlu0 %v92, 31
  %v307 = vpop.permute.xlu0 %306
  %308 = vrot.lane.b32.xlu0 %v93, 31
  %v309 = vpop.permute.xlu0 %308
  %310 = vrot.lane.b32.xlu0 %v94, 31
  %v311 = vpop.permute.xlu0 %310
  %312 = vrot.lane.b32.xlu0 %v95, 31
  %v313 = vpop.permute.xlu0 %312
  %314 = vrot.lane.b32.xlu0 %v96, 31
  %v315 = vpop.permute.xlu0 %314
  %316 = vrot.lane.b32.xlu0 %v97, 31
  %v317 = vpop.permute.xlu0 %316
  %318 = vrot.lane.b32.xlu0 %v98, 31
  %v319 = vpop.permute.xlu0 %318
  %320 = vrot.lane.b32.xlu0 %v99, 31
  %v321 = vpop.permute.xlu0 %320
  %322 = vrot.lane.b32.xlu0 %v100, 31
  %v323 = vpop.permute.xlu0 %322
  %324 = vrot.lane.b32.xlu0 %v101, 31
  %v325 = vpop.permute.xlu0 %324
  %326 = vrot.lane.b32.xlu0 %v102, 31
  %v327 = vpop.permute.xlu0 %326
  %328 = vrot.lane.b32.xlu0 %v103, 31
  %v329 = vpop.permute.xlu0 %328
  %330 = vrot.lane.b32.xlu0 %v104, 31
  %v331 = vpop.permute.xlu0 %330
  %332 = vrot.lane.b32.xlu0 %v105, 31
  %v333 = vpop.permute.xlu0 %332
  %334 = vrot.lane.b32.xlu0 %v106, 31
  %v335 = vpop.permute.xlu0 %334
  %vm336 = vcmp.lt.s32.totalorder %v140, 31
  %v337 = vsel %vm336, %v333, %v335
  %v338 = vsel %vm336, %v331, %v333
  %v339 = vsel %vm336, %v329, %v331
  %v340 = vsel %vm336, %v327, %v329
  %v341 = vsel %vm336, %v325, %v327
  %v342 = vsel %vm336, %v323, %v325
  %v343 = vsel %vm336, %v321, %v323
  %v344 = vsel %vm336, %v319, %v321
  %v345 = vsel %vm336, %v317, %v319
  %v346 = vsel %vm336, %v315, %v317
  %v347 = vsel %vm336, %v313, %v315
  %v348 = vsel %vm336, %v311, %v313
  %v349 = vsel %vm336, %v309, %v311
  %v350 = vsel %vm336, %v307, %v309
  %v351 = vsel %vm336, %v305, %v307
  %v352 = vsel %vm336, %v335, %v305
  %s353 = scalar_lea.vmem %s2, 256
  %v354 = vld [vmem:[%s353] sm:$0xff]
  %v355 = vld [vmem:[%s353 + $0x8] sm:$0xff]
  %v356 = vld [vmem:[%s353 + $0x10] sm:$0xff]
  %v357 = vld [vmem:[%s353 + $0x18] sm:$0xff]
  %v358 = vld [vmem:[%s353 + $0x20] sm:$0xff]
  %v359 = vld [vmem:[%s353 + $0x28] sm:$0xff]
  %v360 = vld [vmem:[%s353 + $0x30] sm:$0xff]
  %v361 = vld [vmem:[%s353 + $0x38] sm:$0xff]
  %v362 = vld [vmem:[%s353 + $0x40] sm:$0xff]
  %v363 = vld [vmem:[%s353 + $0x48] sm:$0xff]
  %v364 = vld [vmem:[%s353 + $0x50] sm:$0xff]
  %v365 = vld [vmem:[%s353 + $0x58] sm:$0xff]
  %v366 = vld [vmem:[%s353 + $0x60] sm:$0xff]
  %v367 = vld [vmem:[%s353 + $0x68] sm:$0xff]
  %v368 = vld [vmem:[%s353 + $0x70] sm:$0xff]
  %v369 = vld [vmem:[%s353 + $0x78] sm:$0xff]
  %v370 = vmul.f32 %v352, %v354
  %v371 = vmul.f32 %v351, %v355
  %v372 = vmul.f32 %v350, %v356
  %v373 = vmul.f32 %v349, %v357
  %v374 = vmul.f32 %v348, %v358
  %v375 = vmul.f32 %v347, %v359
  %v376 = vmul.f32 %v346, %v360
  %v377 = vmul.f32 %v345, %v361
  %v378 = vmul.f32 %v344, %v362
  %v379 = vmul.f32 %v343, %v363
  %v380 = vmul.f32 %v342, %v364
  %v381 = vmul.f32 %v341, %v365
  %v382 = vmul.f32 %v340, %v366
  %v383 = vmul.f32 %v339, %v367
  %v384 = vmul.f32 %v338, %v368
  %v385 = vmul.f32 %v337, %v369
  %386 = vst [vmem:[#allocation2 + $0x100] sm:$0xff] %v370
  %387 = vst [vmem:[#allocation2 + $0x108] sm:$0xff] %v371
  %388 = vst [vmem:[#allocation2 + $0x110] sm:$0xff] %v372
  %389 = vst [vmem:[#allocation2 + $0x118] sm:$0xff] %v373
  %390 = vst [vmem:[#allocation2 + $0x120] sm:$0xff] %v374
  %391 = vst [vmem:[#allocation2 + $0x128] sm:$0xff] %v375
  %392 = vst [vmem:[#allocation2 + $0x130] sm:$0xff] %v376
  %393 = vst [vmem:[#allocation2 + $0x138] sm:$0xff] %v377
  %394 = vst [vmem:[#allocation2 + $0x140] sm:$0xff] %v378
  %395 = vst [vmem:[#allocation2 + $0x148] sm:$0xff] %v379
  %396 = vst [vmem:[#allocation2 + $0x150] sm:$0xff] %v380
  %397 = vst [vmem:[#allocation2 + $0x158] sm:$0xff] %v381
  %398 = vst [vmem:[#allocation2 + $0x160] sm:$0xff] %v382
  %399 = vst [vmem:[#allocation2 + $0x168] sm:$0xff] %v383
  %400 = vst [vmem:[#allocation2 + $0x170] sm:$0xff] %v384
  %401 = vst [vmem:[#allocation2 + $0x178] sm:$0xff] %v385
  %402 = vrot.lane.b32.xlu0 %v91, 1
  %v403 = vpop.permute.xlu0 %402
  %404 = vrot.lane.b32.xlu0 %v92, 1
  %v405 = vpop.permute.xlu0 %404
  %406 = vrot.lane.b32.xlu0 %v93, 1
  %v407 = vpop.permute.xlu0 %406
  %408 = vrot.lane.b32.xlu0 %v94, 1
  %v409 = vpop.permute.xlu0 %408
  %410 = vrot.lane.b32.xlu0 %v95, 1
  %v411 = vpop.permute.xlu0 %410
  %412 = vrot.lane.b32.xlu0 %v96, 1
  %v413 = vpop.permute.xlu0 %412
  %414 = vrot.lane.b32.xlu0 %v97, 1
  %v415 = vpop.permute.xlu0 %414
  %416 = vrot.lane.b32.xlu0 %v98, 1
  %v417 = vpop.permute.xlu0 %416
  %418 = vrot.lane.b32.xlu0 %v99, 1
  %v419 = vpop.permute.xlu0 %418
  %420 = vrot.lane.b32.xlu0 %v100, 1
  %v421 = vpop.permute.xlu0 %420
  %422 = vrot.lane.b32.xlu0 %v101, 1
  %v423 = vpop.permute.xlu0 %422
  %424 = vrot.lane.b32.xlu0 %v102, 1
  %v425 = vpop.permute.xlu0 %424
  %426 = vrot.lane.b32.xlu0 %v103, 1
  %v427 = vpop.permute.xlu0 %426
  %428 = vrot.lane.b32.xlu0 %v104, 1
  %v429 = vpop.permute.xlu0 %428
  %430 = vrot.lane.b32.xlu0 %v105, 1
  %v431 = vpop.permute.xlu0 %430
  %432 = vrot.lane.b32.xlu0 %v106, 1
  %v433 = vpop.permute.xlu0 %432
  %vm434 = vcmp.lt.s32.totalorder %v140, 1
  %v435 = vsel %vm434, %v431, %v433
  %v436 = vsel %vm434, %v429, %v431
  %v437 = vsel %vm434, %v427, %v429
  %v438 = vsel %vm434, %v425, %v427
  %v439 = vsel %vm434, %v423, %v425
  %v440 = vsel %vm434, %v421, %v423
  %v441 = vsel %vm434, %v419, %v421
  %v442 = vsel %vm434, %v417, %v419
  %v443 = vsel %vm434, %v415, %v417
  %v444 = vsel %vm434, %v413, %v415
  %v445 = vsel %vm434, %v411, %v413
  %v446 = vsel %vm434, %v409, %v411
  %v447 = vsel %vm434, %v407, %v409
  %v448 = vsel %vm434, %v405, %v407
  %v449 = vsel %vm434, %v403, %v405
  %v450 = vsel %vm434, %v433, %v403
  %s451 = scalar_lea.vmem %s2, 384
  %v452 = vld [vmem:[%s451] sm:$0xff]
  %v453 = vld [vmem:[%s451 + $0x8] sm:$0xff]
  %v454 = vld [vmem:[%s451 + $0x10] sm:$0xff]
  %v455 = vld [vmem:[%s451 + $0x18] sm:$0xff]
  %v456 = vld [vmem:[%s451 + $0x20] sm:$0xff]
  %v457 = vld [vmem:[%s451 + $0x28] sm:$0xff]
  %v458 = vld [vmem:[%s451 + $0x30] sm:$0xff]
  %v459 = vld [vmem:[%s451 + $0x38] sm:$0xff]
  %v460 = vld [vmem:[%s451 + $0x40] sm:$0xff]
  %v461 = vld [vmem:[%s451 + $0x48] sm:$0xff]
  %v462 = vld [vmem:[%s451 + $0x50] sm:$0xff]
  %v463 = vld [vmem:[%s451 + $0x58] sm:$0xff]
  %v464 = vld [vmem:[%s451 + $0x60] sm:$0xff]
  %v465 = vld [vmem:[%s451 + $0x68] sm:$0xff]
  %v466 = vld [vmem:[%s451 + $0x70] sm:$0xff]
  %v467 = vld [vmem:[%s451 + $0x78] sm:$0xff]
  %v468 = vmul.f32 %v450, %v452
  %v469 = vmul.f32 %v449, %v453
  %v470 = vmul.f32 %v448, %v454
  %v471 = vmul.f32 %v447, %v455
  %v472 = vmul.f32 %v446, %v456
  %v473 = vmul.f32 %v445, %v457
  %v474 = vmul.f32 %v444, %v458
  %v475 = vmul.f32 %v443, %v459
  %v476 = vmul.f32 %v442, %v460
  %v477 = vmul.f32 %v441, %v461
  %v478 = vmul.f32 %v440, %v462
  %v479 = vmul.f32 %v439, %v463
  %v480 = vmul.f32 %v438, %v464
  %v481 = vmul.f32 %v437, %v465
  %v482 = vmul.f32 %v436, %v466
  %v483 = vmul.f32 %v435, %v467
  %484 = vst [vmem:[#allocation2 + $0x180] sm:$0xff] %v468
  %485 = vst [vmem:[#allocation2 + $0x188] sm:$0xff] %v469
  %486 = vst [vmem:[#allocation2 + $0x190] sm:$0xff] %v470
  %487 = vst [vmem:[#allocation2 + $0x198] sm:$0xff] %v471
  %488 = vst [vmem:[#allocation2 + $0x1a0] sm:$0xff] %v472
  %489 = vst [vmem:[#allocation2 + $0x1a8] sm:$0xff] %v473
  %490 = vst [vmem:[#allocation2 + $0x1b0] sm:$0xff] %v474
  %491 = vst [vmem:[#allocation2 + $0x1b8] sm:$0xff] %v475
  %492 = vst [vmem:[#allocation2 + $0x1c0] sm:$0xff] %v476
  %493 = vst [vmem:[#allocation2 + $0x1c8] sm:$0xff] %v477
  %494 = vst [vmem:[#allocation2 + $0x1d0] sm:$0xff] %v478
  %495 = vst [vmem:[#allocation2 + $0x1d8] sm:$0xff] %v479
  %496 = vst [vmem:[#allocation2 + $0x1e0] sm:$0xff] %v480
  %497 = vst [vmem:[#allocation2 + $0x1e8] sm:$0xff] %v481
  %498 = vst [vmem:[#allocation2 + $0x1f0] sm:$0xff] %v482
  %499 = vst [vmem:[#allocation2 + $0x1f8] sm:$0xff] %v483
  %500 = vst [vmem:[#allocation2 + $0x200] sm:$0xff] %v91
  %501 = vst [vmem:[#allocation2 + $0x208] sm:$0xff] %v92
  %502 = vst [vmem:[#allocation2 + $0x210] sm:$0xff] %v93
  %503 = vst [vmem:[#allocation2 + $0x218] sm:$0xff] %v94
  %504 = vst [vmem:[#allocation2 + $0x220] sm:$0xff] %v95
  %505 = vst [vmem:[#allocation2 + $0x228] sm:$0xff] %v96
  %506 = vst [vmem:[#allocation2 + $0x230] sm:$0xff] %v97
  %507 = vst [vmem:[#allocation2 + $0x238] sm:$0xff] %v98
  %508 = vst [vmem:[#allocation2 + $0x240] sm:$0xff] %v99
  %509 = vst [vmem:[#allocation2 + $0x248] sm:$0xff] %v100
  %510 = vst [vmem:[#allocation2 + $0x250] sm:$0xff] %v101
  %511 = vst [vmem:[#allocation2 + $0x258] sm:$0xff] %v102
  %512 = vst [vmem:[#allocation2 + $0x260] sm:$0xff] %v103
  %513 = vst [vmem:[#allocation2 + $0x268] sm:$0xff] %v104
  %514 = vst [vmem:[#allocation2 + $0x270] sm:$0xff] %v105
  %515 = vst [vmem:[#allocation2 + $0x278] sm:$0xff] %v106
  %516 = vrot.lane.b32.xlu0 %v91, 127
  %v517 = vpop.permute.xlu0 %516
  %518 = vrot.lane.b32.xlu0 %v92, 127
  %v519 = vpop.permute.xlu0 %518
  %520 = vrot.lane.b32.xlu0 %v93, 127
  %v521 = vpop.permute.xlu0 %520
  %522 = vrot.lane.b32.xlu0 %v94, 127
  %v523 = vpop.permute.xlu0 %522
  %524 = vrot.lane.b32.xlu0 %v95, 127
  %v525 = vpop.permute.xlu0 %524
  %526 = vrot.lane.b32.xlu0 %v96, 127
  %v527 = vpop.permute.xlu0 %526
  %528 = vrot.lane.b32.xlu0 %v97, 127
  %v529 = vpop.permute.xlu0 %528
  %530 = vrot.lane.b32.xlu0 %v98, 127
  %v531 = vpop.permute.xlu0 %530
  %532 = vrot.lane.b32.xlu0 %v99, 127
  %v533 = vpop.permute.xlu0 %532
  %534 = vrot.lane.b32.xlu0 %v100, 127
  %v535 = vpop.permute.xlu0 %534
  %536 = vrot.lane.b32.xlu0 %v101, 127
  %v537 = vpop.permute.xlu0 %536
  %538 = vrot.lane.b32.xlu0 %v102, 127
  %v539 = vpop.permute.xlu0 %538
  %540 = vrot.lane.b32.xlu0 %v103, 127
  %v541 = vpop.permute.xlu0 %540
  %542 = vrot.lane.b32.xlu0 %v104, 127
  %v543 = vpop.permute.xlu0 %542
  %544 = vrot.lane.b32.xlu0 %v105, 127
  %v545 = vpop.permute.xlu0 %544
  %546 = vrot.lane.b32.xlu0 %v106, 127
  %v547 = vpop.permute.xlu0 %546
  %vm548 = vcmp.lt.s32.totalorder %v140, 127
  %v549 = vsel %vm548, %v545, %v547
  %v550 = vsel %vm548, %v543, %v545
  %v551 = vsel %vm548, %v541, %v543
  %v552 = vsel %vm548, %v539, %v541
  %v553 = vsel %vm548, %v537, %v539
  %v554 = vsel %vm548, %v535, %v537
  %v555 = vsel %vm548, %v533, %v535
  %v556 = vsel %vm548, %v531, %v533
  %v557 = vsel %vm548, %v529, %v531
  %v558 = vsel %vm548, %v527, %v529
  %v559 = vsel %vm548, %v525, %v527
  %v560 = vsel %vm548, %v523, %v525
  %v561 = vsel %vm548, %v521, %v523
  %v562 = vsel %vm548, %v519, %v521
  %v563 = vsel %vm548, %v517, %v519
  %v564 = vsel %vm548, %v547, %v517
  %s565 = scalar_lea.vmem %s2, 640
  %v566 = vld [vmem:[%s565] sm:$0xff]
  %v567 = vld [vmem:[%s565 + $0x8] sm:$0xff]
  %v568 = vld [vmem:[%s565 + $0x10] sm:$0xff]
  %v569 = vld [vmem:[%s565 + $0x18] sm:$0xff]
  %v570 = vld [vmem:[%s565 + $0x20] sm:$0xff]
  %v571 = vld [vmem:[%s565 + $0x28] sm:$0xff]
  %v572 = vld [vmem:[%s565 + $0x30] sm:$0xff]
  %v573 = vld [vmem:[%s565 + $0x38] sm:$0xff]
  %v574 = vld [vmem:[%s565 + $0x40] sm:$0xff]
  %v575 = vld [vmem:[%s565 + $0x48] sm:$0xff]
  %v576 = vld [vmem:[%s565 + $0x50] sm:$0xff]
  %v577 = vld [vmem:[%s565 + $0x58] sm:$0xff]
  %v578 = vld [vmem:[%s565 + $0x60] sm:$0xff]
  %v579 = vld [vmem:[%s565 + $0x68] sm:$0xff]
  %v580 = vld [vmem:[%s565 + $0x70] sm:$0xff]
  %v581 = vld [vmem:[%s565 + $0x78] sm:$0xff]
  %v582 = vmul.f32 %v563, %v566
  %v583 = vmul.f32 %v562, %v567
  %v584 = vmul.f32 %v561, %v568
  %v585 = vmul.f32 %v560, %v569
  %v586 = vmul.f32 %v559, %v570
  %v587 = vmul.f32 %v558, %v571
  %v588 = vmul.f32 %v557, %v572
  %v589 = vmul.f32 %v556, %v573
  %v590 = vmul.f32 %v555, %v574
  %v591 = vmul.f32 %v554, %v575
  %v592 = vmul.f32 %v553, %v576
  %v593 = vmul.f32 %v552, %v577
  %v594 = vmul.f32 %v551, %v578
  %v595 = vmul.f32 %v550, %v579
  %v596 = vmul.f32 %v549, %v580
  %v597 = vmul.f32 %v564, %v581
  %598 = vst [vmem:[#allocation2 + $0x280] sm:$0xff] %v582
  %599 = vst [vmem:[#allocation2 + $0x288] sm:$0xff] %v583
  %600 = vst [vmem:[#allocation2 + $0x290] sm:$0xff] %v584
  %601 = vst [vmem:[#allocation2 + $0x298] sm:$0xff] %v585
  %602 = vst [vmem:[#allocation2 + $0x2a0] sm:$0xff] %v586
  %603 = vst [vmem:[#allocation2 + $0x2a8] sm:$0xff] %v587
  %604 = vst [vmem:[#allocation2 + $0x2b0] sm:$0xff] %v588
  %605 = vst [vmem:[#allocation2 + $0x2b8] sm:$0xff] %v589
  %606 = vst [vmem:[#allocation2 + $0x2c0] sm:$0xff] %v590
  %607 = vst [vmem:[#allocation2 + $0x2c8] sm:$0xff] %v591
  %608 = vst [vmem:[#allocation2 + $0x2d0] sm:$0xff] %v592
  %609 = vst [vmem:[#allocation2 + $0x2d8] sm:$0xff] %v593
  %610 = vst [vmem:[#allocation2 + $0x2e0] sm:$0xff] %v594
  %611 = vst [vmem:[#allocation2 + $0x2e8] sm:$0xff] %v595
  %612 = vst [vmem:[#allocation2 + $0x2f0] sm:$0xff] %v596
  %613 = vst [vmem:[#allocation2 + $0x2f8] sm:$0xff] %v597
  %614 = vrot.lane.b32.xlu0 %v91, 97
  %v615 = vpop.permute.xlu0 %614
  %616 = vrot.lane.b32.xlu0 %v92, 97
  %v617 = vpop.permute.xlu0 %616
  %618 = vrot.lane.b32.xlu0 %v93, 97
  %v619 = vpop.permute.xlu0 %618
  %620 = vrot.lane.b32.xlu0 %v94, 97
  %v621 = vpop.permute.xlu0 %620
  %622 = vrot.lane.b32.xlu0 %v95, 97
  %v623 = vpop.permute.xlu0 %622
  %624 = vrot.lane.b32.xlu0 %v96, 97
  %v625 = vpop.permute.xlu0 %624
  %626 = vrot.lane.b32.xlu0 %v97, 97
  %v627 = vpop.permute.xlu0 %626
  %628 = vrot.lane.b32.xlu0 %v98, 97
  %v629 = vpop.permute.xlu0 %628
  %630 = vrot.lane.b32.xlu0 %v99, 97
  %v631 = vpop.permute.xlu0 %630
  %632 = vrot.lane.b32.xlu0 %v100, 97
  %v633 = vpop.permute.xlu0 %632
  %634 = vrot.lane.b32.xlu0 %v101, 97
  %v635 = vpop.permute.xlu0 %634
  %636 = vrot.lane.b32.xlu0 %v102, 97
  %v637 = vpop.permute.xlu0 %636
  %638 = vrot.lane.b32.xlu0 %v103, 97
  %v639 = vpop.permute.xlu0 %638
  %640 = vrot.lane.b32.xlu0 %v104, 97
  %v641 = vpop.permute.xlu0 %640
  %642 = vrot.lane.b32.xlu0 %v105, 97
  %v643 = vpop.permute.xlu0 %642
  %644 = vrot.lane.b32.xlu0 %v106, 97
  %v645 = vpop.permute.xlu0 %644
  %vm646 = vcmp.lt.s32.totalorder %v140, 97
  %v647 = vsel %vm646, %v643, %v645
  %v648 = vsel %vm646, %v641, %v643
  %v649 = vsel %vm646, %v639, %v641
  %v650 = vsel %vm646, %v637, %v639
  %v651 = vsel %vm646, %v635, %v637
  %v652 = vsel %vm646, %v633, %v635
  %v653 = vsel %vm646, %v631, %v633
  %v654 = vsel %vm646, %v629, %v631
  %v655 = vsel %vm646, %v627, %v629
  %v656 = vsel %vm646, %v625, %v627
  %v657 = vsel %vm646, %v623, %v625
  %v658 = vsel %vm646, %v621, %v623
  %v659 = vsel %vm646, %v619, %v621
  %v660 = vsel %vm646, %v617, %v619
  %v661 = vsel %vm646, %v615, %v617
  %v662 = vsel %vm646, %v645, %v615
  %s663 = scalar_lea.vmem %s2, 768
  %v664 = vld [vmem:[%s663] sm:$0xff]
  %v665 = vld [vmem:[%s663 + $0x8] sm:$0xff]
  %v666 = vld [vmem:[%s663 + $0x10] sm:$0xff]
  %v667 = vld [vmem:[%s663 + $0x18] sm:$0xff]
  %v668 = vld [vmem:[%s663 + $0x20] sm:$0xff]
  %v669 = vld [vmem:[%s663 + $0x28] sm:$0xff]
  %v670 = vld [vmem:[%s663 + $0x30] sm:$0xff]
  %v671 = vld [vmem:[%s663 + $0x38] sm:$0xff]
  %v672 = vld [vmem:[%s663 + $0x40] sm:$0xff]
  %v673 = vld [vmem:[%s663 + $0x48] sm:$0xff]
  %v674 = vld [vmem:[%s663 + $0x50] sm:$0xff]
  %v675 = vld [vmem:[%s663 + $0x58] sm:$0xff]
  %v676 = vld [vmem:[%s663 + $0x60] sm:$0xff]
  %v677 = vld [vmem:[%s663 + $0x68] sm:$0xff]
  %v678 = vld [vmem:[%s663 + $0x70] sm:$0xff]
  %v679 = vld [vmem:[%s663 + $0x78] sm:$0xff]
  %v680 = vmul.f32 %v661, %v664
  %v681 = vmul.f32 %v660, %v665
  %v682 = vmul.f32 %v659, %v666
  %v683 = vmul.f32 %v658, %v667
  %v684 = vmul.f32 %v657, %v668
  %v685 = vmul.f32 %v656, %v669
  %v686 = vmul.f32 %v655, %v670
  %v687 = vmul.f32 %v654, %v671
  %v688 = vmul.f32 %v653, %v672
  %v689 = vmul.f32 %v652, %v673
  %v690 = vmul.f32 %v651, %v674
  %v691 = vmul.f32 %v650, %v675
  %v692 = vmul.f32 %v649, %v676
  %v693 = vmul.f32 %v648, %v677
  %v694 = vmul.f32 %v647, %v678
  %v695 = vmul.f32 %v662, %v679
  %696 = vst [vmem:[#allocation2 + $0x300] sm:$0xff] %v680
  %697 = vst [vmem:[#allocation2 + $0x308] sm:$0xff] %v681
  %698 = vst [vmem:[#allocation2 + $0x310] sm:$0xff] %v682
  %699 = vst [vmem:[#allocation2 + $0x318] sm:$0xff] %v683
  %700 = vst [vmem:[#allocation2 + $0x320] sm:$0xff] %v684
  %701 = vst [vmem:[#allocation2 + $0x328] sm:$0xff] %v685
  %702 = vst [vmem:[#allocation2 + $0x330] sm:$0xff] %v686
  %703 = vst [vmem:[#allocation2 + $0x338] sm:$0xff] %v687
  %704 = vst [vmem:[#allocation2 + $0x340] sm:$0xff] %v688
  %705 = vst [vmem:[#allocation2 + $0x348] sm:$0xff] %v689
  %706 = vst [vmem:[#allocation2 + $0x350] sm:$0xff] %v690
  %707 = vst [vmem:[#allocation2 + $0x358] sm:$0xff] %v691
  %708 = vst [vmem:[#allocation2 + $0x360] sm:$0xff] %v692
  %709 = vst [vmem:[#allocation2 + $0x368] sm:$0xff] %v693
  %710 = vst [vmem:[#allocation2 + $0x370] sm:$0xff] %v694
  %711 = vst [vmem:[#allocation2 + $0x378] sm:$0xff] %v695
  %712 = vrot.lane.b32.xlu0 %v91, 96
  %v713 = vpop.permute.xlu0 %712
  %714 = vrot.lane.b32.xlu0 %v92, 96
  %v715 = vpop.permute.xlu0 %714
  %716 = vrot.lane.b32.xlu0 %v93, 96
  %v717 = vpop.permute.xlu0 %716
  %718 = vrot.lane.b32.xlu0 %v94, 96
  %v719 = vpop.permute.xlu0 %718
  %720 = vrot.lane.b32.xlu0 %v95, 96
  %v721 = vpop.permute.xlu0 %720
  %722 = vrot.lane.b32.xlu0 %v96, 96
  %v723 = vpop.permute.xlu0 %722
  %724 = vrot.lane.b32.xlu0 %v97, 96
  %v725 = vpop.permute.xlu0 %724
  %726 = vrot.lane.b32.xlu0 %v98, 96
  %v727 = vpop.permute.xlu0 %726
  %728 = vrot.lane.b32.xlu0 %v99, 96
  %v729 = vpop.permute.xlu0 %728
  %730 = vrot.lane.b32.xlu0 %v100, 96
  %v731 = vpop.permute.xlu0 %730
  %732 = vrot.lane.b32.xlu0 %v101, 96
  %v733 = vpop.permute.xlu0 %732
  %734 = vrot.lane.b32.xlu0 %v102, 96
  %v735 = vpop.permute.xlu0 %734
  %736 = vrot.lane.b32.xlu0 %v103, 96
  %v737 = vpop.permute.xlu0 %736
  %738 = vrot.lane.b32.xlu0 %v104, 96
  %v739 = vpop.permute.xlu0 %738
  %740 = vrot.lane.b32.xlu0 %v105, 96
  %v741 = vpop.permute.xlu0 %740
  %742 = vrot.lane.b32.xlu0 %v106, 96
  %v743 = vpop.permute.xlu0 %742
  %vm744 = vcmp.lt.s32.totalorder %v140, 96
  %v745 = vsel %vm744, %v741, %v743
  %v746 = vsel %vm744, %v739, %v741
  %v747 = vsel %vm744, %v737, %v739
  %v748 = vsel %vm744, %v735, %v737
  %v749 = vsel %vm744, %v733, %v735
  %v750 = vsel %vm744, %v731, %v733
  %v751 = vsel %vm744, %v729, %v731
  %v752 = vsel %vm744, %v727, %v729
  %v753 = vsel %vm744, %v725, %v727
  %v754 = vsel %vm744, %v723, %v725
  %v755 = vsel %vm744, %v721, %v723
  %v756 = vsel %vm744, %v719, %v721
  %v757 = vsel %vm744, %v717, %v719
  %v758 = vsel %vm744, %v715, %v717
  %v759 = vsel %vm744, %v713, %v715
  %v760 = vsel %vm744, %v743, %v713
  %s761 = scalar_lea.vmem %s2, 896
  %v762 = vld [vmem:[%s761] sm:$0xff]
  %v763 = vld [vmem:[%s761 + $0x8] sm:$0xff]
  %v764 = vld [vmem:[%s761 + $0x10] sm:$0xff]
  %v765 = vld [vmem:[%s761 + $0x18] sm:$0xff]
  %v766 = vld [vmem:[%s761 + $0x20] sm:$0xff]
  %v767 = vld [vmem:[%s761 + $0x28] sm:$0xff]
  %v768 = vld [vmem:[%s761 + $0x30] sm:$0xff]
  %v769 = vld [vmem:[%s761 + $0x38] sm:$0xff]
  %v770 = vld [vmem:[%s761 + $0x40] sm:$0xff]
  %v771 = vld [vmem:[%s761 + $0x48] sm:$0xff]
  %v772 = vld [vmem:[%s761 + $0x50] sm:$0xff]
  %v773 = vld [vmem:[%s761 + $0x58] sm:$0xff]
  %v774 = vld [vmem:[%s761 + $0x60] sm:$0xff]
  %v775 = vld [vmem:[%s761 + $0x68] sm:$0xff]
  %v776 = vld [vmem:[%s761 + $0x70] sm:$0xff]
  %v777 = vld [vmem:[%s761 + $0x78] sm:$0xff]
  %v778 = vmul.f32 %v759, %v762
  %v779 = vmul.f32 %v758, %v763
  %v780 = vmul.f32 %v757, %v764
  %v781 = vmul.f32 %v756, %v765
  %v782 = vmul.f32 %v755, %v766
  %v783 = vmul.f32 %v754, %v767
  %v784 = vmul.f32 %v753, %v768
  %v785 = vmul.f32 %v752, %v769
  %v786 = vmul.f32 %v751, %v770
  %v787 = vmul.f32 %v750, %v771
  %v788 = vmul.f32 %v749, %v772
  %v789 = vmul.f32 %v748, %v773
  %v790 = vmul.f32 %v747, %v774
  %v791 = vmul.f32 %v746, %v775
  %v792 = vmul.f32 %v745, %v776
  %v793 = vmul.f32 %v760, %v777
  %794 = vst [vmem:[#allocation2 + $0x380] sm:$0xff] %v778
  %795 = vst [vmem:[#allocation2 + $0x388] sm:$0xff] %v779
  %796 = vst [vmem:[#allocation2 + $0x390] sm:$0xff] %v780
  %797 = vst [vmem:[#allocation2 + $0x398] sm:$0xff] %v781
  %798 = vst [vmem:[#allocation2 + $0x3a0] sm:$0xff] %v782
  %799 = vst [vmem:[#allocation2 + $0x3a8] sm:$0xff] %v783
  %800 = vst [vmem:[#allocation2 + $0x3b0] sm:$0xff] %v784
  %801 = vst [vmem:[#allocation2 + $0x3b8] sm:$0xff] %v785
  %802 = vst [vmem:[#allocation2 + $0x3c0] sm:$0xff] %v786
  %803 = vst [vmem:[#allocation2 + $0x3c8] sm:$0xff] %v787
  %804 = vst [vmem:[#allocation2 + $0x3d0] sm:$0xff] %v788
  %805 = vst [vmem:[#allocation2 + $0x3d8] sm:$0xff] %v789
  %806 = vst [vmem:[#allocation2 + $0x3e0] sm:$0xff] %v790
  %807 = vst [vmem:[#allocation2 + $0x3e8] sm:$0xff] %v791
  %808 = vst [vmem:[#allocation2 + $0x3f0] sm:$0xff] %v792
  %809 = vst [vmem:[#allocation2 + $0x3f8] sm:$0xff] %v793
  %810 = vrot.lane.b32.xlu0 %v91, 95
  %v811 = vpop.permute.xlu0 %810
  %812 = vrot.lane.b32.xlu0 %v92, 95
  %v813 = vpop.permute.xlu0 %812
  %814 = vrot.lane.b32.xlu0 %v93, 95
  %v815 = vpop.permute.xlu0 %814
  %816 = vrot.lane.b32.xlu0 %v94, 95
  %v817 = vpop.permute.xlu0 %816
  %818 = vrot.lane.b32.xlu0 %v95, 95
  %v819 = vpop.permute.xlu0 %818
  %820 = vrot.lane.b32.xlu0 %v96, 95
  %v821 = vpop.permute.xlu0 %820
  %822 = vrot.lane.b32.xlu0 %v97, 95
  %v823 = vpop.permute.xlu0 %822
  %824 = vrot.lane.b32.xlu0 %v98, 95
  %v825 = vpop.permute.xlu0 %824
  %826 = vrot.lane.b32.xlu0 %v99, 95
  %v827 = vpop.permute.xlu0 %826
  %828 = vrot.lane.b32.xlu0 %v100, 95
  %v829 = vpop.permute.xlu0 %828
  %830 = vrot.lane.b32.xlu0 %v101, 95
  %v831 = vpop.permute.xlu0 %830
  %832 = vrot.lane.b32.xlu0 %v102, 95
  %v833 = vpop.permute.xlu0 %832
  %834 = vrot.lane.b32.xlu0 %v103, 95
  %v835 = vpop.permute.xlu0 %834
  %836 = vrot.lane.b32.xlu0 %v104, 95
  %v837 = vpop.permute.xlu0 %836
  %838 = vrot.lane.b32.xlu0 %v105, 95
  %v839 = vpop.permute.xlu0 %838
  %840 = vrot.lane.b32.xlu0 %v106, 95
  %v841 = vpop.permute.xlu0 %840
  %vm842 = vcmp.lt.s32.totalorder %v140, 95
  %v843 = vsel %vm842, %v839, %v841
  %v844 = vsel %vm842, %v837, %v839
  %v845 = vsel %vm842, %v835, %v837
  %v846 = vsel %vm842, %v833, %v835
  %v847 = vsel %vm842, %v831, %v833
  %v848 = vsel %vm842, %v829, %v831
  %v849 = vsel %vm842, %v827, %v829
  %v850 = vsel %vm842, %v825, %v827
  %v851 = vsel %vm842, %v823, %v825
  %v852 = vsel %vm842, %v821, %v823
  %v853 = vsel %vm842, %v819, %v821
  %v854 = vsel %vm842, %v817, %v819
  %v855 = vsel %vm842, %v815, %v817
  %v856 = vsel %vm842, %v813, %v815
  %v857 = vsel %vm842, %v811, %v813
  %v858 = vsel %vm842, %v841, %v811
  %s859 = scalar_lea.vmem %s2, 1024
  %v860 = vld [vmem:[%s859] sm:$0xff]
  %v861 = vld [vmem:[%s859 + $0x8] sm:$0xff]
  %v862 = vld [vmem:[%s859 + $0x10] sm:$0xff]
  %v863 = vld [vmem:[%s859 + $0x18] sm:$0xff]
  %v864 = vld [vmem:[%s859 + $0x20] sm:$0xff]
  %v865 = vld [vmem:[%s859 + $0x28] sm:$0xff]
  %v866 = vld [vmem:[%s859 + $0x30] sm:$0xff]
  %v867 = vld [vmem:[%s859 + $0x38] sm:$0xff]
  %v868 = vld [vmem:[%s859 + $0x40] sm:$0xff]
  %v869 = vld [vmem:[%s859 + $0x48] sm:$0xff]
  %v870 = vld [vmem:[%s859 + $0x50] sm:$0xff]
  %v871 = vld [vmem:[%s859 + $0x58] sm:$0xff]
  %v872 = vld [vmem:[%s859 + $0x60] sm:$0xff]
  %v873 = vld [vmem:[%s859 + $0x68] sm:$0xff]
  %v874 = vld [vmem:[%s859 + $0x70] sm:$0xff]
  %v875 = vld [vmem:[%s859 + $0x78] sm:$0xff]
  %v876 = vmul.f32 %v857, %v860
  %v877 = vmul.f32 %v856, %v861
  %v878 = vmul.f32 %v855, %v862
  %v879 = vmul.f32 %v854, %v863
  %v880 = vmul.f32 %v853, %v864
  %v881 = vmul.f32 %v852, %v865
  %v882 = vmul.f32 %v851, %v866
  %v883 = vmul.f32 %v850, %v867
  %v884 = vmul.f32 %v849, %v868
  %v885 = vmul.f32 %v848, %v869
  %v886 = vmul.f32 %v847, %v870
  %v887 = vmul.f32 %v846, %v871
  %v888 = vmul.f32 %v845, %v872
  %v889 = vmul.f32 %v844, %v873
  %v890 = vmul.f32 %v843, %v874
  %v891 = vmul.f32 %v858, %v875
  %892 = vst [vmem:[#allocation2 + $0x400] sm:$0xff] %v876
  %893 = vst [vmem:[#allocation2 + $0x408] sm:$0xff] %v877
  %894 = vst [vmem:[#allocation2 + $0x410] sm:$0xff] %v878
  %895 = vst [vmem:[#allocation2 + $0x418] sm:$0xff] %v879
  %896 = vst [vmem:[#allocation2 + $0x420] sm:$0xff] %v880
  %897 = vst [vmem:[#allocation2 + $0x428] sm:$0xff] %v881
  %898 = vst [vmem:[#allocation2 + $0x430] sm:$0xff] %v882
  %899 = vst [vmem:[#allocation2 + $0x438] sm:$0xff] %v883
  %900 = vst [vmem:[#allocation2 + $0x440] sm:$0xff] %v884
  %901 = vst [vmem:[#allocation2 + $0x448] sm:$0xff] %v885
  %902 = vst [vmem:[#allocation2 + $0x450] sm:$0xff] %v886
  %903 = vst [vmem:[#allocation2 + $0x458] sm:$0xff] %v887
  %904 = vst [vmem:[#allocation2 + $0x460] sm:$0xff] %v888
  %905 = vst [vmem:[#allocation2 + $0x468] sm:$0xff] %v889
  %906 = vst [vmem:[#allocation2 + $0x470] sm:$0xff] %v890
  %907 = vst [vmem:[#allocation2 + $0x478] sm:$0xff] %v891
  %v908 = vld [vmem:[%s5] sm:$0xff]
  %v909 = vld [vmem:[#allocation2] sm:$0xff]
  %v910 = vld [vmem:[#allocation2 + $0x8] sm:$0xff]
  %v911 = vld [vmem:[#allocation2 + $0x10] sm:$0xff]
  %v912 = vld [vmem:[#allocation2 + $0x18] sm:$0xff]
  %v913 = vld [vmem:[#allocation2 + $0x20] sm:$0xff]
  %v914 = vld [vmem:[#allocation2 + $0x28] sm:$0xff]
  %v915 = vld [vmem:[#allocation2 + $0x30] sm:$0xff]
  %v916 = vld [vmem:[#allocation2 + $0x38] sm:$0xff]
  %v917 = vld [vmem:[#allocation2 + $0x40] sm:$0xff]
  %v918 = vld [vmem:[#allocation2 + $0x48] sm:$0xff]
  %v919 = vld [vmem:[#allocation2 + $0x50] sm:$0xff]
  %v920 = vld [vmem:[#allocation2 + $0x58] sm:$0xff]
  %v921 = vld [vmem:[#allocation2 + $0x60] sm:$0xff]
  %v922 = vld [vmem:[#allocation2 + $0x68] sm:$0xff]
  %v923 = vld [vmem:[#allocation2 + $0x70] sm:$0xff]
  %v924 = vld [vmem:[#allocation2 + $0x78] sm:$0xff]
  %v925 = vld [vmem:[#allocation2 + $0x80] sm:$0xff]
  %v926 = vld [vmem:[#allocation2 + $0x88] sm:$0xff]
  %v927 = vld [vmem:[#allocation2 + $0x90] sm:$0xff]
  %v928 = vld [vmem:[#allocation2 + $0x98] sm:$0xff]
  %v929 = vld [vmem:[#allocation2 + $0xa0] sm:$0xff]
  %v930 = vld [vmem:[#allocation2 + $0xa8] sm:$0xff]
  %v931 = vld [vmem:[#allocation2 + $0xb0] sm:$0xff]
  %v932 = vld [vmem:[#allocation2 + $0xb8] sm:$0xff]
  %v933 = vld [vmem:[#allocation2 + $0xc0] sm:$0xff]
  %v934 = vld [vmem:[#allocation2 + $0xc8] sm:$0xff]
  %v935 = vld [vmem:[#allocation2 + $0xd0] sm:$0xff]
  %v936 = vld [vmem:[#allocation2 + $0xd8] sm:$0xff]
  %v937 = vld [vmem:[#allocation2 + $0xe0] sm:$0xff]
  %v938 = vld [vmem:[#allocation2 + $0xe8] sm:$0xff]
  %v939 = vld [vmem:[#allocation2 + $0xf0] sm:$0xff]
  %v940 = vld [vmem:[#allocation2 + $0xf8] sm:$0xff]
  %v941 = vld [vmem:[#allocation2 + $0x100] sm:$0xff]
  %v942 = vld [vmem:[#allocation2 + $0x108] sm:$0xff]
  %v943 = vld [vmem:[#allocation2 + $0x110] sm:$0xff]
  %v944 = vld [vmem:[#allocation2 + $0x118] sm:$0xff]
  %v945 = vld [vmem:[#allocation2 + $0x120] sm:$0xff]
  %v946 = vld [vmem:[#allocation2 + $0x128] sm:$0xff]
  %v947 = vld [vmem:[#allocation2 + $0x130] sm:$0xff]
  %v948 = vld [vmem:[#allocation2 + $0x138] sm:$0xff]
  %v949 = vld [vmem:[#allocation2 + $0x140] sm:$0xff]
  %v950 = vld [vmem:[#allocation2 + $0x148] sm:$0xff]
  %v951 = vld [vmem:[#allocation2 + $0x150] sm:$0xff]
  %v952 = vld [vmem:[#allocation2 + $0x158] sm:$0xff]
  %v953 = vld [vmem:[#allocation2 + $0x160] sm:$0xff]
  %v954 = vld [vmem:[#allocation2 + $0x168] sm:$0xff]
  %v955 = vld [vmem:[#allocation2 + $0x170] sm:$0xff]
  %v956 = vld [vmem:[#allocation2 + $0x178] sm:$0xff]
  %v957 = vld [vmem:[#allocation2 + $0x180] sm:$0xff]
  %v958 = vld [vmem:[#allocation2 + $0x188] sm:$0xff]
  %v959 = vld [vmem:[#allocation2 + $0x190] sm:$0xff]
  %v960 = vld [vmem:[#allocation2 + $0x198] sm:$0xff]
  %v961 = vld [vmem:[#allocation2 + $0x1a0] sm:$0xff]
  %v962 = vld [vmem:[#allocation2 + $0x1a8] sm:$0xff]
  %v963 = vld [vmem:[#allocation2 + $0x1b0] sm:$0xff]
  %v964 = vld [vmem:[#allocation2 + $0x1b8] sm:$0xff]
  %v965 = vld [vmem:[#allocation2 + $0x1c0] sm:$0xff]
  %v966 = vld [vmem:[#allocation2 + $0x1c8] sm:$0xff]
  %v967 = vld [vmem:[#allocation2 + $0x1d0] sm:$0xff]
  %v968 = vld [vmem:[#allocation2 + $0x1d8] sm:$0xff]
  %v969 = vld [vmem:[#allocation2 + $0x1e0] sm:$0xff]
  %v970 = vld [vmem:[#allocation2 + $0x1e8] sm:$0xff]
  %v971 = vld [vmem:[#allocation2 + $0x1f0] sm:$0xff]
  %v972 = vld [vmem:[#allocation2 + $0x1f8] sm:$0xff]
  %v973 = vld [vmem:[#allocation2 + $0x200] sm:$0xff]
  %v974 = vld [vmem:[#allocation2 + $0x208] sm:$0xff]
  %v975 = vld [vmem:[#allocation2 + $0x210] sm:$0xff]
  %v976 = vld [vmem:[#allocation2 + $0x218] sm:$0xff]
  %v977 = vld [vmem:[#allocation2 + $0x220] sm:$0xff]
  %v978 = vld [vmem:[#allocation2 + $0x228] sm:$0xff]
  %v979 = vld [vmem:[#allocation2 + $0x230] sm:$0xff]
  %v980 = vld [vmem:[#allocation2 + $0x238] sm:$0xff]
  %v981 = vld [vmem:[#allocation2 + $0x240] sm:$0xff]
  %v982 = vld [vmem:[#allocation2 + $0x248] sm:$0xff]
  %v983 = vld [vmem:[#allocation2 + $0x250] sm:$0xff]
  %v984 = vld [vmem:[#allocation2 + $0x258] sm:$0xff]
  %v985 = vld [vmem:[#allocation2 + $0x260] sm:$0xff]
  %v986 = vld [vmem:[#allocation2 + $0x268] sm:$0xff]
  %v987 = vld [vmem:[#allocation2 + $0x270] sm:$0xff]
  %v988 = vld [vmem:[#allocation2 + $0x278] sm:$0xff]
  %v989 = vld [vmem:[#allocation2 + $0x280] sm:$0xff]
  %v990 = vld [vmem:[#allocation2 + $0x288] sm:$0xff]
  %v991 = vld [vmem:[#allocation2 + $0x290] sm:$0xff]
  %v992 = vld [vmem:[#allocation2 + $0x298] sm:$0xff]
  %v993 = vld [vmem:[#allocation2 + $0x2a0] sm:$0xff]
  %v994 = vld [vmem:[#allocation2 + $0x2a8] sm:$0xff]
  %v995 = vld [vmem:[#allocation2 + $0x2b0] sm:$0xff]
  %v996 = vld [vmem:[#allocation2 + $0x2b8] sm:$0xff]
  %v997 = vld [vmem:[#allocation2 + $0x2c0] sm:$0xff]
  %v998 = vld [vmem:[#allocation2 + $0x2c8] sm:$0xff]
  %v999 = vld [vmem:[#allocation2 + $0x2d0] sm:$0xff]
  %v1000 = vld [vmem:[#allocation2 + $0x2d8] sm:$0xff]
  %v1001 = vld [vmem:[#allocation2 + $0x2e0] sm:$0xff]
  %v1002 = vld [vmem:[#allocation2 + $0x2e8] sm:$0xff]
  %v1003 = vld [vmem:[#allocation2 + $0x2f0] sm:$0xff]
  %v1004 = vld [vmem:[#allocation2 + $0x2f8] sm:$0xff]
  %v1005 = vld [vmem:[#allocation2 + $0x300] sm:$0xff]
  %v1006 = vld [vmem:[#allocation2 + $0x308] sm:$0xff]
  %v1007 = vld [vmem:[#allocation2 + $0x310] sm:$0xff]
  %v1008 = vld [vmem:[#allocation2 + $0x318] sm:$0xff]
  %v1009 = vld [vmem:[#allocation2 + $0x320] sm:$0xff]
  %v1010 = vld [vmem:[#allocation2 + $0x328] sm:$0xff]
  %v1011 = vld [vmem:[#allocation2 + $0x330] sm:$0xff]
  %v1012 = vld [vmem:[#allocation2 + $0x338] sm:$0xff]
  %v1013 = vld [vmem:[#allocation2 + $0x340] sm:$0xff]
  %v1014 = vld [vmem:[#allocation2 + $0x348] sm:$0xff]
  %v1015 = vld [vmem:[#allocation2 + $0x350] sm:$0xff]
  %v1016 = vld [vmem:[#allocation2 + $0x358] sm:$0xff]
  %v1017 = vld [vmem:[#allocation2 + $0x360] sm:$0xff]
  %v1018 = vld [vmem:[#allocation2 + $0x368] sm:$0xff]
  %v1019 = vld [vmem:[#allocation2 + $0x370] sm:$0xff]
  %v1020 = vld [vmem:[#allocation2 + $0x378] sm:$0xff]
  %v1021 = vld [vmem:[#allocation2 + $0x380] sm:$0xff]
  %v1022 = vld [vmem:[#allocation2 + $0x388] sm:$0xff]
  %v1023 = vld [vmem:[#allocation2 + $0x390] sm:$0xff]
  %v1024 = vld [vmem:[#allocation2 + $0x398] sm:$0xff]
  %v1025 = vld [vmem:[#allocation2 + $0x3a0] sm:$0xff]
  %v1026 = vld [vmem:[#allocation2 + $0x3a8] sm:$0xff]
  %v1027 = vld [vmem:[#allocation2 + $0x3b0] sm:$0xff]
  %v1028 = vld [vmem:[#allocation2 + $0x3b8] sm:$0xff]
  %v1029 = vld [vmem:[#allocation2 + $0x3c0] sm:$0xff]
  %v1030 = vld [vmem:[#allocation2 + $0x3c8] sm:$0xff]
  %v1031 = vld [vmem:[#allocation2 + $0x3d0] sm:$0xff]
  %v1032 = vld [vmem:[#allocation2 + $0x3d8] sm:$0xff]
  %v1033 = vld [vmem:[#allocation2 + $0x3e0] sm:$0xff]
  %v1034 = vld [vmem:[#allocation2 + $0x3e8] sm:$0xff]
  %v1035 = vld [vmem:[#allocation2 + $0x3f0] sm:$0xff]
  %v1036 = vld [vmem:[#allocation2 + $0x3f8] sm:$0xff]
  %v1037 = vld [vmem:[#allocation2 + $0x400] sm:$0xff]
  %v1038 = vld [vmem:[#allocation2 + $0x408] sm:$0xff]
  %v1039 = vld [vmem:[#allocation2 + $0x410] sm:$0xff]
  %v1040 = vld [vmem:[#allocation2 + $0x418] sm:$0xff]
  %v1041 = vld [vmem:[#allocation2 + $0x420] sm:$0xff]
  %v1042 = vld [vmem:[#allocation2 + $0x428] sm:$0xff]
  %v1043 = vld [vmem:[#allocation2 + $0x430] sm:$0xff]
  %v1044 = vld [vmem:[#allocation2 + $0x438] sm:$0xff]
  %v1045 = vld [vmem:[#allocation2 + $0x440] sm:$0xff]
  %v1046 = vld [vmem:[#allocation2 + $0x448] sm:$0xff]
  %v1047 = vld [vmem:[#allocation2 + $0x450] sm:$0xff]
  %v1048 = vld [vmem:[#allocation2 + $0x458] sm:$0xff]
  %v1049 = vld [vmem:[#allocation2 + $0x460] sm:$0xff]
  %v1050 = vld [vmem:[#allocation2 + $0x468] sm:$0xff]
  %v1051 = vld [vmem:[#allocation2 + $0x470] sm:$0xff]
  %v1052 = vld [vmem:[#allocation2 + $0x478] sm:$0xff]
  %v1053 = vld [vmem:[%s6] sm:$0xff]
  %1055 = vset.pattern.permute.xlu0 0
  %1056 = vperm.xlu0 %1055, %v1053
  %v1057 = vpop.permute.xlu0 %1056
  %vm1059 = vcmask 588800
  %v1061 = vsel %vm1059, %v908, 0
  %1063 = vmatprep.subr.mxu0 %v910
  %1064 = vmatpush1.msra.mxu0 %v909
  %1065 = vmatprep.subr.mxu0 %v926
  %1066 = vmatpush1.msra.mxu0 %v925
  %1067 = vmatprep.subr.mxu0 %v942
  %1068 = vmatpush1.msra.mxu0 %v941
  %1069 = vmatprep.subr.mxu0 %v958
  %1070 = vmatpush1.msra.mxu0 %v957
  %1071 = vmatprep.subr.mxu0 %v974
  %1072 = vmatpush1.msra.mxu0 %v973
  %1073 = vmatprep.subr.mxu0 %v990
  %1074 = vmatpush1.msra.mxu0 %v989
  %1075 = vmatprep.subr.mxu0 %v1006
  %1076 = vmatpush1.msra.mxu0 %v1005
  %1077 = vmatprep.subr.mxu0 %v1022
  %1078 = vmatpush1.msra.mxu0 %v1021
  %1079 = vmatprep.subr.mxu0 %v1038
  %1080 = vmatpush1.msra.mxu0 %v1037
  %1081 = vmatprep.subr.mxu0 0.0
  %1082 = vmatpush1.msra.mxu0 0.0
  %1083 = vmatprep.subr.mxu0 0.0
  %1084 = vmatpush1.msra.mxu0 0.0
  %1085 = vmatprep.subr.mxu0 0.0
  %1086 = vmatpush1.msra.mxu0 0.0
  %1087 = vmatprep.subr.mxu0 0.0
  %1088 = vmatpush1.msra.mxu0 0.0
  %1089 = vmatprep.subr.mxu0 0.0
  %1090 = vmatpush1.msra.mxu0 0.0
  %1091 = vmatprep.subr.mxu0 0.0
  %1092 = vmatpush1.msra.mxu0 0.0
  %1093 = vmatprep.subr.mxu0 0.0
  %1094 = vmatpush1.msra.mxu0 0.0
  %1095 = vmatprep.subr.mxu0 0.0
  %1096 = vmatpush1.msra.mxu0 0.0
  %1097 = vmatprep.subr.mxu0 0.0
  %1098 = vmatpush1.msra.mxu0 0.0
  %1099 = vmatprep.subr.mxu0 0.0
  %1100 = vmatpush1.msra.mxu0 0.0
  %1101 = vmatprep.subr.mxu0 0.0
  %1102 = vmatpush1.msra.mxu0 0.0
  %1103 = vmatprep.subr.mxu0 0.0
  %1104 = vmatpush1.msra.mxu0 0.0
  %1105 = vmatprep.subr.mxu0 0.0
  %1106 = vmatpush1.msra.mxu0 0.0
  %1107 = vmatprep.subr.mxu0 0.0
  %1108 = vmatpush1.msra.mxu0 0.0
  %1109 = vmatprep.subr.mxu0 0.0
  %1110 = vmatpush1.msra.mxu0 0.0
  %1111 = vmatprep.subr.mxu0 0.0
  %1112 = vmatpush1.msra.mxu0 0.0
  %1113 = vmatprep.subr.mxu0 0.0
  %1114 = vmatpush1.msra.mxu0 0.0
  %1115 = vmatprep.subr.mxu0 0.0
  %1116 = vmatpush1.msra.mxu0 0.0
  %1117 = vmatprep.subr.mxu0 0.0
  %1118 = vmatpush1.msra.mxu0 0.0
  %1119 = vmatprep.subr.mxu0 0.0
  %1120 = vmatpush1.msra.mxu0 0.0
  %1121 = vmatprep.subr.mxu0 0.0
  %1122 = vmatpush1.msra.mxu0 0.0
  %1123 = vmatprep.subr.mxu0 0.0
  %1124 = vmatpush1.msra.mxu0 0.0
  %1125 = vmatprep.subr.mxu0 0.0
  %1126 = vmatpush1.msra.mxu0 0.0
  %1127 = vmatprep.mubr.f32.mxu0 0.0
  %1128 = vmatmul.mubr.f32.gmra.mrb[0].mxu0 %v1061
  %v1129 = vpop.f32.mrb[0].mxu0
  %v1130 = vadd.f32 %v1057, %v1129
  %v1131 = vpop.f32.mrb[0].mxu0
  %v1132 = vadd.f32 %v1057, %v1131
  %1133 = vdwg.mxu0
  %1134 = vmatprep.subr.mxu0 %v912
  %1135 = vmatpush1.msra.mxu0 %v911
  %1136 = vmatprep.subr.mxu0 %v928
  %1137 = vmatpush1.msra.mxu0 %v927
  %1138 = vmatprep.subr.mxu0 %v944
  %1139 = vmatpush1.msra.mxu0 %v943
  %1140 = vmatprep.subr.mxu0 %v960
  %1141 = vmatpush1.msra.mxu0 %v959
  %1142 = vmatprep.subr.mxu0 %v976
  %1143 = vmatpush1.msra.mxu0 %v975
  %1144 = vmatprep.subr.mxu0 %v992
  %1145 = vmatpush1.msra.mxu0 %v991
  %1146 = vmatprep.subr.mxu0 %v1008
  %1147 = vmatpush1.msra.mxu0 %v1007
  %1148 = vmatprep.subr.mxu0 %v1024
  %1149 = vmatpush1.msra.mxu0 %v1023
  %1150 = vmatprep.subr.mxu0 %v1040
  %1151 = vmatpush1.msra.mxu0 %v1039
  %1152 = vmatprep.subr.mxu0 0.0
  %1153 = vmatpush1.msra.mxu0 0.0
  %1154 = vmatprep.subr.mxu0 0.0
  %1155 = vmatpush1.msra.mxu0 0.0
  %1156 = vmatprep.subr.mxu0 0.0
  %1157 = vmatpush1.msra.mxu0 0.0
  %1158 = vmatprep.subr.mxu0 0.0
  %1159 = vmatpush1.msra.mxu0 0.0
  %1160 = vmatprep.subr.mxu0 0.0
  %1161 = vmatpush1.msra.mxu0 0.0
  %1162 = vmatprep.subr.mxu0 0.0
  %1163 = vmatpush1.msra.mxu0 0.0
  %1164 = vmatprep.subr.mxu0 0.0
  %1165 = vmatpush1.msra.mxu0 0.0
  %1166 = vmatprep.subr.mxu0 0.0
  %1167 = vmatpush1.msra.mxu0 0.0
  %1168 = vmatprep.subr.mxu0 0.0
  %1169 = vmatpush1.msra.mxu0 0.0
  %1170 = vmatprep.subr.mxu0 0.0
  %1171 = vmatpush1.msra.mxu0 0.0
  %1172 = vmatprep.subr.mxu0 0.0
  %1173 = vmatpush1.msra.mxu0 0.0
  %1174 = vmatprep.subr.mxu0 0.0
  %1175 = vmatpush1.msra.mxu0 0.0
  %1176 = vmatprep.subr.mxu0 0.0
  %1177 = vmatpush1.msra.mxu0 0.0
  %1178 = vmatprep.subr.mxu0 0.0
  %1179 = vmatpush1.msra.mxu0 0.0
  %1180 = vmatprep.subr.mxu0 0.0
  %1181 = vmatpush1.msra.mxu0 0.0
  %1182 = vmatprep.subr.mxu0 0.0
  %1183 = vmatpush1.msra.mxu0 0.0
  %1184 = vmatprep.subr.mxu0 0.0
  %1185 = vmatpush1.msra.mxu0 0.0
  %1186 = vmatprep.subr.mxu0 0.0
  %1187 = vmatpush1.msra.mxu0 0.0
  %1188 = vmatprep.subr.mxu0 0.0
  %1189 = vmatpush1.msra.mxu0 0.0
  %1190 = vmatprep.subr.mxu0 0.0
  %1191 = vmatpush1.msra.mxu0 0.0
  %1192 = vmatprep.subr.mxu0 0.0
  %1193 = vmatpush1.msra.mxu0 0.0
  %1194 = vmatprep.subr.mxu0 0.0
  %1195 = vmatpush1.msra.mxu0 0.0
  %1196 = vmatprep.subr.mxu0 0.0
  %1197 = vmatpush1.msra.mxu0 0.0
  %1198 = vmatprep.mubr.f32.mxu0 0.0
  %1199 = vmatmul.mubr.f32.gmra.mrb[0].mxu0 %v1061
  %v1200 = vpop.f32.mrb[0].mxu0
  %v1201 = vadd.f32 %v1057, %v1200
  %v1202 = vpop.f32.mrb[0].mxu0
  %v1203 = vadd.f32 %v1057, %v1202
  %1204 = vdwg.mxu0
  %1205 = vmatprep.subr.mxu0 %v914
  %1206 = vmatpush1.msra.mxu0 %v913
  %1207 = vmatprep.subr.mxu0 %v930
  %1208 = vmatpush1.msra.mxu0 %v929
  %1209 = vmatprep.subr.mxu0 %v946
  %1210 = vmatpush1.msra.mxu0 %v945
  %1211 = vmatprep.subr.mxu0 %v962
  %1212 = vmatpush1.msra.mxu0 %v961
  %1213 = vmatprep.subr.mxu0 %v978
  %1214 = vmatpush1.msra.mxu0 %v977
  %1215 = vmatprep.subr.mxu0 %v994
  %1216 = vmatpush1.msra.mxu0 %v993
  %1217 = vmatprep.subr.mxu0 %v1010
  %1218 = vmatpush1.msra.mxu0 %v1009
  %1219 = vmatprep.subr.mxu0 %v1026
  %1220 = vmatpush1.msra.mxu0 %v1025
  %1221 = vmatprep.subr.mxu0 %v1042
  %1222 = vmatpush1.msra.mxu0 %v1041
  %1223 = vmatprep.subr.mxu0 0.0
  %1224 = vmatpush1.msra.mxu0 0.0
  %1225 = vmatprep.subr.mxu0 0.0
  %1226 = vmatpush1.msra.mxu0 0.0
  %1227 = vmatprep.subr.mxu0 0.0
  %1228 = vmatpush1.msra.mxu0 0.0
  %1229 = vmatprep.subr.mxu0 0.0
  %1230 = vmatpush1.msra.mxu0 0.0
  %1231 = vmatprep.subr.mxu0 0.0
  %1232 = vmatpush1.msra.mxu0 0.0
  %1233 = vmatprep.subr.mxu0 0.0
  %1234 = vmatpush1.msra.mxu0 0.0
  %1235 = vmatprep.subr.mxu0 0.0
  %1236 = vmatpush1.msra.mxu0 0.0
  %1237 = vmatprep.subr.mxu0 0.0
  %1238 = vmatpush1.msra.mxu0 0.0
  %1239 = vmatprep.subr.mxu0 0.0
  %1240 = vmatpush1.msra.mxu0 0.0
  %1241 = vmatprep.subr.mxu0 0.0
  %1242 = vmatpush1.msra.mxu0 0.0
  %1243 = vmatprep.subr.mxu0 0.0
  %1244 = vmatpush1.msra.mxu0 0.0
  %1245 = vmatprep.subr.mxu0 0.0
  %1246 = vmatpush1.msra.mxu0 0.0
  %1247 = vmatprep.subr.mxu0 0.0
  %1248 = vmatpush1.msra.mxu0 0.0
  %1249 = vmatprep.subr.mxu0 0.0
  %1250 = vmatpush1.msra.mxu0 0.0
  %1251 = vmatprep.subr.mxu0 0.0
  %1252 = vmatpush1.msra.mxu0 0.0
  %1253 = vmatprep.subr.mxu0 0.0
  %1254 = vmatpush1.msra.mxu0 0.0
  %1255 = vmatprep.subr.mxu0 0.0
  %1256 = vmatpush1.msra.mxu0 0.0
  %1257 = vmatprep.subr.mxu0 0.0
  %1258 = vmatpush1.msra.mxu0 0.0
  %1259 = vmatprep.subr.mxu0 0.0
  %1260 = vmatpush1.msra.mxu0 0.0
  %1261 = vmatprep.subr.mxu0 0.0
  %1262 = vmatpush1.msra.mxu0 0.0
  %1263 = vmatprep.subr.mxu0 0.0
  %1264 = vmatpush1.msra.mxu0 0.0
  %1265 = vmatprep.subr.mxu0 0.0
  %1266 = vmatpush1.msra.mxu0 0.0
  %1267 = vmatprep.subr.mxu0 0.0
  %1268 = vmatpush1.msra.mxu0 0.0
  %1269 = vmatprep.mubr.f32.mxu0 0.0
  %1270 = vmatmul.mubr.f32.gmra.mrb[0].mxu0 %v1061
  %v1271 = vpop.f32.mrb[0].mxu0
  %v1272 = vadd.f32 %v1057, %v1271
  %v1273 = vpop.f32.mrb[0].mxu0
  %v1274 = vadd.f32 %v1057, %v1273
  %1275 = vdwg.mxu0
  %1276 = vmatprep.subr.mxu0 %v916
  %1277 = vmatpush1.msra.mxu0 %v915
  %1278 = vmatprep.subr.mxu0 %v932
  %1279 = vmatpush1.msra.mxu0 %v931
  %1280 = vmatprep.subr.mxu0 %v948
  %1281 = vmatpush1.msra.mxu0 %v947
  %1282 = vmatprep.subr.mxu0 %v964
  %1283 = vmatpush1.msra.mxu0 %v963
  %1284 = vmatprep.subr.mxu0 %v980
  %1285 = vmatpush1.msra.mxu0 %v979
  %1286 = vmatprep.subr.mxu0 %v996
  %1287 = vmatpush1.msra.mxu0 %v995
  %1288 = vmatprep.subr.mxu0 %v1012
  %1289 = vmatpush1.msra.mxu0 %v1011
  %1290 = vmatprep.subr.mxu0 %v1028
  %1291 = vmatpush1.msra.mxu0 %v1027
  %1292 = vmatprep.subr.mxu0 %v1044
  %1293 = vmatpush1.msra.mxu0 %v1043
  %1294 = vmatprep.subr.mxu0 0.0
  %1295 = vmatpush1.msra.mxu0 0.0
  %1296 = vmatprep.subr.mxu0 0.0
  %1297 = vmatpush1.msra.mxu0 0.0
  %1298 = vmatprep.subr.mxu0 0.0
  %1299 = vmatpush1.msra.mxu0 0.0
  %1300 = vmatprep.subr.mxu0 0.0
  %1301 = vmatpush1.msra.mxu0 0.0
  %1302 = vmatprep.subr.mxu0 0.0
  %1303 = vmatpush1.msra.mxu0 0.0
  %1304 = vmatprep.subr.mxu0 0.0
  %1305 = vmatpush1.msra.mxu0 0.0
  %1306 = vmatprep.subr.mxu0 0.0
  %1307 = vmatpush1.msra.mxu0 0.0
  %1308 = vmatprep.subr.mxu0 0.0
  %1309 = vmatpush1.msra.mxu0 0.0
  %1310 = vmatprep.subr.mxu0 0.0
  %1311 = vmatpush1.msra.mxu0 0.0
  %1312 = vmatprep.subr.mxu0 0.0
  %1313 = vmatpush1.msra.mxu0 0.0
  %1314 = vmatprep.subr.mxu0 0.0
  %1315 = vmatpush1.msra.mxu0 0.0
  %1316 = vmatprep.subr.mxu0 0.0
  %1317 = vmatpush1.msra.mxu0 0.0
  %1318 = vmatprep.subr.mxu0 0.0
  %1319 = vmatpush1.msra.mxu0 0.0
  %1320 = vmatprep.subr.mxu0 0.0
  %1321 = vmatpush1.msra.mxu0 0.0
  %1322 = vmatprep.subr.mxu0 0.0
  %1323 = vmatpush1.msra.mxu0 0.0
  %1324 = vmatprep.subr.mxu0 0.0
  %1325 = vmatpush1.msra.mxu0 0.0
  %1326 = vmatprep.subr.mxu0 0.0
  %1327 = vmatpush1.msra.mxu0 0.0
  %1328 = vmatprep.subr.mxu0 0.0
  %1329 = vmatpush1.msra.mxu0 0.0
  %1330 = vmatprep.subr.mxu0 0.0
  %1331 = vmatpush1.msra.mxu0 0.0
  %1332 = vmatprep.subr.mxu0 0.0
  %1333 = vmatpush1.msra.mxu0 0.0
  %1334 = vmatprep.subr.mxu0 0.0
  %1335 = vmatpush1.msra.mxu0 0.0
  %1336 = vmatprep.subr.mxu0 0.0
  %1337 = vmatpush1.msra.mxu0 0.0
  %1338 = vmatprep.subr.mxu0 0.0
  %1339 = vmatpush1.msra.mxu0 0.0
  %1340 = vmatprep.mubr.f32.mxu0 0.0
  %1341 = vmatmul.mubr.f32.gmra.mrb[0].mxu0 %v1061
  %v1342 = vpop.f32.mrb[0].mxu0
  %v1343 = vadd.f32 %v1057, %v1342
  %v1344 = vpop.f32.mrb[0].mxu0
  %v1345 = vadd.f32 %v1057, %v1344
  %1346 = vdwg.mxu0
  %1347 = vmatprep.subr.mxu0 %v918
  %1348 = vmatpush1.msra.mxu0 %v917
  %1349 = vmatprep.subr.mxu0 %v934
  %1350 = vmatpush1.msra.mxu0 %v933
  %1351 = vmatprep.subr.mxu0 %v950
  %1352 = vmatpush1.msra.mxu0 %v949
  %1353 = vmatprep.subr.mxu0 %v966
  %1354 = vmatpush1.msra.mxu0 %v965
  %1355 = vmatprep.subr.mxu0 %v982
  %1356 = vmatpush1.msra.mxu0 %v981
  %1357 = vmatprep.subr.mxu0 %v998
  %1358 = vmatpush1.msra.mxu0 %v997
  %1359 = vmatprep.subr.mxu0 %v1014
  %1360 = vmatpush1.msra.mxu0 %v1013
  %1361 = vmatprep.subr.mxu0 %v1030
  %1362 = vmatpush1.msra.mxu0 %v1029
  %1363 = vmatprep.subr.mxu0 %v1046
  %1364 = vmatpush1.msra.mxu0 %v1045
  %1365 = vmatprep.subr.mxu0 0.0
  %1366 = vmatpush1.msra.mxu0 0.0
  %1367 = vmatprep.subr.mxu0 0.0
  %1368 = vmatpush1.msra.mxu0 0.0
  %1369 = vmatprep.subr.mxu0 0.0
  %1370 = vmatpush1.msra.mxu0 0.0
  %1371 = vmatprep.subr.mxu0 0.0
  %1372 = vmatpush1.msra.mxu0 0.0
  %1373 = vmatprep.subr.mxu0 0.0
  %1374 = vmatpush1.msra.mxu0 0.0
  %1375 = vmatprep.subr.mxu0 0.0
  %1376 = vmatpush1.msra.mxu0 0.0
  %1377 = vmatprep.subr.mxu0 0.0
  %1378 = vmatpush1.msra.mxu0 0.0
  %1379 = vmatprep.subr.mxu0 0.0
  %1380 = vmatpush1.msra.mxu0 0.0
  %1381 = vmatprep.subr.mxu0 0.0
  %1382 = vmatpush1.msra.mxu0 0.0
  %1383 = vmatprep.subr.mxu0 0.0
  %1384 = vmatpush1.msra.mxu0 0.0
  %1385 = vmatprep.subr.mxu0 0.0
  %1386 = vmatpush1.msra.mxu0 0.0
  %1387 = vmatprep.subr.mxu0 0.0
  %1388 = vmatpush1.msra.mxu0 0.0
  %1389 = vmatprep.subr.mxu0 0.0
  %1390 = vmatpush1.msra.mxu0 0.0
  %1391 = vmatprep.subr.mxu0 0.0
  %1392 = vmatpush1.msra.mxu0 0.0
  %1393 = vmatprep.subr.mxu0 0.0
  %1394 = vmatpush1.msra.mxu0 0.0
  %1395 = vmatprep.subr.mxu0 0.0
  %1396 = vmatpush1.msra.mxu0 0.0
  %1397 = vmatprep.subr.mxu0 0.0
  %1398 = vmatpush1.msra.mxu0 0.0
  %1399 = vmatprep.subr.mxu0 0.0
  %1400 = vmatpush1.msra.mxu0 0.0
  %1401 = vmatprep.subr.mxu0 0.0
  %1402 = vmatpush1.msra.mxu0 0.0
  %1403 = vmatprep.subr.mxu0 0.0
  %1404 = vmatpush1.msra.mxu0 0.0
  %1405 = vmatprep.subr.mxu0 0.0
  %1406 = vmatpush1.msra.mxu0 0.0
  %1407 = vmatprep.subr.mxu0 0.0
  %1408 = vmatpush1.msra.mxu0 0.0
  %1409 = vmatprep.subr.mxu0 0.0
  %1410 = vmatpush1.msra.mxu0 0.0
  %1411 = vmatprep.mubr.f32.mxu0 0.0
  %1412 = vmatmul.mubr.f32.gmra.mrb[0].mxu0 %v1061
  %v1413 = vpop.f32.mrb[0].mxu0
  %v1414 = vadd.f32 %v1057, %v1413
  %v1415 = vpop.f32.mrb[0].mxu0
  %v1416 = vadd.f32 %v1057, %v1415
  %1417 = vdwg.mxu0
  %1418 = vmatprep.subr.mxu0 %v920
  %1419 = vmatpush1.msra.mxu0 %v919
  %1420 = vmatprep.subr.mxu0 %v936
  %1421 = vmatpush1.msra.mxu0 %v935
  %1422 = vmatprep.subr.mxu0 %v952
  %1423 = vmatpush1.msra.mxu0 %v951
  %1424 = vmatprep.subr.mxu0 %v968
  %1425 = vmatpush1.msra.mxu0 %v967
  %1426 = vmatprep.subr.mxu0 %v984
  %1427 = vmatpush1.msra.mxu0 %v983
  %1428 = vmatprep.subr.mxu0 %v1000
  %1429 = vmatpush1.msra.mxu0 %v999
  %1430 = vmatprep.subr.mxu0 %v1016
  %1431 = vmatpush1.msra.mxu0 %v1015
  %1432 = vmatprep.subr.mxu0 %v1032
  %1433 = vmatpush1.msra.mxu0 %v1031
  %1434 = vmatprep.subr.mxu0 %v1048
  %1435 = vmatpush1.msra.mxu0 %v1047
  %1436 = vmatprep.subr.mxu0 0.0
  %1437 = vmatpush1.msra.mxu0 0.0
  %1438 = vmatprep.subr.mxu0 0.0
  %1439 = vmatpush1.msra.mxu0 0.0
  %1440 = vmatprep.subr.mxu0 0.0
  %1441 = vmatpush1.msra.mxu0 0.0
  %1442 = vmatprep.subr.mxu0 0.0
  %1443 = vmatpush1.msra.mxu0 0.0
  %1444 = vmatprep.subr.mxu0 0.0
  %1445 = vmatpush1.msra.mxu0 0.0
  %1446 = vmatprep.subr.mxu0 0.0
  %1447 = vmatpush1.msra.mxu0 0.0
  %1448 = vmatprep.subr.mxu0 0.0
  %1449 = vmatpush1.msra.mxu0 0.0
  %1450 = vmatprep.subr.mxu0 0.0
  %1451 = vmatpush1.msra.mxu0 0.0
  %1452 = vmatprep.subr.mxu0 0.0
  %1453 = vmatpush1.msra.mxu0 0.0
  %1454 = vmatprep.subr.mxu0 0.0
  %1455 = vmatpush1.msra.mxu0 0.0
  %1456 = vmatprep.subr.mxu0 0.0
  %1457 = vmatpush1.msra.mxu0 0.0
  %1458 = vmatprep.subr.mxu0 0.0
  %1459 = vmatpush1.msra.mxu0 0.0
  %1460 = vmatprep.subr.mxu0 0.0
  %1461 = vmatpush1.msra.mxu0 0.0
  %1462 = vmatprep.subr.mxu0 0.0
  %1463 = vmatpush1.msra.mxu0 0.0
  %1464 = vmatprep.subr.mxu0 0.0
  %1465 = vmatpush1.msra.mxu0 0.0
  %1466 = vmatprep.subr.mxu0 0.0
  %1467 = vmatpush1.msra.mxu0 0.0
  %1468 = vmatprep.subr.mxu0 0.0
  %1469 = vmatpush1.msra.mxu0 0.0
  %1470 = vmatprep.subr.mxu0 0.0
  %1471 = vmatpush1.msra.mxu0 0.0
  %1472 = vmatprep.subr.mxu0 0.0
  %1473 = vmatpush1.msra.mxu0 0.0
  %1474 = vmatprep.subr.mxu0 0.0
  %1475 = vmatpush1.msra.mxu0 0.0
  %1476 = vmatprep.subr.mxu0 0.0
  %1477 = vmatpush1.msra.mxu0 0.0
  %1478 = vmatprep.subr.mxu0 0.0
  %1479 = vmatpush1.msra.mxu0 0.0
  %1480 = vmatprep.subr.mxu0 0.0
  %1481 = vmatpush1.msra.mxu0 0.0
  %1482 = vmatprep.mubr.f32.mxu0 0.0
  %1483 = vmatmul.mubr.f32.gmra.mrb[0].mxu0 %v1061
  %v1484 = vpop.f32.mrb[0].mxu0
  %v1485 = vadd.f32 %v1057, %v1484
  %v1486 = vpop.f32.mrb[0].mxu0
  %v1487 = vadd.f32 %v1057, %v1486
  %1488 = vdwg.mxu0
  %1489 = vmatprep.subr.mxu0 %v922
  %1490 = vmatpush1.msra.mxu0 %v921
  %1491 = vmatprep.subr.mxu0 %v938
  %1492 = vmatpush1.msra.mxu0 %v937
  %1493 = vmatprep.subr.mxu0 %v954
  %1494 = vmatpush1.msra.mxu0 %v953
  %1495 = vmatprep.subr.mxu0 %v970
  %1496 = vmatpush1.msra.mxu0 %v969
  %1497 = vmatprep.subr.mxu0 %v986
  %1498 = vmatpush1.msra.mxu0 %v985
  %1499 = vmatprep.subr.mxu0 %v1002
  %1500 = vmatpush1.msra.mxu0 %v1001
  %1501 = vmatprep.subr.mxu0 %v1018
  %1502 = vmatpush1.msra.mxu0 %v1017
  %1503 = vmatprep.subr.mxu0 %v1034
  %1504 = vmatpush1.msra.mxu0 %v1033
  %1505 = vmatprep.subr.mxu0 %v1050
  %1506 = vmatpush1.msra.mxu0 %v1049
  %1507 = vmatprep.subr.mxu0 0.0
  %1508 = vmatpush1.msra.mxu0 0.0
  %1509 = vmatprep.subr.mxu0 0.0
  %1510 = vmatpush1.msra.mxu0 0.0
  %1511 = vmatprep.subr.mxu0 0.0
  %1512 = vmatpush1.msra.mxu0 0.0
  %1513 = vmatprep.subr.mxu0 0.0
  %1514 = vmatpush1.msra.mxu0 0.0
  %1515 = vmatprep.subr.mxu0 0.0
  %1516 = vmatpush1.msra.mxu0 0.0
  %1517 = vmatprep.subr.mxu0 0.0
  %1518 = vmatpush1.msra.mxu0 0.0
  %1519 = vmatprep.subr.mxu0 0.0
  %1520 = vmatpush1.msra.mxu0 0.0
  %1521 = vmatprep.subr.mxu0 0.0
  %1522 = vmatpush1.msra.mxu0 0.0
  %1523 = vmatprep.subr.mxu0 0.0
  %1524 = vmatpush1.msra.mxu0 0.0
  %1525 = vmatprep.subr.mxu0 0.0
  %1526 = vmatpush1.msra.mxu0 0.0
  %1527 = vmatprep.subr.mxu0 0.0
  %1528 = vmatpush1.msra.mxu0 0.0
  %1529 = vmatprep.subr.mxu0 0.0
  %1530 = vmatpush1.msra.mxu0 0.0
  %1531 = vmatprep.subr.mxu0 0.0
  %1532 = vmatpush1.msra.mxu0 0.0
  %1533 = vmatprep.subr.mxu0 0.0
  %1534 = vmatpush1.msra.mxu0 0.0
  %1535 = vmatprep.subr.mxu0 0.0
  %1536 = vmatpush1.msra.mxu0 0.0
  %1537 = vmatprep.subr.mxu0 0.0
  %1538 = vmatpush1.msra.mxu0 0.0
  %1539 = vmatprep.subr.mxu0 0.0
  %1540 = vmatpush1.msra.mxu0 0.0
  %1541 = vmatprep.subr.mxu0 0.0
  %1542 = vmatpush1.msra.mxu0 0.0
  %1543 = vmatprep.subr.mxu0 0.0
  %1544 = vmatpush1.msra.mxu0 0.0
  %1545 = vmatprep.subr.mxu0 0.0
  %1546 = vmatpush1.msra.mxu0 0.0
  %1547 = vmatprep.subr.mxu0 0.0
  %1548 = vmatpush1.msra.mxu0 0.0
  %1549 = vmatprep.subr.mxu0 0.0
  %1550 = vmatpush1.msra.mxu0 0.0
  %1551 = vmatprep.subr.mxu0 0.0
  %1552 = vmatpush1.msra.mxu0 0.0
  %1553 = vmatprep.mubr.f32.mxu0 0.0
  %1554 = vmatmul.mubr.f32.gmra.mrb[0].mxu0 %v1061
  %v1555 = vpop.f32.mrb[0].mxu0
  %v1556 = vadd.f32 %v1057, %v1555
  %v1557 = vpop.f32.mrb[0].mxu0
  %v1558 = vadd.f32 %v1057, %v1557
  %1559 = vdwg.mxu0
  %1560 = vmatprep.subr.mxu0 %v924
  %1561 = vmatpush1.msra.mxu0 %v923
  %1562 = vmatprep.subr.mxu0 %v940
  %1563 = vmatpush1.msra.mxu0 %v939
  %1564 = vmatprep.subr.mxu0 %v956
  %1565 = vmatpush1.msra.mxu0 %v955
  %1566 = vmatprep.subr.mxu0 %v972
  %1567 = vmatpush1.msra.mxu0 %v971
  %1568 = vmatprep.subr.mxu0 %v988
  %1569 = vmatpush1.msra.mxu0 %v987
  %1570 = vmatprep.subr.mxu0 %v1004
  %1571 = vmatpush1.msra.mxu0 %v1003
  %1572 = vmatprep.subr.mxu0 %v1020
  %1573 = vmatpush1.msra.mxu0 %v1019
  %1574 = vmatprep.subr.mxu0 %v1036
  %1575 = vmatpush1.msra.mxu0 %v1035
  %1576 = vmatprep.subr.mxu0 %v1052
  %1577 = vmatpush1.msra.mxu0 %v1051
  %1578 = vmatprep.subr.mxu0 0.0
  %1579 = vmatpush1.msra.mxu0 0.0
  %1580 = vmatprep.subr.mxu0 0.0
  %1581 = vmatpush1.msra.mxu0 0.0
  %1582 = vmatprep.subr.mxu0 0.0
  %1583 = vmatpush1.msra.mxu0 0.0
  %1584 = vmatprep.subr.mxu0 0.0
  %1585 = vmatpush1.msra.mxu0 0.0
  %1586 = vmatprep.subr.mxu0 0.0
  %1587 = vmatpush1.msra.mxu0 0.0
  %1588 = vmatprep.subr.mxu0 0.0
  %1589 = vmatpush1.msra.mxu0 0.0
  %1590 = vmatprep.subr.mxu0 0.0
  %1591 = vmatpush1.msra.mxu0 0.0
  %1592 = vmatprep.subr.mxu0 0.0
  %1593 = vmatpush1.msra.mxu0 0.0
  %1594 = vmatprep.subr.mxu0 0.0
  %1595 = vmatpush1.msra.mxu0 0.0
  %1596 = vmatprep.subr.mxu0 0.0
  %1597 = vmatpush1.msra.mxu0 0.0
  %1598 = vmatprep.subr.mxu0 0.0
  %1599 = vmatpush1.msra.mxu0 0.0
  %1600 = vmatprep.subr.mxu0 0.0
  %1601 = vmatpush1.msra.mxu0 0.0
  %1602 = vmatprep.subr.mxu0 0.0
  %1603 = vmatpush1.msra.mxu0 0.0
  %1604 = vmatprep.subr.mxu0 0.0
  %1605 = vmatpush1.msra.mxu0 0.0
  %1606 = vmatprep.subr.mxu0 0.0
  %1607 = vmatpush1.msra.mxu0 0.0
  %1608 = vmatprep.subr.mxu0 0.0
  %1609 = vmatpush1.msra.mxu0 0.0
  %1610 = vmatprep.subr.mxu0 0.0
  %1611 = vmatpush1.msra.mxu0 0.0
  %1612 = vmatprep.subr.mxu0 0.0
  %1613 = vmatpush1.msra.mxu0 0.0
  %1614 = vmatprep.subr.mxu0 0.0
  %1615 = vmatpush1.msra.mxu0 0.0
  %1616 = vmatprep.subr.mxu0 0.0
  %1617 = vmatpush1.msra.mxu0 0.0
  %1618 = vmatprep.subr.mxu0 0.0
  %1619 = vmatpush1.msra.mxu0 0.0
  %1620 = vmatprep.subr.mxu0 0.0
  %1621 = vmatpush1.msra.mxu0 0.0
  %1622 = vmatprep.subr.mxu0 0.0
  %1623 = vmatpush1.msra.mxu0 0.0
  %1624 = vmatprep.mubr.f32.mxu0 0.0
  %1625 = vmatmul.mubr.f32.gmra.mrb[0].mxu0 %v1061
  %v1626 = vpop.f32.mrb[0].mxu0
  %v1627 = vadd.f32 %v1057, %v1626
  %v1628 = vpop.f32.mrb[0].mxu0
  %v1629 = vadd.f32 %v1057, %v1628
  %1630 = vdwg.mxu0
  %v1639 = vcombine.low %v1130, %v1132
  %v1640 = vcombine.low %v1201, %v1203
  %v1641 = vcombine.low %v1272, %v1274
  %v1642 = vcombine.low %v1343, %v1345
  %v1644 = vunpack.c.l.s4 1966171168
  %v1645 = vunpack.c.0.s8 %v1644
  %v1646 = vlaneseq
  %v1647 = vshrl.u32 %v1646, 7
  %v1648 = vsub.s32 %v1645, %v1647
  %v1649 = vrot.slane %v1639, %v1648
  %v1651 = vunpack.c.l.s4 1966171168
  %v1652 = vunpack.c.0.s8 %v1651
  %v1653 = vlaneseq
  %v1654 = vshrl.u32 %v1653, 7
  %v1655 = vsub.s32 %v1652, %v1654
  %v1656 = vrot.slane %v1640, %v1655
  %v1658 = vunpack.c.l.s4 1966171168
  %v1659 = vunpack.c.0.s8 %v1658
  %v1660 = vlaneseq
  %v1661 = vshrl.u32 %v1660, 7
  %v1662 = vsub.s32 %v1659, %v1661
  %v1663 = vrot.slane %v1641, %v1662
  %v1665 = vunpack.c.l.s4 1966171168
  %v1666 = vunpack.c.0.s8 %v1665
  %v1667 = vlaneseq
  %v1668 = vshrl.u32 %v1667, 7
  %v1669 = vsub.s32 %v1666, %v1668
  %v1670 = vrot.slane %v1642, %v1669
  %v1671 = vcombine.low %v1649, %v1656
  %v1672 = vcombine.low %v1663, %v1670
  %v1674 = vunpack.c.l.s4 1966171168
  %v1675 = vunpack.c.0.s8 %v1674
  %v1676 = vlaneseq
  %v1677 = vshrl.u32 %v1676, 7
  %v1678 = vsub.s32 %v1675, %v1677
  %v1679 = vrot.slane %v1671, %v1678
  %v1681 = vunpack.c.l.s4 1966171168
  %v1682 = vunpack.c.0.s8 %v1681
  %v1683 = vlaneseq
  %v1684 = vshrl.u32 %v1683, 7
  %v1685 = vsub.s32 %v1682, %v1684
  %v1686 = vrot.slane %v1672, %v1685
  %v1687 = vcombine.low %v1679, %v1686
  %1689 = vst [vmem:[#allocation4] ss:$2 sm:$0xff] %v1687
  %v1698 = vcombine.low %v1414, %v1416
  %v1699 = vcombine.low %v1485, %v1487
  %v1700 = vcombine.low %v1556, %v1558
  %v1701 = vcombine.low %v1627, %v1629
  %v1703 = vunpack.c.l.s4 1966171168
  %v1704 = vunpack.c.0.s8 %v1703
  %v1705 = vlaneseq
  %v1706 = vshrl.u32 %v1705, 7
  %v1707 = vsub.s32 %v1704, %v1706
  %v1708 = vrot.slane %v1698, %v1707
  %v1710 = vunpack.c.l.s4 1966171168
  %v1711 = vunpack.c.0.s8 %v1710
  %v1712 = vlaneseq
  %v1713 = vshrl.u32 %v1712, 7
  %v1714 = vsub.s32 %v1711, %v1713
  %v1715 = vrot.slane %v1699, %v1714
  %v1717 = vunpack.c.l.s4 1966171168
  %v1718 = vunpack.c.0.s8 %v1717
  %v1719 = vlaneseq
  %v1720 = vshrl.u32 %v1719, 7
  %v1721 = vsub.s32 %v1718, %v1720
  %v1722 = vrot.slane %v1700, %v1721
  %v1724 = vunpack.c.l.s4 1966171168
  %v1725 = vunpack.c.0.s8 %v1724
  %v1726 = vlaneseq
  %v1727 = vshrl.u32 %v1726, 7
  %v1728 = vsub.s32 %v1725, %v1727
  %v1729 = vrot.slane %v1701, %v1728
  %v1730 = vcombine.low %v1708, %v1715
  %v1731 = vcombine.low %v1722, %v1729
  %v1733 = vunpack.c.l.s4 1966171168
  %v1734 = vunpack.c.0.s8 %v1733
  %v1735 = vlaneseq
  %v1736 = vshrl.u32 %v1735, 7
  %v1737 = vsub.s32 %v1734, %v1736
  %v1738 = vrot.slane %v1730, %v1737
  %v1740 = vunpack.c.l.s4 1966171168
  %v1741 = vunpack.c.0.s8 %v1740
  %v1742 = vlaneseq
  %v1743 = vshrl.u32 %v1742, 7
  %v1744 = vsub.s32 %v1741, %v1743
  %v1745 = vrot.slane %v1731, %v1744
  %v1746 = vcombine.low %v1738, %v1745
  %s1748 = scalar_lea.vmem [#allocation4], 1
  %1749 = vst [vmem:[%s1748] ss:$2 sm:$0xff] %v1746
  %v1750 = vld [vmem:[#allocation4] sm:$0xff]
  %v1751 = vld [vmem:[#allocation4 + $0x8] sm:$0xff]
  %v1752 = vld [vmem:[%s3] sm:$0xff]
  %v1753 = vld [vmem:[%s3 + $0x8] sm:$0xff]
  %v1754 = vld [vmem:[%s3 + $0x10] sm:$0xff]
  %v1755 = vld [vmem:[%s3 + $0x18] sm:$0xff]
  %v1756 = vld [vmem:[%s3 + $0x20] sm:$0xff]
  %v1757 = vld [vmem:[%s3 + $0x28] sm:$0xff]
  %v1758 = vld [vmem:[%s3 + $0x30] sm:$0xff]
  %v1759 = vld [vmem:[%s3 + $0x38] sm:$0xff]
  %v1760 = vld [vmem:[%s3 + $0x40] sm:$0xff]
  %v1761 = vld [vmem:[%s3 + $0x48] sm:$0xff]
  %v1762 = vld [vmem:[%s3 + $0x50] sm:$0xff]
  %v1763 = vld [vmem:[%s3 + $0x58] sm:$0xff]
  %v1764 = vld [vmem:[%s3 + $0x60] sm:$0xff]
  %v1765 = vld [vmem:[%s3 + $0x68] sm:$0xff]
  %v1766 = vld [vmem:[%s3 + $0x70] sm:$0xff]
  %v1767 = vld [vmem:[%s3 + $0x78] sm:$0xff]
  %v1768 = vld [vmem:[%s3 + $0x80] sm:$0xff]
  %v1769 = vld [vmem:[%s3 + $0x88] sm:$0xff]
  %v1770 = vld [vmem:[%s3 + $0x90] sm:$0xff]
  %v1771 = vld [vmem:[%s3 + $0x98] sm:$0xff]
  %v1772 = vld [vmem:[%s3 + $0xa0] sm:$0xff]
  %v1773 = vld [vmem:[%s3 + $0xa8] sm:$0xff]
  %v1774 = vld [vmem:[%s3 + $0xb0] sm:$0xff]
  %v1775 = vld [vmem:[%s3 + $0xb8] sm:$0xff]
  %v1776 = vld [vmem:[%s3 + $0xc0] sm:$0xff]
  %v1777 = vld [vmem:[%s3 + $0xc8] sm:$0xff]
  %v1778 = vld [vmem:[%s3 + $0xd0] sm:$0xff]
  %v1779 = vld [vmem:[%s3 + $0xd8] sm:$0xff]
  %v1780 = vld [vmem:[%s3 + $0xe0] sm:$0xff]
  %v1781 = vld [vmem:[%s3 + $0xe8] sm:$0xff]
  %v1782 = vld [vmem:[%s3 + $0xf0] sm:$0xff]
  %v1783 = vld [vmem:[%s3 + $0xf8] sm:$0xff]
  %v1784 = vld [vmem:[%s3 + $0x100] sm:$0xff]
  %v1785 = vld [vmem:[%s3 + $0x108] sm:$0xff]
  %v1786 = vld [vmem:[%s3 + $0x110] sm:$0xff]
  %v1787 = vld [vmem:[%s3 + $0x118] sm:$0xff]
  %v1788 = vld [vmem:[%s3 + $0x120] sm:$0xff]
  %v1789 = vld [vmem:[%s3 + $0x128] sm:$0xff]
  %v1790 = vld [vmem:[%s3 + $0x130] sm:$0xff]
  %v1791 = vld [vmem:[%s3 + $0x138] sm:$0xff]
  %v1792 = vld [vmem:[%s3 + $0x140] sm:$0xff]
  %v1793 = vld [vmem:[%s3 + $0x148] sm:$0xff]
  %v1794 = vld [vmem:[%s3 + $0x150] sm:$0xff]
  %v1795 = vld [vmem:[%s3 + $0x158] sm:$0xff]
  %v1796 = vld [vmem:[%s3 + $0x160] sm:$0xff]
  %v1797 = vld [vmem:[%s3 + $0x168] sm:$0xff]
  %v1798 = vld [vmem:[%s3 + $0x170] sm:$0xff]
  %v1799 = vld [vmem:[%s3 + $0x178] sm:$0xff]
  %v1800 = vld [vmem:[%s3 + $0x180] sm:$0xff]
  %v1801 = vld [vmem:[%s3 + $0x188] sm:$0xff]
  %v1802 = vld [vmem:[%s3 + $0x190] sm:$0xff]
  %v1803 = vld [vmem:[%s3 + $0x198] sm:$0xff]
  %v1804 = vld [vmem:[%s3 + $0x1a0] sm:$0xff]
  %v1805 = vld [vmem:[%s3 + $0x1a8] sm:$0xff]
  %v1806 = vld [vmem:[%s3 + $0x1b0] sm:$0xff]
  %v1807 = vld [vmem:[%s3 + $0x1b8] sm:$0xff]
  %v1808 = vld [vmem:[%s3 + $0x1c0] sm:$0xff]
  %v1809 = vld [vmem:[%s3 + $0x1c8] sm:$0xff]
  %v1810 = vld [vmem:[%s3 + $0x1d0] sm:$0xff]
  %v1811 = vld [vmem:[%s3 + $0x1d8] sm:$0xff]
  %v1812 = vld [vmem:[%s3 + $0x1e0] sm:$0xff]
  %v1813 = vld [vmem:[%s3 + $0x1e8] sm:$0xff]
  %v1814 = vld [vmem:[%s3 + $0x1f0] sm:$0xff]
  %v1815 = vld [vmem:[%s3 + $0x1f8] sm:$0xff]
  %v1816 = vld [vmem:[%s3 + $0x200] sm:$0xff]
  %v1817 = vld [vmem:[%s3 + $0x208] sm:$0xff]
  %v1818 = vld [vmem:[%s3 + $0x210] sm:$0xff]
  %v1819 = vld [vmem:[%s3 + $0x218] sm:$0xff]
  %v1820 = vld [vmem:[%s3 + $0x220] sm:$0xff]
  %v1821 = vld [vmem:[%s3 + $0x228] sm:$0xff]
  %v1822 = vld [vmem:[%s3 + $0x230] sm:$0xff]
  %v1823 = vld [vmem:[%s3 + $0x238] sm:$0xff]
  %v1824 = vld [vmem:[%s3 + $0x240] sm:$0xff]
  %v1825 = vld [vmem:[%s3 + $0x248] sm:$0xff]
  %v1826 = vld [vmem:[%s3 + $0x250] sm:$0xff]
  %v1827 = vld [vmem:[%s3 + $0x258] sm:$0xff]
  %v1828 = vld [vmem:[%s3 + $0x260] sm:$0xff]
  %v1829 = vld [vmem:[%s3 + $0x268] sm:$0xff]
  %v1830 = vld [vmem:[%s3 + $0x270] sm:$0xff]
  %v1831 = vld [vmem:[%s3 + $0x278] sm:$0xff]
  %v1832 = vld [vmem:[%s3 + $0x280] sm:$0xff]
  %v1833 = vld [vmem:[%s3 + $0x288] sm:$0xff]
  %v1834 = vld [vmem:[%s3 + $0x290] sm:$0xff]
  %v1835 = vld [vmem:[%s3 + $0x298] sm:$0xff]
  %v1836 = vld [vmem:[%s3 + $0x2a0] sm:$0xff]
  %v1837 = vld [vmem:[%s3 + $0x2a8] sm:$0xff]
  %v1838 = vld [vmem:[%s3 + $0x2b0] sm:$0xff]
  %v1839 = vld [vmem:[%s3 + $0x2b8] sm:$0xff]
  %v1840 = vld [vmem:[%s3 + $0x2c0] sm:$0xff]
  %v1841 = vld [vmem:[%s3 + $0x2c8] sm:$0xff]
  %v1842 = vld [vmem:[%s3 + $0x2d0] sm:$0xff]
  %v1843 = vld [vmem:[%s3 + $0x2d8] sm:$0xff]
  %v1844 = vld [vmem:[%s3 + $0x2e0] sm:$0xff]
  %v1845 = vld [vmem:[%s3 + $0x2e8] sm:$0xff]
  %v1846 = vld [vmem:[%s3 + $0x2f0] sm:$0xff]
  %v1847 = vld [vmem:[%s3 + $0x2f8] sm:$0xff]
  %v1848 = vld [vmem:[%s3 + $0x300] sm:$0xff]
  %v1849 = vld [vmem:[%s3 + $0x308] sm:$0xff]
  %v1850 = vld [vmem:[%s3 + $0x310] sm:$0xff]
  %v1851 = vld [vmem:[%s3 + $0x318] sm:$0xff]
  %v1852 = vld [vmem:[%s3 + $0x320] sm:$0xff]
  %v1853 = vld [vmem:[%s3 + $0x328] sm:$0xff]
  %v1854 = vld [vmem:[%s3 + $0x330] sm:$0xff]
  %v1855 = vld [vmem:[%s3 + $0x338] sm:$0xff]
  %v1856 = vld [vmem:[%s3 + $0x340] sm:$0xff]
  %v1857 = vld [vmem:[%s3 + $0x348] sm:$0xff]
  %v1858 = vld [vmem:[%s3 + $0x350] sm:$0xff]
  %v1859 = vld [vmem:[%s3 + $0x358] sm:$0xff]
  %v1860 = vld [vmem:[%s3 + $0x360] sm:$0xff]
  %v1861 = vld [vmem:[%s3 + $0x368] sm:$0xff]
  %v1862 = vld [vmem:[%s3 + $0x370] sm:$0xff]
  %v1863 = vld [vmem:[%s3 + $0x378] sm:$0xff]
  %v1864 = vld [vmem:[%s3 + $0x380] sm:$0xff]
  %v1865 = vld [vmem:[%s3 + $0x388] sm:$0xff]
  %v1866 = vld [vmem:[%s3 + $0x390] sm:$0xff]
  %v1867 = vld [vmem:[%s3 + $0x398] sm:$0xff]
  %v1868 = vld [vmem:[%s3 + $0x3a0] sm:$0xff]
  %v1869 = vld [vmem:[%s3 + $0x3a8] sm:$0xff]
  %v1870 = vld [vmem:[%s3 + $0x3b0] sm:$0xff]
  %v1871 = vld [vmem:[%s3 + $0x3b8] sm:$0xff]
  %v1872 = vld [vmem:[%s3 + $0x3c0] sm:$0xff]
  %v1873 = vld [vmem:[%s3 + $0x3c8] sm:$0xff]
  %v1874 = vld [vmem:[%s3 + $0x3d0] sm:$0xff]
  %v1875 = vld [vmem:[%s3 + $0x3d8] sm:$0xff]
  %v1876 = vld [vmem:[%s3 + $0x3e0] sm:$0xff]
  %v1877 = vld [vmem:[%s3 + $0x3e8] sm:$0xff]
  %v1878 = vld [vmem:[%s3 + $0x3f0] sm:$0xff]
  %v1879 = vld [vmem:[%s3 + $0x3f8] sm:$0xff]
  %v1882 = vcombine.high %v1750, %v1750
  %v1884 = vunpack.c.l.s4 1983009808
  %v1885 = vunpack.c.0.s8 %v1884
  %v1886 = vlaneseq
  %v1887 = vshrl.u32 %v1886, 7
  %v1888 = vsub.s32 %v1885, %v1887
  %v1889 = vrot.slane %v1750, %v1888
  %v1891 = vunpack.c.l.s4 1983009808
  %v1892 = vunpack.c.0.s8 %v1891
  %v1893 = vlaneseq
  %v1894 = vshrl.u32 %v1893, 7
  %v1895 = vsub.s32 %v1892, %v1894
  %v1896 = vrot.slane %v1882, %v1895
  %v1897 = vcombine.high %v1889, %v1889
  %v1898 = vcombine.high %v1896, %v1896
  %v1899 = vcombine.high %v1751, %v1751
  %v1901 = vunpack.c.l.s4 1983009808
  %v1902 = vunpack.c.0.s8 %v1901
  %v1903 = vlaneseq
  %v1904 = vshrl.u32 %v1903, 7
  %v1905 = vsub.s32 %v1902, %v1904
  %v1906 = vrot.slane %v1751, %v1905
  %v1908 = vunpack.c.l.s4 1983009808
  %v1909 = vunpack.c.0.s8 %v1908
  %v1910 = vlaneseq
  %v1911 = vshrl.u32 %v1910, 7
  %v1912 = vsub.s32 %v1909, %v1911
  %v1913 = vrot.slane %v1899, %v1912
  %v1914 = vcombine.high %v1906, %v1906
  %v1915 = vcombine.high %v1913, %v1913
  %1924 = vmatprep.subr.mxu0 0.0
  %1925 = vmatpush1.msra.mxu0 %v1752
  %1926 = vmatprep.subr.mxu0 0.0
  %1927 = vmatpush1.msra.mxu0 %v1753
  %1928 = vmatprep.subr.mxu0 0.0
  %1929 = vmatpush1.msra.mxu0 %v1754
  %1930 = vmatprep.subr.mxu0 0.0
  %1931 = vmatpush1.msra.mxu0 %v1755
  %1932 = vmatprep.subr.mxu0 0.0
  %1933 = vmatpush1.msra.mxu0 %v1756
  %1934 = vmatprep.subr.mxu0 0.0
  %1935 = vmatpush1.msra.mxu0 %v1757
  %1936 = vmatprep.subr.mxu0 0.0
  %1937 = vmatpush1.msra.mxu0 %v1758
  %1938 = vmatprep.subr.mxu0 0.0
  %1939 = vmatpush1.msra.mxu0 %v1759
  %1940 = vmatprep.subr.mxu0 0.0
  %1941 = vmatpush1.msra.mxu0 %v1760
  %1942 = vmatprep.subr.mxu0 0.0
  %1943 = vmatpush1.msra.mxu0 %v1761
  %1944 = vmatprep.subr.mxu0 0.0
  %1945 = vmatpush1.msra.mxu0 %v1762
  %1946 = vmatprep.subr.mxu0 0.0
  %1947 = vmatpush1.msra.mxu0 %v1763
  %1948 = vmatprep.subr.mxu0 0.0
  %1949 = vmatpush1.msra.mxu0 %v1764
  %1950 = vmatprep.subr.mxu0 0.0
  %1951 = vmatpush1.msra.mxu0 %v1765
  %1952 = vmatprep.subr.mxu0 0.0
  %1953 = vmatpush1.msra.mxu0 %v1766
  %1954 = vmatprep.subr.mxu0 0.0
  %1955 = vmatpush1.msra.mxu0 %v1767
  %1956 = vmatprep.subr.mxu0 0.0
  %1957 = vmatpush1.msra.mxu0 %v1768
  %1958 = vmatprep.subr.mxu0 0.0
  %1959 = vmatpush1.msra.mxu0 %v1769
  %1960 = vmatprep.subr.mxu0 0.0
  %1961 = vmatpush1.msra.mxu0 %v1770
  %1962 = vmatprep.subr.mxu0 0.0
  %1963 = vmatpush1.msra.mxu0 %v1771
  %1964 = vmatprep.subr.mxu0 0.0
  %1965 = vmatpush1.msra.mxu0 %v1772
  %1966 = vmatprep.subr.mxu0 0.0
  %1967 = vmatpush1.msra.mxu0 %v1773
  %1968 = vmatprep.subr.mxu0 0.0
  %1969 = vmatpush1.msra.mxu0 %v1774
  %1970 = vmatprep.subr.mxu0 0.0
  %1971 = vmatpush1.msra.mxu0 %v1775
  %1972 = vmatprep.subr.mxu0 0.0
  %1973 = vmatpush1.msra.mxu0 %v1776
  %1974 = vmatprep.subr.mxu0 0.0
  %1975 = vmatpush1.msra.mxu0 %v1777
  %1976 = vmatprep.subr.mxu0 0.0
  %1977 = vmatpush1.msra.mxu0 %v1778
  %1978 = vmatprep.subr.mxu0 0.0
  %1979 = vmatpush1.msra.mxu0 %v1779
  %1980 = vmatprep.subr.mxu0 0.0
  %1981 = vmatpush1.msra.mxu0 %v1780
  %1982 = vmatprep.subr.mxu0 0.0
  %1983 = vmatpush1.msra.mxu0 %v1781
  %1984 = vmatprep.subr.mxu0 0.0
  %1985 = vmatpush1.msra.mxu0 %v1782
  %1986 = vmatprep.subr.mxu0 0.0
  %1987 = vmatpush1.msra.mxu0 %v1783
  %1988 = vmatprep.mubr.f32.mxu0 %v1897
  %1989 = vmatmul.mubr.f32.gmra.mrb[0].mxu0 %v1889
  %v1990 = vpop.f32.mrb[0].mxu0
  %v1991 = vadd.f32 0.0, %v1990
  %v1992 = vpop.f32.mrb[0].mxu0
  %1993 = vdwg.mxu0
  %1994 = vmatprep.subr.mxu0 0.0
  %1995 = vmatpush1.msra.mxu0 %v1784
  %1996 = vmatprep.subr.mxu0 0.0
  %1997 = vmatpush1.msra.mxu0 %v1785
  %1998 = vmatprep.subr.mxu0 0.0
  %1999 = vmatpush1.msra.mxu0 %v1786
  %2000 = vmatprep.subr.mxu0 0.0
  %2001 = vmatpush1.msra.mxu0 %v1787
  %2002 = vmatprep.subr.mxu0 0.0
  %2003 = vmatpush1.msra.mxu0 %v1788
  %2004 = vmatprep.subr.mxu0 0.0
  %2005 = vmatpush1.msra.mxu0 %v1789
  %2006 = vmatprep.subr.mxu0 0.0
  %2007 = vmatpush1.msra.mxu0 %v1790
  %2008 = vmatprep.subr.mxu0 0.0
  %2009 = vmatpush1.msra.mxu0 %v1791
  %2010 = vmatprep.subr.mxu0 0.0
  %2011 = vmatpush1.msra.mxu0 %v1792
  %2012 = vmatprep.subr.mxu0 0.0
  %2013 = vmatpush1.msra.mxu0 %v1793
  %2014 = vmatprep.subr.mxu0 0.0
  %2015 = vmatpush1.msra.mxu0 %v1794
  %2016 = vmatprep.subr.mxu0 0.0
  %2017 = vmatpush1.msra.mxu0 %v1795
  %2018 = vmatprep.subr.mxu0 0.0
  %2019 = vmatpush1.msra.mxu0 %v1796
  %2020 = vmatprep.subr.mxu0 0.0
  %2021 = vmatpush1.msra.mxu0 %v1797
  %2022 = vmatprep.subr.mxu0 0.0
  %2023 = vmatpush1.msra.mxu0 %v1798
  %2024 = vmatprep.subr.mxu0 0.0
  %2025 = vmatpush1.msra.mxu0 %v1799
  %2026 = vmatprep.subr.mxu0 0.0
  %2027 = vmatpush1.msra.mxu0 %v1800
  %2028 = vmatprep.subr.mxu0 0.0
  %2029 = vmatpush1.msra.mxu0 %v1801
  %2030 = vmatprep.subr.mxu0 0.0
  %2031 = vmatpush1.msra.mxu0 %v1802
  %2032 = vmatprep.subr.mxu0 0.0
  %2033 = vmatpush1.msra.mxu0 %v1803
  %2034 = vmatprep.subr.mxu0 0.0
  %2035 = vmatpush1.msra.mxu0 %v1804
  %2036 = vmatprep.subr.mxu0 0.0
  %2037 = vmatpush1.msra.mxu0 %v1805
  %2038 = vmatprep.subr.mxu0 0.0
  %2039 = vmatpush1.msra.mxu0 %v1806
  %2040 = vmatprep.subr.mxu0 0.0
  %2041 = vmatpush1.msra.mxu0 %v1807
  %2042 = vmatprep.subr.mxu0 0.0
  %2043 = vmatpush1.msra.mxu0 %v1808
  %2044 = vmatprep.subr.mxu0 0.0
  %2045 = vmatpush1.msra.mxu0 %v1809
  %2046 = vmatprep.subr.mxu0 0.0
  %2047 = vmatpush1.msra.mxu0 %v1810
  %2048 = vmatprep.subr.mxu0 0.0
  %2049 = vmatpush1.msra.mxu0 %v1811
  %2050 = vmatprep.subr.mxu0 0.0
  %2051 = vmatpush1.msra.mxu0 %v1812
  %2052 = vmatprep.subr.mxu0 0.0
  %2053 = vmatpush1.msra.mxu0 %v1813
  %2054 = vmatprep.subr.mxu0 0.0
  %2055 = vmatpush1.msra.mxu0 %v1814
  %2056 = vmatprep.subr.mxu0 0.0
  %2057 = vmatpush1.msra.mxu0 %v1815
  %2058 = vmatprep.mubr.f32.mxu0 %v1898
  %2059 = vmatmul.mubr.f32.gmra.mrb[0].mxu0 %v1896
  %v2060 = vpop.f32.mrb[0].mxu0
  %v2061 = vadd.f32 %v1991, %v2060
  %v2062 = vpop.f32.mrb[0].mxu0
  %2063 = vdwg.mxu0
  %2064 = vmatprep.subr.mxu0 0.0
  %2065 = vmatpush1.msra.mxu0 %v1816
  %2066 = vmatprep.subr.mxu0 0.0
  %2067 = vmatpush1.msra.mxu0 %v1817
  %2068 = vmatprep.subr.mxu0 0.0
  %2069 = vmatpush1.msra.mxu0 %v1818
  %2070 = vmatprep.subr.mxu0 0.0
  %2071 = vmatpush1.msra.mxu0 %v1819
  %2072 = vmatprep.subr.mxu0 0.0
  %2073 = vmatpush1.msra.mxu0 %v1820
  %2074 = vmatprep.subr.mxu0 0.0
  %2075 = vmatpush1.msra.mxu0 %v1821
  %2076 = vmatprep.subr.mxu0 0.0
  %2077 = vmatpush1.msra.mxu0 %v1822
  %2078 = vmatprep.subr.mxu0 0.0
  %2079 = vmatpush1.msra.mxu0 %v1823
  %2080 = vmatprep.subr.mxu0 0.0
  %2081 = vmatpush1.msra.mxu0 %v1824
  %2082 = vmatprep.subr.mxu0 0.0
  %2083 = vmatpush1.msra.mxu0 %v1825
  %2084 = vmatprep.subr.mxu0 0.0
  %2085 = vmatpush1.msra.mxu0 %v1826
  %2086 = vmatprep.subr.mxu0 0.0
  %2087 = vmatpush1.msra.mxu0 %v1827
  %2088 = vmatprep.subr.mxu0 0.0
  %2089 = vmatpush1.msra.mxu0 %v1828
  %2090 = vmatprep.subr.mxu0 0.0
  %2091 = vmatpush1.msra.mxu0 %v1829
  %2092 = vmatprep.subr.mxu0 0.0
  %2093 = vmatpush1.msra.mxu0 %v1830
  %2094 = vmatprep.subr.mxu0 0.0
  %2095 = vmatpush1.msra.mxu0 %v1831
  %2096 = vmatprep.subr.mxu0 0.0
  %2097 = vmatpush1.msra.mxu0 %v1832
  %2098 = vmatprep.subr.mxu0 0.0
  %2099 = vmatpush1.msra.mxu0 %v1833
  %2100 = vmatprep.subr.mxu0 0.0
  %2101 = vmatpush1.msra.mxu0 %v1834
  %2102 = vmatprep.subr.mxu0 0.0
  %2103 = vmatpush1.msra.mxu0 %v1835
  %2104 = vmatprep.subr.mxu0 0.0
  %2105 = vmatpush1.msra.mxu0 %v1836
  %2106 = vmatprep.subr.mxu0 0.0
  %2107 = vmatpush1.msra.mxu0 %v1837
  %2108 = vmatprep.subr.mxu0 0.0
  %2109 = vmatpush1.msra.mxu0 %v1838
  %2110 = vmatprep.subr.mxu0 0.0
  %2111 = vmatpush1.msra.mxu0 %v1839
  %2112 = vmatprep.subr.mxu0 0.0
  %2113 = vmatpush1.msra.mxu0 %v1840
  %2114 = vmatprep.subr.mxu0 0.0
  %2115 = vmatpush1.msra.mxu0 %v1841
  %2116 = vmatprep.subr.mxu0 0.0
  %2117 = vmatpush1.msra.mxu0 %v1842
  %2118 = vmatprep.subr.mxu0 0.0
  %2119 = vmatpush1.msra.mxu0 %v1843
  %2120 = vmatprep.subr.mxu0 0.0
  %2121 = vmatpush1.msra.mxu0 %v1844
  %2122 = vmatprep.subr.mxu0 0.0
  %2123 = vmatpush1.msra.mxu0 %v1845
  %2124 = vmatprep.subr.mxu0 0.0
  %2125 = vmatpush1.msra.mxu0 %v1846
  %2126 = vmatprep.subr.mxu0 0.0
  %2127 = vmatpush1.msra.mxu0 %v1847
  %2128 = vmatprep.mubr.f32.mxu0 %v1914
  %2129 = vmatmul.mubr.f32.gmra.mrb[0].mxu0 %v1906
  %v2130 = vpop.f32.mrb[0].mxu0
  %v2131 = vadd.f32 %v2061, %v2130
  %v2132 = vpop.f32.mrb[0].mxu0
  %2133 = vdwg.mxu0
  %2134 = vmatprep.subr.mxu0 0.0
  %2135 = vmatpush1.msra.mxu0 %v1848
  %2136 = vmatprep.subr.mxu0 0.0
  %2137 = vmatpush1.msra.mxu0 %v1849
  %2138 = vmatprep.subr.mxu0 0.0
  %2139 = vmatpush1.msra.mxu0 %v1850
  %2140 = vmatprep.subr.mxu0 0.0
  %2141 = vmatpush1.msra.mxu0 %v1851
  %2142 = vmatprep.subr.mxu0 0.0
  %2143 = vmatpush1.msra.mxu0 %v1852
  %2144 = vmatprep.subr.mxu0 0.0
  %2145 = vmatpush1.msra.mxu0 %v1853
  %2146 = vmatprep.subr.mxu0 0.0
  %2147 = vmatpush1.msra.mxu0 %v1854
  %2148 = vmatprep.subr.mxu0 0.0
  %2149 = vmatpush1.msra.mxu0 %v1855
  %2150 = vmatprep.subr.mxu0 0.0
  %2151 = vmatpush1.msra.mxu0 %v1856
  %2152 = vmatprep.subr.mxu0 0.0
  %2153 = vmatpush1.msra.mxu0 %v1857
  %2154 = vmatprep.subr.mxu0 0.0
  %2155 = vmatpush1.msra.mxu0 %v1858
  %2156 = vmatprep.subr.mxu0 0.0
  %2157 = vmatpush1.msra.mxu0 %v1859
  %2158 = vmatprep.subr.mxu0 0.0
  %2159 = vmatpush1.msra.mxu0 %v1860
  %2160 = vmatprep.subr.mxu0 0.0
  %2161 = vmatpush1.msra.mxu0 %v1861
  %2162 = vmatprep.subr.mxu0 0.0
  %2163 = vmatpush1.msra.mxu0 %v1862
  %2164 = vmatprep.subr.mxu0 0.0
  %2165 = vmatpush1.msra.mxu0 %v1863
  %2166 = vmatprep.subr.mxu0 0.0
  %2167 = vmatpush1.msra.mxu0 %v1864
  %2168 = vmatprep.subr.mxu0 0.0
  %2169 = vmatpush1.msra.mxu0 %v1865
  %2170 = vmatprep.subr.mxu0 0.0
  %2171 = vmatpush1.msra.mxu0 %v1866
  %2172 = vmatprep.subr.mxu0 0.0
  %2173 = vmatpush1.msra.mxu0 %v1867
  %2174 = vmatprep.subr.mxu0 0.0
  %2175 = vmatpush1.msra.mxu0 %v1868
  %2176 = vmatprep.subr.mxu0 0.0
  %2177 = vmatpush1.msra.mxu0 %v1869
  %2178 = vmatprep.subr.mxu0 0.0
  %2179 = vmatpush1.msra.mxu0 %v1870
  %2180 = vmatprep.subr.mxu0 0.0
  %2181 = vmatpush1.msra.mxu0 %v1871
  %2182 = vmatprep.subr.mxu0 0.0
  %2183 = vmatpush1.msra.mxu0 %v1872
  %2184 = vmatprep.subr.mxu0 0.0
  %2185 = vmatpush1.msra.mxu0 %v1873
  %2186 = vmatprep.subr.mxu0 0.0
  %2187 = vmatpush1.msra.mxu0 %v1874
  %2188 = vmatprep.subr.mxu0 0.0
  %2189 = vmatpush1.msra.mxu0 %v1875
  %2190 = vmatprep.subr.mxu0 0.0
  %2191 = vmatpush1.msra.mxu0 %v1876
  %2192 = vmatprep.subr.mxu0 0.0
  %2193 = vmatpush1.msra.mxu0 %v1877
  %2194 = vmatprep.subr.mxu0 0.0
  %2195 = vmatpush1.msra.mxu0 %v1878
  %2196 = vmatprep.subr.mxu0 0.0
  %2197 = vmatpush1.msra.mxu0 %v1879
  %2198 = vmatprep.mubr.f32.mxu0 %v1915
  %2199 = vmatmul.mubr.f32.gmra.mrb[0].mxu0 %v1913
  %v2200 = vpop.f32.mrb[0].mxu0
  %v2201 = vadd.f32 %v2131, %v2200
  %v2202 = vpop.f32.mrb[0].mxu0
  %2203 = vdwg.mxu0
  %v2204 = vld [vmem:[%s1] sm:$0x3]
  %v2205 = vsub.f32 %v2204, %v2201
  %v2206 = vld [vmem:[%s4] sm:$0xff]
  %v2207 = vld [vmem:[%s4 + $0x8] sm:$0xff]
  %v2208 = vld [vmem:[%s4 + $0x10] sm:$0xff]
  %v2209 = vld [vmem:[%s4 + $0x18] sm:$0xff]
  %v2210 = vld [vmem:[%s4 + $0x20] sm:$0xff]
  %v2211 = vld [vmem:[%s4 + $0x28] sm:$0xff]
  %v2212 = vld [vmem:[%s4 + $0x30] sm:$0xff]
  %v2213 = vld [vmem:[%s4 + $0x38] sm:$0xff]
  %v2214 = vld [vmem:[%s4 + $0x40] sm:$0xff]
  %v2215 = vld [vmem:[%s4 + $0x48] sm:$0xff]
  %v2216 = vld [vmem:[%s4 + $0x50] sm:$0xff]
  %v2217 = vld [vmem:[%s4 + $0x58] sm:$0xff]
  %v2218 = vld [vmem:[%s4 + $0x60] sm:$0xff]
  %v2219 = vld [vmem:[%s4 + $0x68] sm:$0xff]
  %v2220 = vld [vmem:[%s4 + $0x70] sm:$0xff]
  %v2221 = vld [vmem:[%s4 + $0x78] sm:$0xff]
  %vm2222 = vcmask 130048
  %v2224 = vsel %vm2222, %v2205, 0
  %2226 = vmatprep.subr.mxu0 %v2207
  %2227 = vmatpush1.msra.mxu0 %v2206
  %2228 = vmatprep.subr.mxu0 %v2215
  %2229 = vmatpush1.msra.mxu0 %v2214
  %2230 = vmatprep.subr.mxu0 0.0
  %2231 = vmatpush1.msra.mxu0 0.0
  %2232 = vmatprep.subr.mxu0 0.0
  %2233 = vmatpush1.msra.mxu0 0.0
  %2234 = vmatprep.subr.mxu0 0.0
  %2235 = vmatpush1.msra.mxu0 0.0
  %2236 = vmatprep.subr.mxu0 0.0
  %2237 = vmatpush1.msra.mxu0 0.0
  %2238 = vmatprep.subr.mxu0 0.0
  %2239 = vmatpush1.msra.mxu0 0.0
  %2240 = vmatprep.subr.mxu0 0.0
  %2241 = vmatpush1.msra.mxu0 0.0
  %2242 = vmatprep.subr.mxu0 0.0
  %2243 = vmatpush1.msra.mxu0 0.0
  %2244 = vmatprep.subr.mxu0 0.0
  %2245 = vmatpush1.msra.mxu0 0.0
  %2246 = vmatprep.subr.mxu0 0.0
  %2247 = vmatpush1.msra.mxu0 0.0
  %2248 = vmatprep.subr.mxu0 0.0
  %2249 = vmatpush1.msra.mxu0 0.0
  %2250 = vmatprep.subr.mxu0 0.0
  %2251 = vmatpush1.msra.mxu0 0.0
  %2252 = vmatprep.subr.mxu0 0.0
  %2253 = vmatpush1.msra.mxu0 0.0
  %2254 = vmatprep.subr.mxu0 0.0
  %2255 = vmatpush1.msra.mxu0 0.0
  %2256 = vmatprep.subr.mxu0 0.0
  %2257 = vmatpush1.msra.mxu0 0.0
  %2258 = vmatprep.subr.mxu0 0.0
  %2259 = vmatpush1.msra.mxu0 0.0
  %2260 = vmatprep.subr.mxu0 0.0
  %2261 = vmatpush1.msra.mxu0 0.0
  %2262 = vmatprep.subr.mxu0 0.0
  %2263 = vmatpush1.msra.mxu0 0.0
  %2264 = vmatprep.subr.mxu0 0.0
  %2265 = vmatpush1.msra.mxu0 0.0
  %2266 = vmatprep.subr.mxu0 0.0
  %2267 = vmatpush1.msra.mxu0 0.0
  %2268 = vmatprep.subr.mxu0 0.0
  %2269 = vmatpush1.msra.mxu0 0.0
  %2270 = vmatprep.subr.mxu0 0.0
  %2271 = vmatpush1.msra.mxu0 0.0
  %2272 = vmatprep.subr.mxu0 0.0
  %2273 = vmatpush1.msra.mxu0 0.0
  %2274 = vmatprep.subr.mxu0 0.0
  %2275 = vmatpush1.msra.mxu0 0.0
  %2276 = vmatprep.subr.mxu0 0.0
  %2277 = vmatpush1.msra.mxu0 0.0
  %2278 = vmatprep.subr.mxu0 0.0
  %2279 = vmatpush1.msra.mxu0 0.0
  %2280 = vmatprep.subr.mxu0 0.0
  %2281 = vmatpush1.msra.mxu0 0.0
  %2282 = vmatprep.subr.mxu0 0.0
  %2283 = vmatpush1.msra.mxu0 0.0
  %2284 = vmatprep.subr.mxu0 0.0
  %2285 = vmatpush1.msra.mxu0 0.0
  %2286 = vmatprep.subr.mxu0 0.0
  %2287 = vmatpush1.msra.mxu0 0.0
  %2288 = vmatprep.subr.mxu0 0.0
  %2289 = vmatpush1.msra.mxu0 0.0
  %2290 = vmatprep.mubr.f32.mxu0 0.0
  %2291 = vmatmul.mubr.f32.gmra.mrb[0].mxu0 %v2224
  %v2292 = vpop.f32.mrb[0].mxu0
  %v2293 = vadd.f32 0.0, %v2292
  %v2294 = vpop.f32.mrb[0].mxu0
  %v2295 = vadd.f32 0.0, %v2294
  %2296 = vdwg.mxu0
  %2297 = vmatprep.subr.mxu0 %v2209
  %2298 = vmatpush1.msra.mxu0 %v2208
  %2299 = vmatprep.subr.mxu0 %v2217
  %2300 = vmatpush1.msra.mxu0 %v2216
  %2301 = vmatprep.subr.mxu0 0.0
  %2302 = vmatpush1.msra.mxu0 0.0
  %2303 = vmatprep.subr.mxu0 0.0
  %2304 = vmatpush1.msra.mxu0 0.0
  %2305 = vmatprep.subr.mxu0 0.0
  %2306 = vmatpush1.msra.mxu0 0.0
  %2307 = vmatprep.subr.mxu0 0.0
  %2308 = vmatpush1.msra.mxu0 0.0
  %2309 = vmatprep.subr.mxu0 0.0
  %2310 = vmatpush1.msra.mxu0 0.0
  %2311 = vmatprep.subr.mxu0 0.0
  %2312 = vmatpush1.msra.mxu0 0.0
  %2313 = vmatprep.subr.mxu0 0.0
  %2314 = vmatpush1.msra.mxu0 0.0
  %2315 = vmatprep.subr.mxu0 0.0
  %2316 = vmatpush1.msra.mxu0 0.0
  %2317 = vmatprep.subr.mxu0 0.0
  %2318 = vmatpush1.msra.mxu0 0.0
  %2319 = vmatprep.subr.mxu0 0.0
  %2320 = vmatpush1.msra.mxu0 0.0
  %2321 = vmatprep.subr.mxu0 0.0
  %2322 = vmatpush1.msra.mxu0 0.0
  %2323 = vmatprep.subr.mxu0 0.0
  %2324 = vmatpush1.msra.mxu0 0.0
  %2325 = vmatprep.subr.mxu0 0.0
  %2326 = vmatpush1.msra.mxu0 0.0
  %2327 = vmatprep.subr.mxu0 0.0
  %2328 = vmatpush1.msra.mxu0 0.0
  %2329 = vmatprep.subr.mxu0 0.0
  %2330 = vmatpush1.msra.mxu0 0.0
  %2331 = vmatprep.subr.mxu0 0.0
  %2332 = vmatpush1.msra.mxu0 0.0
  %2333 = vmatprep.subr.mxu0 0.0
  %2334 = vmatpush1.msra.mxu0 0.0
  %2335 = vmatprep.subr.mxu0 0.0
  %2336 = vmatpush1.msra.mxu0 0.0
  %2337 = vmatprep.subr.mxu0 0.0
  %2338 = vmatpush1.msra.mxu0 0.0
  %2339 = vmatprep.subr.mxu0 0.0
  %2340 = vmatpush1.msra.mxu0 0.0
  %2341 = vmatprep.subr.mxu0 0.0
  %2342 = vmatpush1.msra.mxu0 0.0
  %2343 = vmatprep.subr.mxu0 0.0
  %2344 = vmatpush1.msra.mxu0 0.0
  %2345 = vmatprep.subr.mxu0 0.0
  %2346 = vmatpush1.msra.mxu0 0.0
  %2347 = vmatprep.subr.mxu0 0.0
  %2348 = vmatpush1.msra.mxu0 0.0
  %2349 = vmatprep.subr.mxu0 0.0
  %2350 = vmatpush1.msra.mxu0 0.0
  %2351 = vmatprep.subr.mxu0 0.0
  %2352 = vmatpush1.msra.mxu0 0.0
  %2353 = vmatprep.subr.mxu0 0.0
  %2354 = vmatpush1.msra.mxu0 0.0
  %2355 = vmatprep.subr.mxu0 0.0
  %2356 = vmatpush1.msra.mxu0 0.0
  %2357 = vmatprep.subr.mxu0 0.0
  %2358 = vmatpush1.msra.mxu0 0.0
  %2359 = vmatprep.subr.mxu0 0.0
  %2360 = vmatpush1.msra.mxu0 0.0
  %2361 = vmatprep.mubr.f32.mxu0 0.0
  %2362 = vmatmul.mubr.f32.gmra.mrb[0].mxu0 %v2224
  %v2363 = vpop.f32.mrb[0].mxu0
  %v2364 = vadd.f32 0.0, %v2363
  %v2365 = vpop.f32.mrb[0].mxu0
  %v2366 = vadd.f32 0.0, %v2365
  %2367 = vdwg.mxu0
  %2368 = vmatprep.subr.mxu0 %v2211
  %2369 = vmatpush1.msra.mxu0 %v2210
  %2370 = vmatprep.subr.mxu0 %v2219
  %2371 = vmatpush1.msra.mxu0 %v2218
  %2372 = vmatprep.subr.mxu0 0.0
  %2373 = vmatpush1.msra.mxu0 0.0
  %2374 = vmatprep.subr.mxu0 0.0
  %2375 = vmatpush1.msra.mxu0 0.0
  %2376 = vmatprep.subr.mxu0 0.0
  %2377 = vmatpush1.msra.mxu0 0.0
  %2378 = vmatprep.subr.mxu0 0.0
  %2379 = vmatpush1.msra.mxu0 0.0
  %2380 = vmatprep.subr.mxu0 0.0
  %2381 = vmatpush1.msra.mxu0 0.0
  %2382 = vmatprep.subr.mxu0 0.0
  %2383 = vmatpush1.msra.mxu0 0.0
  %2384 = vmatprep.subr.mxu0 0.0
  %2385 = vmatpush1.msra.mxu0 0.0
  %2386 = vmatprep.subr.mxu0 0.0
  %2387 = vmatpush1.msra.mxu0 0.0
  %2388 = vmatprep.subr.mxu0 0.0
  %2389 = vmatpush1.msra.mxu0 0.0
  %2390 = vmatprep.subr.mxu0 0.0
  %2391 = vmatpush1.msra.mxu0 0.0
  %2392 = vmatprep.subr.mxu0 0.0
  %2393 = vmatpush1.msra.mxu0 0.0
  %2394 = vmatprep.subr.mxu0 0.0
  %2395 = vmatpush1.msra.mxu0 0.0
  %2396 = vmatprep.subr.mxu0 0.0
  %2397 = vmatpush1.msra.mxu0 0.0
  %2398 = vmatprep.subr.mxu0 0.0
  %2399 = vmatpush1.msra.mxu0 0.0
  %2400 = vmatprep.subr.mxu0 0.0
  %2401 = vmatpush1.msra.mxu0 0.0
  %2402 = vmatprep.subr.mxu0 0.0
  %2403 = vmatpush1.msra.mxu0 0.0
  %2404 = vmatprep.subr.mxu0 0.0
  %2405 = vmatpush1.msra.mxu0 0.0
  %2406 = vmatprep.subr.mxu0 0.0
  %2407 = vmatpush1.msra.mxu0 0.0
  %2408 = vmatprep.subr.mxu0 0.0
  %2409 = vmatpush1.msra.mxu0 0.0
  %2410 = vmatprep.subr.mxu0 0.0
  %2411 = vmatpush1.msra.mxu0 0.0
  %2412 = vmatprep.subr.mxu0 0.0
  %2413 = vmatpush1.msra.mxu0 0.0
  %2414 = vmatprep.subr.mxu0 0.0
  %2415 = vmatpush1.msra.mxu0 0.0
  %2416 = vmatprep.subr.mxu0 0.0
  %2417 = vmatpush1.msra.mxu0 0.0
  %2418 = vmatprep.subr.mxu0 0.0
  %2419 = vmatpush1.msra.mxu0 0.0
  %2420 = vmatprep.subr.mxu0 0.0
  %2421 = vmatpush1.msra.mxu0 0.0
  %2422 = vmatprep.subr.mxu0 0.0
  %2423 = vmatpush1.msra.mxu0 0.0
  %2424 = vmatprep.subr.mxu0 0.0
  %2425 = vmatpush1.msra.mxu0 0.0
  %2426 = vmatprep.subr.mxu0 0.0
  %2427 = vmatpush1.msra.mxu0 0.0
  %2428 = vmatprep.subr.mxu0 0.0
  %2429 = vmatpush1.msra.mxu0 0.0
  %2430 = vmatprep.subr.mxu0 0.0
  %2431 = vmatpush1.msra.mxu0 0.0
  %2432 = vmatprep.mubr.f32.mxu0 0.0
  %2433 = vmatmul.mubr.f32.gmra.mrb[0].mxu0 %v2224
  %v2434 = vpop.f32.mrb[0].mxu0
  %v2435 = vadd.f32 0.0, %v2434
  %v2436 = vpop.f32.mrb[0].mxu0
  %v2437 = vadd.f32 0.0, %v2436
  %2438 = vdwg.mxu0
  %2439 = vmatprep.subr.mxu0 %v2213
  %2440 = vmatpush1.msra.mxu0 %v2212
  %2441 = vmatprep.subr.mxu0 %v2221
  %2442 = vmatpush1.msra.mxu0 %v2220
  %2443 = vmatprep.subr.mxu0 0.0
  %2444 = vmatpush1.msra.mxu0 0.0
  %2445 = vmatprep.subr.mxu0 0.0
  %2446 = vmatpush1.msra.mxu0 0.0
  %2447 = vmatprep.subr.mxu0 0.0
  %2448 = vmatpush1.msra.mxu0 0.0
  %2449 = vmatprep.subr.mxu0 0.0
  %2450 = vmatpush1.msra.mxu0 0.0
  %2451 = vmatprep.subr.mxu0 0.0
  %2452 = vmatpush1.msra.mxu0 0.0
  %2453 = vmatprep.subr.mxu0 0.0
  %2454 = vmatpush1.msra.mxu0 0.0
  %2455 = vmatprep.subr.mxu0 0.0
  %2456 = vmatpush1.msra.mxu0 0.0
  %2457 = vmatprep.subr.mxu0 0.0
  %2458 = vmatpush1.msra.mxu0 0.0
  %2459 = vmatprep.subr.mxu0 0.0
  %2460 = vmatpush1.msra.mxu0 0.0
  %2461 = vmatprep.subr.mxu0 0.0
  %2462 = vmatpush1.msra.mxu0 0.0
  %2463 = vmatprep.subr.mxu0 0.0
  %2464 = vmatpush1.msra.mxu0 0.0
  %2465 = vmatprep.subr.mxu0 0.0
  %2466 = vmatpush1.msra.mxu0 0.0
  %2467 = vmatprep.subr.mxu0 0.0
  %2468 = vmatpush1.msra.mxu0 0.0
  %2469 = vmatprep.subr.mxu0 0.0
  %2470 = vmatpush1.msra.mxu0 0.0
  %2471 = vmatprep.subr.mxu0 0.0
  %2472 = vmatpush1.msra.mxu0 0.0
  %2473 = vmatprep.subr.mxu0 0.0
  %2474 = vmatpush1.msra.mxu0 0.0
  %2475 = vmatprep.subr.mxu0 0.0
  %2476 = vmatpush1.msra.mxu0 0.0
  %2477 = vmatprep.subr.mxu0 0.0
  %2478 = vmatpush1.msra.mxu0 0.0
  %2479 = vmatprep.subr.mxu0 0.0
  %2480 = vmatpush1.msra.mxu0 0.0
  %2481 = vmatprep.subr.mxu0 0.0
  %2482 = vmatpush1.msra.mxu0 0.0
  %2483 = vmatprep.subr.mxu0 0.0
  %2484 = vmatpush1.msra.mxu0 0.0
  %2485 = vmatprep.subr.mxu0 0.0
  %2486 = vmatpush1.msra.mxu0 0.0
  %2487 = vmatprep.subr.mxu0 0.0
  %2488 = vmatpush1.msra.mxu0 0.0
  %2489 = vmatprep.subr.mxu0 0.0
  %2490 = vmatpush1.msra.mxu0 0.0
  %2491 = vmatprep.subr.mxu0 0.0
  %2492 = vmatpush1.msra.mxu0 0.0
  %2493 = vmatprep.subr.mxu0 0.0
  %2494 = vmatpush1.msra.mxu0 0.0
  %2495 = vmatprep.subr.mxu0 0.0
  %2496 = vmatpush1.msra.mxu0 0.0
  %2497 = vmatprep.subr.mxu0 0.0
  %2498 = vmatpush1.msra.mxu0 0.0
  %2499 = vmatprep.subr.mxu0 0.0
  %2500 = vmatpush1.msra.mxu0 0.0
  %2501 = vmatprep.subr.mxu0 0.0
  %2502 = vmatpush1.msra.mxu0 0.0
  %2503 = vmatprep.mubr.f32.mxu0 0.0
  %2504 = vmatmul.mubr.f32.gmra.mrb[0].mxu0 %v2224
  %v2505 = vpop.f32.mrb[0].mxu0
  %v2506 = vadd.f32 0.0, %v2505
  %v2507 = vpop.f32.mrb[0].mxu0
  %v2508 = vadd.f32 0.0, %v2507
  %2509 = vdwg.mxu0
  %2510 = vst [vmem:[#allocation3] sm:$0xff] 0.0
  %2511 = vst [vmem:[#allocation3 + $0x8] sm:$0xff] 0.0
  %2512 = vst [vmem:[#allocation3 + $0x10] sm:$0xff] 0.0
  %2513 = vst [vmem:[#allocation3 + $0x18] sm:$0xff] 0.0
  %2514 = vst [vmem:[#allocation3 + $0x20] sm:$0xff] 0.0
  %2515 = vst [vmem:[#allocation3 + $0x28] sm:$0xff] 0.0
  %2516 = vst [vmem:[#allocation3 + $0x30] sm:$0xff] 0.0
  %2517 = vst [vmem:[#allocation3 + $0x38] sm:$0xff] 0.0
  %2518 = vst [vmem:[#allocation3 + $0x40] sm:$0xff] 0.0
  %2519 = vst [vmem:[#allocation3 + $0x48] sm:$0xff] 0.0
  %2520 = vst [vmem:[#allocation3 + $0x50] sm:$0xff] 0.0
  %2521 = vst [vmem:[#allocation3 + $0x58] sm:$0xff] 0.0
  %2522 = vst [vmem:[#allocation3 + $0x60] sm:$0xff] 0.0
  %2523 = vst [vmem:[#allocation3 + $0x68] sm:$0xff] 0.0
  %2524 = vst [vmem:[#allocation3 + $0x70] sm:$0xff] 0.0
  %2525 = vst [vmem:[#allocation3 + $0x78] sm:$0xff] 0.0
  %v2534 = vcombine.low %v2293, %v2295
  %v2535 = vcombine.low %v2364, %v2366
  %v2536 = vcombine.low %v2435, %v2437
  %v2537 = vcombine.low %v2506, %v2508
  %v2539 = vunpack.c.l.s4 1966171168
  %v2540 = vunpack.c.0.s8 %v2539
  %v2541 = vlaneseq
  %v2542 = vshrl.u32 %v2541, 7
  %v2543 = vsub.s32 %v2540, %v2542
  %v2544 = vrot.slane %v2534, %v2543
  %v2546 = vunpack.c.l.s4 1966171168
  %v2547 = vunpack.c.0.s8 %v2546
  %v2548 = vlaneseq
  %v2549 = vshrl.u32 %v2548, 7
  %v2550 = vsub.s32 %v2547, %v2549
  %v2551 = vrot.slane %v2535, %v2550
  %v2553 = vunpack.c.l.s4 1966171168
  %v2554 = vunpack.c.0.s8 %v2553
  %v2555 = vlaneseq
  %v2556 = vshrl.u32 %v2555, 7
  %v2557 = vsub.s32 %v2554, %v2556
  %v2558 = vrot.slane %v2536, %v2557
  %v2560 = vunpack.c.l.s4 1966171168
  %v2561 = vunpack.c.0.s8 %v2560
  %v2562 = vlaneseq
  %v2563 = vshrl.u32 %v2562, 7
  %v2564 = vsub.s32 %v2561, %v2563
  %v2565 = vrot.slane %v2537, %v2564
  %v2566 = vcombine.low %v2544, %v2551
  %v2567 = vcombine.low %v2558, %v2565
  %v2569 = vunpack.c.l.s4 1966171168
  %v2570 = vunpack.c.0.s8 %v2569
  %v2571 = vlaneseq
  %v2572 = vshrl.u32 %v2571, 7
  %v2573 = vsub.s32 %v2570, %v2572
  %v2574 = vrot.slane %v2566, %v2573
  %v2576 = vunpack.c.l.s4 1966171168
  %v2577 = vunpack.c.0.s8 %v2576
  %v2578 = vlaneseq
  %v2579 = vshrl.u32 %v2578, 7
  %v2580 = vsub.s32 %v2577, %v2579
  %v2581 = vrot.slane %v2567, %v2580
  %v2582 = vcombine.low %v2574, %v2581
  %2584 = vst [vmem:[#allocation3] ss:$8 sm:$0xf] %v2582
  %2585 = vst [vmem:[#allocation3] ss:$8 sm:$0xf0] %v2582
  %v2586 = vcombine.high %v2544, %v2551
  %v2587 = vcombine.high %v2558, %v2565
  %v2589 = vunpack.c.l.s4 1966171168
  %v2590 = vunpack.c.0.s8 %v2589
  %v2591 = vlaneseq
  %v2592 = vshrl.u32 %v2591, 7
  %v2593 = vsub.s32 %v2590, %v2592
  %v2594 = vrot.slane %v2586, %v2593
  %v2596 = vunpack.c.l.s4 1966171168
  %v2597 = vunpack.c.0.s8 %v2596
  %v2598 = vlaneseq
  %v2599 = vshrl.u32 %v2598, 7
  %v2600 = vsub.s32 %v2597, %v2599
  %v2601 = vrot.slane %v2587, %v2600
  %v2602 = vcombine.low %v2594, %v2601
  %s2604 = scalar_lea.vmem [#allocation3], 64
  %2605 = vst [vmem:[%s2604] ss:$8 sm:$0xf] %v2602
  %2606 = vst [vmem:[%s2604] ss:$8 sm:$0xf0] %v2602
  %v2607 = vld [vmem:[#allocation3] sm:$0xff]
  %v2608 = vld [vmem:[#allocation3 + $0x8] sm:$0xff]
  %v2609 = vld [vmem:[#allocation3 + $0x10] sm:$0xff]
  %v2610 = vld [vmem:[#allocation3 + $0x18] sm:$0xff]
  %v2611 = vld [vmem:[#allocation3 + $0x20] sm:$0xff]
  %v2612 = vld [vmem:[#allocation3 + $0x28] sm:$0xff]
  %v2613 = vld [vmem:[#allocation3 + $0x30] sm:$0xff]
  %v2614 = vld [vmem:[#allocation3 + $0x38] sm:$0xff]
  %v2615 = vld [vmem:[#allocation3 + $0x40] sm:$0xff]
  %v2616 = vld [vmem:[#allocation3 + $0x48] sm:$0xff]
  %v2617 = vld [vmem:[#allocation3 + $0x50] sm:$0xff]
  %v2618 = vld [vmem:[#allocation3 + $0x58] sm:$0xff]
  %v2619 = vld [vmem:[#allocation3 + $0x60] sm:$0xff]
  %v2620 = vld [vmem:[#allocation3 + $0x68] sm:$0xff]
  %v2621 = vld [vmem:[#allocation3 + $0x70] sm:$0xff]
  %v2622 = vld [vmem:[#allocation3 + $0x78] sm:$0xff]
  %2623 = vrot.lane.b32.xlu0 %v2607, 33
  %v2624 = vpop.permute.xlu0 %2623
  %2625 = vrot.lane.b32.xlu0 %v2608, 33
  %v2626 = vpop.permute.xlu0 %2625
  %2627 = vrot.lane.b32.xlu0 %v2609, 33
  %v2628 = vpop.permute.xlu0 %2627
  %2629 = vrot.lane.b32.xlu0 %v2610, 33
  %v2630 = vpop.permute.xlu0 %2629
  %2631 = vrot.lane.b32.xlu0 %v2611, 33
  %v2632 = vpop.permute.xlu0 %2631
  %2633 = vrot.lane.b32.xlu0 %v2612, 33
  %v2634 = vpop.permute.xlu0 %2633
  %2635 = vrot.lane.b32.xlu0 %v2613, 33
  %v2636 = vpop.permute.xlu0 %2635
  %2637 = vrot.lane.b32.xlu0 %v2614, 33
  %v2638 = vpop.permute.xlu0 %2637
  %2639 = vrot.lane.b32.xlu0 %v2615, 33
  %v2640 = vpop.permute.xlu0 %2639
  %2641 = vrot.lane.b32.xlu0 %v2616, 33
  %v2642 = vpop.permute.xlu0 %2641
  %2643 = vrot.lane.b32.xlu0 %v2617, 33
  %v2644 = vpop.permute.xlu0 %2643
  %2645 = vrot.lane.b32.xlu0 %v2618, 33
  %v2646 = vpop.permute.xlu0 %2645
  %2647 = vrot.lane.b32.xlu0 %v2619, 33
  %v2648 = vpop.permute.xlu0 %2647
  %2649 = vrot.lane.b32.xlu0 %v2620, 33
  %v2650 = vpop.permute.xlu0 %2649
  %2651 = vrot.lane.b32.xlu0 %v2621, 33
  %v2652 = vpop.permute.xlu0 %2651
  %2653 = vrot.lane.b32.xlu0 %v2622, 33
  %v2654 = vpop.permute.xlu0 %2653
  %v2655 = vsel %vm141, %v2652, %v2654
  %v2656 = vsel %vm141, %v2650, %v2652
  %v2657 = vsel %vm141, %v2648, %v2650
  %v2658 = vsel %vm141, %v2646, %v2648
  %v2659 = vsel %vm141, %v2644, %v2646
  %v2660 = vsel %vm141, %v2642, %v2644
  %v2661 = vsel %vm141, %v2640, %v2642
  %v2662 = vsel %vm141, %v2638, %v2640
  %v2663 = vsel %vm141, %v2636, %v2638
  %v2664 = vsel %vm141, %v2634, %v2636
  %v2665 = vsel %vm141, %v2632, %v2634
  %v2666 = vsel %vm141, %v2630, %v2632
  %v2667 = vsel %vm141, %v2628, %v2630
  %v2668 = vsel %vm141, %v2626, %v2628
  %v2669 = vsel %vm141, %v2624, %v2626
  %v2670 = vsel %vm141, %v2654, %v2624
  %v2671 = vld [vmem:[%s2] sm:$0xff]
  %v2672 = vld [vmem:[%s2 + $0x8] sm:$0xff]
  %v2673 = vld [vmem:[%s2 + $0x10] sm:$0xff]
  %v2674 = vld [vmem:[%s2 + $0x18] sm:$0xff]
  %v2675 = vld [vmem:[%s2 + $0x20] sm:$0xff]
  %v2676 = vld [vmem:[%s2 + $0x28] sm:$0xff]
  %v2677 = vld [vmem:[%s2 + $0x30] sm:$0xff]
  %v2678 = vld [vmem:[%s2 + $0x38] sm:$0xff]
  %v2679 = vld [vmem:[%s2 + $0x40] sm:$0xff]
  %v2680 = vld [vmem:[%s2 + $0x48] sm:$0xff]
  %v2681 = vld [vmem:[%s2 + $0x50] sm:$0xff]
  %v2682 = vld [vmem:[%s2 + $0x58] sm:$0xff]
  %v2683 = vld [vmem:[%s2 + $0x60] sm:$0xff]
  %v2684 = vld [vmem:[%s2 + $0x68] sm:$0xff]
  %v2685 = vld [vmem:[%s2 + $0x70] sm:$0xff]
  %v2686 = vld [vmem:[%s2 + $0x78] sm:$0xff]
  %v2687 = vmul.f32 %v2670, %v2671
  %v2688 = vmul.f32 %v2669, %v2672
  %v2689 = vmul.f32 %v2668, %v2673
  %v2690 = vmul.f32 %v2667, %v2674
  %v2691 = vmul.f32 %v2666, %v2675
  %v2692 = vmul.f32 %v2665, %v2676
  %v2693 = vmul.f32 %v2664, %v2677
  %v2694 = vmul.f32 %v2663, %v2678
  %v2695 = vmul.f32 %v2662, %v2679
  %v2696 = vmul.f32 %v2661, %v2680
  %v2697 = vmul.f32 %v2660, %v2681
  %v2698 = vmul.f32 %v2659, %v2682
  %v2699 = vmul.f32 %v2658, %v2683
  %v2700 = vmul.f32 %v2657, %v2684
  %v2701 = vmul.f32 %v2656, %v2685
  %v2702 = vmul.f32 %v2655, %v2686
  %2703 = vst [vmem:[#allocation2] sm:$0xff] %v2687
  %2704 = vst [vmem:[#allocation2 + $0x8] sm:$0xff] %v2688
  %2705 = vst [vmem:[#allocation2 + $0x10] sm:$0xff] %v2689
  %2706 = vst [vmem:[#allocation2 + $0x18] sm:$0xff] %v2690
  %2707 = vst [vmem:[#allocation2 + $0x20] sm:$0xff] %v2691
  %2708 = vst [vmem:[#allocation2 + $0x28] sm:$0xff] %v2692
  %2709 = vst [vmem:[#allocation2 + $0x30] sm:$0xff] %v2693
  %2710 = vst [vmem:[#allocation2 + $0x38] sm:$0xff] %v2694
  %2711 = vst [vmem:[#allocation2 + $0x40] sm:$0xff] %v2695
  %2712 = vst [vmem:[#allocation2 + $0x48] sm:$0xff] %v2696
  %2713 = vst [vmem:[#allocation2 + $0x50] sm:$0xff] %v2697
  %2714 = vst [vmem:[#allocation2 + $0x58] sm:$0xff] %v2698
  %2715 = vst [vmem:[#allocation2 + $0x60] sm:$0xff] %v2699
  %2716 = vst [vmem:[#allocation2 + $0x68] sm:$0xff] %v2700
  %2717 = vst [vmem:[#allocation2 + $0x70] sm:$0xff] %v2701
  %2718 = vst [vmem:[#allocation2 + $0x78] sm:$0xff] %v2702
  %2719 = vrot.lane.b32.xlu0 %v2607, 32
  %v2720 = vpop.permute.xlu0 %2719
  %2721 = vrot.lane.b32.xlu0 %v2608, 32
  %v2722 = vpop.permute.xlu0 %2721
  %2723 = vrot.lane.b32.xlu0 %v2609, 32
  %v2724 = vpop.permute.xlu0 %2723
  %2725 = vrot.lane.b32.xlu0 %v2610, 32
  %v2726 = vpop.permute.xlu0 %2725
  %2727 = vrot.lane.b32.xlu0 %v2611, 32
  %v2728 = vpop.permute.xlu0 %2727
  %2729 = vrot.lane.b32.xlu0 %v2612, 32
  %v2730 = vpop.permute.xlu0 %2729
  %2731 = vrot.lane.b32.xlu0 %v2613, 32
  %v2732 = vpop.permute.xlu0 %2731
  %2733 = vrot.lane.b32.xlu0 %v2614, 32
  %v2734 = vpop.permute.xlu0 %2733
  %2735 = vrot.lane.b32.xlu0 %v2615, 32
  %v2736 = vpop.permute.xlu0 %2735
  %2737 = vrot.lane.b32.xlu0 %v2616, 32
  %v2738 = vpop.permute.xlu0 %2737
  %2739 = vrot.lane.b32.xlu0 %v2617, 32
  %v2740 = vpop.permute.xlu0 %2739
  %2741 = vrot.lane.b32.xlu0 %v2618, 32
  %v2742 = vpop.permute.xlu0 %2741
  %2743 = vrot.lane.b32.xlu0 %v2619, 32
  %v2744 = vpop.permute.xlu0 %2743
  %2745 = vrot.lane.b32.xlu0 %v2620, 32
  %v2746 = vpop.permute.xlu0 %2745
  %2747 = vrot.lane.b32.xlu0 %v2621, 32
  %v2748 = vpop.permute.xlu0 %2747
  %2749 = vrot.lane.b32.xlu0 %v2622, 32
  %v2750 = vpop.permute.xlu0 %2749
  %v2751 = vsel %vm238, %v2748, %v2750
  %v2752 = vsel %vm238, %v2746, %v2748
  %v2753 = vsel %vm238, %v2744, %v2746
  %v2754 = vsel %vm238, %v2742, %v2744
  %v2755 = vsel %vm238, %v2740, %v2742
  %v2756 = vsel %vm238, %v2738, %v2740
  %v2757 = vsel %vm238, %v2736, %v2738
  %v2758 = vsel %vm238, %v2734, %v2736
  %v2759 = vsel %vm238, %v2732, %v2734
  %v2760 = vsel %vm238, %v2730, %v2732
  %v2761 = vsel %vm238, %v2728, %v2730
  %v2762 = vsel %vm238, %v2726, %v2728
  %v2763 = vsel %vm238, %v2724, %v2726
  %v2764 = vsel %vm238, %v2722, %v2724
  %v2765 = vsel %vm238, %v2720, %v2722
  %v2766 = vsel %vm238, %v2750, %v2720
  %v2767 = vld [vmem:[%s255] sm:$0xff]
  %v2768 = vld [vmem:[%s255 + $0x8] sm:$0xff]
  %v2769 = vld [vmem:[%s255 + $0x10] sm:$0xff]
  %v2770 = vld [vmem:[%s255 + $0x18] sm:$0xff]
  %v2771 = vld [vmem:[%s255 + $0x20] sm:$0xff]
  %v2772 = vld [vmem:[%s255 + $0x28] sm:$0xff]
  %v2773 = vld [vmem:[%s255 + $0x30] sm:$0xff]
  %v2774 = vld [vmem:[%s255 + $0x38] sm:$0xff]
  %v2775 = vld [vmem:[%s255 + $0x40] sm:$0xff]
  %v2776 = vld [vmem:[%s255 + $0x48] sm:$0xff]
  %v2777 = vld [vmem:[%s255 + $0x50] sm:$0xff]
  %v2778 = vld [vmem:[%s255 + $0x58] sm:$0xff]
  %v2779 = vld [vmem:[%s255 + $0x60] sm:$0xff]
  %v2780 = vld [vmem:[%s255 + $0x68] sm:$0xff]
  %v2781 = vld [vmem:[%s255 + $0x70] sm:$0xff]
  %v2782 = vld [vmem:[%s255 + $0x78] sm:$0xff]
  %v2783 = vmul.f32 %v2766, %v2767
  %v2784 = vmul.f32 %v2765, %v2768
  %v2785 = vmul.f32 %v2764, %v2769
  %v2786 = vmul.f32 %v2763, %v2770
  %v2787 = vmul.f32 %v2762, %v2771
  %v2788 = vmul.f32 %v2761, %v2772
  %v2789 = vmul.f32 %v2760, %v2773
  %v2790 = vmul.f32 %v2759, %v2774
  %v2791 = vmul.f32 %v2758, %v2775
  %v2792 = vmul.f32 %v2757, %v2776
  %v2793 = vmul.f32 %v2756, %v2777
  %v2794 = vmul.f32 %v2755, %v2778
  %v2795 = vmul.f32 %v2754, %v2779
  %v2796 = vmul.f32 %v2753, %v2780
  %v2797 = vmul.f32 %v2752, %v2781
  %v2798 = vmul.f32 %v2751, %v2782
  %2799 = vst [vmem:[#allocation2 + $0x80] sm:$0xff] %v2783
  %2800 = vst [vmem:[#allocation2 + $0x88] sm:$0xff] %v2784
  %2801 = vst [vmem:[#allocation2 + $0x90] sm:$0xff] %v2785
  %2802 = vst [vmem:[#allocation2 + $0x98] sm:$0xff] %v2786
  %2803 = vst [vmem:[#allocation2 + $0xa0] sm:$0xff] %v2787
  %2804 = vst [vmem:[#allocation2 + $0xa8] sm:$0xff] %v2788
  %2805 = vst [vmem:[#allocation2 + $0xb0] sm:$0xff] %v2789
  %2806 = vst [vmem:[#allocation2 + $0xb8] sm:$0xff] %v2790
  %2807 = vst [vmem:[#allocation2 + $0xc0] sm:$0xff] %v2791
  %2808 = vst [vmem:[#allocation2 + $0xc8] sm:$0xff] %v2792
  %2809 = vst [vmem:[#allocation2 + $0xd0] sm:$0xff] %v2793
  %2810 = vst [vmem:[#allocation2 + $0xd8] sm:$0xff] %v2794
  %2811 = vst [vmem:[#allocation2 + $0xe0] sm:$0xff] %v2795
  %2812 = vst [vmem:[#allocation2 + $0xe8] sm:$0xff] %v2796
  %2813 = vst [vmem:[#allocation2 + $0xf0] sm:$0xff] %v2797
  %2814 = vst [vmem:[#allocation2 + $0xf8] sm:$0xff] %v2798
  %2815 = vrot.lane.b32.xlu0 %v2607, 31
  %v2816 = vpop.permute.xlu0 %2815
  %2817 = vrot.lane.b32.xlu0 %v2608, 31
  %v2818 = vpop.permute.xlu0 %2817
  %2819 = vrot.lane.b32.xlu0 %v2609, 31
  %v2820 = vpop.permute.xlu0 %2819
  %2821 = vrot.lane.b32.xlu0 %v2610, 31
  %v2822 = vpop.permute.xlu0 %2821
  %2823 = vrot.lane.b32.xlu0 %v2611, 31
  %v2824 = vpop.permute.xlu0 %2823
  %2825 = vrot.lane.b32.xlu0 %v2612, 31
  %v2826 = vpop.permute.xlu0 %2825
  %2827 = vrot.lane.b32.xlu0 %v2613, 31
  %v2828 = vpop.permute.xlu0 %2827
  %2829 = vrot.lane.b32.xlu0 %v2614, 31
  %v2830 = vpop.permute.xlu0 %2829
  %2831 = vrot.lane.b32.xlu0 %v2615, 31
  %v2832 = vpop.permute.xlu0 %2831
  %2833 = vrot.lane.b32.xlu0 %v2616, 31
  %v2834 = vpop.permute.xlu0 %2833
  %2835 = vrot.lane.b32.xlu0 %v2617, 31
  %v2836 = vpop.permute.xlu0 %2835
  %2837 = vrot.lane.b32.xlu0 %v2618, 31
  %v2838 = vpop.permute.xlu0 %2837
  %2839 = vrot.lane.b32.xlu0 %v2619, 31
  %v2840 = vpop.permute.xlu0 %2839
  %2841 = vrot.lane.b32.xlu0 %v2620, 31
  %v2842 = vpop.permute.xlu0 %2841
  %2843 = vrot.lane.b32.xlu0 %v2621, 31
  %v2844 = vpop.permute.xlu0 %2843
  %2845 = vrot.lane.b32.xlu0 %v2622, 31
  %v2846 = vpop.permute.xlu0 %2845
  %v2847 = vsel %vm336, %v2844, %v2846
  %v2848 = vsel %vm336, %v2842, %v2844
  %v2849 = vsel %vm336, %v2840, %v2842
  %v2850 = vsel %vm336, %v2838, %v2840
  %v2851 = vsel %vm336, %v2836, %v2838
  %v2852 = vsel %vm336, %v2834, %v2836
  %v2853 = vsel %vm336, %v2832, %v2834
  %v2854 = vsel %vm336, %v2830, %v2832
  %v2855 = vsel %vm336, %v2828, %v2830
  %v2856 = vsel %vm336, %v2826, %v2828
  %v2857 = vsel %vm336, %v2824, %v2826
  %v2858 = vsel %vm336, %v2822, %v2824
  %v2859 = vsel %vm336, %v2820, %v2822
  %v2860 = vsel %vm336, %v2818, %v2820
  %v2861 = vsel %vm336, %v2816, %v2818
  %v2862 = vsel %vm336, %v2846, %v2816
  %v2863 = vld [vmem:[%s353] sm:$0xff]
  %v2864 = vld [vmem:[%s353 + $0x8] sm:$0xff]
  %v2865 = vld [vmem:[%s353 + $0x10] sm:$0xff]
  %v2866 = vld [vmem:[%s353 + $0x18] sm:$0xff]
  %v2867 = vld [vmem:[%s353 + $0x20] sm:$0xff]
  %v2868 = vld [vmem:[%s353 + $0x28] sm:$0xff]
  %v2869 = vld [vmem:[%s353 + $0x30] sm:$0xff]
  %v2870 = vld [vmem:[%s353 + $0x38] sm:$0xff]
  %v2871 = vld [vmem:[%s353 + $0x40] sm:$0xff]
  %v2872 = vld [vmem:[%s353 + $0x48] sm:$0xff]
  %v2873 = vld [vmem:[%s353 + $0x50] sm:$0xff]
  %v2874 = vld [vmem:[%s353 + $0x58] sm:$0xff]
  %v2875 = vld [vmem:[%s353 + $0x60] sm:$0xff]
  %v2876 = vld [vmem:[%s353 + $0x68] sm:$0xff]
  %v2877 = vld [vmem:[%s353 + $0x70] sm:$0xff]
  %v2878 = vld [vmem:[%s353 + $0x78] sm:$0xff]
  %v2879 = vmul.f32 %v2862, %v2863
  %v2880 = vmul.f32 %v2861, %v2864
  %v2881 = vmul.f32 %v2860, %v2865
  %v2882 = vmul.f32 %v2859, %v2866
  %v2883 = vmul.f32 %v2858, %v2867
  %v2884 = vmul.f32 %v2857, %v2868
  %v2885 = vmul.f32 %v2856, %v2869
  %v2886 = vmul.f32 %v2855, %v2870
  %v2887 = vmul.f32 %v2854, %v2871
  %v2888 = vmul.f32 %v2853, %v2872
  %v2889 = vmul.f32 %v2852, %v2873
  %v2890 = vmul.f32 %v2851, %v2874
  %v2891 = vmul.f32 %v2850, %v2875
  %v2892 = vmul.f32 %v2849, %v2876
  %v2893 = vmul.f32 %v2848, %v2877
  %v2894 = vmul.f32 %v2847, %v2878
  %2895 = vst [vmem:[#allocation2 + $0x100] sm:$0xff] %v2879
  %2896 = vst [vmem:[#allocation2 + $0x108] sm:$0xff] %v2880
  %2897 = vst [vmem:[#allocation2 + $0x110] sm:$0xff] %v2881
  %2898 = vst [vmem:[#allocation2 + $0x118] sm:$0xff] %v2882
  %2899 = vst [vmem:[#allocation2 + $0x120] sm:$0xff] %v2883
  %2900 = vst [vmem:[#allocation2 + $0x128] sm:$0xff] %v2884
  %2901 = vst [vmem:[#allocation2 + $0x130] sm:$0xff] %v2885
  %2902 = vst [vmem:[#allocation2 + $0x138] sm:$0xff] %v2886
  %2903 = vst [vmem:[#allocation2 + $0x140] sm:$0xff] %v2887
  %2904 = vst [vmem:[#allocation2 + $0x148] sm:$0xff] %v2888
  %2905 = vst [vmem:[#allocation2 + $0x150] sm:$0xff] %v2889
  %2906 = vst [vmem:[#allocation2 + $0x158] sm:$0xff] %v2890
  %2907 = vst [vmem:[#allocation2 + $0x160] sm:$0xff] %v2891
  %2908 = vst [vmem:[#allocation2 + $0x168] sm:$0xff] %v2892
  %2909 = vst [vmem:[#allocation2 + $0x170] sm:$0xff] %v2893
  %2910 = vst [vmem:[#allocation2 + $0x178] sm:$0xff] %v2894
  %2911 = vrot.lane.b32.xlu0 %v2607, 1
  %v2912 = vpop.permute.xlu0 %2911
  %2913 = vrot.lane.b32.xlu0 %v2608, 1
  %v2914 = vpop.permute.xlu0 %2913
  %2915 = vrot.lane.b32.xlu0 %v2609, 1
  %v2916 = vpop.permute.xlu0 %2915
  %2917 = vrot.lane.b32.xlu0 %v2610, 1
  %v2918 = vpop.permute.xlu0 %2917
  %2919 = vrot.lane.b32.xlu0 %v2611, 1
  %v2920 = vpop.permute.xlu0 %2919
  %2921 = vrot.lane.b32.xlu0 %v2612, 1
  %v2922 = vpop.permute.xlu0 %2921
  %2923 = vrot.lane.b32.xlu0 %v2613, 1
  %v2924 = vpop.permute.xlu0 %2923
  %2925 = vrot.lane.b32.xlu0 %v2614, 1
  %v2926 = vpop.permute.xlu0 %2925
  %2927 = vrot.lane.b32.xlu0 %v2615, 1
  %v2928 = vpop.permute.xlu0 %2927
  %2929 = vrot.lane.b32.xlu0 %v2616, 1
  %v2930 = vpop.permute.xlu0 %2929
  %2931 = vrot.lane.b32.xlu0 %v2617, 1
  %v2932 = vpop.permute.xlu0 %2931
  %2933 = vrot.lane.b32.xlu0 %v2618, 1
  %v2934 = vpop.permute.xlu0 %2933
  %2935 = vrot.lane.b32.xlu0 %v2619, 1
  %v2936 = vpop.permute.xlu0 %2935
  %2937 = vrot.lane.b32.xlu0 %v2620, 1
  %v2938 = vpop.permute.xlu0 %2937
  %2939 = vrot.lane.b32.xlu0 %v2621, 1
  %v2940 = vpop.permute.xlu0 %2939
  %2941 = vrot.lane.b32.xlu0 %v2622, 1
  %v2942 = vpop.permute.xlu0 %2941
  %v2943 = vsel %vm434, %v2940, %v2942
  %v2944 = vsel %vm434, %v2938, %v2940
  %v2945 = vsel %vm434, %v2936, %v2938
  %v2946 = vsel %vm434, %v2934, %v2936
  %v2947 = vsel %vm434, %v2932, %v2934
  %v2948 = vsel %vm434, %v2930, %v2932
  %v2949 = vsel %vm434, %v2928, %v2930
  %v2950 = vsel %vm434, %v2926, %v2928
  %v2951 = vsel %vm434, %v2924, %v2926
  %v2952 = vsel %vm434, %v2922, %v2924
  %v2953 = vsel %vm434, %v2920, %v2922
  %v2954 = vsel %vm434, %v2918, %v2920
  %v2955 = vsel %vm434, %v2916, %v2918
  %v2956 = vsel %vm434, %v2914, %v2916
  %v2957 = vsel %vm434, %v2912, %v2914
  %v2958 = vsel %vm434, %v2942, %v2912
  %v2959 = vld [vmem:[%s451] sm:$0xff]
  %v2960 = vld [vmem:[%s451 + $0x8] sm:$0xff]
  %v2961 = vld [vmem:[%s451 + $0x10] sm:$0xff]
  %v2962 = vld [vmem:[%s451 + $0x18] sm:$0xff]
  %v2963 = vld [vmem:[%s451 + $0x20] sm:$0xff]
  %v2964 = vld [vmem:[%s451 + $0x28] sm:$0xff]
  %v2965 = vld [vmem:[%s451 + $0x30] sm:$0xff]
  %v2966 = vld [vmem:[%s451 + $0x38] sm:$0xff]
  %v2967 = vld [vmem:[%s451 + $0x40] sm:$0xff]
  %v2968 = vld [vmem:[%s451 + $0x48] sm:$0xff]
  %v2969 = vld [vmem:[%s451 + $0x50] sm:$0xff]
  %v2970 = vld [vmem:[%s451 + $0x58] sm:$0xff]
  %v2971 = vld [vmem:[%s451 + $0x60] sm:$0xff]
  %v2972 = vld [vmem:[%s451 + $0x68] sm:$0xff]
  %v2973 = vld [vmem:[%s451 + $0x70] sm:$0xff]
  %v2974 = vld [vmem:[%s451 + $0x78] sm:$0xff]
  %v2975 = vmul.f32 %v2958, %v2959
  %v2976 = vmul.f32 %v2957, %v2960
  %v2977 = vmul.f32 %v2956, %v2961
  %v2978 = vmul.f32 %v2955, %v2962
  %v2979 = vmul.f32 %v2954, %v2963
  %v2980 = vmul.f32 %v2953, %v2964
  %v2981 = vmul.f32 %v2952, %v2965
  %v2982 = vmul.f32 %v2951, %v2966
  %v2983 = vmul.f32 %v2950, %v2967
  %v2984 = vmul.f32 %v2949, %v2968
  %v2985 = vmul.f32 %v2948, %v2969
  %v2986 = vmul.f32 %v2947, %v2970
  %v2987 = vmul.f32 %v2946, %v2971
  %v2988 = vmul.f32 %v2945, %v2972
  %v2989 = vmul.f32 %v2944, %v2973
  %v2990 = vmul.f32 %v2943, %v2974
  %2991 = vst [vmem:[#allocation2 + $0x180] sm:$0xff] %v2975
  %2992 = vst [vmem:[#allocation2 + $0x188] sm:$0xff] %v2976
  %2993 = vst [vmem:[#allocation2 + $0x190] sm:$0xff] %v2977
  %2994 = vst [vmem:[#allocation2 + $0x198] sm:$0xff] %v2978
  %2995 = vst [vmem:[#allocation2 + $0x1a0] sm:$0xff] %v2979
  %2996 = vst [vmem:[#allocation2 + $0x1a8] sm:$0xff] %v2980
  %2997 = vst [vmem:[#allocation2 + $0x1b0] sm:$0xff] %v2981
  %2998 = vst [vmem:[#allocation2 + $0x1b8] sm:$0xff] %v2982
  %2999 = vst [vmem:[#allocation2 + $0x1c0] sm:$0xff] %v2983
  %3000 = vst [vmem:[#allocation2 + $0x1c8] sm:$0xff] %v2984
  %3001 = vst [vmem:[#allocation2 + $0x1d0] sm:$0xff] %v2985
  %3002 = vst [vmem:[#allocation2 + $0x1d8] sm:$0xff] %v2986
  %3003 = vst [vmem:[#allocation2 + $0x1e0] sm:$0xff] %v2987
  %3004 = vst [vmem:[#allocation2 + $0x1e8] sm:$0xff] %v2988
  %3005 = vst [vmem:[#allocation2 + $0x1f0] sm:$0xff] %v2989
  %3006 = vst [vmem:[#allocation2 + $0x1f8] sm:$0xff] %v2990
  %3007 = vst [vmem:[#allocation2 + $0x200] sm:$0xff] %v2607
  %3008 = vst [vmem:[#allocation2 + $0x208] sm:$0xff] %v2608
  %3009 = vst [vmem:[#allocation2 + $0x210] sm:$0xff] %v2609
  %3010 = vst [vmem:[#allocation2 + $0x218] sm:$0xff] %v2610
  %3011 = vst [vmem:[#allocation2 + $0x220] sm:$0xff] %v2611
  %3012 = vst [vmem:[#allocation2 + $0x228] sm:$0xff] %v2612
  %3013 = vst [vmem:[#allocation2 + $0x230] sm:$0xff] %v2613
  %3014 = vst [vmem:[#allocation2 + $0x238] sm:$0xff] %v2614
  %3015 = vst [vmem:[#allocation2 + $0x240] sm:$0xff] %v2615
  %3016 = vst [vmem:[#allocation2 + $0x248] sm:$0xff] %v2616
  %3017 = vst [vmem:[#allocation2 + $0x250] sm:$0xff] %v2617
  %3018 = vst [vmem:[#allocation2 + $0x258] sm:$0xff] %v2618
  %3019 = vst [vmem:[#allocation2 + $0x260] sm:$0xff] %v2619
  %3020 = vst [vmem:[#allocation2 + $0x268] sm:$0xff] %v2620
  %3021 = vst [vmem:[#allocation2 + $0x270] sm:$0xff] %v2621
  %3022 = vst [vmem:[#allocation2 + $0x278] sm:$0xff] %v2622
  %3023 = vrot.lane.b32.xlu0 %v2607, 127
  %v3024 = vpop.permute.xlu0 %3023
  %3025 = vrot.lane.b32.xlu0 %v2608, 127
  %v3026 = vpop.permute.xlu0 %3025
  %3027 = vrot.lane.b32.xlu0 %v2609, 127
  %v3028 = vpop.permute.xlu0 %3027
  %3029 = vrot.lane.b32.xlu0 %v2610, 127
  %v3030 = vpop.permute.xlu0 %3029
  %3031 = vrot.lane.b32.xlu0 %v2611, 127
  %v3032 = vpop.permute.xlu0 %3031
  %3033 = vrot.lane.b32.xlu0 %v2612, 127
  %v3034 = vpop.permute.xlu0 %3033
  %3035 = vrot.lane.b32.xlu0 %v2613, 127
  %v3036 = vpop.permute.xlu0 %3035
  %3037 = vrot.lane.b32.xlu0 %v2614, 127
  %v3038 = vpop.permute.xlu0 %3037
  %3039 = vrot.lane.b32.xlu0 %v2615, 127
  %v3040 = vpop.permute.xlu0 %3039
  %3041 = vrot.lane.b32.xlu0 %v2616, 127
  %v3042 = vpop.permute.xlu0 %3041
  %3043 = vrot.lane.b32.xlu0 %v2617, 127
  %v3044 = vpop.permute.xlu0 %3043
  %3045 = vrot.lane.b32.xlu0 %v2618, 127
  %v3046 = vpop.permute.xlu0 %3045
  %3047 = vrot.lane.b32.xlu0 %v2619, 127
  %v3048 = vpop.permute.xlu0 %3047
  %3049 = vrot.lane.b32.xlu0 %v2620, 127
  %v3050 = vpop.permute.xlu0 %3049
  %3051 = vrot.lane.b32.xlu0 %v2621, 127
  %v3052 = vpop.permute.xlu0 %3051
  %3053 = vrot.lane.b32.xlu0 %v2622, 127
  %v3054 = vpop.permute.xlu0 %3053
  %v3055 = vsel %vm548, %v3052, %v3054
  %v3056 = vsel %vm548, %v3050, %v3052
  %v3057 = vsel %vm548, %v3048, %v3050
  %v3058 = vsel %vm548, %v3046, %v3048
  %v3059 = vsel %vm548, %v3044, %v3046
  %v3060 = vsel %vm548, %v3042, %v3044
  %v3061 = vsel %vm548, %v3040, %v3042
  %v3062 = vsel %vm548, %v3038, %v3040
  %v3063 = vsel %vm548, %v3036, %v3038
  %v3064 = vsel %vm548, %v3034, %v3036
  %v3065 = vsel %vm548, %v3032, %v3034
  %v3066 = vsel %vm548, %v3030, %v3032
  %v3067 = vsel %vm548, %v3028, %v3030
  %v3068 = vsel %vm548, %v3026, %v3028
  %v3069 = vsel %vm548, %v3024, %v3026
  %v3070 = vsel %vm548, %v3054, %v3024
  %v3071 = vld [vmem:[%s565] sm:$0xff]
  %v3072 = vld [vmem:[%s565 + $0x8] sm:$0xff]
  %v3073 = vld [vmem:[%s565 + $0x10] sm:$0xff]
  %v3074 = vld [vmem:[%s565 + $0x18] sm:$0xff]
  %v3075 = vld [vmem:[%s565 + $0x20] sm:$0xff]
  %v3076 = vld [vmem:[%s565 + $0x28] sm:$0xff]
  %v3077 = vld [vmem:[%s565 + $0x30] sm:$0xff]
  %v3078 = vld [vmem:[%s565 + $0x38] sm:$0xff]
  %v3079 = vld [vmem:[%s565 + $0x40] sm:$0xff]
  %v3080 = vld [vmem:[%s565 + $0x48] sm:$0xff]
  %v3081 = vld [vmem:[%s565 + $0x50] sm:$0xff]
  %v3082 = vld [vmem:[%s565 + $0x58] sm:$0xff]
  %v3083 = vld [vmem:[%s565 + $0x60] sm:$0xff]
  %v3084 = vld [vmem:[%s565 + $0x68] sm:$0xff]
  %v3085 = vld [vmem:[%s565 + $0x70] sm:$0xff]
  %v3086 = vld [vmem:[%s565 + $0x78] sm:$0xff]
  %v3087 = vmul.f32 %v3069, %v3071
  %v3088 = vmul.f32 %v3068, %v3072
  %v3089 = vmul.f32 %v3067, %v3073
  %v3090 = vmul.f32 %v3066, %v3074
  %v3091 = vmul.f32 %v3065, %v3075
  %v3092 = vmul.f32 %v3064, %v3076
  %v3093 = vmul.f32 %v3063, %v3077
  %v3094 = vmul.f32 %v3062, %v3078
  %v3095 = vmul.f32 %v3061, %v3079
  %v3096 = vmul.f32 %v3060, %v3080
  %v3097 = vmul.f32 %v3059, %v3081
  %v3098 = vmul.f32 %v3058, %v3082
  %v3099 = vmul.f32 %v3057, %v3083
  %v3100 = vmul.f32 %v3056, %v3084
  %v3101 = vmul.f32 %v3055, %v3085
  %v3102 = vmul.f32 %v3070, %v3086
  %3103 = vst [vmem:[#allocation2 + $0x280] sm:$0xff] %v3087
  %3104 = vst [vmem:[#allocation2 + $0x288] sm:$0xff] %v3088
  %3105 = vst [vmem:[#allocation2 + $0x290] sm:$0xff] %v3089
  %3106 = vst [vmem:[#allocation2 + $0x298] sm:$0xff] %v3090
  %3107 = vst [vmem:[#allocation2 + $0x2a0] sm:$0xff] %v3091
  %3108 = vst [vmem:[#allocation2 + $0x2a8] sm:$0xff] %v3092
  %3109 = vst [vmem:[#allocation2 + $0x2b0] sm:$0xff] %v3093
  %3110 = vst [vmem:[#allocation2 + $0x2b8] sm:$0xff] %v3094
  %3111 = vst [vmem:[#allocation2 + $0x2c0] sm:$0xff] %v3095
  %3112 = vst [vmem:[#allocation2 + $0x2c8] sm:$0xff] %v3096
  %3113 = vst [vmem:[#allocation2 + $0x2d0] sm:$0xff] %v3097
  %3114 = vst [vmem:[#allocation2 + $0x2d8] sm:$0xff] %v3098
  %3115 = vst [vmem:[#allocation2 + $0x2e0] sm:$0xff] %v3099
  %3116 = vst [vmem:[#allocation2 + $0x2e8] sm:$0xff] %v3100
  %3117 = vst [vmem:[#allocation2 + $0x2f0] sm:$0xff] %v3101
  %3118 = vst [vmem:[#allocation2 + $0x2f8] sm:$0xff] %v3102
  %3119 = vrot.lane.b32.xlu0 %v2607, 97
  %v3120 = vpop.permute.xlu0 %3119
  %3121 = vrot.lane.b32.xlu0 %v2608, 97
  %v3122 = vpop.permute.xlu0 %3121
  %3123 = vrot.lane.b32.xlu0 %v2609, 97
  %v3124 = vpop.permute.xlu0 %3123
  %3125 = vrot.lane.b32.xlu0 %v2610, 97
  %v3126 = vpop.permute.xlu0 %3125
  %3127 = vrot.lane.b32.xlu0 %v2611, 97
  %v3128 = vpop.permute.xlu0 %3127
  %3129 = vrot.lane.b32.xlu0 %v2612, 97
  %v3130 = vpop.permute.xlu0 %3129
  %3131 = vrot.lane.b32.xlu0 %v2613, 97
  %v3132 = vpop.permute.xlu0 %3131
  %3133 = vrot.lane.b32.xlu0 %v2614, 97
  %v3134 = vpop.permute.xlu0 %3133
  %3135 = vrot.lane.b32.xlu0 %v2615, 97
  %v3136 = vpop.permute.xlu0 %3135
  %3137 = vrot.lane.b32.xlu0 %v2616, 97
  %v3138 = vpop.permute.xlu0 %3137
  %3139 = vrot.lane.b32.xlu0 %v2617, 97
  %v3140 = vpop.permute.xlu0 %3139
  %3141 = vrot.lane.b32.xlu0 %v2618, 97
  %v3142 = vpop.permute.xlu0 %3141
  %3143 = vrot.lane.b32.xlu0 %v2619, 97
  %v3144 = vpop.permute.xlu0 %3143
  %3145 = vrot.lane.b32.xlu0 %v2620, 97
  %v3146 = vpop.permute.xlu0 %3145
  %3147 = vrot.lane.b32.xlu0 %v2621, 97
  %v3148 = vpop.permute.xlu0 %3147
  %3149 = vrot.lane.b32.xlu0 %v2622, 97
  %v3150 = vpop.permute.xlu0 %3149
  %v3151 = vsel %vm646, %v3148, %v3150
  %v3152 = vsel %vm646, %v3146, %v3148
  %v3153 = vsel %vm646, %v3144, %v3146
  %v3154 = vsel %vm646, %v3142, %v3144
  %v3155 = vsel %vm646, %v3140, %v3142
  %v3156 = vsel %vm646, %v3138, %v3140
  %v3157 = vsel %vm646, %v3136, %v3138
  %v3158 = vsel %vm646, %v3134, %v3136
  %v3159 = vsel %vm646, %v3132, %v3134
  %v3160 = vsel %vm646, %v3130, %v3132
  %v3161 = vsel %vm646, %v3128, %v3130
  %v3162 = vsel %vm646, %v3126, %v3128
  %v3163 = vsel %vm646, %v3124, %v3126
  %v3164 = vsel %vm646, %v3122, %v3124
  %v3165 = vsel %vm646, %v3120, %v3122
  %v3166 = vsel %vm646, %v3150, %v3120
  %v3167 = vld [vmem:[%s663] sm:$0xff]
  %v3168 = vld [vmem:[%s663 + $0x8] sm:$0xff]
  %v3169 = vld [vmem:[%s663 + $0x10] sm:$0xff]
  %v3170 = vld [vmem:[%s663 + $0x18] sm:$0xff]
  %v3171 = vld [vmem:[%s663 + $0x20] sm:$0xff]
  %v3172 = vld [vmem:[%s663 + $0x28] sm:$0xff]
  %v3173 = vld [vmem:[%s663 + $0x30] sm:$0xff]
  %v3174 = vld [vmem:[%s663 + $0x38] sm:$0xff]
  %v3175 = vld [vmem:[%s663 + $0x40] sm:$0xff]
  %v3176 = vld [vmem:[%s663 + $0x48] sm:$0xff]
  %v3177 = vld [vmem:[%s663 + $0x50] sm:$0xff]
  %v3178 = vld [vmem:[%s663 + $0x58] sm:$0xff]
  %v3179 = vld [vmem:[%s663 + $0x60] sm:$0xff]
  %v3180 = vld [vmem:[%s663 + $0x68] sm:$0xff]
  %v3181 = vld [vmem:[%s663 + $0x70] sm:$0xff]
  %v3182 = vld [vmem:[%s663 + $0x78] sm:$0xff]
  %v3183 = vmul.f32 %v3165, %v3167
  %v3184 = vmul.f32 %v3164, %v3168
  %v3185 = vmul.f32 %v3163, %v3169
  %v3186 = vmul.f32 %v3162, %v3170
  %v3187 = vmul.f32 %v3161, %v3171
  %v3188 = vmul.f32 %v3160, %v3172
  %v3189 = vmul.f32 %v3159, %v3173
  %v3190 = vmul.f32 %v3158, %v3174
  %v3191 = vmul.f32 %v3157, %v3175
  %v3192 = vmul.f32 %v3156, %v3176
  %v3193 = vmul.f32 %v3155, %v3177
  %v3194 = vmul.f32 %v3154, %v3178
  %v3195 = vmul.f32 %v3153, %v3179
  %v3196 = vmul.f32 %v3152, %v3180
  %v3197 = vmul.f32 %v3151, %v3181
  %v3198 = vmul.f32 %v3166, %v3182
  %3199 = vst [vmem:[#allocation2 + $0x300] sm:$0xff] %v3183
  %3200 = vst [vmem:[#allocation2 + $0x308] sm:$0xff] %v3184
  %3201 = vst [vmem:[#allocation2 + $0x310] sm:$0xff] %v3185
  %3202 = vst [vmem:[#allocation2 + $0x318] sm:$0xff] %v3186
  %3203 = vst [vmem:[#allocation2 + $0x320] sm:$0xff] %v3187
  %3204 = vst [vmem:[#allocation2 + $0x328] sm:$0xff] %v3188
  %3205 = vst [vmem:[#allocation2 + $0x330] sm:$0xff] %v3189
  %3206 = vst [vmem:[#allocation2 + $0x338] sm:$0xff] %v3190
  %3207 = vst [vmem:[#allocation2 + $0x340] sm:$0xff] %v3191
  %3208 = vst [vmem:[#allocation2 + $0x348] sm:$0xff] %v3192
  %3209 = vst [vmem:[#allocation2 + $0x350] sm:$0xff] %v3193
  %3210 = vst [vmem:[#allocation2 + $0x358] sm:$0xff] %v3194
  %3211 = vst [vmem:[#allocation2 + $0x360] sm:$0xff] %v3195
  %3212 = vst [vmem:[#allocation2 + $0x368] sm:$0xff] %v3196
  %3213 = vst [vmem:[#allocation2 + $0x370] sm:$0xff] %v3197
  %3214 = vst [vmem:[#allocation2 + $0x378] sm:$0xff] %v3198
  %3215 = vrot.lane.b32.xlu0 %v2607, 96
  %v3216 = vpop.permute.xlu0 %3215
  %3217 = vrot.lane.b32.xlu0 %v2608, 96
  %v3218 = vpop.permute.xlu0 %3217
  %3219 = vrot.lane.b32.xlu0 %v2609, 96
  %v3220 = vpop.permute.xlu0 %3219
  %3221 = vrot.lane.b32.xlu0 %v2610, 96
  %v3222 = vpop.permute.xlu0 %3221
  %3223 = vrot.lane.b32.xlu0 %v2611, 96
  %v3224 = vpop.permute.xlu0 %3223
  %3225 = vrot.lane.b32.xlu0 %v2612, 96
  %v3226 = vpop.permute.xlu0 %3225
  %3227 = vrot.lane.b32.xlu0 %v2613, 96
  %v3228 = vpop.permute.xlu0 %3227
  %3229 = vrot.lane.b32.xlu0 %v2614, 96
  %v3230 = vpop.permute.xlu0 %3229
  %3231 = vrot.lane.b32.xlu0 %v2615, 96
  %v3232 = vpop.permute.xlu0 %3231
  %3233 = vrot.lane.b32.xlu0 %v2616, 96
  %v3234 = vpop.permute.xlu0 %3233
  %3235 = vrot.lane.b32.xlu0 %v2617, 96
  %v3236 = vpop.permute.xlu0 %3235
  %3237 = vrot.lane.b32.xlu0 %v2618, 96
  %v3238 = vpop.permute.xlu0 %3237
  %3239 = vrot.lane.b32.xlu0 %v2619, 96
  %v3240 = vpop.permute.xlu0 %3239
  %3241 = vrot.lane.b32.xlu0 %v2620, 96
  %v3242 = vpop.permute.xlu0 %3241
  %3243 = vrot.lane.b32.xlu0 %v2621, 96
  %v3244 = vpop.permute.xlu0 %3243
  %3245 = vrot.lane.b32.xlu0 %v2622, 96
  %v3246 = vpop.permute.xlu0 %3245
  %v3247 = vsel %vm744, %v3244, %v3246
  %v3248 = vsel %vm744, %v3242, %v3244
  %v3249 = vsel %vm744, %v3240, %v3242
  %v3250 = vsel %vm744, %v3238, %v3240
  %v3251 = vsel %vm744, %v3236, %v3238
  %v3252 = vsel %vm744, %v3234, %v3236
  %v3253 = vsel %vm744, %v3232, %v3234
  %v3254 = vsel %vm744, %v3230, %v3232
  %v3255 = vsel %vm744, %v3228, %v3230
  %v3256 = vsel %vm744, %v3226, %v3228
  %v3257 = vsel %vm744, %v3224, %v3226
  %v3258 = vsel %vm744, %v3222, %v3224
  %v3259 = vsel %vm744, %v3220, %v3222
  %v3260 = vsel %vm744, %v3218, %v3220
  %v3261 = vsel %vm744, %v3216, %v3218
  %v3262 = vsel %vm744, %v3246, %v3216
  %v3263 = vld [vmem:[%s761] sm:$0xff]
  %v3264 = vld [vmem:[%s761 + $0x8] sm:$0xff]
  %v3265 = vld [vmem:[%s761 + $0x10] sm:$0xff]
  %v3266 = vld [vmem:[%s761 + $0x18] sm:$0xff]
  %v3267 = vld [vmem:[%s761 + $0x20] sm:$0xff]
  %v3268 = vld [vmem:[%s761 + $0x28] sm:$0xff]
  %v3269 = vld [vmem:[%s761 + $0x30] sm:$0xff]
  %v3270 = vld [vmem:[%s761 + $0x38] sm:$0xff]
  %v3271 = vld [vmem:[%s761 + $0x40] sm:$0xff]
  %v3272 = vld [vmem:[%s761 + $0x48] sm:$0xff]
  %v3273 = vld [vmem:[%s761 + $0x50] sm:$0xff]
  %v3274 = vld [vmem:[%s761 + $0x58] sm:$0xff]
  %v3275 = vld [vmem:[%s761 + $0x60] sm:$0xff]
  %v3276 = vld [vmem:[%s761 + $0x68] sm:$0xff]
  %v3277 = vld [vmem:[%s761 + $0x70] sm:$0xff]
  %v3278 = vld [vmem:[%s761 + $0x78] sm:$0xff]
  %v3279 = vmul.f32 %v3261, %v3263
  %v3280 = vmul.f32 %v3260, %v3264
  %v3281 = vmul.f32 %v3259, %v3265
  %v3282 = vmul.f32 %v3258, %v3266
  %v3283 = vmul.f32 %v3257, %v3267
  %v3284 = vmul.f32 %v3256, %v3268
  %v3285 = vmul.f32 %v3255, %v3269
  %v3286 = vmul.f32 %v3254, %v3270
  %v3287 = vmul.f32 %v3253, %v3271
  %v3288 = vmul.f32 %v3252, %v3272
  %v3289 = vmul.f32 %v3251, %v3273
  %v3290 = vmul.f32 %v3250, %v3274
  %v3291 = vmul.f32 %v3249, %v3275
  %v3292 = vmul.f32 %v3248, %v3276
  %v3293 = vmul.f32 %v3247, %v3277
  %v3294 = vmul.f32 %v3262, %v3278
  %3295 = vst [vmem:[#allocation2 + $0x380] sm:$0xff] %v3279
  %3296 = vst [vmem:[#allocation2 + $0x388] sm:$0xff] %v3280
  %3297 = vst [vmem:[#allocation2 + $0x390] sm:$0xff] %v3281
  %3298 = vst [vmem:[#allocation2 + $0x398] sm:$0xff] %v3282
  %3299 = vst [vmem:[#allocation2 + $0x3a0] sm:$0xff] %v3283
  %3300 = vst [vmem:[#allocation2 + $0x3a8] sm:$0xff] %v3284
  %3301 = vst [vmem:[#allocation2 + $0x3b0] sm:$0xff] %v3285
  %3302 = vst [vmem:[#allocation2 + $0x3b8] sm:$0xff] %v3286
  %3303 = vst [vmem:[#allocation2 + $0x3c0] sm:$0xff] %v3287
  %3304 = vst [vmem:[#allocation2 + $0x3c8] sm:$0xff] %v3288
  %3305 = vst [vmem:[#allocation2 + $0x3d0] sm:$0xff] %v3289
  %3306 = vst [vmem:[#allocation2 + $0x3d8] sm:$0xff] %v3290
  %3307 = vst [vmem:[#allocation2 + $0x3e0] sm:$0xff] %v3291
  %3308 = vst [vmem:[#allocation2 + $0x3e8] sm:$0xff] %v3292
  %3309 = vst [vmem:[#allocation2 + $0x3f0] sm:$0xff] %v3293
  %3310 = vst [vmem:[#allocation2 + $0x3f8] sm:$0xff] %v3294
  %3311 = vrot.lane.b32.xlu0 %v2607, 95
  %v3312 = vpop.permute.xlu0 %3311
  %3313 = vrot.lane.b32.xlu0 %v2608, 95
  %v3314 = vpop.permute.xlu0 %3313
  %3315 = vrot.lane.b32.xlu0 %v2609, 95
  %v3316 = vpop.permute.xlu0 %3315
  %3317 = vrot.lane.b32.xlu0 %v2610, 95
  %v3318 = vpop.permute.xlu0 %3317
  %3319 = vrot.lane.b32.xlu0 %v2611, 95
  %v3320 = vpop.permute.xlu0 %3319
  %3321 = vrot.lane.b32.xlu0 %v2612, 95
  %v3322 = vpop.permute.xlu0 %3321
  %3323 = vrot.lane.b32.xlu0 %v2613, 95
  %v3324 = vpop.permute.xlu0 %3323
  %3325 = vrot.lane.b32.xlu0 %v2614, 95
  %v3326 = vpop.permute.xlu0 %3325
  %3327 = vrot.lane.b32.xlu0 %v2615, 95
  %v3328 = vpop.permute.xlu0 %3327
  %3329 = vrot.lane.b32.xlu0 %v2616, 95
  %v3330 = vpop.permute.xlu0 %3329
  %3331 = vrot.lane.b32.xlu0 %v2617, 95
  %v3332 = vpop.permute.xlu0 %3331
  %3333 = vrot.lane.b32.xlu0 %v2618, 95
  %v3334 = vpop.permute.xlu0 %3333
  %3335 = vrot.lane.b32.xlu0 %v2619, 95
  %v3336 = vpop.permute.xlu0 %3335
  %3337 = vrot.lane.b32.xlu0 %v2620, 95
  %v3338 = vpop.permute.xlu0 %3337
  %3339 = vrot.lane.b32.xlu0 %v2621, 95
  %v3340 = vpop.permute.xlu0 %3339
  %3341 = vrot.lane.b32.xlu0 %v2622, 95
  %v3342 = vpop.permute.xlu0 %3341
  %v3343 = vsel %vm842, %v3340, %v3342
  %v3344 = vsel %vm842, %v3338, %v3340
  %v3345 = vsel %vm842, %v3336, %v3338
  %v3346 = vsel %vm842, %v3334, %v3336
  %v3347 = vsel %vm842, %v3332, %v3334
  %v3348 = vsel %vm842, %v3330, %v3332
  %v3349 = vsel %vm842, %v3328, %v3330
  %v3350 = vsel %vm842, %v3326, %v3328
  %v3351 = vsel %vm842, %v3324, %v3326
  %v3352 = vsel %vm842, %v3322, %v3324
  %v3353 = vsel %vm842, %v3320, %v3322
  %v3354 = vsel %vm842, %v3318, %v3320
  %v3355 = vsel %vm842, %v3316, %v3318
  %v3356 = vsel %vm842, %v3314, %v3316
  %v3357 = vsel %vm842, %v3312, %v3314
  %v3358 = vsel %vm842, %v3342, %v3312
  %v3359 = vld [vmem:[%s859] sm:$0xff]
  %v3360 = vld [vmem:[%s859 + $0x8] sm:$0xff]
  %v3361 = vld [vmem:[%s859 + $0x10] sm:$0xff]
  %v3362 = vld [vmem:[%s859 + $0x18] sm:$0xff]
  %v3363 = vld [vmem:[%s859 + $0x20] sm:$0xff]
  %v3364 = vld [vmem:[%s859 + $0x28] sm:$0xff]
  %v3365 = vld [vmem:[%s859 + $0x30] sm:$0xff]
  %v3366 = vld [vmem:[%s859 + $0x38] sm:$0xff]
  %v3367 = vld [vmem:[%s859 + $0x40] sm:$0xff]
  %v3368 = vld [vmem:[%s859 + $0x48] sm:$0xff]
  %v3369 = vld [vmem:[%s859 + $0x50] sm:$0xff]
  %v3370 = vld [vmem:[%s859 + $0x58] sm:$0xff]
  %v3371 = vld [vmem:[%s859 + $0x60] sm:$0xff]
  %v3372 = vld [vmem:[%s859 + $0x68] sm:$0xff]
  %v3373 = vld [vmem:[%s859 + $0x70] sm:$0xff]
  %v3374 = vld [vmem:[%s859 + $0x78] sm:$0xff]
  %v3375 = vmul.f32 %v3357, %v3359
  %v3376 = vmul.f32 %v3356, %v3360
  %v3377 = vmul.f32 %v3355, %v3361
  %v3378 = vmul.f32 %v3354, %v3362
  %v3379 = vmul.f32 %v3353, %v3363
  %v3380 = vmul.f32 %v3352, %v3364
  %v3381 = vmul.f32 %v3351, %v3365
  %v3382 = vmul.f32 %v3350, %v3366
  %v3383 = vmul.f32 %v3349, %v3367
  %v3384 = vmul.f32 %v3348, %v3368
  %v3385 = vmul.f32 %v3347, %v3369
  %v3386 = vmul.f32 %v3346, %v3370
  %v3387 = vmul.f32 %v3345, %v3371
  %v3388 = vmul.f32 %v3344, %v3372
  %v3389 = vmul.f32 %v3343, %v3373
  %v3390 = vmul.f32 %v3358, %v3374
  %3391 = vst [vmem:[#allocation2 + $0x400] sm:$0xff] %v3375
  %3392 = vst [vmem:[#allocation2 + $0x408] sm:$0xff] %v3376
  %3393 = vst [vmem:[#allocation2 + $0x410] sm:$0xff] %v3377
  %3394 = vst [vmem:[#allocation2 + $0x418] sm:$0xff] %v3378
  %3395 = vst [vmem:[#allocation2 + $0x420] sm:$0xff] %v3379
  %3396 = vst [vmem:[#allocation2 + $0x428] sm:$0xff] %v3380
  %3397 = vst [vmem:[#allocation2 + $0x430] sm:$0xff] %v3381
  %3398 = vst [vmem:[#allocation2 + $0x438] sm:$0xff] %v3382
  %3399 = vst [vmem:[#allocation2 + $0x440] sm:$0xff] %v3383
  %3400 = vst [vmem:[#allocation2 + $0x448] sm:$0xff] %v3384
  %3401 = vst [vmem:[#allocation2 + $0x450] sm:$0xff] %v3385
  %3402 = vst [vmem:[#allocation2 + $0x458] sm:$0xff] %v3386
  %3403 = vst [vmem:[#allocation2 + $0x460] sm:$0xff] %v3387
  %3404 = vst [vmem:[#allocation2 + $0x468] sm:$0xff] %v3388
  %3405 = vst [vmem:[#allocation2 + $0x470] sm:$0xff] %v3389
  %3406 = vst [vmem:[#allocation2 + $0x478] sm:$0xff] %v3390
  %s3407 = scalar_lea.vmem %s5, 8
  %v3408 = vld [vmem:[%s3407] sm:$0xff]
  %v3409 = vld [vmem:[#allocation2] sm:$0xff]
  %v3410 = vld [vmem:[#allocation2 + $0x8] sm:$0xff]
  %v3411 = vld [vmem:[#allocation2 + $0x10] sm:$0xff]
  %v3412 = vld [vmem:[#allocation2 + $0x18] sm:$0xff]
  %v3413 = vld [vmem:[#allocation2 + $0x20] sm:$0xff]
  %v3414 = vld [vmem:[#allocation2 + $0x28] sm:$0xff]
  %v3415 = vld [vmem:[#allocation2 + $0x30] sm:$0xff]
  %v3416 = vld [vmem:[#allocation2 + $0x38] sm:$0xff]
  %v3417 = vld [vmem:[#allocation2 + $0x40] sm:$0xff]
  %v3418 = vld [vmem:[#allocation2 + $0x48] sm:$0xff]
  %v3419 = vld [vmem:[#allocation2 + $0x50] sm:$0xff]
  %v3420 = vld [vmem:[#allocation2 + $0x58] sm:$0xff]
  %v3421 = vld [vmem:[#allocation2 + $0x60] sm:$0xff]
  %v3422 = vld [vmem:[#allocation2 + $0x68] sm:$0xff]
  %v3423 = vld [vmem:[#allocation2 + $0x70] sm:$0xff]
  %v3424 = vld [vmem:[#allocation2 + $0x78] sm:$0xff]
  %v3425 = vld [vmem:[#allocation2 + $0x80] sm:$0xff]
  %v3426 = vld [vmem:[#allocation2 + $0x88] sm:$0xff]
  %v3427 = vld [vmem:[#allocation2 + $0x90] sm:$0xff]
  %v3428 = vld [vmem:[#allocation2 + $0x98] sm:$0xff]
  %v3429 = vld [vmem:[#allocation2 + $0xa0] sm:$0xff]
  %v3430 = vld [vmem:[#allocation2 + $0xa8] sm:$0xff]
  %v3431 = vld [vmem:[#allocation2 + $0xb0] sm:$0xff]
  %v3432 = vld [vmem:[#allocation2 + $0xb8] sm:$0xff]
  %v3433 = vld [vmem:[#allocation2 + $0xc0] sm:$0xff]
  %v3434 = vld [vmem:[#allocation2 + $0xc8] sm:$0xff]
  %v3435 = vld [vmem:[#allocation2 + $0xd0] sm:$0xff]
  %v3436 = vld [vmem:[#allocation2 + $0xd8] sm:$0xff]
  %v3437 = vld [vmem:[#allocation2 + $0xe0] sm:$0xff]
  %v3438 = vld [vmem:[#allocation2 + $0xe8] sm:$0xff]
  %v3439 = vld [vmem:[#allocation2 + $0xf0] sm:$0xff]
  %v3440 = vld [vmem:[#allocation2 + $0xf8] sm:$0xff]
  %v3441 = vld [vmem:[#allocation2 + $0x100] sm:$0xff]
  %v3442 = vld [vmem:[#allocation2 + $0x108] sm:$0xff]
  %v3443 = vld [vmem:[#allocation2 + $0x110] sm:$0xff]
  %v3444 = vld [vmem:[#allocation2 + $0x118] sm:$0xff]
  %v3445 = vld [vmem:[#allocation2 + $0x120] sm:$0xff]
  %v3446 = vld [vmem:[#allocation2 + $0x128] sm:$0xff]
  %v3447 = vld [vmem:[#allocation2 + $0x130] sm:$0xff]
  %v3448 = vld [vmem:[#allocation2 + $0x138] sm:$0xff]
  %v3449 = vld [vmem:[#allocation2 + $0x140] sm:$0xff]
  %v3450 = vld [vmem:[#allocation2 + $0x148] sm:$0xff]
  %v3451 = vld [vmem:[#allocation2 + $0x150] sm:$0xff]
  %v3452 = vld [vmem:[#allocation2 + $0x158] sm:$0xff]
  %v3453 = vld [vmem:[#allocation2 + $0x160] sm:$0xff]
  %v3454 = vld [vmem:[#allocation2 + $0x168] sm:$0xff]
  %v3455 = vld [vmem:[#allocation2 + $0x170] sm:$0xff]
  %v3456 = vld [vmem:[#allocation2 + $0x178] sm:$0xff]
  %v3457 = vld [vmem:[#allocation2 + $0x180] sm:$0xff]
  %v3458 = vld [vmem:[#allocation2 + $0x188] sm:$0xff]
  %v3459 = vld [vmem:[#allocation2 + $0x190] sm:$0xff]
  %v3460 = vld [vmem:[#allocation2 + $0x198] sm:$0xff]
  %v3461 = vld [vmem:[#allocation2 + $0x1a0] sm:$0xff]
  %v3462 = vld [vmem:[#allocation2 + $0x1a8] sm:$0xff]
  %v3463 = vld [vmem:[#allocation2 + $0x1b0] sm:$0xff]
  %v3464 = vld [vmem:[#allocation2 + $0x1b8] sm:$0xff]
  %v3465 = vld [vmem:[#allocation2 + $0x1c0] sm:$0xff]
  %v3466 = vld [vmem:[#allocation2 + $0x1c8] sm:$0xff]
  %v3467 = vld [vmem:[#allocation2 + $0x1d0] sm:$0xff]
  %v3468 = vld [vmem:[#allocation2 + $0x1d8] sm:$0xff]
  %v3469 = vld [vmem:[#allocation2 + $0x1e0] sm:$0xff]
  %v3470 = vld [vmem:[#allocation2 + $0x1e8] sm:$0xff]
  %v3471 = vld [vmem:[#allocation2 + $0x1f0] sm:$0xff]
  %v3472 = vld [vmem:[#allocation2 + $0x1f8] sm:$0xff]
  %v3473 = vld [vmem:[#allocation2 + $0x200] sm:$0xff]
  %v3474 = vld [vmem:[#allocation2 + $0x208] sm:$0xff]
  %v3475 = vld [vmem:[#allocation2 + $0x210] sm:$0xff]
  %v3476 = vld [vmem:[#allocation2 + $0x218] sm:$0xff]
  %v3477 = vld [vmem:[#allocation2 + $0x220] sm:$0xff]
  %v3478 = vld [vmem:[#allocation2 + $0x228] sm:$0xff]
  %v3479 = vld [vmem:[#allocation2 + $0x230] sm:$0xff]
  %v3480 = vld [vmem:[#allocation2 + $0x238] sm:$0xff]
  %v3481 = vld [vmem:[#allocation2 + $0x240] sm:$0xff]
  %v3482 = vld [vmem:[#allocation2 + $0x248] sm:$0xff]
  %v3483 = vld [vmem:[#allocation2 + $0x250] sm:$0xff]
  %v3484 = vld [vmem:[#allocation2 + $0x258] sm:$0xff]
  %v3485 = vld [vmem:[#allocation2 + $0x260] sm:$0xff]
  %v3486 = vld [vmem:[#allocation2 + $0x268] sm:$0xff]
  %v3487 = vld [vmem:[#allocation2 + $0x270] sm:$0xff]
  %v3488 = vld [vmem:[#allocation2 + $0x278] sm:$0xff]
  %v3489 = vld [vmem:[#allocation2 + $0x280] sm:$0xff]
  %v3490 = vld [vmem:[#allocation2 + $0x288] sm:$0xff]
  %v3491 = vld [vmem:[#allocation2 + $0x290] sm:$0xff]
  %v3492 = vld [vmem:[#allocation2 + $0x298] sm:$0xff]
  %v3493 = vld [vmem:[#allocation2 + $0x2a0] sm:$0xff]
  %v3494 = vld [vmem:[#allocation2 + $0x2a8] sm:$0xff]
  %v3495 = vld [vmem:[#allocation2 + $0x2b0] sm:$0xff]
  %v3496 = vld [vmem:[#allocation2 + $0x2b8] sm:$0xff]
  %v3497 = vld [vmem:[#allocation2 + $0x2c0] sm:$0xff]
  %v3498 = vld [vmem:[#allocation2 + $0x2c8] sm:$0xff]
  %v3499 = vld [vmem:[#allocation2 + $0x2d0] sm:$0xff]
  %v3500 = vld [vmem:[#allocation2 + $0x2d8] sm:$0xff]
  %v3501 = vld [vmem:[#allocation2 + $0x2e0] sm:$0xff]
  %v3502 = vld [vmem:[#allocation2 + $0x2e8] sm:$0xff]
  %v3503 = vld [vmem:[#allocation2 + $0x2f0] sm:$0xff]
  %v3504 = vld [vmem:[#allocation2 + $0x2f8] sm:$0xff]
  %v3505 = vld [vmem:[#allocation2 + $0x300] sm:$0xff]
  %v3506 = vld [vmem:[#allocation2 + $0x308] sm:$0xff]
  %v3507 = vld [vmem:[#allocation2 + $0x310] sm:$0xff]
  %v3508 = vld [vmem:[#allocation2 + $0x318] sm:$0xff]
  %v3509 = vld [vmem:[#allocation2 + $0x320] sm:$0xff]
  %v3510 = vld [vmem:[#allocation2 + $0x328] sm:$0xff]
  %v3511 = vld [vmem:[#allocation2 + $0x330] sm:$0xff]
  %v3512 = vld [vmem:[#allocation2 + $0x338] sm:$0xff]
  %v3513 = vld [vmem:[#allocation2 + $0x340] sm:$0xff]
  %v3514 = vld [vmem:[#allocation2 + $0x348] sm:$0xff]
  %v3515 = vld [vmem:[#allocation2 + $0x350] sm:$0xff]
  %v3516 = vld [vmem:[#allocation2 + $0x358] sm:$0xff]
  %v3517 = vld [vmem:[#allocation2 + $0x360] sm:$0xff]
  %v3518 = vld [vmem:[#allocation2 + $0x368] sm:$0xff]
  %v3519 = vld [vmem:[#allocation2 + $0x370] sm:$0xff]
  %v3520 = vld [vmem:[#allocation2 + $0x378] sm:$0xff]
  %v3521 = vld [vmem:[#allocation2 + $0x380] sm:$0xff]
  %v3522 = vld [vmem:[#allocation2 + $0x388] sm:$0xff]
  %v3523 = vld [vmem:[#allocation2 + $0x390] sm:$0xff]
  %v3524 = vld [vmem:[#allocation2 + $0x398] sm:$0xff]
  %v3525 = vld [vmem:[#allocation2 + $0x3a0] sm:$0xff]
  %v3526 = vld [vmem:[#allocation2 + $0x3a8] sm:$0xff]
  %v3527 = vld [vmem:[#allocation2 + $0x3b0] sm:$0xff]
  %v3528 = vld [vmem:[#allocation2 + $0x3b8] sm:$0xff]
  %v3529 = vld [vmem:[#allocation2 + $0x3c0] sm:$0xff]
  %v3530 = vld [vmem:[#allocation2 + $0x3c8] sm:$0xff]
  %v3531 = vld [vmem:[#allocation2 + $0x3d0] sm:$0xff]
  %v3532 = vld [vmem:[#allocation2 + $0x3d8] sm:$0xff]
  %v3533 = vld [vmem:[#allocation2 + $0x3e0] sm:$0xff]
  %v3534 = vld [vmem:[#allocation2 + $0x3e8] sm:$0xff]
  %v3535 = vld [vmem:[#allocation2 + $0x3f0] sm:$0xff]
  %v3536 = vld [vmem:[#allocation2 + $0x3f8] sm:$0xff]
  %v3537 = vld [vmem:[#allocation2 + $0x400] sm:$0xff]
  %v3538 = vld [vmem:[#allocation2 + $0x408] sm:$0xff]
  %v3539 = vld [vmem:[#allocation2 + $0x410] sm:$0xff]
  %v3540 = vld [vmem:[#allocation2 + $0x418] sm:$0xff]
  %v3541 = vld [vmem:[#allocation2 + $0x420] sm:$0xff]
  %v3542 = vld [vmem:[#allocation2 + $0x428] sm:$0xff]
  %v3543 = vld [vmem:[#allocation2 + $0x430] sm:$0xff]
  %v3544 = vld [vmem:[#allocation2 + $0x438] sm:$0xff]
  %v3545 = vld [vmem:[#allocation2 + $0x440] sm:$0xff]
  %v3546 = vld [vmem:[#allocation2 + $0x448] sm:$0xff]
  %v3547 = vld [vmem:[#allocation2 + $0x450] sm:$0xff]
  %v3548 = vld [vmem:[#allocation2 + $0x458] sm:$0xff]
  %v3549 = vld [vmem:[#allocation2 + $0x460] sm:$0xff]
  %v3550 = vld [vmem:[#allocation2 + $0x468] sm:$0xff]
  %v3551 = vld [vmem:[#allocation2 + $0x470] sm:$0xff]
  %v3552 = vld [vmem:[#allocation2 + $0x478] sm:$0xff]
  %s3553 = scalar_lea.vmem %s6, 8
  %v3554 = vld [vmem:[%s3553] sm:$0xff]
  %3556 = vset.pattern.permute.xlu0 0
  %3557 = vperm.xlu0 %3556, %v3554
  %v3558 = vpop.permute.xlu0 %3557
  %v3561 = vsel %vm1059, %v3408, 0
  %3563 = vmatprep.subr.mxu0 %v3410
  %3564 = vmatpush1.msra.mxu0 %v3409
  %3565 = vmatprep.subr.mxu0 %v3426
  %3566 = vmatpush1.msra.mxu0 %v3425
  %3567 = vmatprep.subr.mxu0 %v3442
  %3568 = vmatpush1.msra.mxu0 %v3441
  %3569 = vmatprep.subr.mxu0 %v3458
  %3570 = vmatpush1.msra.mxu0 %v3457
  %3571 = vmatprep.subr.mxu0 %v3474
  %3572 = vmatpush1.msra.mxu0 %v3473
  %3573 = vmatprep.subr.mxu0 %v3490
  %3574 = vmatpush1.msra.mxu0 %v3489
  %3575 = vmatprep.subr.mxu0 %v3506
  %3576 = vmatpush1.msra.mxu0 %v3505
  %3577 = vmatprep.subr.mxu0 %v3522
  %3578 = vmatpush1.msra.mxu0 %v3521
  %3579 = vmatprep.subr.mxu0 %v3538
  %3580 = vmatpush1.msra.mxu0 %v3537
  %3581 = vmatprep.subr.mxu0 0.0
  %3582 = vmatpush1.msra.mxu0 0.0
  %3583 = vmatprep.subr.mxu0 0.0
  %3584 = vmatpush1.msra.mxu0 0.0
  %3585 = vmatprep.subr.mxu0 0.0
  %3586 = vmatpush1.msra.mxu0 0.0
  %3587 = vmatprep.subr.mxu0 0.0
  %3588 = vmatpush1.msra.mxu0 0.0
  %3589 = vmatprep.subr.mxu0 0.0
  %3590 = vmatpush1.msra.mxu0 0.0
  %3591 = vmatprep.subr.mxu0 0.0
  %3592 = vmatpush1.msra.mxu0 0.0
  %3593 = vmatprep.subr.mxu0 0.0
  %3594 = vmatpush1.msra.mxu0 0.0
  %3595 = vmatprep.subr.mxu0 0.0
  %3596 = vmatpush1.msra.mxu0 0.0
  %3597 = vmatprep.subr.mxu0 0.0
  %3598 = vmatpush1.msra.mxu0 0.0
  %3599 = vmatprep.subr.mxu0 0.0
  %3600 = vmatpush1.msra.mxu0 0.0
  %3601 = vmatprep.subr.mxu0 0.0
  %3602 = vmatpush1.msra.mxu0 0.0
  %3603 = vmatprep.subr.mxu0 0.0
  %3604 = vmatpush1.msra.mxu0 0.0
  %3605 = vmatprep.subr.mxu0 0.0
  %3606 = vmatpush1.msra.mxu0 0.0
  %3607 = vmatprep.subr.mxu0 0.0
  %3608 = vmatpush1.msra.mxu0 0.0
  %3609 = vmatprep.subr.mxu0 0.0
  %3610 = vmatpush1.msra.mxu0 0.0
  %3611 = vmatprep.subr.mxu0 0.0
  %3612 = vmatpush1.msra.mxu0 0.0
  %3613 = vmatprep.subr.mxu0 0.0
  %3614 = vmatpush1.msra.mxu0 0.0
  %3615 = vmatprep.subr.mxu0 0.0
  %3616 = vmatpush1.msra.mxu0 0.0
  %3617 = vmatprep.subr.mxu0 0.0
  %3618 = vmatpush1.msra.mxu0 0.0
  %3619 = vmatprep.subr.mxu0 0.0
  %3620 = vmatpush1.msra.mxu0 0.0
  %3621 = vmatprep.subr.mxu0 0.0
  %3622 = vmatpush1.msra.mxu0 0.0
  %3623 = vmatprep.subr.mxu0 0.0
  %3624 = vmatpush1.msra.mxu0 0.0
  %3625 = vmatprep.subr.mxu0 0.0
  %3626 = vmatpush1.msra.mxu0 0.0
  %3627 = vmatprep.mubr.f32.mxu0 0.0
  %3628 = vmatmul.mubr.f32.gmra.mrb[0].mxu0 %v3561
  %v3629 = vpop.f32.mrb[0].mxu0
  %v3630 = vadd.f32 %v3558, %v3629
  %v3631 = vpop.f32.mrb[0].mxu0
  %v3632 = vadd.f32 %v3558, %v3631
  %3633 = vdwg.mxu0
  %3634 = vmatprep.subr.mxu0 %v3412
  %3635 = vmatpush1.msra.mxu0 %v3411
  %3636 = vmatprep.subr.mxu0 %v3428
  %3637 = vmatpush1.msra.mxu0 %v3427
  %3638 = vmatprep.subr.mxu0 %v3444
  %3639 = vmatpush1.msra.mxu0 %v3443
  %3640 = vmatprep.subr.mxu0 %v3460
  %3641 = vmatpush1.msra.mxu0 %v3459
  %3642 = vmatprep.subr.mxu0 %v3476
  %3643 = vmatpush1.msra.mxu0 %v3475
  %3644 = vmatprep.subr.mxu0 %v3492
  %3645 = vmatpush1.msra.mxu0 %v3491
  %3646 = vmatprep.subr.mxu0 %v3508
  %3647 = vmatpush1.msra.mxu0 %v3507
  %3648 = vmatprep.subr.mxu0 %v3524
  %3649 = vmatpush1.msra.mxu0 %v3523
  %3650 = vmatprep.subr.mxu0 %v3540
  %3651 = vmatpush1.msra.mxu0 %v3539
  %3652 = vmatprep.subr.mxu0 0.0
  %3653 = vmatpush1.msra.mxu0 0.0
  %3654 = vmatprep.subr.mxu0 0.0
  %3655 = vmatpush1.msra.mxu0 0.0
  %3656 = vmatprep.subr.mxu0 0.0
  %3657 = vmatpush1.msra.mxu0 0.0
  %3658 = vmatprep.subr.mxu0 0.0
  %3659 = vmatpush1.msra.mxu0 0.0
  %3660 = vmatprep.subr.mxu0 0.0
  %3661 = vmatpush1.msra.mxu0 0.0
  %3662 = vmatprep.subr.mxu0 0.0
  %3663 = vmatpush1.msra.mxu0 0.0
  %3664 = vmatprep.subr.mxu0 0.0
  %3665 = vmatpush1.msra.mxu0 0.0
  %3666 = vmatprep.subr.mxu0 0.0
  %3667 = vmatpush1.msra.mxu0 0.0
  %3668 = vmatprep.subr.mxu0 0.0
  %3669 = vmatpush1.msra.mxu0 0.0
  %3670 = vmatprep.subr.mxu0 0.0
  %3671 = vmatpush1.msra.mxu0 0.0
  %3672 = vmatprep.subr.mxu0 0.0
  %3673 = vmatpush1.msra.mxu0 0.0
  %3674 = vmatprep.subr.mxu0 0.0
  %3675 = vmatpush1.msra.mxu0 0.0
  %3676 = vmatprep.subr.mxu0 0.0
  %3677 = vmatpush1.msra.mxu0 0.0
  %3678 = vmatprep.subr.mxu0 0.0
  %3679 = vmatpush1.msra.mxu0 0.0
  %3680 = vmatprep.subr.mxu0 0.0
  %3681 = vmatpush1.msra.mxu0 0.0
  %3682 = vmatprep.subr.mxu0 0.0
  %3683 = vmatpush1.msra.mxu0 0.0
  %3684 = vmatprep.subr.mxu0 0.0
  %3685 = vmatpush1.msra.mxu0 0.0
  %3686 = vmatprep.subr.mxu0 0.0
  %3687 = vmatpush1.msra.mxu0 0.0
  %3688 = vmatprep.subr.mxu0 0.0
  %3689 = vmatpush1.msra.mxu0 0.0
  %3690 = vmatprep.subr.mxu0 0.0
  %3691 = vmatpush1.msra.mxu0 0.0
  %3692 = vmatprep.subr.mxu0 0.0
  %3693 = vmatpush1.msra.mxu0 0.0
  %3694 = vmatprep.subr.mxu0 0.0
  %3695 = vmatpush1.msra.mxu0 0.0
  %3696 = vmatprep.subr.mxu0 0.0
  %3697 = vmatpush1.msra.mxu0 0.0
  %3698 = vmatprep.mubr.f32.mxu0 0.0
  %3699 = vmatmul.mubr.f32.gmra.mrb[0].mxu0 %v3561
  %v3700 = vpop.f32.mrb[0].mxu0
  %v3701 = vadd.f32 %v3558, %v3700
  %v3702 = vpop.f32.mrb[0].mxu0
  %v3703 = vadd.f32 %v3558, %v3702
  %3704 = vdwg.mxu0
  %3705 = vmatprep.subr.mxu0 %v3414
  %3706 = vmatpush1.msra.mxu0 %v3413
  %3707 = vmatprep.subr.mxu0 %v3430
  %3708 = vmatpush1.msra.mxu0 %v3429
  %3709 = vmatprep.subr.mxu0 %v3446
  %3710 = vmatpush1.msra.mxu0 %v3445
  %3711 = vmatprep.subr.mxu0 %v3462
  %3712 = vmatpush1.msra.mxu0 %v3461
  %3713 = vmatprep.subr.mxu0 %v3478
  %3714 = vmatpush1.msra.mxu0 %v3477
  %3715 = vmatprep.subr.mxu0 %v3494
  %3716 = vmatpush1.msra.mxu0 %v3493
  %3717 = vmatprep.subr.mxu0 %v3510
  %3718 = vmatpush1.msra.mxu0 %v3509
  %3719 = vmatprep.subr.mxu0 %v3526
  %3720 = vmatpush1.msra.mxu0 %v3525
  %3721 = vmatprep.subr.mxu0 %v3542
  %3722 = vmatpush1.msra.mxu0 %v3541
  %3723 = vmatprep.subr.mxu0 0.0
  %3724 = vmatpush1.msra.mxu0 0.0
  %3725 = vmatprep.subr.mxu0 0.0
  %3726 = vmatpush1.msra.mxu0 0.0
  %3727 = vmatprep.subr.mxu0 0.0
  %3728 = vmatpush1.msra.mxu0 0.0
  %3729 = vmatprep.subr.mxu0 0.0
  %3730 = vmatpush1.msra.mxu0 0.0
  %3731 = vmatprep.subr.mxu0 0.0
  %3732 = vmatpush1.msra.mxu0 0.0
  %3733 = vmatprep.subr.mxu0 0.0
  %3734 = vmatpush1.msra.mxu0 0.0
  %3735 = vmatprep.subr.mxu0 0.0
  %3736 = vmatpush1.msra.mxu0 0.0
  %3737 = vmatprep.subr.mxu0 0.0
  %3738 = vmatpush1.msra.mxu0 0.0
  %3739 = vmatprep.subr.mxu0 0.0
  %3740 = vmatpush1.msra.mxu0 0.0
  %3741 = vmatprep.subr.mxu0 0.0
  %3742 = vmatpush1.msra.mxu0 0.0
  %3743 = vmatprep.subr.mxu0 0.0
  %3744 = vmatpush1.msra.mxu0 0.0
  %3745 = vmatprep.subr.mxu0 0.0
  %3746 = vmatpush1.msra.mxu0 0.0
  %3747 = vmatprep.subr.mxu0 0.0
  %3748 = vmatpush1.msra.mxu0 0.0
  %3749 = vmatprep.subr.mxu0 0.0
  %3750 = vmatpush1.msra.mxu0 0.0
  %3751 = vmatprep.subr.mxu0 0.0
  %3752 = vmatpush1.msra.mxu0 0.0
  %3753 = vmatprep.subr.mxu0 0.0
  %3754 = vmatpush1.msra.mxu0 0.0
  %3755 = vmatprep.subr.mxu0 0.0
  %3756 = vmatpush1.msra.mxu0 0.0
  %3757 = vmatprep.subr.mxu0 0.0
  %3758 = vmatpush1.msra.mxu0 0.0
  %3759 = vmatprep.subr.mxu0 0.0
  %3760 = vmatpush1.msra.mxu0 0.0
  %3761 = vmatprep.subr.mxu0 0.0
  %3762 = vmatpush1.msra.mxu0 0.0
  %3763 = vmatprep.subr.mxu0 0.0
  %3764 = vmatpush1.msra.mxu0 0.0
  %3765 = vmatprep.subr.mxu0 0.0
  %3766 = vmatpush1.msra.mxu0 0.0
  %3767 = vmatprep.subr.mxu0 0.0
  %3768 = vmatpush1.msra.mxu0 0.0
  %3769 = vmatprep.mubr.f32.mxu0 0.0
  %3770 = vmatmul.mubr.f32.gmra.mrb[0].mxu0 %v3561
  %v3771 = vpop.f32.mrb[0].mxu0
  %v3772 = vadd.f32 %v3558, %v3771
  %v3773 = vpop.f32.mrb[0].mxu0
  %v3774 = vadd.f32 %v3558, %v3773
  %3775 = vdwg.mxu0
  %3776 = vmatprep.subr.mxu0 %v3416
  %3777 = vmatpush1.msra.mxu0 %v3415
  %3778 = vmatprep.subr.mxu0 %v3432
  %3779 = vmatpush1.msra.mxu0 %v3431
  %3780 = vmatprep.subr.mxu0 %v3448
  %3781 = vmatpush1.msra.mxu0 %v3447
  %3782 = vmatprep.subr.mxu0 %v3464
  %3783 = vmatpush1.msra.mxu0 %v3463
  %3784 = vmatprep.subr.mxu0 %v3480
  %3785 = vmatpush1.msra.mxu0 %v3479
  %3786 = vmatprep.subr.mxu0 %v3496
  %3787 = vmatpush1.msra.mxu0 %v3495
  %3788 = vmatprep.subr.mxu0 %v3512
  %3789 = vmatpush1.msra.mxu0 %v3511
  %3790 = vmatprep.subr.mxu0 %v3528
  %3791 = vmatpush1.msra.mxu0 %v3527
  %3792 = vmatprep.subr.mxu0 %v3544
  %3793 = vmatpush1.msra.mxu0 %v3543
  %3794 = vmatprep.subr.mxu0 0.0
  %3795 = vmatpush1.msra.mxu0 0.0
  %3796 = vmatprep.subr.mxu0 0.0
  %3797 = vmatpush1.msra.mxu0 0.0
  %3798 = vmatprep.subr.mxu0 0.0
  %3799 = vmatpush1.msra.mxu0 0.0
  %3800 = vmatprep.subr.mxu0 0.0
  %3801 = vmatpush1.msra.mxu0 0.0
  %3802 = vmatprep.subr.mxu0 0.0
  %3803 = vmatpush1.msra.mxu0 0.0
  %3804 = vmatprep.subr.mxu0 0.0
  %3805 = vmatpush1.msra.mxu0 0.0
  %3806 = vmatprep.subr.mxu0 0.0
  %3807 = vmatpush1.msra.mxu0 0.0
  %3808 = vmatprep.subr.mxu0 0.0
  %3809 = vmatpush1.msra.mxu0 0.0
  %3810 = vmatprep.subr.mxu0 0.0
  %3811 = vmatpush1.msra.mxu0 0.0
  %3812 = vmatprep.subr.mxu0 0.0
  %3813 = vmatpush1.msra.mxu0 0.0
  %3814 = vmatprep.subr.mxu0 0.0
  %3815 = vmatpush1.msra.mxu0 0.0
  %3816 = vmatprep.subr.mxu0 0.0
  %3817 = vmatpush1.msra.mxu0 0.0
  %3818 = vmatprep.subr.mxu0 0.0
  %3819 = vmatpush1.msra.mxu0 0.0
  %3820 = vmatprep.subr.mxu0 0.0
  %3821 = vmatpush1.msra.mxu0 0.0
  %3822 = vmatprep.subr.mxu0 0.0
  %3823 = vmatpush1.msra.mxu0 0.0
  %3824 = vmatprep.subr.mxu0 0.0
  %3825 = vmatpush1.msra.mxu0 0.0
  %3826 = vmatprep.subr.mxu0 0.0
  %3827 = vmatpush1.msra.mxu0 0.0
  %3828 = vmatprep.subr.mxu0 0.0
  %3829 = vmatpush1.msra.mxu0 0.0
  %3830 = vmatprep.subr.mxu0 0.0
  %3831 = vmatpush1.msra.mxu0 0.0
  %3832 = vmatprep.subr.mxu0 0.0
  %3833 = vmatpush1.msra.mxu0 0.0
  %3834 = vmatprep.subr.mxu0 0.0
  %3835 = vmatpush1.msra.mxu0 0.0
  %3836 = vmatprep.subr.mxu0 0.0
  %3837 = vmatpush1.msra.mxu0 0.0
  %3838 = vmatprep.subr.mxu0 0.0
  %3839 = vmatpush1.msra.mxu0 0.0
  %3840 = vmatprep.mubr.f32.mxu0 0.0
  %3841 = vmatmul.mubr.f32.gmra.mrb[0].mxu0 %v3561
  %v3842 = vpop.f32.mrb[0].mxu0
  %v3843 = vadd.f32 %v3558, %v3842
  %v3844 = vpop.f32.mrb[0].mxu0
  %v3845 = vadd.f32 %v3558, %v3844
  %3846 = vdwg.mxu0
  %3847 = vmatprep.subr.mxu0 %v3418
  %3848 = vmatpush1.msra.mxu0 %v3417
  %3849 = vmatprep.subr.mxu0 %v3434
  %3850 = vmatpush1.msra.mxu0 %v3433
  %3851 = vmatprep.subr.mxu0 %v3450
  %3852 = vmatpush1.msra.mxu0 %v3449
  %3853 = vmatprep.subr.mxu0 %v3466
  %3854 = vmatpush1.msra.mxu0 %v3465
  %3855 = vmatprep.subr.mxu0 %v3482
  %3856 = vmatpush1.msra.mxu0 %v3481
  %3857 = vmatprep.subr.mxu0 %v3498
  %3858 = vmatpush1.msra.mxu0 %v3497
  %3859 = vmatprep.subr.mxu0 %v3514
  %3860 = vmatpush1.msra.mxu0 %v3513
  %3861 = vmatprep.subr.mxu0 %v3530
  %3862 = vmatpush1.msra.mxu0 %v3529
  %3863 = vmatprep.subr.mxu0 %v3546
  %3864 = vmatpush1.msra.mxu0 %v3545
  %3865 = vmatprep.subr.mxu0 0.0
  %3866 = vmatpush1.msra.mxu0 0.0
  %3867 = vmatprep.subr.mxu0 0.0
  %3868 = vmatpush1.msra.mxu0 0.0
  %3869 = vmatprep.subr.mxu0 0.0
  %3870 = vmatpush1.msra.mxu0 0.0
  %3871 = vmatprep.subr.mxu0 0.0
  %3872 = vmatpush1.msra.mxu0 0.0
  %3873 = vmatprep.subr.mxu0 0.0
  %3874 = vmatpush1.msra.mxu0 0.0
  %3875 = vmatprep.subr.mxu0 0.0
  %3876 = vmatpush1.msra.mxu0 0.0
  %3877 = vmatprep.subr.mxu0 0.0
  %3878 = vmatpush1.msra.mxu0 0.0
  %3879 = vmatprep.subr.mxu0 0.0
  %3880 = vmatpush1.msra.mxu0 0.0
  %3881 = vmatprep.subr.mxu0 0.0
  %3882 = vmatpush1.msra.mxu0 0.0
  %3883 = vmatprep.subr.mxu0 0.0
  %3884 = vmatpush1.msra.mxu0 0.0
  %3885 = vmatprep.subr.mxu0 0.0
  %3886 = vmatpush1.msra.mxu0 0.0
  %3887 = vmatprep.subr.mxu0 0.0
  %3888 = vmatpush1.msra.mxu0 0.0
  %3889 = vmatprep.subr.mxu0 0.0
  %3890 = vmatpush1.msra.mxu0 0.0
  %3891 = vmatprep.subr.mxu0 0.0
  %3892 = vmatpush1.msra.mxu0 0.0
  %3893 = vmatprep.subr.mxu0 0.0
  %3894 = vmatpush1.msra.mxu0 0.0
  %3895 = vmatprep.subr.mxu0 0.0
  %3896 = vmatpush1.msra.mxu0 0.0
  %3897 = vmatprep.subr.mxu0 0.0
  %3898 = vmatpush1.msra.mxu0 0.0
  %3899 = vmatprep.subr.mxu0 0.0
  %3900 = vmatpush1.msra.mxu0 0.0
  %3901 = vmatprep.subr.mxu0 0.0
  %3902 = vmatpush1.msra.mxu0 0.0
  %3903 = vmatprep.subr.mxu0 0.0
  %3904 = vmatpush1.msra.mxu0 0.0
  %3905 = vmatprep.subr.mxu0 0.0
  %3906 = vmatpush1.msra.mxu0 0.0
  %3907 = vmatprep.subr.mxu0 0.0
  %3908 = vmatpush1.msra.mxu0 0.0
  %3909 = vmatprep.subr.mxu0 0.0
  %3910 = vmatpush1.msra.mxu0 0.0
  %3911 = vmatprep.mubr.f32.mxu0 0.0
  %3912 = vmatmul.mubr.f32.gmra.mrb[0].mxu0 %v3561
  %v3913 = vpop.f32.mrb[0].mxu0
  %v3914 = vadd.f32 %v3558, %v3913
  %v3915 = vpop.f32.mrb[0].mxu0
  %v3916 = vadd.f32 %v3558, %v3915
  %3917 = vdwg.mxu0
  %3918 = vmatprep.subr.mxu0 %v3420
  %3919 = vmatpush1.msra.mxu0 %v3419
  %3920 = vmatprep.subr.mxu0 %v3436
  %3921 = vmatpush1.msra.mxu0 %v3435
  %3922 = vmatprep.subr.mxu0 %v3452
  %3923 = vmatpush1.msra.mxu0 %v3451
  %3924 = vmatprep.subr.mxu0 %v3468
  %3925 = vmatpush1.msra.mxu0 %v3467
  %3926 = vmatprep.subr.mxu0 %v3484
  %3927 = vmatpush1.msra.mxu0 %v3483
  %3928 = vmatprep.subr.mxu0 %v3500
  %3929 = vmatpush1.msra.mxu0 %v3499
  %3930 = vmatprep.subr.mxu0 %v3516
  %3931 = vmatpush1.msra.mxu0 %v3515
  %3932 = vmatprep.subr.mxu0 %v3532
  %3933 = vmatpush1.msra.mxu0 %v3531
  %3934 = vmatprep.subr.mxu0 %v3548
  %3935 = vmatpush1.msra.mxu0 %v3547
  %3936 = vmatprep.subr.mxu0 0.0
  %3937 = vmatpush1.msra.mxu0 0.0
  %3938 = vmatprep.subr.mxu0 0.0
  %3939 = vmatpush1.msra.mxu0 0.0
  %3940 = vmatprep.subr.mxu0 0.0
  %3941 = vmatpush1.msra.mxu0 0.0
  %3942 = vmatprep.subr.mxu0 0.0
  %3943 = vmatpush1.msra.mxu0 0.0
  %3944 = vmatprep.subr.mxu0 0.0
  %3945 = vmatpush1.msra.mxu0 0.0
  %3946 = vmatprep.subr.mxu0 0.0
  %3947 = vmatpush1.msra.mxu0 0.0
  %3948 = vmatprep.subr.mxu0 0.0
  %3949 = vmatpush1.msra.mxu0 0.0
  %3950 = vmatprep.subr.mxu0 0.0
  %3951 = vmatpush1.msra.mxu0 0.0
  %3952 = vmatprep.subr.mxu0 0.0
  %3953 = vmatpush1.msra.mxu0 0.0
  %3954 = vmatprep.subr.mxu0 0.0
  %3955 = vmatpush1.msra.mxu0 0.0
  %3956 = vmatprep.subr.mxu0 0.0
  %3957 = vmatpush1.msra.mxu0 0.0
  %3958 = vmatprep.subr.mxu0 0.0
  %3959 = vmatpush1.msra.mxu0 0.0
  %3960 = vmatprep.subr.mxu0 0.0
  %3961 = vmatpush1.msra.mxu0 0.0
  %3962 = vmatprep.subr.mxu0 0.0
  %3963 = vmatpush1.msra.mxu0 0.0
  %3964 = vmatprep.subr.mxu0 0.0
  %3965 = vmatpush1.msra.mxu0 0.0
  %3966 = vmatprep.subr.mxu0 0.0
  %3967 = vmatpush1.msra.mxu0 0.0
  %3968 = vmatprep.subr.mxu0 0.0
  %3969 = vmatpush1.msra.mxu0 0.0
  %3970 = vmatprep.subr.mxu0 0.0
  %3971 = vmatpush1.msra.mxu0 0.0
  %3972 = vmatprep.subr.mxu0 0.0
  %3973 = vmatpush1.msra.mxu0 0.0
  %3974 = vmatprep.subr.mxu0 0.0
  %3975 = vmatpush1.msra.mxu0 0.0
  %3976 = vmatprep.subr.mxu0 0.0
  %3977 = vmatpush1.msra.mxu0 0.0
  %3978 = vmatprep.subr.mxu0 0.0
  %3979 = vmatpush1.msra.mxu0 0.0
  %3980 = vmatprep.subr.mxu0 0.0
  %3981 = vmatpush1.msra.mxu0 0.0
  %3982 = vmatprep.mubr.f32.mxu0 0.0
  %3983 = vmatmul.mubr.f32.gmra.mrb[0].mxu0 %v3561
  %v3984 = vpop.f32.mrb[0].mxu0
  %v3985 = vadd.f32 %v3558, %v3984
  %v3986 = vpop.f32.mrb[0].mxu0
  %v3987 = vadd.f32 %v3558, %v3986
  %3988 = vdwg.mxu0
  %3989 = vmatprep.subr.mxu0 %v3422
  %3990 = vmatpush1.msra.mxu0 %v3421
  %3991 = vmatprep.subr.mxu0 %v3438
  %3992 = vmatpush1.msra.mxu0 %v3437
  %3993 = vmatprep.subr.mxu0 %v3454
  %3994 = vmatpush1.msra.mxu0 %v3453
  %3995 = vmatprep.subr.mxu0 %v3470
  %3996 = vmatpush1.msra.mxu0 %v3469
  %3997 = vmatprep.subr.mxu0 %v3486
  %3998 = vmatpush1.msra.mxu0 %v3485
  %3999 = vmatprep.subr.mxu0 %v3502
  %4000 = vmatpush1.msra.mxu0 %v3501
  %4001 = vmatprep.subr.mxu0 %v3518
  %4002 = vmatpush1.msra.mxu0 %v3517
  %4003 = vmatprep.subr.mxu0 %v3534
  %4004 = vmatpush1.msra.mxu0 %v3533
  %4005 = vmatprep.subr.mxu0 %v3550
  %4006 = vmatpush1.msra.mxu0 %v3549
  %4007 = vmatprep.subr.mxu0 0.0
  %4008 = vmatpush1.msra.mxu0 0.0
  %4009 = vmatprep.subr.mxu0 0.0
  %4010 = vmatpush1.msra.mxu0 0.0
  %4011 = vmatprep.subr.mxu0 0.0
  %4012 = vmatpush1.msra.mxu0 0.0
  %4013 = vmatprep.subr.mxu0 0.0
  %4014 = vmatpush1.msra.mxu0 0.0
  %4015 = vmatprep.subr.mxu0 0.0
  %4016 = vmatpush1.msra.mxu0 0.0
  %4017 = vmatprep.subr.mxu0 0.0
  %4018 = vmatpush1.msra.mxu0 0.0
  %4019 = vmatprep.subr.mxu0 0.0
  %4020 = vmatpush1.msra.mxu0 0.0
  %4021 = vmatprep.subr.mxu0 0.0
  %4022 = vmatpush1.msra.mxu0 0.0
  %4023 = vmatprep.subr.mxu0 0.0
  %4024 = vmatpush1.msra.mxu0 0.0
  %4025 = vmatprep.subr.mxu0 0.0
  %4026 = vmatpush1.msra.mxu0 0.0
  %4027 = vmatprep.subr.mxu0 0.0
  %4028 = vmatpush1.msra.mxu0 0.0
  %4029 = vmatprep.subr.mxu0 0.0
  %4030 = vmatpush1.msra.mxu0 0.0
  %4031 = vmatprep.subr.mxu0 0.0
  %4032 = vmatpush1.msra.mxu0 0.0
  %4033 = vmatprep.subr.mxu0 0.0
  %4034 = vmatpush1.msra.mxu0 0.0
  %4035 = vmatprep.subr.mxu0 0.0
  %4036 = vmatpush1.msra.mxu0 0.0
  %4037 = vmatprep.subr.mxu0 0.0
  %4038 = vmatpush1.msra.mxu0 0.0
  %4039 = vmatprep.subr.mxu0 0.0
  %4040 = vmatpush1.msra.mxu0 0.0
  %4041 = vmatprep.subr.mxu0 0.0
  %4042 = vmatpush1.msra.mxu0 0.0
  %4043 = vmatprep.subr.mxu0 0.0
  %4044 = vmatpush1.msra.mxu0 0.0
  %4045 = vmatprep.subr.mxu0 0.0
  %4046 = vmatpush1.msra.mxu0 0.0
  %4047 = vmatprep.subr.mxu0 0.0
  %4048 = vmatpush1.msra.mxu0 0.0
  %4049 = vmatprep.subr.mxu0 0.0
  %4050 = vmatpush1.msra.mxu0 0.0
  %4051 = vmatprep.subr.mxu0 0.0
  %4052 = vmatpush1.msra.mxu0 0.0
  %4053 = vmatprep.mubr.f32.mxu0 0.0
  %4054 = vmatmul.mubr.f32.gmra.mrb[0].mxu0 %v3561
  %v4055 = vpop.f32.mrb[0].mxu0
  %v4056 = vadd.f32 %v3558, %v4055
  %v4057 = vpop.f32.mrb[0].mxu0
  %v4058 = vadd.f32 %v3558, %v4057
  %4059 = vdwg.mxu0
  %4060 = vmatprep.subr.mxu0 %v3424
  %4061 = vmatpush1.msra.mxu0 %v3423
  %4062 = vmatprep.subr.mxu0 %v3440
  %4063 = vmatpush1.msra.mxu0 %v3439
  %4064 = vmatprep.subr.mxu0 %v3456
  %4065 = vmatpush1.msra.mxu0 %v3455
  %4066 = vmatprep.subr.mxu0 %v3472
  %4067 = vmatpush1.msra.mxu0 %v3471
  %4068 = vmatprep.subr.mxu0 %v3488
  %4069 = vmatpush1.msra.mxu0 %v3487
  %4070 = vmatprep.subr.mxu0 %v3504
  %4071 = vmatpush1.msra.mxu0 %v3503
  %4072 = vmatprep.subr.mxu0 %v3520
  %4073 = vmatpush1.msra.mxu0 %v3519
  %4074 = vmatprep.subr.mxu0 %v3536
  %4075 = vmatpush1.msra.mxu0 %v3535
  %4076 = vmatprep.subr.mxu0 %v3552
  %4077 = vmatpush1.msra.mxu0 %v3551
  %4078 = vmatprep.subr.mxu0 0.0
  %4079 = vmatpush1.msra.mxu0 0.0
  %4080 = vmatprep.subr.mxu0 0.0
  %4081 = vmatpush1.msra.mxu0 0.0
  %4082 = vmatprep.subr.mxu0 0.0
  %4083 = vmatpush1.msra.mxu0 0.0
  %4084 = vmatprep.subr.mxu0 0.0
  %4085 = vmatpush1.msra.mxu0 0.0
  %4086 = vmatprep.subr.mxu0 0.0
  %4087 = vmatpush1.msra.mxu0 0.0
  %4088 = vmatprep.subr.mxu0 0.0
  %4089 = vmatpush1.msra.mxu0 0.0
  %4090 = vmatprep.subr.mxu0 0.0
  %4091 = vmatpush1.msra.mxu0 0.0
  %4092 = vmatprep.subr.mxu0 0.0
  %4093 = vmatpush1.msra.mxu0 0.0
  %4094 = vmatprep.subr.mxu0 0.0
  %4095 = vmatpush1.msra.mxu0 0.0
  %4096 = vmatprep.subr.mxu0 0.0
  %4097 = vmatpush1.msra.mxu0 0.0
  %4098 = vmatprep.subr.mxu0 0.0
  %4099 = vmatpush1.msra.mxu0 0.0
  %4100 = vmatprep.subr.mxu0 0.0
  %4101 = vmatpush1.msra.mxu0 0.0
  %4102 = vmatprep.subr.mxu0 0.0
  %4103 = vmatpush1.msra.mxu0 0.0
  %4104 = vmatprep.subr.mxu0 0.0
  %4105 = vmatpush1.msra.mxu0 0.0
  %4106 = vmatprep.subr.mxu0 0.0
  %4107 = vmatpush1.msra.mxu0 0.0
  %4108 = vmatprep.subr.mxu0 0.0
  %4109 = vmatpush1.msra.mxu0 0.0
  %4110 = vmatprep.subr.mxu0 0.0
  %4111 = vmatpush1.msra.mxu0 0.0
  %4112 = vmatprep.subr.mxu0 0.0
  %4113 = vmatpush1.msra.mxu0 0.0
  %4114 = vmatprep.subr.mxu0 0.0
  %4115 = vmatpush1.msra.mxu0 0.0
  %4116 = vmatprep.subr.mxu0 0.0
  %4117 = vmatpush1.msra.mxu0 0.0
  %4118 = vmatprep.subr.mxu0 0.0
  %4119 = vmatpush1.msra.mxu0 0.0
  %4120 = vmatprep.subr.mxu0 0.0
  %4121 = vmatpush1.msra.mxu0 0.0
  %4122 = vmatprep.subr.mxu0 0.0
  %4123 = vmatpush1.msra.mxu0 0.0
  %4124 = vmatprep.mubr.f32.mxu0 0.0
  %4125 = vmatmul.mubr.f32.gmra.mrb[0].mxu0 %v3561
  %v4126 = vpop.f32.mrb[0].mxu0
  %v4127 = vadd.f32 %v3558, %v4126
  %v4128 = vpop.f32.mrb[0].mxu0
  %v4129 = vadd.f32 %v3558, %v4128
  %4130 = vdwg.mxu0
  %4131 = vrot.lane.b32.xlu0 %v3630, 33
  %v4132 = vpop.permute.xlu0 %4131
  %4133 = vrot.lane.b32.xlu0 %v3632, 33
  %v4134 = vpop.permute.xlu0 %4133
  %4135 = vrot.lane.b32.xlu0 %v3701, 33
  %v4136 = vpop.permute.xlu0 %4135
  %4137 = vrot.lane.b32.xlu0 %v3703, 33
  %v4138 = vpop.permute.xlu0 %4137
  %4139 = vrot.lane.b32.xlu0 %v3772, 33
  %v4140 = vpop.permute.xlu0 %4139
  %4141 = vrot.lane.b32.xlu0 %v3774, 33
  %v4142 = vpop.permute.xlu0 %4141
  %4143 = vrot.lane.b32.xlu0 %v3843, 33
  %v4144 = vpop.permute.xlu0 %4143
  %4145 = vrot.lane.b32.xlu0 %v3845, 33
  %v4146 = vpop.permute.xlu0 %4145
  %4147 = vrot.lane.b32.xlu0 %v3914, 33
  %v4148 = vpop.permute.xlu0 %4147
  %4149 = vrot.lane.b32.xlu0 %v3916, 33
  %v4150 = vpop.permute.xlu0 %4149
  %4151 = vrot.lane.b32.xlu0 %v3985, 33
  %v4152 = vpop.permute.xlu0 %4151
  %4153 = vrot.lane.b32.xlu0 %v3987, 33
  %v4154 = vpop.permute.xlu0 %4153
  %4155 = vrot.lane.b32.xlu0 %v4056, 33
  %v4156 = vpop.permute.xlu0 %4155
  %4157 = vrot.lane.b32.xlu0 %v4058, 33
  %v4158 = vpop.permute.xlu0 %4157
  %4159 = vrot.lane.b32.xlu0 %v4127, 33
  %v4160 = vpop.permute.xlu0 %4159
  %4161 = vrot.lane.b32.xlu0 %v4129, 33
  %v4162 = vpop.permute.xlu0 %4161
  %v4163 = vsel %vm141, %v4160, %v4162
  %v4164 = vsel %vm141, %v4158, %v4160
  %v4165 = vsel %vm141, %v4156, %v4158
  %v4166 = vsel %vm141, %v4154, %v4156
  %v4167 = vsel %vm141, %v4152, %v4154
  %v4168 = vsel %vm141, %v4150, %v4152
  %v4169 = vsel %vm141, %v4148, %v4150
  %v4170 = vsel %vm141, %v4146, %v4148
  %v4171 = vsel %vm141, %v4144, %v4146
  %v4172 = vsel %vm141, %v4142, %v4144
  %v4173 = vsel %vm141, %v4140, %v4142
  %v4174 = vsel %vm141, %v4138, %v4140
  %v4175 = vsel %vm141, %v4136, %v4138
  %v4176 = vsel %vm141, %v4134, %v4136
  %v4177 = vsel %vm141, %v4132, %v4134
  %v4178 = vsel %vm141, %v4162, %v4132
  %v4179 = vld [vmem:[%s2] sm:$0xff]
  %v4180 = vld [vmem:[%s2 + $0x8] sm:$0xff]
  %v4181 = vld [vmem:[%s2 + $0x10] sm:$0xff]
  %v4182 = vld [vmem:[%s2 + $0x18] sm:$0xff]
  %v4183 = vld [vmem:[%s2 + $0x20] sm:$0xff]
  %v4184 = vld [vmem:[%s2 + $0x28] sm:$0xff]
  %v4185 = vld [vmem:[%s2 + $0x30] sm:$0xff]
  %v4186 = vld [vmem:[%s2 + $0x38] sm:$0xff]
  %v4187 = vld [vmem:[%s2 + $0x40] sm:$0xff]
  %v4188 = vld [vmem:[%s2 + $0x48] sm:$0xff]
  %v4189 = vld [vmem:[%s2 + $0x50] sm:$0xff]
  %v4190 = vld [vmem:[%s2 + $0x58] sm:$0xff]
  %v4191 = vld [vmem:[%s2 + $0x60] sm:$0xff]
  %v4192 = vld [vmem:[%s2 + $0x68] sm:$0xff]
  %v4193 = vld [vmem:[%s2 + $0x70] sm:$0xff]
  %v4194 = vld [vmem:[%s2 + $0x78] sm:$0xff]
  %v4195 = vmul.f32 %v4178, %v4179
  %v4196 = vmul.f32 %v4177, %v4180
  %v4197 = vmul.f32 %v4176, %v4181
  %v4198 = vmul.f32 %v4175, %v4182
  %v4199 = vmul.f32 %v4174, %v4183
  %v4200 = vmul.f32 %v4173, %v4184
  %v4201 = vmul.f32 %v4172, %v4185
  %v4202 = vmul.f32 %v4171, %v4186
  %v4203 = vmul.f32 %v4170, %v4187
  %v4204 = vmul.f32 %v4169, %v4188
  %v4205 = vmul.f32 %v4168, %v4189
  %v4206 = vmul.f32 %v4167, %v4190
  %v4207 = vmul.f32 %v4166, %v4191
  %v4208 = vmul.f32 %v4165, %v4192
  %v4209 = vmul.f32 %v4164, %v4193
  %v4210 = vmul.f32 %v4163, %v4194
  %4211 = vst [vmem:[#allocation2] sm:$0xff] %v4195
  %4212 = vst [vmem:[#allocation2 + $0x8] sm:$0xff] %v4196
  %4213 = vst [vmem:[#allocation2 + $0x10] sm:$0xff] %v4197
  %4214 = vst [vmem:[#allocation2 + $0x18] sm:$0xff] %v4198
  %4215 = vst [vmem:[#allocation2 + $0x20] sm:$0xff] %v4199
  %4216 = vst [vmem:[#allocation2 + $0x28] sm:$0xff] %v4200
  %4217 = vst [vmem:[#allocation2 + $0x30] sm:$0xff] %v4201
  %4218 = vst [vmem:[#allocation2 + $0x38] sm:$0xff] %v4202
  %4219 = vst [vmem:[#allocation2 + $0x40] sm:$0xff] %v4203
  %4220 = vst [vmem:[#allocation2 + $0x48] sm:$0xff] %v4204
  %4221 = vst [vmem:[#allocation2 + $0x50] sm:$0xff] %v4205
  %4222 = vst [vmem:[#allocation2 + $0x58] sm:$0xff] %v4206
  %4223 = vst [vmem:[#allocation2 + $0x60] sm:$0xff] %v4207
  %4224 = vst [vmem:[#allocation2 + $0x68] sm:$0xff] %v4208
  %4225 = vst [vmem:[#allocation2 + $0x70] sm:$0xff] %v4209
  %4226 = vst [vmem:[#allocation2 + $0x78] sm:$0xff] %v4210
  %4227 = vrot.lane.b32.xlu0 %v3630, 32
  %v4228 = vpop.permute.xlu0 %4227
  %4229 = vrot.lane.b32.xlu0 %v3632, 32
  %v4230 = vpop.permute.xlu0 %4229
  %4231 = vrot.lane.b32.xlu0 %v3701, 32
  %v4232 = vpop.permute.xlu0 %4231
  %4233 = vrot.lane.b32.xlu0 %v3703, 32
  %v4234 = vpop.permute.xlu0 %4233
  %4235 = vrot.lane.b32.xlu0 %v3772, 32
  %v4236 = vpop.permute.xlu0 %4235
  %4237 = vrot.lane.b32.xlu0 %v3774, 32
  %v4238 = vpop.permute.xlu0 %4237
  %4239 = vrot.lane.b32.xlu0 %v3843, 32
  %v4240 = vpop.permute.xlu0 %4239
  %4241 = vrot.lane.b32.xlu0 %v3845, 32
  %v4242 = vpop.permute.xlu0 %4241
  %4243 = vrot.lane.b32.xlu0 %v3914, 32
  %v4244 = vpop.permute.xlu0 %4243
  %4245 = vrot.lane.b32.xlu0 %v3916, 32
  %v4246 = vpop.permute.xlu0 %4245
  %4247 = vrot.lane.b32.xlu0 %v3985, 32
  %v4248 = vpop.permute.xlu0 %4247
  %4249 = vrot.lane.b32.xlu0 %v3987, 32
  %v4250 = vpop.permute.xlu0 %4249
  %4251 = vrot.lane.b32.xlu0 %v4056, 32
  %v4252 = vpop.permute.xlu0 %4251
  %4253 = vrot.lane.b32.xlu0 %v4058, 32
  %v4254 = vpop.permute.xlu0 %4253
  %4255 = vrot.lane.b32.xlu0 %v4127, 32
  %v4256 = vpop.permute.xlu0 %4255
  %4257 = vrot.lane.b32.xlu0 %v4129, 32
  %v4258 = vpop.permute.xlu0 %4257
  %v4259 = vsel %vm238, %v4256, %v4258
  %v4260 = vsel %vm238, %v4254, %v4256
  %v4261 = vsel %vm238, %v4252, %v4254
  %v4262 = vsel %vm238, %v4250, %v4252
  %v4263 = vsel %vm238, %v4248, %v4250
  %v4264 = vsel %vm238, %v4246, %v4248
  %v4265 = vsel %vm238, %v4244, %v4246
  %v4266 = vsel %vm238, %v4242, %v4244
  %v4267 = vsel %vm238, %v4240, %v4242
  %v4268 = vsel %vm238, %v4238, %v4240
  %v4269 = vsel %vm238, %v4236, %v4238
  %v4270 = vsel %vm238, %v4234, %v4236
  %v4271 = vsel %vm238, %v4232, %v4234
  %v4272 = vsel %vm238, %v4230, %v4232
  %v4273 = vsel %vm238, %v4228, %v4230
  %v4274 = vsel %vm238, %v4258, %v4228
  %v4275 = vld [vmem:[%s255] sm:$0xff]
  %v4276 = vld [vmem:[%s255 + $0x8] sm:$0xff]
  %v4277 = vld [vmem:[%s255 + $0x10] sm:$0xff]
  %v4278 = vld [vmem:[%s255 + $0x18] sm:$0xff]
  %v4279 = vld [vmem:[%s255 + $0x20] sm:$0xff]
  %v4280 = vld [vmem:[%s255 + $0x28] sm:$0xff]
  %v4281 = vld [vmem:[%s255 + $0x30] sm:$0xff]
  %v4282 = vld [vmem:[%s255 + $0x38] sm:$0xff]
  %v4283 = vld [vmem:[%s255 + $0x40] sm:$0xff]
  %v4284 = vld [vmem:[%s255 + $0x48] sm:$0xff]
  %v4285 = vld [vmem:[%s255 + $0x50] sm:$0xff]
  %v4286 = vld [vmem:[%s255 + $0x58] sm:$0xff]
  %v4287 = vld [vmem:[%s255 + $0x60] sm:$0xff]
  %v4288 = vld [vmem:[%s255 + $0x68] sm:$0xff]
  %v4289 = vld [vmem:[%s255 + $0x70] sm:$0xff]
  %v4290 = vld [vmem:[%s255 + $0x78] sm:$0xff]
  %v4291 = vmul.f32 %v4274, %v4275
  %v4292 = vmul.f32 %v4273, %v4276
  %v4293 = vmul.f32 %v4272, %v4277
  %v4294 = vmul.f32 %v4271, %v4278
  %v4295 = vmul.f32 %v4270, %v4279
  %v4296 = vmul.f32 %v4269, %v4280
  %v4297 = vmul.f32 %v4268, %v4281
  %v4298 = vmul.f32 %v4267, %v4282
  %v4299 = vmul.f32 %v4266, %v4283
  %v4300 = vmul.f32 %v4265, %v4284
  %v4301 = vmul.f32 %v4264, %v4285
  %v4302 = vmul.f32 %v4263, %v4286
  %v4303 = vmul.f32 %v4262, %v4287
  %v4304 = vmul.f32 %v4261, %v4288
  %v4305 = vmul.f32 %v4260, %v4289
  %v4306 = vmul.f32 %v4259, %v4290
  %4307 = vst [vmem:[#allocation2 + $0x80] sm:$0xff] %v4291
  %4308 = vst [vmem:[#allocation2 + $0x88] sm:$0xff] %v4292
  %4309 = vst [vmem:[#allocation2 + $0x90] sm:$0xff] %v4293
  %4310 = vst [vmem:[#allocation2 + $0x98] sm:$0xff] %v4294
  %4311 = vst [vmem:[#allocation2 + $0xa0] sm:$0xff] %v4295
  %4312 = vst [vmem:[#allocation2 + $0xa8] sm:$0xff] %v4296
  %4313 = vst [vmem:[#allocation2 + $0xb0] sm:$0xff] %v4297
  %4314 = vst [vmem:[#allocation2 + $0xb8] sm:$0xff] %v4298
  %4315 = vst [vmem:[#allocation2 + $0xc0] sm:$0xff] %v4299
  %4316 = vst [vmem:[#allocation2 + $0xc8] sm:$0xff] %v4300
  %4317 = vst [vmem:[#allocation2 + $0xd0] sm:$0xff] %v4301
  %4318 = vst [vmem:[#allocation2 + $0xd8] sm:$0xff] %v4302
  %4319 = vst [vmem:[#allocation2 + $0xe0] sm:$0xff] %v4303
  %4320 = vst [vmem:[#allocation2 + $0xe8] sm:$0xff] %v4304
  %4321 = vst [vmem:[#allocation2 + $0xf0] sm:$0xff] %v4305
  %4322 = vst [vmem:[#allocation2 + $0xf8] sm:$0xff] %v4306
  %4323 = vrot.lane.b32.xlu0 %v3630, 31
  %v4324 = vpop.permute.xlu0 %4323
  %4325 = vrot.lane.b32.xlu0 %v3632, 31
  %v4326 = vpop.permute.xlu0 %4325
  %4327 = vrot.lane.b32.xlu0 %v3701, 31
  %v4328 = vpop.permute.xlu0 %4327
  %4329 = vrot.lane.b32.xlu0 %v3703, 31
  %v4330 = vpop.permute.xlu0 %4329
  %4331 = vrot.lane.b32.xlu0 %v3772, 31
  %v4332 = vpop.permute.xlu0 %4331
  %4333 = vrot.lane.b32.xlu0 %v3774, 31
  %v4334 = vpop.permute.xlu0 %4333
  %4335 = vrot.lane.b32.xlu0 %v3843, 31
  %v4336 = vpop.permute.xlu0 %4335
  %4337 = vrot.lane.b32.xlu0 %v3845, 31
  %v4338 = vpop.permute.xlu0 %4337
  %4339 = vrot.lane.b32.xlu0 %v3914, 31
  %v4340 = vpop.permute.xlu0 %4339
  %4341 = vrot.lane.b32.xlu0 %v3916, 31
  %v4342 = vpop.permute.xlu0 %4341
  %4343 = vrot.lane.b32.xlu0 %v3985, 31
  %v4344 = vpop.permute.xlu0 %4343
  %4345 = vrot.lane.b32.xlu0 %v3987, 31
  %v4346 = vpop.permute.xlu0 %4345
  %4347 = vrot.lane.b32.xlu0 %v4056, 31
  %v4348 = vpop.permute.xlu0 %4347
  %4349 = vrot.lane.b32.xlu0 %v4058, 31
  %v4350 = vpop.permute.xlu0 %4349
  %4351 = vrot.lane.b32.xlu0 %v4127, 31
  %v4352 = vpop.permute.xlu0 %4351
  %4353 = vrot.lane.b32.xlu0 %v4129, 31
  %v4354 = vpop.permute.xlu0 %4353
  %v4355 = vsel %vm336, %v4352, %v4354
  %v4356 = vsel %vm336, %v4350, %v4352
  %v4357 = vsel %vm336, %v4348, %v4350
  %v4358 = vsel %vm336, %v4346, %v4348
  %v4359 = vsel %vm336, %v4344, %v4346
  %v4360 = vsel %vm336, %v4342, %v4344
  %v4361 = vsel %vm336, %v4340, %v4342
  %v4362 = vsel %vm336, %v4338, %v4340
  %v4363 = vsel %vm336, %v4336, %v4338
  %v4364 = vsel %vm336, %v4334, %v4336
  %v4365 = vsel %vm336, %v4332, %v4334
  %v4366 = vsel %vm336, %v4330, %v4332
  %v4367 = vsel %vm336, %v4328, %v4330
  %v4368 = vsel %vm336, %v4326, %v4328
  %v4369 = vsel %vm336, %v4324, %v4326
  %v4370 = vsel %vm336, %v4354, %v4324
  %v4371 = vld [vmem:[%s353] sm:$0xff]
  %v4372 = vld [vmem:[%s353 + $0x8] sm:$0xff]
  %v4373 = vld [vmem:[%s353 + $0x10] sm:$0xff]
  %v4374 = vld [vmem:[%s353 + $0x18] sm:$0xff]
  %v4375 = vld [vmem:[%s353 + $0x20] sm:$0xff]
  %v4376 = vld [vmem:[%s353 + $0x28] sm:$0xff]
  %v4377 = vld [vmem:[%s353 + $0x30] sm:$0xff]
  %v4378 = vld [vmem:[%s353 + $0x38] sm:$0xff]
  %v4379 = vld [vmem:[%s353 + $0x40] sm:$0xff]
  %v4380 = vld [vmem:[%s353 + $0x48] sm:$0xff]
  %v4381 = vld [vmem:[%s353 + $0x50] sm:$0xff]
  %v4382 = vld [vmem:[%s353 + $0x58] sm:$0xff]
  %v4383 = vld [vmem:[%s353 + $0x60] sm:$0xff]
  %v4384 = vld [vmem:[%s353 + $0x68] sm:$0xff]
  %v4385 = vld [vmem:[%s353 + $0x70] sm:$0xff]
  %v4386 = vld [vmem:[%s353 + $0x78] sm:$0xff]
  %v4387 = vmul.f32 %v4370, %v4371
  %v4388 = vmul.f32 %v4369, %v4372
  %v4389 = vmul.f32 %v4368, %v4373
  %v4390 = vmul.f32 %v4367, %v4374
  %v4391 = vmul.f32 %v4366, %v4375
  %v4392 = vmul.f32 %v4365, %v4376
  %v4393 = vmul.f32 %v4364, %v4377
  %v4394 = vmul.f32 %v4363, %v4378
  %v4395 = vmul.f32 %v4362, %v4379
  %v4396 = vmul.f32 %v4361, %v4380
  %v4397 = vmul.f32 %v4360, %v4381
  %v4398 = vmul.f32 %v4359, %v4382
  %v4399 = vmul.f32 %v4358, %v4383
  %v4400 = vmul.f32 %v4357, %v4384
  %v4401 = vmul.f32 %v4356, %v4385
  %v4402 = vmul.f32 %v4355, %v4386
  %4403 = vst [vmem:[#allocation2 + $0x100] sm:$0xff] %v4387
  %4404 = vst [vmem:[#allocation2 + $0x108] sm:$0xff] %v4388
  %4405 = vst [vmem:[#allocation2 + $0x110] sm:$0xff] %v4389
  %4406 = vst [vmem:[#allocation2 + $0x118] sm:$0xff] %v4390
  %4407 = vst [vmem:[#allocation2 + $0x120] sm:$0xff] %v4391
  %4408 = vst [vmem:[#allocation2 + $0x128] sm:$0xff] %v4392
  %4409 = vst [vmem:[#allocation2 + $0x130] sm:$0xff] %v4393
  %4410 = vst [vmem:[#allocation2 + $0x138] sm:$0xff] %v4394
  %4411 = vst [vmem:[#allocation2 + $0x140] sm:$0xff] %v4395
  %4412 = vst [vmem:[#allocation2 + $0x148] sm:$0xff] %v4396
  %4413 = vst [vmem:[#allocation2 + $0x150] sm:$0xff] %v4397
  %4414 = vst [vmem:[#allocation2 + $0x158] sm:$0xff] %v4398
  %4415 = vst [vmem:[#allocation2 + $0x160] sm:$0xff] %v4399
  %4416 = vst [vmem:[#allocation2 + $0x168] sm:$0xff] %v4400
  %4417 = vst [vmem:[#allocation2 + $0x170] sm:$0xff] %v4401
  %4418 = vst [vmem:[#allocation2 + $0x178] sm:$0xff] %v4402
  %4419 = vrot.lane.b32.xlu0 %v3630, 1
  %v4420 = vpop.permute.xlu0 %4419
  %4421 = vrot.lane.b32.xlu0 %v3632, 1
  %v4422 = vpop.permute.xlu0 %4421
  %4423 = vrot.lane.b32.xlu0 %v3701, 1
  %v4424 = vpop.permute.xlu0 %4423
  %4425 = vrot.lane.b32.xlu0 %v3703, 1
  %v4426 = vpop.permute.xlu0 %4425
  %4427 = vrot.lane.b32.xlu0 %v3772, 1
  %v4428 = vpop.permute.xlu0 %4427
  %4429 = vrot.lane.b32.xlu0 %v3774, 1
  %v4430 = vpop.permute.xlu0 %4429
  %4431 = vrot.lane.b32.xlu0 %v3843, 1
  %v4432 = vpop.permute.xlu0 %4431
  %4433 = vrot.lane.b32.xlu0 %v3845, 1
  %v4434 = vpop.permute.xlu0 %4433
  %4435 = vrot.lane.b32.xlu0 %v3914, 1
  %v4436 = vpop.permute.xlu0 %4435
  %4437 = vrot.lane.b32.xlu0 %v3916, 1
  %v4438 = vpop.permute.xlu0 %4437
  %4439 = vrot.lane.b32.xlu0 %v3985, 1
  %v4440 = vpop.permute.xlu0 %4439
  %4441 = vrot.lane.b32.xlu0 %v3987, 1
  %v4442 = vpop.permute.xlu0 %4441
  %4443 = vrot.lane.b32.xlu0 %v4056, 1
  %v4444 = vpop.permute.xlu0 %4443
  %4445 = vrot.lane.b32.xlu0 %v4058, 1
  %v4446 = vpop.permute.xlu0 %4445
  %4447 = vrot.lane.b32.xlu0 %v4127, 1
  %v4448 = vpop.permute.xlu0 %4447
  %4449 = vrot.lane.b32.xlu0 %v4129, 1
  %v4450 = vpop.permute.xlu0 %4449
  %v4451 = vsel %vm434, %v4448, %v4450
  %v4452 = vsel %vm434, %v4446, %v4448
  %v4453 = vsel %vm434, %v4444, %v4446
  %v4454 = vsel %vm434, %v4442, %v4444
  %v4455 = vsel %vm434, %v4440, %v4442
  %v4456 = vsel %vm434, %v4438, %v4440
  %v4457 = vsel %vm434, %v4436, %v4438
  %v4458 = vsel %vm434, %v4434, %v4436
  %v4459 = vsel %vm434, %v4432, %v4434
  %v4460 = vsel %vm434, %v4430, %v4432
  %v4461 = vsel %vm434, %v4428, %v4430
  %v4462 = vsel %vm434, %v4426, %v4428
  %v4463 = vsel %vm434, %v4424, %v4426
  %v4464 = vsel %vm434, %v4422, %v4424
  %v4465 = vsel %vm434, %v4420, %v4422
  %v4466 = vsel %vm434, %v4450, %v4420
  %v4467 = vld [vmem:[%s451] sm:$0xff]
  %v4468 = vld [vmem:[%s451 + $0x8] sm:$0xff]
  %v4469 = vld [vmem:[%s451 + $0x10] sm:$0xff]
  %v4470 = vld [vmem:[%s451 + $0x18] sm:$0xff]
  %v4471 = vld [vmem:[%s451 + $0x20] sm:$0xff]
  %v4472 = vld [vmem:[%s451 + $0x28] sm:$0xff]
  %v4473 = vld [vmem:[%s451 + $0x30] sm:$0xff]
  %v4474 = vld [vmem:[%s451 + $0x38] sm:$0xff]
  %v4475 = vld [vmem:[%s451 + $0x40] sm:$0xff]
  %v4476 = vld [vmem:[%s451 + $0x48] sm:$0xff]
  %v4477 = vld [vmem:[%s451 + $0x50] sm:$0xff]
  %v4478 = vld [vmem:[%s451 + $0x58] sm:$0xff]
  %v4479 = vld [vmem:[%s451 + $0x60] sm:$0xff]
  %v4480 = vld [vmem:[%s451 + $0x68] sm:$0xff]
  %v4481 = vld [vmem:[%s451 + $0x70] sm:$0xff]
  %v4482 = vld [vmem:[%s451 + $0x78] sm:$0xff]
  %v4483 = vmul.f32 %v4466, %v4467
  %v4484 = vmul.f32 %v4465, %v4468
  %v4485 = vmul.f32 %v4464, %v4469
  %v4486 = vmul.f32 %v4463, %v4470
  %v4487 = vmul.f32 %v4462, %v4471
  %v4488 = vmul.f32 %v4461, %v4472
  %v4489 = vmul.f32 %v4460, %v4473
  %v4490 = vmul.f32 %v4459, %v4474
  %v4491 = vmul.f32 %v4458, %v4475
  %v4492 = vmul.f32 %v4457, %v4476
  %v4493 = vmul.f32 %v4456, %v4477
  %v4494 = vmul.f32 %v4455, %v4478
  %v4495 = vmul.f32 %v4454, %v4479
  %v4496 = vmul.f32 %v4453, %v4480
  %v4497 = vmul.f32 %v4452, %v4481
  %v4498 = vmul.f32 %v4451, %v4482
  %4499 = vst [vmem:[#allocation2 + $0x180] sm:$0xff] %v4483
  %4500 = vst [vmem:[#allocation2 + $0x188] sm:$0xff] %v4484
  %4501 = vst [vmem:[#allocation2 + $0x190] sm:$0xff] %v4485
  %4502 = vst [vmem:[#allocation2 + $0x198] sm:$0xff] %v4486
  %4503 = vst [vmem:[#allocation2 + $0x1a0] sm:$0xff] %v4487
  %4504 = vst [vmem:[#allocation2 + $0x1a8] sm:$0xff] %v4488
  %4505 = vst [vmem:[#allocation2 + $0x1b0] sm:$0xff] %v4489
  %4506 = vst [vmem:[#allocation2 + $0x1b8] sm:$0xff] %v4490
  %4507 = vst [vmem:[#allocation2 + $0x1c0] sm:$0xff] %v4491
  %4508 = vst [vmem:[#allocation2 + $0x1c8] sm:$0xff] %v4492
  %4509 = vst [vmem:[#allocation2 + $0x1d0] sm:$0xff] %v4493
  %4510 = vst [vmem:[#allocation2 + $0x1d8] sm:$0xff] %v4494
  %4511 = vst [vmem:[#allocation2 + $0x1e0] sm:$0xff] %v4495
  %4512 = vst [vmem:[#allocation2 + $0x1e8] sm:$0xff] %v4496
  %4513 = vst [vmem:[#allocation2 + $0x1f0] sm:$0xff] %v4497
  %4514 = vst [vmem:[#allocation2 + $0x1f8] sm:$0xff] %v4498
  %4515 = vst [vmem:[#allocation2 + $0x200] sm:$0xff] %v3630
  %4516 = vst [vmem:[#allocation2 + $0x208] sm:$0xff] %v3632
  %4517 = vst [vmem:[#allocation2 + $0x210] sm:$0xff] %v3701
  %4518 = vst [vmem:[#allocation2 + $0x218] sm:$0xff] %v3703
  %4519 = vst [vmem:[#allocation2 + $0x220] sm:$0xff] %v3772
  %4520 = vst [vmem:[#allocation2 + $0x228] sm:$0xff] %v3774
  %4521 = vst [vmem:[#allocation2 + $0x230] sm:$0xff] %v3843
  %4522 = vst [vmem:[#allocation2 + $0x238] sm:$0xff] %v3845
  %4523 = vst [vmem:[#allocation2 + $0x240] sm:$0xff] %v3914
  %4524 = vst [vmem:[#allocation2 + $0x248] sm:$0xff] %v3916
  %4525 = vst [vmem:[#allocation2 + $0x250] sm:$0xff] %v3985
  %4526 = vst [vmem:[#allocation2 + $0x258] sm:$0xff] %v3987
  %4527 = vst [vmem:[#allocation2 + $0x260] sm:$0xff] %v4056
  %4528 = vst [vmem:[#allocation2 + $0x268] sm:$0xff] %v4058
  %4529 = vst [vmem:[#allocation2 + $0x270] sm:$0xff] %v4127
  %4530 = vst [vmem:[#allocation2 + $0x278] sm:$0xff] %v4129
  %4531 = vrot.lane.b32.xlu0 %v3630, 127
  %v4532 = vpop.permute.xlu0 %4531
  %4533 = vrot.lane.b32.xlu0 %v3632, 127
  %v4534 = vpop.permute.xlu0 %4533
  %4535 = vrot.lane.b32.xlu0 %v3701, 127
  %v4536 = vpop.permute.xlu0 %4535
  %4537 = vrot.lane.b32.xlu0 %v3703, 127
  %v4538 = vpop.permute.xlu0 %4537
  %4539 = vrot.lane.b32.xlu0 %v3772, 127
  %v4540 = vpop.permute.xlu0 %4539
  %4541 = vrot.lane.b32.xlu0 %v3774, 127
  %v4542 = vpop.permute.xlu0 %4541
  %4543 = vrot.lane.b32.xlu0 %v3843, 127
  %v4544 = vpop.permute.xlu0 %4543
  %4545 = vrot.lane.b32.xlu0 %v3845, 127
  %v4546 = vpop.permute.xlu0 %4545
  %4547 = vrot.lane.b32.xlu0 %v3914, 127
  %v4548 = vpop.permute.xlu0 %4547
  %4549 = vrot.lane.b32.xlu0 %v3916, 127
  %v4550 = vpop.permute.xlu0 %4549
  %4551 = vrot.lane.b32.xlu0 %v3985, 127
  %v4552 = vpop.permute.xlu0 %4551
  %4553 = vrot.lane.b32.xlu0 %v3987, 127
  %v4554 = vpop.permute.xlu0 %4553
  %4555 = vrot.lane.b32.xlu0 %v4056, 127
  %v4556 = vpop.permute.xlu0 %4555
  %4557 = vrot.lane.b32.xlu0 %v4058, 127
  %v4558 = vpop.permute.xlu0 %4557
  %4559 = vrot.lane.b32.xlu0 %v4127, 127
  %v4560 = vpop.permute.xlu0 %4559
  %4561 = vrot.lane.b32.xlu0 %v4129, 127
  %v4562 = vpop.permute.xlu0 %4561
  %v4563 = vsel %vm548, %v4560, %v4562
  %v4564 = vsel %vm548, %v4558, %v4560
  %v4565 = vsel %vm548, %v4556, %v4558
  %v4566 = vsel %vm548, %v4554, %v4556
  %v4567 = vsel %vm548, %v4552, %v4554
  %v4568 = vsel %vm548, %v4550, %v4552
  %v4569 = vsel %vm548, %v4548, %v4550
  %v4570 = vsel %vm548, %v4546, %v4548
  %v4571 = vsel %vm548, %v4544, %v4546
  %v4572 = vsel %vm548, %v4542, %v4544
  %v4573 = vsel %vm548, %v4540, %v4542
  %v4574 = vsel %vm548, %v4538, %v4540
  %v4575 = vsel %vm548, %v4536, %v4538
  %v4576 = vsel %vm548, %v4534, %v4536
  %v4577 = vsel %vm548, %v4532, %v4534
  %v4578 = vsel %vm548, %v4562, %v4532
  %v4579 = vld [vmem:[%s565] sm:$0xff]
  %v4580 = vld [vmem:[%s565 + $0x8] sm:$0xff]
  %v4581 = vld [vmem:[%s565 + $0x10] sm:$0xff]
  %v4582 = vld [vmem:[%s565 + $0x18] sm:$0xff]
  %v4583 = vld [vmem:[%s565 + $0x20] sm:$0xff]
  %v4584 = vld [vmem:[%s565 + $0x28] sm:$0xff]
  %v4585 = vld [vmem:[%s565 + $0x30] sm:$0xff]
  %v4586 = vld [vmem:[%s565 + $0x38] sm:$0xff]
  %v4587 = vld [vmem:[%s565 + $0x40] sm:$0xff]
  %v4588 = vld [vmem:[%s565 + $0x48] sm:$0xff]
  %v4589 = vld [vmem:[%s565 + $0x50] sm:$0xff]
  %v4590 = vld [vmem:[%s565 + $0x58] sm:$0xff]
  %v4591 = vld [vmem:[%s565 + $0x60] sm:$0xff]
  %v4592 = vld [vmem:[%s565 + $0x68] sm:$0xff]
  %v4593 = vld [vmem:[%s565 + $0x70] sm:$0xff]
  %v4594 = vld [vmem:[%s565 + $0x78] sm:$0xff]
  %v4595 = vmul.f32 %v4577, %v4579
  %v4596 = vmul.f32 %v4576, %v4580
  %v4597 = vmul.f32 %v4575, %v4581
  %v4598 = vmul.f32 %v4574, %v4582
  %v4599 = vmul.f32 %v4573, %v4583
  %v4600 = vmul.f32 %v4572, %v4584
  %v4601 = vmul.f32 %v4571, %v4585
  %v4602 = vmul.f32 %v4570, %v4586
  %v4603 = vmul.f32 %v4569, %v4587
  %v4604 = vmul.f32 %v4568, %v4588
  %v4605 = vmul.f32 %v4567, %v4589
  %v4606 = vmul.f32 %v4566, %v4590
  %v4607 = vmul.f32 %v4565, %v4591
  %v4608 = vmul.f32 %v4564, %v4592
  %v4609 = vmul.f32 %v4563, %v4593
  %v4610 = vmul.f32 %v4578, %v4594
  %4611 = vst [vmem:[#allocation2 + $0x280] sm:$0xff] %v4595
  %4612 = vst [vmem:[#allocation2 + $0x288] sm:$0xff] %v4596
  %4613 = vst [vmem:[#allocation2 + $0x290] sm:$0xff] %v4597
  %4614 = vst [vmem:[#allocation2 + $0x298] sm:$0xff] %v4598
  %4615 = vst [vmem:[#allocation2 + $0x2a0] sm:$0xff] %v4599
  %4616 = vst [vmem:[#allocation2 + $0x2a8] sm:$0xff] %v4600
  %4617 = vst [vmem:[#allocation2 + $0x2b0] sm:$0xff] %v4601
  %4618 = vst [vmem:[#allocation2 + $0x2b8] sm:$0xff] %v4602
  %4619 = vst [vmem:[#allocation2 + $0x2c0] sm:$0xff] %v4603
  %4620 = vst [vmem:[#allocation2 + $0x2c8] sm:$0xff] %v4604
  %4621 = vst [vmem:[#allocation2 + $0x2d0] sm:$0xff] %v4605
  %4622 = vst [vmem:[#allocation2 + $0x2d8] sm:$0xff] %v4606
  %4623 = vst [vmem:[#allocation2 + $0x2e0] sm:$0xff] %v4607
  %4624 = vst [vmem:[#allocation2 + $0x2e8] sm:$0xff] %v4608
  %4625 = vst [vmem:[#allocation2 + $0x2f0] sm:$0xff] %v4609
  %4626 = vst [vmem:[#allocation2 + $0x2f8] sm:$0xff] %v4610
  %4627 = vrot.lane.b32.xlu0 %v3630, 97
  %v4628 = vpop.permute.xlu0 %4627
  %4629 = vrot.lane.b32.xlu0 %v3632, 97
  %v4630 = vpop.permute.xlu0 %4629
  %4631 = vrot.lane.b32.xlu0 %v3701, 97
  %v4632 = vpop.permute.xlu0 %4631
  %4633 = vrot.lane.b32.xlu0 %v3703, 97
  %v4634 = vpop.permute.xlu0 %4633
  %4635 = vrot.lane.b32.xlu0 %v3772, 97
  %v4636 = vpop.permute.xlu0 %4635
  %4637 = vrot.lane.b32.xlu0 %v3774, 97
  %v4638 = vpop.permute.xlu0 %4637
  %4639 = vrot.lane.b32.xlu0 %v3843, 97
  %v4640 = vpop.permute.xlu0 %4639
  %4641 = vrot.lane.b32.xlu0 %v3845, 97
  %v4642 = vpop.permute.xlu0 %4641
  %4643 = vrot.lane.b32.xlu0 %v3914, 97
  %v4644 = vpop.permute.xlu0 %4643
  %4645 = vrot.lane.b32.xlu0 %v3916, 97
  %v4646 = vpop.permute.xlu0 %4645
  %4647 = vrot.lane.b32.xlu0 %v3985, 97
  %v4648 = vpop.permute.xlu0 %4647
  %4649 = vrot.lane.b32.xlu0 %v3987, 97
  %v4650 = vpop.permute.xlu0 %4649
  %4651 = vrot.lane.b32.xlu0 %v4056, 97
  %v4652 = vpop.permute.xlu0 %4651
  %4653 = vrot.lane.b32.xlu0 %v4058, 97
  %v4654 = vpop.permute.xlu0 %4653
  %4655 = vrot.lane.b32.xlu0 %v4127, 97
  %v4656 = vpop.permute.xlu0 %4655
  %4657 = vrot.lane.b32.xlu0 %v4129, 97
  %v4658 = vpop.permute.xlu0 %4657
  %v4659 = vsel %vm646, %v4656, %v4658
  %v4660 = vsel %vm646, %v4654, %v4656
  %v4661 = vsel %vm646, %v4652, %v4654
  %v4662 = vsel %vm646, %v4650, %v4652
  %v4663 = vsel %vm646, %v4648, %v4650
  %v4664 = vsel %vm646, %v4646, %v4648
  %v4665 = vsel %vm646, %v4644, %v4646
  %v4666 = vsel %vm646, %v4642, %v4644
  %v4667 = vsel %vm646, %v4640, %v4642
  %v4668 = vsel %vm646, %v4638, %v4640
  %v4669 = vsel %vm646, %v4636, %v4638
  %v4670 = vsel %vm646, %v4634, %v4636
  %v4671 = vsel %vm646, %v4632, %v4634
  %v4672 = vsel %vm646, %v4630, %v4632
  %v4673 = vsel %vm646, %v4628, %v4630
  %v4674 = vsel %vm646, %v4658, %v4628
  %v4675 = vld [vmem:[%s663] sm:$0xff]
  %v4676 = vld [vmem:[%s663 + $0x8] sm:$0xff]
  %v4677 = vld [vmem:[%s663 + $0x10] sm:$0xff]
  %v4678 = vld [vmem:[%s663 + $0x18] sm:$0xff]
  %v4679 = vld [vmem:[%s663 + $0x20] sm:$0xff]
  %v4680 = vld [vmem:[%s663 + $0x28] sm:$0xff]
  %v4681 = vld [vmem:[%s663 + $0x30] sm:$0xff]
  %v4682 = vld [vmem:[%s663 + $0x38] sm:$0xff]
  %v4683 = vld [vmem:[%s663 + $0x40] sm:$0xff]
  %v4684 = vld [vmem:[%s663 + $0x48] sm:$0xff]
  %v4685 = vld [vmem:[%s663 + $0x50] sm:$0xff]
  %v4686 = vld [vmem:[%s663 + $0x58] sm:$0xff]
  %v4687 = vld [vmem:[%s663 + $0x60] sm:$0xff]
  %v4688 = vld [vmem:[%s663 + $0x68] sm:$0xff]
  %v4689 = vld [vmem:[%s663 + $0x70] sm:$0xff]
  %v4690 = vld [vmem:[%s663 + $0x78] sm:$0xff]
  %v4691 = vmul.f32 %v4673, %v4675
  %v4692 = vmul.f32 %v4672, %v4676
  %v4693 = vmul.f32 %v4671, %v4677
  %v4694 = vmul.f32 %v4670, %v4678
  %v4695 = vmul.f32 %v4669, %v4679
  %v4696 = vmul.f32 %v4668, %v4680
  %v4697 = vmul.f32 %v4667, %v4681
  %v4698 = vmul.f32 %v4666, %v4682
  %v4699 = vmul.f32 %v4665, %v4683
  %v4700 = vmul.f32 %v4664, %v4684
  %v4701 = vmul.f32 %v4663, %v4685
  %v4702 = vmul.f32 %v4662, %v4686
  %v4703 = vmul.f32 %v4661, %v4687
  %v4704 = vmul.f32 %v4660, %v4688
  %v4705 = vmul.f32 %v4659, %v4689
  %v4706 = vmul.f32 %v4674, %v4690
  %4707 = vst [vmem:[#allocation2 + $0x300] sm:$0xff] %v4691
  %4708 = vst [vmem:[#allocation2 + $0x308] sm:$0xff] %v4692
  %4709 = vst [vmem:[#allocation2 + $0x310] sm:$0xff] %v4693
  %4710 = vst [vmem:[#allocation2 + $0x318] sm:$0xff] %v4694
  %4711 = vst [vmem:[#allocation2 + $0x320] sm:$0xff] %v4695
  %4712 = vst [vmem:[#allocation2 + $0x328] sm:$0xff] %v4696
  %4713 = vst [vmem:[#allocation2 + $0x330] sm:$0xff] %v4697
  %4714 = vst [vmem:[#allocation2 + $0x338] sm:$0xff] %v4698
  %4715 = vst [vmem:[#allocation2 + $0x340] sm:$0xff] %v4699
  %4716 = vst [vmem:[#allocation2 + $0x348] sm:$0xff] %v4700
  %4717 = vst [vmem:[#allocation2 + $0x350] sm:$0xff] %v4701
  %4718 = vst [vmem:[#allocation2 + $0x358] sm:$0xff] %v4702
  %4719 = vst [vmem:[#allocation2 + $0x360] sm:$0xff] %v4703
  %4720 = vst [vmem:[#allocation2 + $0x368] sm:$0xff] %v4704
  %4721 = vst [vmem:[#allocation2 + $0x370] sm:$0xff] %v4705
  %4722 = vst [vmem:[#allocation2 + $0x378] sm:$0xff] %v4706
  %4723 = vrot.lane.b32.xlu0 %v3630, 96
  %v4724 = vpop.permute.xlu0 %4723
  %4725 = vrot.lane.b32.xlu0 %v3632, 96
  %v4726 = vpop.permute.xlu0 %4725
  %4727 = vrot.lane.b32.xlu0 %v3701, 96
  %v4728 = vpop.permute.xlu0 %4727
  %4729 = vrot.lane.b32.xlu0 %v3703, 96
  %v4730 = vpop.permute.xlu0 %4729
  %4731 = vrot.lane.b32.xlu0 %v3772, 96
  %v4732 = vpop.permute.xlu0 %4731
  %4733 = vrot.lane.b32.xlu0 %v3774, 96
  %v4734 = vpop.permute.xlu0 %4733
  %4735 = vrot.lane.b32.xlu0 %v3843, 96
  %v4736 = vpop.permute.xlu0 %4735
  %4737 = vrot.lane.b32.xlu0 %v3845, 96
  %v4738 = vpop.permute.xlu0 %4737
  %4739 = vrot.lane.b32.xlu0 %v3914, 96
  %v4740 = vpop.permute.xlu0 %4739
  %4741 = vrot.lane.b32.xlu0 %v3916, 96
  %v4742 = vpop.permute.xlu0 %4741
  %4743 = vrot.lane.b32.xlu0 %v3985, 96
  %v4744 = vpop.permute.xlu0 %4743
  %4745 = vrot.lane.b32.xlu0 %v3987, 96
  %v4746 = vpop.permute.xlu0 %4745
  %4747 = vrot.lane.b32.xlu0 %v4056, 96
  %v4748 = vpop.permute.xlu0 %4747
  %4749 = vrot.lane.b32.xlu0 %v4058, 96
  %v4750 = vpop.permute.xlu0 %4749
  %4751 = vrot.lane.b32.xlu0 %v4127, 96
  %v4752 = vpop.permute.xlu0 %4751
  %4753 = vrot.lane.b32.xlu0 %v4129, 96
  %v4754 = vpop.permute.xlu0 %4753
  %v4755 = vsel %vm744, %v4752, %v4754
  %v4756 = vsel %vm744, %v4750, %v4752
  %v4757 = vsel %vm744, %v4748, %v4750
  %v4758 = vsel %vm744, %v4746, %v4748
  %v4759 = vsel %vm744, %v4744, %v4746
  %v4760 = vsel %vm744, %v4742, %v4744
  %v4761 = vsel %vm744, %v4740, %v4742
  %v4762 = vsel %vm744, %v4738, %v4740
  %v4763 = vsel %vm744, %v4736, %v4738
  %v4764 = vsel %vm744, %v4734, %v4736
  %v4765 = vsel %vm744, %v4732, %v4734
  %v4766 = vsel %vm744, %v4730, %v4732
  %v4767 = vsel %vm744, %v4728, %v4730
  %v4768 = vsel %vm744, %v4726, %v4728
  %v4769 = vsel %vm744, %v4724, %v4726
  %v4770 = vsel %vm744, %v4754, %v4724
  %v4771 = vld [vmem:[%s761] sm:$0xff]
  %v4772 = vld [vmem:[%s761 + $0x8] sm:$0xff]
  %v4773 = vld [vmem:[%s761 + $0x10] sm:$0xff]
  %v4774 = vld [vmem:[%s761 + $0x18] sm:$0xff]
  %v4775 = vld [vmem:[%s761 + $0x20] sm:$0xff]
  %v4776 = vld [vmem:[%s761 + $0x28] sm:$0xff]
  %v4777 = vld [vmem:[%s761 + $0x30] sm:$0xff]
  %v4778 = vld [vmem:[%s761 + $0x38] sm:$0xff]
  %v4779 = vld [vmem:[%s761 + $0x40] sm:$0xff]
  %v4780 = vld [vmem:[%s761 + $0x48] sm:$0xff]
  %v4781 = vld [vmem:[%s761 + $0x50] sm:$0xff]
  %v4782 = vld [vmem:[%s761 + $0x58] sm:$0xff]
  %v4783 = vld [vmem:[%s761 + $0x60] sm:$0xff]
  %v4784 = vld [vmem:[%s761 + $0x68] sm:$0xff]
  %v4785 = vld [vmem:[%s761 + $0x70] sm:$0xff]
  %v4786 = vld [vmem:[%s761 + $0x78] sm:$0xff]
  %v4787 = vmul.f32 %v4769, %v4771
  %v4788 = vmul.f32 %v4768, %v4772
  %v4789 = vmul.f32 %v4767, %v4773
  %v4790 = vmul.f32 %v4766, %v4774
  %v4791 = vmul.f32 %v4765, %v4775
  %v4792 = vmul.f32 %v4764, %v4776
  %v4793 = vmul.f32 %v4763, %v4777
  %v4794 = vmul.f32 %v4762, %v4778
  %v4795 = vmul.f32 %v4761, %v4779
  %v4796 = vmul.f32 %v4760, %v4780
  %v4797 = vmul.f32 %v4759, %v4781
  %v4798 = vmul.f32 %v4758, %v4782
  %v4799 = vmul.f32 %v4757, %v4783
  %v4800 = vmul.f32 %v4756, %v4784
  %v4801 = vmul.f32 %v4755, %v4785
  %v4802 = vmul.f32 %v4770, %v4786
  %4803 = vst [vmem:[#allocation2 + $0x380] sm:$0xff] %v4787
  %4804 = vst [vmem:[#allocation2 + $0x388] sm:$0xff] %v4788
  %4805 = vst [vmem:[#allocation2 + $0x390] sm:$0xff] %v4789
  %4806 = vst [vmem:[#allocation2 + $0x398] sm:$0xff] %v4790
  %4807 = vst [vmem:[#allocation2 + $0x3a0] sm:$0xff] %v4791
  %4808 = vst [vmem:[#allocation2 + $0x3a8] sm:$0xff] %v4792
  %4809 = vst [vmem:[#allocation2 + $0x3b0] sm:$0xff] %v4793
  %4810 = vst [vmem:[#allocation2 + $0x3b8] sm:$0xff] %v4794
  %4811 = vst [vmem:[#allocation2 + $0x3c0] sm:$0xff] %v4795
  %4812 = vst [vmem:[#allocation2 + $0x3c8] sm:$0xff] %v4796
  %4813 = vst [vmem:[#allocation2 + $0x3d0] sm:$0xff] %v4797
  %4814 = vst [vmem:[#allocation2 + $0x3d8] sm:$0xff] %v4798
  %4815 = vst [vmem:[#allocation2 + $0x3e0] sm:$0xff] %v4799
  %4816 = vst [vmem:[#allocation2 + $0x3e8] sm:$0xff] %v4800
  %4817 = vst [vmem:[#allocation2 + $0x3f0] sm:$0xff] %v4801
  %4818 = vst [vmem:[#allocation2 + $0x3f8] sm:$0xff] %v4802
  %4819 = vrot.lane.b32.xlu0 %v3630, 95
  %v4820 = vpop.permute.xlu0 %4819
  %4821 = vrot.lane.b32.xlu0 %v3632, 95
  %v4822 = vpop.permute.xlu0 %4821
  %4823 = vrot.lane.b32.xlu0 %v3701, 95
  %v4824 = vpop.permute.xlu0 %4823
  %4825 = vrot.lane.b32.xlu0 %v3703, 95
  %v4826 = vpop.permute.xlu0 %4825
  %4827 = vrot.lane.b32.xlu0 %v3772, 95
  %v4828 = vpop.permute.xlu0 %4827
  %4829 = vrot.lane.b32.xlu0 %v3774, 95
  %v4830 = vpop.permute.xlu0 %4829
  %4831 = vrot.lane.b32.xlu0 %v3843, 95
  %v4832 = vpop.permute.xlu0 %4831
  %4833 = vrot.lane.b32.xlu0 %v3845, 95
  %v4834 = vpop.permute.xlu0 %4833
  %4835 = vrot.lane.b32.xlu0 %v3914, 95
  %v4836 = vpop.permute.xlu0 %4835
  %4837 = vrot.lane.b32.xlu0 %v3916, 95
  %v4838 = vpop.permute.xlu0 %4837
  %4839 = vrot.lane.b32.xlu0 %v3985, 95
  %v4840 = vpop.permute.xlu0 %4839
  %4841 = vrot.lane.b32.xlu0 %v3987, 95
  %v4842 = vpop.permute.xlu0 %4841
  %4843 = vrot.lane.b32.xlu0 %v4056, 95
  %v4844 = vpop.permute.xlu0 %4843
  %4845 = vrot.lane.b32.xlu0 %v4058, 95
  %v4846 = vpop.permute.xlu0 %4845
  %4847 = vrot.lane.b32.xlu0 %v4127, 95
  %v4848 = vpop.permute.xlu0 %4847
  %4849 = vrot.lane.b32.xlu0 %v4129, 95
  %v4850 = vpop.permute.xlu0 %4849
  %v4851 = vsel %vm842, %v4848, %v4850
  %v4852 = vsel %vm842, %v4846, %v4848
  %v4853 = vsel %vm842, %v4844, %v4846
  %v4854 = vsel %vm842, %v4842, %v4844
  %v4855 = vsel %vm842, %v4840, %v4842
  %v4856 = vsel %vm842, %v4838, %v4840
  %v4857 = vsel %vm842, %v4836, %v4838
  %v4858 = vsel %vm842, %v4834, %v4836
  %v4859 = vsel %vm842, %v4832, %v4834
  %v4860 = vsel %vm842, %v4830, %v4832
  %v4861 = vsel %vm842, %v4828, %v4830
  %v4862 = vsel %vm842, %v4826, %v4828
  %v4863 = vsel %vm842, %v4824, %v4826
  %v4864 = vsel %vm842, %v4822, %v4824
  %v4865 = vsel %vm842, %v4820, %v4822
  %v4866 = vsel %vm842, %v4850, %v4820
  %v4867 = vld [vmem:[%s859] sm:$0xff]
  %v4868 = vld [vmem:[%s859 + $0x8] sm:$0xff]
  %v4869 = vld [vmem:[%s859 + $0x10] sm:$0xff]
  %v4870 = vld [vmem:[%s859 + $0x18] sm:$0xff]
  %v4871 = vld [vmem:[%s859 + $0x20] sm:$0xff]
  %v4872 = vld [vmem:[%s859 + $0x28] sm:$0xff]
  %v4873 = vld [vmem:[%s859 + $0x30] sm:$0xff]
  %v4874 = vld [vmem:[%s859 + $0x38] sm:$0xff]
  %v4875 = vld [vmem:[%s859 + $0x40] sm:$0xff]
  %v4876 = vld [vmem:[%s859 + $0x48] sm:$0xff]
  %v4877 = vld [vmem:[%s859 + $0x50] sm:$0xff]
  %v4878 = vld [vmem:[%s859 + $0x58] sm:$0xff]
  %v4879 = vld [vmem:[%s859 + $0x60] sm:$0xff]
  %v4880 = vld [vmem:[%s859 + $0x68] sm:$0xff]
  %v4881 = vld [vmem:[%s859 + $0x70] sm:$0xff]
  %v4882 = vld [vmem:[%s859 + $0x78] sm:$0xff]
  %v4883 = vmul.f32 %v4865, %v4867
  %v4884 = vmul.f32 %v4864, %v4868
  %v4885 = vmul.f32 %v4863, %v4869
  %v4886 = vmul.f32 %v4862, %v4870
  %v4887 = vmul.f32 %v4861, %v4871
  %v4888 = vmul.f32 %v4860, %v4872
  %v4889 = vmul.f32 %v4859, %v4873
  %v4890 = vmul.f32 %v4858, %v4874
  %v4891 = vmul.f32 %v4857, %v4875
  %v4892 = vmul.f32 %v4856, %v4876
  %v4893 = vmul.f32 %v4855, %v4877
  %v4894 = vmul.f32 %v4854, %v4878
  %v4895 = vmul.f32 %v4853, %v4879
  %v4896 = vmul.f32 %v4852, %v4880
  %v4897 = vmul.f32 %v4851, %v4881
  %v4898 = vmul.f32 %v4866, %v4882
  %4899 = vst [vmem:[#allocation2 + $0x400] sm:$0xff] %v4883
  %4900 = vst [vmem:[#allocation2 + $0x408] sm:$0xff] %v4884
  %4901 = vst [vmem:[#allocation2 + $0x410] sm:$0xff] %v4885
  %4902 = vst [vmem:[#allocation2 + $0x418] sm:$0xff] %v4886
  %4903 = vst [vmem:[#allocation2 + $0x420] sm:$0xff] %v4887
  %4904 = vst [vmem:[#allocation2 + $0x428] sm:$0xff] %v4888
  %4905 = vst [vmem:[#allocation2 + $0x430] sm:$0xff] %v4889
  %4906 = vst [vmem:[#allocation2 + $0x438] sm:$0xff] %v4890
  %4907 = vst [vmem:[#allocation2 + $0x440] sm:$0xff] %v4891
  %4908 = vst [vmem:[#allocation2 + $0x448] sm:$0xff] %v4892
  %4909 = vst [vmem:[#allocation2 + $0x450] sm:$0xff] %v4893
  %4910 = vst [vmem:[#allocation2 + $0x458] sm:$0xff] %v4894
  %4911 = vst [vmem:[#allocation2 + $0x460] sm:$0xff] %v4895
  %4912 = vst [vmem:[#allocation2 + $0x468] sm:$0xff] %v4896
  %4913 = vst [vmem:[#allocation2 + $0x470] sm:$0xff] %v4897
  %4914 = vst [vmem:[#allocation2 + $0x478] sm:$0xff] %v4898
  %s4915 = scalar_lea.vmem %s5, 16
  %v4916 = vld [vmem:[%s4915] sm:$0xff]
  %v4917 = vld [vmem:[#allocation2] sm:$0xff]
  %v4918 = vld [vmem:[#allocation2 + $0x8] sm:$0xff]
  %v4919 = vld [vmem:[#allocation2 + $0x10] sm:$0xff]
  %v4920 = vld [vmem:[#allocation2 + $0x18] sm:$0xff]
  %v4921 = vld [vmem:[#allocation2 + $0x20] sm:$0xff]
  %v4922 = vld [vmem:[#allocation2 + $0x28] sm:$0xff]
  %v4923 = vld [vmem:[#allocation2 + $0x30] sm:$0xff]
  %v4924 = vld [vmem:[#allocation2 + $0x38] sm:$0xff]
  %v4925 = vld [vmem:[#allocation2 + $0x40] sm:$0xff]
  %v4926 = vld [vmem:[#allocation2 + $0x48] sm:$0xff]
  %v4927 = vld [vmem:[#allocation2 + $0x50] sm:$0xff]
  %v4928 = vld [vmem:[#allocation2 + $0x58] sm:$0xff]
  %v4929 = vld [vmem:[#allocation2 + $0x60] sm:$0xff]
  %v4930 = vld [vmem:[#allocation2 + $0x68] sm:$0xff]
  %v4931 = vld [vmem:[#allocation2 + $0x70] sm:$0xff]
  %v4932 = vld [vmem:[#allocation2 + $0x78] sm:$0xff]
  %v4933 = vld [vmem:[#allocation2 + $0x80] sm:$0xff]
  %v4934 = vld [vmem:[#allocation2 + $0x88] sm:$0xff]
  %v4935 = vld [vmem:[#allocation2 + $0x90] sm:$0xff]
  %v4936 = vld [vmem:[#allocation2 + $0x98] sm:$0xff]
  %v4937 = vld [vmem:[#allocation2 + $0xa0] sm:$0xff]
  %v4938 = vld [vmem:[#allocation2 + $0xa8] sm:$0xff]
  %v4939 = vld [vmem:[#allocation2 + $0xb0] sm:$0xff]
  %v4940 = vld [vmem:[#allocation2 + $0xb8] sm:$0xff]
  %v4941 = vld [vmem:[#allocation2 + $0xc0] sm:$0xff]
  %v4942 = vld [vmem:[#allocation2 + $0xc8] sm:$0xff]
  %v4943 = vld [vmem:[#allocation2 + $0xd0] sm:$0xff]
  %v4944 = vld [vmem:[#allocation2 + $0xd8] sm:$0xff]
  %v4945 = vld [vmem:[#allocation2 + $0xe0] sm:$0xff]
  %v4946 = vld [vmem:[#allocation2 + $0xe8] sm:$0xff]
  %v4947 = vld [vmem:[#allocation2 + $0xf0] sm:$0xff]
  %v4948 = vld [vmem:[#allocation2 + $0xf8] sm:$0xff]
  %v4949 = vld [vmem:[#allocation2 + $0x100] sm:$0xff]
  %v4950 = vld [vmem:[#allocation2 + $0x108] sm:$0xff]
  %v4951 = vld [vmem:[#allocation2 + $0x110] sm:$0xff]
  %v4952 = vld [vmem:[#allocation2 + $0x118] sm:$0xff]
  %v4953 = vld [vmem:[#allocation2 + $0x120] sm:$0xff]
  %v4954 = vld [vmem:[#allocation2 + $0x128] sm:$0xff]
  %v4955 = vld [vmem:[#allocation2 + $0x130] sm:$0xff]
  %v4956 = vld [vmem:[#allocation2 + $0x138] sm:$0xff]
  %v4957 = vld [vmem:[#allocation2 + $0x140] sm:$0xff]
  %v4958 = vld [vmem:[#allocation2 + $0x148] sm:$0xff]
  %v4959 = vld [vmem:[#allocation2 + $0x150] sm:$0xff]
  %v4960 = vld [vmem:[#allocation2 + $0x158] sm:$0xff]
  %v4961 = vld [vmem:[#allocation2 + $0x160] sm:$0xff]
  %v4962 = vld [vmem:[#allocation2 + $0x168] sm:$0xff]
  %v4963 = vld [vmem:[#allocation2 + $0x170] sm:$0xff]
  %v4964 = vld [vmem:[#allocation2 + $0x178] sm:$0xff]
  %v4965 = vld [vmem:[#allocation2 + $0x180] sm:$0xff]
  %v4966 = vld [vmem:[#allocation2 + $0x188] sm:$0xff]
  %v4967 = vld [vmem:[#allocation2 + $0x190] sm:$0xff]
  %v4968 = vld [vmem:[#allocation2 + $0x198] sm:$0xff]
  %v4969 = vld [vmem:[#allocation2 + $0x1a0] sm:$0xff]
  %v4970 = vld [vmem:[#allocation2 + $0x1a8] sm:$0xff]
  %v4971 = vld [vmem:[#allocation2 + $0x1b0] sm:$0xff]
  %v4972 = vld [vmem:[#allocation2 + $0x1b8] sm:$0xff]
  %v4973 = vld [vmem:[#allocation2 + $0x1c0] sm:$0xff]
  %v4974 = vld [vmem:[#allocation2 + $0x1c8] sm:$0xff]
  %v4975 = vld [vmem:[#allocation2 + $0x1d0] sm:$0xff]
  %v4976 = vld [vmem:[#allocation2 + $0x1d8] sm:$0xff]
  %v4977 = vld [vmem:[#allocation2 + $0x1e0] sm:$0xff]
  %v4978 = vld [vmem:[#allocation2 + $0x1e8] sm:$0xff]
  %v4979 = vld [vmem:[#allocation2 + $0x1f0] sm:$0xff]
  %v4980 = vld [vmem:[#allocation2 + $0x1f8] sm:$0xff]
  %v4981 = vld [vmem:[#allocation2 + $0x200] sm:$0xff]
  %v4982 = vld [vmem:[#allocation2 + $0x208] sm:$0xff]
  %v4983 = vld [vmem:[#allocation2 + $0x210] sm:$0xff]
  %v4984 = vld [vmem:[#allocation2 + $0x218] sm:$0xff]
  %v4985 = vld [vmem:[#allocation2 + $0x220] sm:$0xff]
  %v4986 = vld [vmem:[#allocation2 + $0x228] sm:$0xff]
  %v4987 = vld [vmem:[#allocation2 + $0x230] sm:$0xff]
  %v4988 = vld [vmem:[#allocation2 + $0x238] sm:$0xff]
  %v4989 = vld [vmem:[#allocation2 + $0x240] sm:$0xff]
  %v4990 = vld [vmem:[#allocation2 + $0x248] sm:$0xff]
  %v4991 = vld [vmem:[#allocation2 + $0x250] sm:$0xff]
  %v4992 = vld [vmem:[#allocation2 + $0x258] sm:$0xff]
  %v4993 = vld [vmem:[#allocation2 + $0x260] sm:$0xff]
  %v4994 = vld [vmem:[#allocation2 + $0x268] sm:$0xff]
  %v4995 = vld [vmem:[#allocation2 + $0x270] sm:$0xff]
  %v4996 = vld [vmem:[#allocation2 + $0x278] sm:$0xff]
  %v4997 = vld [vmem:[#allocation2 + $0x280] sm:$0xff]
  %v4998 = vld [vmem:[#allocation2 + $0x288] sm:$0xff]
  %v4999 = vld [vmem:[#allocation2 + $0x290] sm:$0xff]
  %v5000 = vld [vmem:[#allocation2 + $0x298] sm:$0xff]
  %v5001 = vld [vmem:[#allocation2 + $0x2a0] sm:$0xff]
  %v5002 = vld [vmem:[#allocation2 + $0x2a8] sm:$0xff]
  %v5003 = vld [vmem:[#allocation2 + $0x2b0] sm:$0xff]
  %v5004 = vld [vmem:[#allocation2 + $0x2b8] sm:$0xff]
  %v5005 = vld [vmem:[#allocation2 + $0x2c0] sm:$0xff]
  %v5006 = vld [vmem:[#allocation2 + $0x2c8] sm:$0xff]
  %v5007 = vld [vmem:[#allocation2 + $0x2d0] sm:$0xff]
  %v5008 = vld [vmem:[#allocation2 + $0x2d8] sm:$0xff]
  %v5009 = vld [vmem:[#allocation2 + $0x2e0] sm:$0xff]
  %v5010 = vld [vmem:[#allocation2 + $0x2e8] sm:$0xff]
  %v5011 = vld [vmem:[#allocation2 + $0x2f0] sm:$0xff]
  %v5012 = vld [vmem:[#allocation2 + $0x2f8] sm:$0xff]
  %v5013 = vld [vmem:[#allocation2 + $0x300] sm:$0xff]
  %v5014 = vld [vmem:[#allocation2 + $0x308] sm:$0xff]
  %v5015 = vld [vmem:[#allocation2 + $0x310] sm:$0xff]
  %v5016 = vld [vmem:[#allocation2 + $0x318] sm:$0xff]
  %v5017 = vld [vmem:[#allocation2 + $0x320] sm:$0xff]
  %v5018 = vld [vmem:[#allocation2 + $0x328] sm:$0xff]
  %v5019 = vld [vmem:[#allocation2 + $0x330] sm:$0xff]
  %v5020 = vld [vmem:[#allocation2 + $0x338] sm:$0xff]
  %v5021 = vld [vmem:[#allocation2 + $0x340] sm:$0xff]
  %v5022 = vld [vmem:[#allocation2 + $0x348] sm:$0xff]
  %v5023 = vld [vmem:[#allocation2 + $0x350] sm:$0xff]
  %v5024 = vld [vmem:[#allocation2 + $0x358] sm:$0xff]
  %v5025 = vld [vmem:[#allocation2 + $0x360] sm:$0xff]
  %v5026 = vld [vmem:[#allocation2 + $0x368] sm:$0xff]
  %v5027 = vld [vmem:[#allocation2 + $0x370] sm:$0xff]
  %v5028 = vld [vmem:[#allocation2 + $0x378] sm:$0xff]
  %v5029 = vld [vmem:[#allocation2 + $0x380] sm:$0xff]
  %v5030 = vld [vmem:[#allocation2 + $0x388] sm:$0xff]
  %v5031 = vld [vmem:[#allocation2 + $0x390] sm:$0xff]
  %v5032 = vld [vmem:[#allocation2 + $0x398] sm:$0xff]
  %v5033 = vld [vmem:[#allocation2 + $0x3a0] sm:$0xff]
  %v5034 = vld [vmem:[#allocation2 + $0x3a8] sm:$0xff]
  %v5035 = vld [vmem:[#allocation2 + $0x3b0] sm:$0xff]
  %v5036 = vld [vmem:[#allocation2 + $0x3b8] sm:$0xff]
  %v5037 = vld [vmem:[#allocation2 + $0x3c0] sm:$0xff]
  %v5038 = vld [vmem:[#allocation2 + $0x3c8] sm:$0xff]
  %v5039 = vld [vmem:[#allocation2 + $0x3d0] sm:$0xff]
  %v5040 = vld [vmem:[#allocation2 + $0x3d8] sm:$0xff]
  %v5041 = vld [vmem:[#allocation2 + $0x3e0] sm:$0xff]
  %v5042 = vld [vmem:[#allocation2 + $0x3e8] sm:$0xff]
  %v5043 = vld [vmem:[#allocation2 + $0x3f0] sm:$0xff]
  %v5044 = vld [vmem:[#allocation2 + $0x3f8] sm:$0xff]
  %v5045 = vld [vmem:[#allocation2 + $0x400] sm:$0xff]
  %v5046 = vld [vmem:[#allocation2 + $0x408] sm:$0xff]
  %v5047 = vld [vmem:[#allocation2 + $0x410] sm:$0xff]
  %v5048 = vld [vmem:[#allocation2 + $0x418] sm:$0xff]
  %v5049 = vld [vmem:[#allocation2 + $0x420] sm:$0xff]
  %v5050 = vld [vmem:[#allocation2 + $0x428] sm:$0xff]
  %v5051 = vld [vmem:[#allocation2 + $0x430] sm:$0xff]
  %v5052 = vld [vmem:[#allocation2 + $0x438] sm:$0xff]
  %v5053 = vld [vmem:[#allocation2 + $0x440] sm:$0xff]
  %v5054 = vld [vmem:[#allocation2 + $0x448] sm:$0xff]
  %v5055 = vld [vmem:[#allocation2 + $0x450] sm:$0xff]
  %v5056 = vld [vmem:[#allocation2 + $0x458] sm:$0xff]
  %v5057 = vld [vmem:[#allocation2 + $0x460] sm:$0xff]
  %v5058 = vld [vmem:[#allocation2 + $0x468] sm:$0xff]
  %v5059 = vld [vmem:[#allocation2 + $0x470] sm:$0xff]
  %v5060 = vld [vmem:[#allocation2 + $0x478] sm:$0xff]
  %s5061 = scalar_lea.vmem %s6, 16
  %v5062 = vld [vmem:[%s5061] sm:$0xff]
  %5064 = vset.pattern.permute.xlu0 0
  %5065 = vperm.xlu0 %5064, %v5062
  %v5066 = vpop.permute.xlu0 %5065
  %v5069 = vsel %vm1059, %v4916, 0
  %5071 = vmatprep.subr.mxu0 %v4918
  %5072 = vmatpush1.msra.mxu0 %v4917
  %5073 = vmatprep.subr.mxu0 %v4934
  %5074 = vmatpush1.msra.mxu0 %v4933
  %5075 = vmatprep.subr.mxu0 %v4950
  %5076 = vmatpush1.msra.mxu0 %v4949
  %5077 = vmatprep.subr.mxu0 %v4966
  %5078 = vmatpush1.msra.mxu0 %v4965
  %5079 = vmatprep.subr.mxu0 %v4982
  %5080 = vmatpush1.msra.mxu0 %v4981
  %5081 = vmatprep.subr.mxu0 %v4998
  %5082 = vmatpush1.msra.mxu0 %v4997
  %5083 = vmatprep.subr.mxu0 %v5014
  %5084 = vmatpush1.msra.mxu0 %v5013
  %5085 = vmatprep.subr.mxu0 %v5030
  %5086 = vmatpush1.msra.mxu0 %v5029
  %5087 = vmatprep.subr.mxu0 %v5046
  %5088 = vmatpush1.msra.mxu0 %v5045
  %5089 = vmatprep.subr.mxu0 0.0
  %5090 = vmatpush1.msra.mxu0 0.0
  %5091 = vmatprep.subr.mxu0 0.0
  %5092 = vmatpush1.msra.mxu0 0.0
  %5093 = vmatprep.subr.mxu0 0.0
  %5094 = vmatpush1.msra.mxu0 0.0
  %5095 = vmatprep.subr.mxu0 0.0
  %5096 = vmatpush1.msra.mxu0 0.0
  %5097 = vmatprep.subr.mxu0 0.0
  %5098 = vmatpush1.msra.mxu0 0.0
  %5099 = vmatprep.subr.mxu0 0.0
  %5100 = vmatpush1.msra.mxu0 0.0
  %5101 = vmatprep.subr.mxu0 0.0
  %5102 = vmatpush1.msra.mxu0 0.0
  %5103 = vmatprep.subr.mxu0 0.0
  %5104 = vmatpush1.msra.mxu0 0.0
  %5105 = vmatprep.subr.mxu0 0.0
  %5106 = vmatpush1.msra.mxu0 0.0
  %5107 = vmatprep.subr.mxu0 0.0
  %5108 = vmatpush1.msra.mxu0 0.0
  %5109 = vmatprep.subr.mxu0 0.0
  %5110 = vmatpush1.msra.mxu0 0.0
  %5111 = vmatprep.subr.mxu0 0.0
  %5112 = vmatpush1.msra.mxu0 0.0
  %5113 = vmatprep.subr.mxu0 0.0
  %5114 = vmatpush1.msra.mxu0 0.0
  %5115 = vmatprep.subr.mxu0 0.0
  %5116 = vmatpush1.msra.mxu0 0.0
  %5117 = vmatprep.subr.mxu0 0.0
  %5118 = vmatpush1.msra.mxu0 0.0
  %5119 = vmatprep.subr.mxu0 0.0
  %5120 = vmatpush1.msra.mxu0 0.0
  %5121 = vmatprep.subr.mxu0 0.0
  %5122 = vmatpush1.msra.mxu0 0.0
  %5123 = vmatprep.subr.mxu0 0.0
  %5124 = vmatpush1.msra.mxu0 0.0
  %5125 = vmatprep.subr.mxu0 0.0
  %5126 = vmatpush1.msra.mxu0 0.0
  %5127 = vmatprep.subr.mxu0 0.0
  %5128 = vmatpush1.msra.mxu0 0.0
  %5129 = vmatprep.subr.mxu0 0.0
  %5130 = vmatpush1.msra.mxu0 0.0
  %5131 = vmatprep.subr.mxu0 0.0
  %5132 = vmatpush1.msra.mxu0 0.0
  %5133 = vmatprep.subr.mxu0 0.0
  %5134 = vmatpush1.msra.mxu0 0.0
  %5135 = vmatprep.mubr.f32.mxu0 0.0
  %5136 = vmatmul.mubr.f32.gmra.mrb[0].mxu0 %v5069
  %v5137 = vpop.f32.mrb[0].mxu0
  %v5138 = vadd.f32 %v5066, %v5137
  %v5139 = vpop.f32.mrb[0].mxu0
  %v5140 = vadd.f32 %v5066, %v5139
  %5141 = vdwg.mxu0
  %5142 = vmatprep.subr.mxu0 %v4920
  %5143 = vmatpush1.msra.mxu0 %v4919
  %5144 = vmatprep.subr.mxu0 %v4936
  %5145 = vmatpush1.msra.mxu0 %v4935
  %5146 = vmatprep.subr.mxu0 %v4952
  %5147 = vmatpush1.msra.mxu0 %v4951
  %5148 = vmatprep.subr.mxu0 %v4968
  %5149 = vmatpush1.msra.mxu0 %v4967
  %5150 = vmatprep.subr.mxu0 %v4984
  %5151 = vmatpush1.msra.mxu0 %v4983
  %5152 = vmatprep.subr.mxu0 %v5000
  %5153 = vmatpush1.msra.mxu0 %v4999
  %5154 = vmatprep.subr.mxu0 %v5016
  %5155 = vmatpush1.msra.mxu0 %v5015
  %5156 = vmatprep.subr.mxu0 %v5032
  %5157 = vmatpush1.msra.mxu0 %v5031
  %5158 = vmatprep.subr.mxu0 %v5048
  %5159 = vmatpush1.msra.mxu0 %v5047
  %5160 = vmatprep.subr.mxu0 0.0
  %5161 = vmatpush1.msra.mxu0 0.0
  %5162 = vmatprep.subr.mxu0 0.0
  %5163 = vmatpush1.msra.mxu0 0.0
  %5164 = vmatprep.subr.mxu0 0.0
  %5165 = vmatpush1.msra.mxu0 0.0
  %5166 = vmatprep.subr.mxu0 0.0
  %5167 = vmatpush1.msra.mxu0 0.0
  %5168 = vmatprep.subr.mxu0 0.0
  %5169 = vmatpush1.msra.mxu0 0.0
  %5170 = vmatprep.subr.mxu0 0.0
  %5171 = vmatpush1.msra.mxu0 0.0
  %5172 = vmatprep.subr.mxu0 0.0
  %5173 = vmatpush1.msra.mxu0 0.0
  %5174 = vmatprep.subr.mxu0 0.0
  %5175 = vmatpush1.msra.mxu0 0.0
  %5176 = vmatprep.subr.mxu0 0.0
  %5177 = vmatpush1.msra.mxu0 0.0
  %5178 = vmatprep.subr.mxu0 0.0
  %5179 = vmatpush1.msra.mxu0 0.0
  %5180 = vmatprep.subr.mxu0 0.0
  %5181 = vmatpush1.msra.mxu0 0.0
  %5182 = vmatprep.subr.mxu0 0.0
  %5183 = vmatpush1.msra.mxu0 0.0
  %5184 = vmatprep.subr.mxu0 0.0
  %5185 = vmatpush1.msra.mxu0 0.0
  %5186 = vmatprep.subr.mxu0 0.0
  %5187 = vmatpush1.msra.mxu0 0.0
  %5188 = vmatprep.subr.mxu0 0.0
  %5189 = vmatpush1.msra.mxu0 0.0
  %5190 = vmatprep.subr.mxu0 0.0
  %5191 = vmatpush1.msra.mxu0 0.0
  %5192 = vmatprep.subr.mxu0 0.0
  %5193 = vmatpush1.msra.mxu0 0.0
  %5194 = vmatprep.subr.mxu0 0.0
  %5195 = vmatpush1.msra.mxu0 0.0
  %5196 = vmatprep.subr.mxu0 0.0
  %5197 = vmatpush1.msra.mxu0 0.0
  %5198 = vmatprep.subr.mxu0 0.0
  %5199 = vmatpush1.msra.mxu0 0.0
  %5200 = vmatprep.subr.mxu0 0.0
  %5201 = vmatpush1.msra.mxu0 0.0
  %5202 = vmatprep.subr.mxu0 0.0
  %5203 = vmatpush1.msra.mxu0 0.0
  %5204 = vmatprep.subr.mxu0 0.0
  %5205 = vmatpush1.msra.mxu0 0.0
  %5206 = vmatprep.mubr.f32.mxu0 0.0
  %5207 = vmatmul.mubr.f32.gmra.mrb[0].mxu0 %v5069
  %v5208 = vpop.f32.mrb[0].mxu0
  %v5209 = vadd.f32 %v5066, %v5208
  %v5210 = vpop.f32.mrb[0].mxu0
  %v5211 = vadd.f32 %v5066, %v5210
  %5212 = vdwg.mxu0
  %5213 = vmatprep.subr.mxu0 %v4922
  %5214 = vmatpush1.msra.mxu0 %v4921
  %5215 = vmatprep.subr.mxu0 %v4938
  %5216 = vmatpush1.msra.mxu0 %v4937
  %5217 = vmatprep.subr.mxu0 %v4954
  %5218 = vmatpush1.msra.mxu0 %v4953
  %5219 = vmatprep.subr.mxu0 %v4970
  %5220 = vmatpush1.msra.mxu0 %v4969
  %5221 = vmatprep.subr.mxu0 %v4986
  %5222 = vmatpush1.msra.mxu0 %v4985
  %5223 = vmatprep.subr.mxu0 %v5002
  %5224 = vmatpush1.msra.mxu0 %v5001
  %5225 = vmatprep.subr.mxu0 %v5018
  %5226 = vmatpush1.msra.mxu0 %v5017
  %5227 = vmatprep.subr.mxu0 %v5034
  %5228 = vmatpush1.msra.mxu0 %v5033
  %5229 = vmatprep.subr.mxu0 %v5050
  %5230 = vmatpush1.msra.mxu0 %v5049
  %5231 = vmatprep.subr.mxu0 0.0
  %5232 = vmatpush1.msra.mxu0 0.0
  %5233 = vmatprep.subr.mxu0 0.0
  %5234 = vmatpush1.msra.mxu0 0.0
  %5235 = vmatprep.subr.mxu0 0.0
  %5236 = vmatpush1.msra.mxu0 0.0
  %5237 = vmatprep.subr.mxu0 0.0
  %5238 = vmatpush1.msra.mxu0 0.0
  %5239 = vmatprep.subr.mxu0 0.0
  %5240 = vmatpush1.msra.mxu0 0.0
  %5241 = vmatprep.subr.mxu0 0.0
  %5242 = vmatpush1.msra.mxu0 0.0
  %5243 = vmatprep.subr.mxu0 0.0
  %5244 = vmatpush1.msra.mxu0 0.0
  %5245 = vmatprep.subr.mxu0 0.0
  %5246 = vmatpush1.msra.mxu0 0.0
  %5247 = vmatprep.subr.mxu0 0.0
  %5248 = vmatpush1.msra.mxu0 0.0
  %5249 = vmatprep.subr.mxu0 0.0
  %5250 = vmatpush1.msra.mxu0 0.0
  %5251 = vmatprep.subr.mxu0 0.0
  %5252 = vmatpush1.msra.mxu0 0.0
  %5253 = vmatprep.subr.mxu0 0.0
  %5254 = vmatpush1.msra.mxu0 0.0
  %5255 = vmatprep.subr.mxu0 0.0
  %5256 = vmatpush1.msra.mxu0 0.0
  %5257 = vmatprep.subr.mxu0 0.0
  %5258 = vmatpush1.msra.mxu0 0.0
  %5259 = vmatprep.subr.mxu0 0.0
  %5260 = vmatpush1.msra.mxu0 0.0
  %5261 = vmatprep.subr.mxu0 0.0
  %5262 = vmatpush1.msra.mxu0 0.0
  %5263 = vmatprep.subr.mxu0 0.0
  %5264 = vmatpush1.msra.mxu0 0.0
  %5265 = vmatprep.subr.mxu0 0.0
  %5266 = vmatpush1.msra.mxu0 0.0
  %5267 = vmatprep.subr.mxu0 0.0
  %5268 = vmatpush1.msra.mxu0 0.0
  %5269 = vmatprep.subr.mxu0 0.0
  %5270 = vmatpush1.msra.mxu0 0.0
  %5271 = vmatprep.subr.mxu0 0.0
  %5272 = vmatpush1.msra.mxu0 0.0
  %5273 = vmatprep.subr.mxu0 0.0
  %5274 = vmatpush1.msra.mxu0 0.0
  %5275 = vmatprep.subr.mxu0 0.0
  %5276 = vmatpush1.msra.mxu0 0.0
  %5277 = vmatprep.mubr.f32.mxu0 0.0
  %5278 = vmatmul.mubr.f32.gmra.mrb[0].mxu0 %v5069
  %v5279 = vpop.f32.mrb[0].mxu0
  %v5280 = vadd.f32 %v5066, %v5279
  %v5281 = vpop.f32.mrb[0].mxu0
  %v5282 = vadd.f32 %v5066, %v5281
  %5283 = vdwg.mxu0
  %5284 = vmatprep.subr.mxu0 %v4924
  %5285 = vmatpush1.msra.mxu0 %v4923
  %5286 = vmatprep.subr.mxu0 %v4940
  %5287 = vmatpush1.msra.mxu0 %v4939
  %5288 = vmatprep.subr.mxu0 %v4956
  %5289 = vmatpush1.msra.mxu0 %v4955
  %5290 = vmatprep.subr.mxu0 %v4972
  %5291 = vmatpush1.msra.mxu0 %v4971
  %5292 = vmatprep.subr.mxu0 %v4988
  %5293 = vmatpush1.msra.mxu0 %v4987
  %5294 = vmatprep.subr.mxu0 %v5004
  %5295 = vmatpush1.msra.mxu0 %v5003
  %5296 = vmatprep.subr.mxu0 %v5020
  %5297 = vmatpush1.msra.mxu0 %v5019
  %5298 = vmatprep.subr.mxu0 %v5036
  %5299 = vmatpush1.msra.mxu0 %v5035
  %5300 = vmatprep.subr.mxu0 %v5052
  %5301 = vmatpush1.msra.mxu0 %v5051
  %5302 = vmatprep.subr.mxu0 0.0
  %5303 = vmatpush1.msra.mxu0 0.0
  %5304 = vmatprep.subr.mxu0 0.0
  %5305 = vmatpush1.msra.mxu0 0.0
  %5306 = vmatprep.subr.mxu0 0.0
  %5307 = vmatpush1.msra.mxu0 0.0
  %5308 = vmatprep.subr.mxu0 0.0
  %5309 = vmatpush1.msra.mxu0 0.0
  %5310 = vmatprep.subr.mxu0 0.0
  %5311 = vmatpush1.msra.mxu0 0.0
  %5312 = vmatprep.subr.mxu0 0.0
  %5313 = vmatpush1.msra.mxu0 0.0
  %5314 = vmatprep.subr.mxu0 0.0
  %5315 = vmatpush1.msra.mxu0 0.0
  %5316 = vmatprep.subr.mxu0 0.0
  %5317 = vmatpush1.msra.mxu0 0.0
  %5318 = vmatprep.subr.mxu0 0.0
  %5319 = vmatpush1.msra.mxu0 0.0
  %5320 = vmatprep.subr.mxu0 0.0
  %5321 = vmatpush1.msra.mxu0 0.0
  %5322 = vmatprep.subr.mxu0 0.0
  %5323 = vmatpush1.msra.mxu0 0.0
  %5324 = vmatprep.subr.mxu0 0.0
  %5325 = vmatpush1.msra.mxu0 0.0
  %5326 = vmatprep.subr.mxu0 0.0
  %5327 = vmatpush1.msra.mxu0 0.0
  %5328 = vmatprep.subr.mxu0 0.0
  %5329 = vmatpush1.msra.mxu0 0.0
  %5330 = vmatprep.subr.mxu0 0.0
  %5331 = vmatpush1.msra.mxu0 0.0
  %5332 = vmatprep.subr.mxu0 0.0
  %5333 = vmatpush1.msra.mxu0 0.0
  %5334 = vmatprep.subr.mxu0 0.0
  %5335 = vmatpush1.msra.mxu0 0.0
  %5336 = vmatprep.subr.mxu0 0.0
  %5337 = vmatpush1.msra.mxu0 0.0
  %5338 = vmatprep.subr.mxu0 0.0
  %5339 = vmatpush1.msra.mxu0 0.0
  %5340 = vmatprep.subr.mxu0 0.0
  %5341 = vmatpush1.msra.mxu0 0.0
  %5342 = vmatprep.subr.mxu0 0.0
  %5343 = vmatpush1.msra.mxu0 0.0
  %5344 = vmatprep.subr.mxu0 0.0
  %5345 = vmatpush1.msra.mxu0 0.0
  %5346 = vmatprep.subr.mxu0 0.0
  %5347 = vmatpush1.msra.mxu0 0.0
  %5348 = vmatprep.mubr.f32.mxu0 0.0
  %5349 = vmatmul.mubr.f32.gmra.mrb[0].mxu0 %v5069
  %v5350 = vpop.f32.mrb[0].mxu0
  %v5351 = vadd.f32 %v5066, %v5350
  %v5352 = vpop.f32.mrb[0].mxu0
  %v5353 = vadd.f32 %v5066, %v5352
  %5354 = vdwg.mxu0
  %5355 = vmatprep.subr.mxu0 %v4926
  %5356 = vmatpush1.msra.mxu0 %v4925
  %5357 = vmatprep.subr.mxu0 %v4942
  %5358 = vmatpush1.msra.mxu0 %v4941
  %5359 = vmatprep.subr.mxu0 %v4958
  %5360 = vmatpush1.msra.mxu0 %v4957
  %5361 = vmatprep.subr.mxu0 %v4974
  %5362 = vmatpush1.msra.mxu0 %v4973
  %5363 = vmatprep.subr.mxu0 %v4990
  %5364 = vmatpush1.msra.mxu0 %v4989
  %5365 = vmatprep.subr.mxu0 %v5006
  %5366 = vmatpush1.msra.mxu0 %v5005
  %5367 = vmatprep.subr.mxu0 %v5022
  %5368 = vmatpush1.msra.mxu0 %v5021
  %5369 = vmatprep.subr.mxu0 %v5038
  %5370 = vmatpush1.msra.mxu0 %v5037
  %5371 = vmatprep.subr.mxu0 %v5054
  %5372 = vmatpush1.msra.mxu0 %v5053
  %5373 = vmatprep.subr.mxu0 0.0
  %5374 = vmatpush1.msra.mxu0 0.0
  %5375 = vmatprep.subr.mxu0 0.0
  %5376 = vmatpush1.msra.mxu0 0.0
  %5377 = vmatprep.subr.mxu0 0.0
  %5378 = vmatpush1.msra.mxu0 0.0
  %5379 = vmatprep.subr.mxu0 0.0
  %5380 = vmatpush1.msra.mxu0 0.0
  %5381 = vmatprep.subr.mxu0 0.0
  %5382 = vmatpush1.msra.mxu0 0.0
  %5383 = vmatprep.subr.mxu0 0.0
  %5384 = vmatpush1.msra.mxu0 0.0
  %5385 = vmatprep.subr.mxu0 0.0
  %5386 = vmatpush1.msra.mxu0 0.0
  %5387 = vmatprep.subr.mxu0 0.0
  %5388 = vmatpush1.msra.mxu0 0.0
  %5389 = vmatprep.subr.mxu0 0.0
  %5390 = vmatpush1.msra.mxu0 0.0
  %5391 = vmatprep.subr.mxu0 0.0
  %5392 = vmatpush1.msra.mxu0 0.0
  %5393 = vmatprep.subr.mxu0 0.0
  %5394 = vmatpush1.msra.mxu0 0.0
  %5395 = vmatprep.subr.mxu0 0.0
  %5396 = vmatpush1.msra.mxu0 0.0
  %5397 = vmatprep.subr.mxu0 0.0
  %5398 = vmatpush1.msra.mxu0 0.0
  %5399 = vmatprep.subr.mxu0 0.0
  %5400 = vmatpush1.msra.mxu0 0.0
  %5401 = vmatprep.subr.mxu0 0.0
  %5402 = vmatpush1.msra.mxu0 0.0
  %5403 = vmatprep.subr.mxu0 0.0
  %5404 = vmatpush1.msra.mxu0 0.0
  %5405 = vmatprep.subr.mxu0 0.0
  %5406 = vmatpush1.msra.mxu0 0.0
  %5407 = vmatprep.subr.mxu0 0.0
  %5408 = vmatpush1.msra.mxu0 0.0
  %5409 = vmatprep.subr.mxu0 0.0
  %5410 = vmatpush1.msra.mxu0 0.0
  %5411 = vmatprep.subr.mxu0 0.0
  %5412 = vmatpush1.msra.mxu0 0.0
  %5413 = vmatprep.subr.mxu0 0.0
  %5414 = vmatpush1.msra.mxu0 0.0
  %5415 = vmatprep.subr.mxu0 0.0
  %5416 = vmatpush1.msra.mxu0 0.0
  %5417 = vmatprep.subr.mxu0 0.0
  %5418 = vmatpush1.msra.mxu0 0.0
  %5419 = vmatprep.mubr.f32.mxu0 0.0
  %5420 = vmatmul.mubr.f32.gmra.mrb[0].mxu0 %v5069
  %v5421 = vpop.f32.mrb[0].mxu0
  %v5422 = vadd.f32 %v5066, %v5421
  %v5423 = vpop.f32.mrb[0].mxu0
  %v5424 = vadd.f32 %v5066, %v5423
  %5425 = vdwg.mxu0
  %5426 = vmatprep.subr.mxu0 %v4928
  %5427 = vmatpush1.msra.mxu0 %v4927
  %5428 = vmatprep.subr.mxu0 %v4944
  %5429 = vmatpush1.msra.mxu0 %v4943
  %5430 = vmatprep.subr.mxu0 %v4960
  %5431 = vmatpush1.msra.mxu0 %v4959
  %5432 = vmatprep.subr.mxu0 %v4976
  %5433 = vmatpush1.msra.mxu0 %v4975
  %5434 = vmatprep.subr.mxu0 %v4992
  %5435 = vmatpush1.msra.mxu0 %v4991
  %5436 = vmatprep.subr.mxu0 %v5008
  %5437 = vmatpush1.msra.mxu0 %v5007
  %5438 = vmatprep.subr.mxu0 %v5024
  %5439 = vmatpush1.msra.mxu0 %v5023
  %5440 = vmatprep.subr.mxu0 %v5040
  %5441 = vmatpush1.msra.mxu0 %v5039
  %5442 = vmatprep.subr.mxu0 %v5056
  %5443 = vmatpush1.msra.mxu0 %v5055
  %5444 = vmatprep.subr.mxu0 0.0
  %5445 = vmatpush1.msra.mxu0 0.0
  %5446 = vmatprep.subr.mxu0 0.0
  %5447 = vmatpush1.msra.mxu0 0.0
  %5448 = vmatprep.subr.mxu0 0.0
  %5449 = vmatpush1.msra.mxu0 0.0
  %5450 = vmatprep.subr.mxu0 0.0
  %5451 = vmatpush1.msra.mxu0 0.0
  %5452 = vmatprep.subr.mxu0 0.0
  %5453 = vmatpush1.msra.mxu0 0.0
  %5454 = vmatprep.subr.mxu0 0.0
  %5455 = vmatpush1.msra.mxu0 0.0
  %5456 = vmatprep.subr.mxu0 0.0
  %5457 = vmatpush1.msra.mxu0 0.0
  %5458 = vmatprep.subr.mxu0 0.0
  %5459 = vmatpush1.msra.mxu0 0.0
  %5460 = vmatprep.subr.mxu0 0.0
  %5461 = vmatpush1.msra.mxu0 0.0
  %5462 = vmatprep.subr.mxu0 0.0
  %5463 = vmatpush1.msra.mxu0 0.0
  %5464 = vmatprep.subr.mxu0 0.0
  %5465 = vmatpush1.msra.mxu0 0.0
  %5466 = vmatprep.subr.mxu0 0.0
  %5467 = vmatpush1.msra.mxu0 0.0
  %5468 = vmatprep.subr.mxu0 0.0
  %5469 = vmatpush1.msra.mxu0 0.0
  %5470 = vmatprep.subr.mxu0 0.0
  %5471 = vmatpush1.msra.mxu0 0.0
  %5472 = vmatprep.subr.mxu0 0.0
  %5473 = vmatpush1.msra.mxu0 0.0
  %5474 = vmatprep.subr.mxu0 0.0
  %5475 = vmatpush1.msra.mxu0 0.0
  %5476 = vmatprep.subr.mxu0 0.0
  %5477 = vmatpush1.msra.mxu0 0.0
  %5478 = vmatprep.subr.mxu0 0.0
  %5479 = vmatpush1.msra.mxu0 0.0
  %5480 = vmatprep.subr.mxu0 0.0
  %5481 = vmatpush1.msra.mxu0 0.0
  %5482 = vmatprep.subr.mxu0 0.0
  %5483 = vmatpush1.msra.mxu0 0.0
  %5484 = vmatprep.subr.mxu0 0.0
  %5485 = vmatpush1.msra.mxu0 0.0
  %5486 = vmatprep.subr.mxu0 0.0
  %5487 = vmatpush1.msra.mxu0 0.0
  %5488 = vmatprep.subr.mxu0 0.0
  %5489 = vmatpush1.msra.mxu0 0.0
  %5490 = vmatprep.mubr.f32.mxu0 0.0
  %5491 = vmatmul.mubr.f32.gmra.mrb[0].mxu0 %v5069
  %v5492 = vpop.f32.mrb[0].mxu0
  %v5493 = vadd.f32 %v5066, %v5492
  %v5494 = vpop.f32.mrb[0].mxu0
  %v5495 = vadd.f32 %v5066, %v5494
  %5496 = vdwg.mxu0
  %5497 = vmatprep.subr.mxu0 %v4930
  %5498 = vmatpush1.msra.mxu0 %v4929
  %5499 = vmatprep.subr.mxu0 %v4946
  %5500 = vmatpush1.msra.mxu0 %v4945
  %5501 = vmatprep.subr.mxu0 %v4962
  %5502 = vmatpush1.msra.mxu0 %v4961
  %5503 = vmatprep.subr.mxu0 %v4978
  %5504 = vmatpush1.msra.mxu0 %v4977
  %5505 = vmatprep.subr.mxu0 %v4994
  %5506 = vmatpush1.msra.mxu0 %v4993
  %5507 = vmatprep.subr.mxu0 %v5010
  %5508 = vmatpush1.msra.mxu0 %v5009
  %5509 = vmatprep.subr.mxu0 %v5026
  %5510 = vmatpush1.msra.mxu0 %v5025
  %5511 = vmatprep.subr.mxu0 %v5042
  %5512 = vmatpush1.msra.mxu0 %v5041
  %5513 = vmatprep.subr.mxu0 %v5058
  %5514 = vmatpush1.msra.mxu0 %v5057
  %5515 = vmatprep.subr.mxu0 0.0
  %5516 = vmatpush1.msra.mxu0 0.0
  %5517 = vmatprep.subr.mxu0 0.0
  %5518 = vmatpush1.msra.mxu0 0.0
  %5519 = vmatprep.subr.mxu0 0.0
  %5520 = vmatpush1.msra.mxu0 0.0
  %5521 = vmatprep.subr.mxu0 0.0
  %5522 = vmatpush1.msra.mxu0 0.0
  %5523 = vmatprep.subr.mxu0 0.0
  %5524 = vmatpush1.msra.mxu0 0.0
  %5525 = vmatprep.subr.mxu0 0.0
  %5526 = vmatpush1.msra.mxu0 0.0
  %5527 = vmatprep.subr.mxu0 0.0
  %5528 = vmatpush1.msra.mxu0 0.0
  %5529 = vmatprep.subr.mxu0 0.0
  %5530 = vmatpush1.msra.mxu0 0.0
  %5531 = vmatprep.subr.mxu0 0.0
  %5532 = vmatpush1.msra.mxu0 0.0
  %5533 = vmatprep.subr.mxu0 0.0
  %5534 = vmatpush1.msra.mxu0 0.0
  %5535 = vmatprep.subr.mxu0 0.0
  %5536 = vmatpush1.msra.mxu0 0.0
  %5537 = vmatprep.subr.mxu0 0.0
  %5538 = vmatpush1.msra.mxu0 0.0
  %5539 = vmatprep.subr.mxu0 0.0
  %5540 = vmatpush1.msra.mxu0 0.0
  %5541 = vmatprep.subr.mxu0 0.0
  %5542 = vmatpush1.msra.mxu0 0.0
  %5543 = vmatprep.subr.mxu0 0.0
  %5544 = vmatpush1.msra.mxu0 0.0
  %5545 = vmatprep.subr.mxu0 0.0
  %5546 = vmatpush1.msra.mxu0 0.0
  %5547 = vmatprep.subr.mxu0 0.0
  %5548 = vmatpush1.msra.mxu0 0.0
  %5549 = vmatprep.subr.mxu0 0.0
  %5550 = vmatpush1.msra.mxu0 0.0
  %5551 = vmatprep.subr.mxu0 0.0
  %5552 = vmatpush1.msra.mxu0 0.0
  %5553 = vmatprep.subr.mxu0 0.0
  %5554 = vmatpush1.msra.mxu0 0.0
  %5555 = vmatprep.subr.mxu0 0.0
  %5556 = vmatpush1.msra.mxu0 0.0
  %5557 = vmatprep.subr.mxu0 0.0
  %5558 = vmatpush1.msra.mxu0 0.0
  %5559 = vmatprep.subr.mxu0 0.0
  %5560 = vmatpush1.msra.mxu0 0.0
  %5561 = vmatprep.mubr.f32.mxu0 0.0
  %5562 = vmatmul.mubr.f32.gmra.mrb[0].mxu0 %v5069
  %v5563 = vpop.f32.mrb[0].mxu0
  %v5564 = vadd.f32 %v5066, %v5563
  %v5565 = vpop.f32.mrb[0].mxu0
  %v5566 = vadd.f32 %v5066, %v5565
  %5567 = vdwg.mxu0
  %5568 = vmatprep.subr.mxu0 %v4932
  %5569 = vmatpush1.msra.mxu0 %v4931
  %5570 = vmatprep.subr.mxu0 %v4948
  %5571 = vmatpush1.msra.mxu0 %v4947
  %5572 = vmatprep.subr.mxu0 %v4964
  %5573 = vmatpush1.msra.mxu0 %v4963
  %5574 = vmatprep.subr.mxu0 %v4980
  %5575 = vmatpush1.msra.mxu0 %v4979
  %5576 = vmatprep.subr.mxu0 %v4996
  %5577 = vmatpush1.msra.mxu0 %v4995
  %5578 = vmatprep.subr.mxu0 %v5012
  %5579 = vmatpush1.msra.mxu0 %v5011
  %5580 = vmatprep.subr.mxu0 %v5028
  %5581 = vmatpush1.msra.mxu0 %v5027
  %5582 = vmatprep.subr.mxu0 %v5044
  %5583 = vmatpush1.msra.mxu0 %v5043
  %5584 = vmatprep.subr.mxu0 %v5060
  %5585 = vmatpush1.msra.mxu0 %v5059
  %5586 = vmatprep.subr.mxu0 0.0
  %5587 = vmatpush1.msra.mxu0 0.0
  %5588 = vmatprep.subr.mxu0 0.0
  %5589 = vmatpush1.msra.mxu0 0.0
  %5590 = vmatprep.subr.mxu0 0.0
  %5591 = vmatpush1.msra.mxu0 0.0
  %5592 = vmatprep.subr.mxu0 0.0
  %5593 = vmatpush1.msra.mxu0 0.0
  %5594 = vmatprep.subr.mxu0 0.0
  %5595 = vmatpush1.msra.mxu0 0.0
  %5596 = vmatprep.subr.mxu0 0.0
  %5597 = vmatpush1.msra.mxu0 0.0
  %5598 = vmatprep.subr.mxu0 0.0
  %5599 = vmatpush1.msra.mxu0 0.0
  %5600 = vmatprep.subr.mxu0 0.0
  %5601 = vmatpush1.msra.mxu0 0.0
  %5602 = vmatprep.subr.mxu0 0.0
  %5603 = vmatpush1.msra.mxu0 0.0
  %5604 = vmatprep.subr.mxu0 0.0
  %5605 = vmatpush1.msra.mxu0 0.0
  %5606 = vmatprep.subr.mxu0 0.0
  %5607 = vmatpush1.msra.mxu0 0.0
  %5608 = vmatprep.subr.mxu0 0.0
  %5609 = vmatpush1.msra.mxu0 0.0
  %5610 = vmatprep.subr.mxu0 0.0
  %5611 = vmatpush1.msra.mxu0 0.0
  %5612 = vmatprep.subr.mxu0 0.0
  %5613 = vmatpush1.msra.mxu0 0.0
  %5614 = vmatprep.subr.mxu0 0.0
  %5615 = vmatpush1.msra.mxu0 0.0
  %5616 = vmatprep.subr.mxu0 0.0
  %5617 = vmatpush1.msra.mxu0 0.0
  %5618 = vmatprep.subr.mxu0 0.0
  %5619 = vmatpush1.msra.mxu0 0.0
  %5620 = vmatprep.subr.mxu0 0.0
  %5621 = vmatpush1.msra.mxu0 0.0
  %5622 = vmatprep.subr.mxu0 0.0
  %5623 = vmatpush1.msra.mxu0 0.0
  %5624 = vmatprep.subr.mxu0 0.0
  %5625 = vmatpush1.msra.mxu0 0.0
  %5626 = vmatprep.subr.mxu0 0.0
  %5627 = vmatpush1.msra.mxu0 0.0
  %5628 = vmatprep.subr.mxu0 0.0
  %5629 = vmatpush1.msra.mxu0 0.0
  %5630 = vmatprep.subr.mxu0 0.0
  %5631 = vmatpush1.msra.mxu0 0.0
  %5632 = vmatprep.mubr.f32.mxu0 0.0
  %5633 = vmatmul.mubr.f32.gmra.mrb[0].mxu0 %v5069
  %v5634 = vpop.f32.mrb[0].mxu0
  %v5635 = vadd.f32 %v5066, %v5634
  %v5636 = vpop.f32.mrb[0].mxu0
  %v5637 = vadd.f32 %v5066, %v5636
  %5638 = vdwg.mxu0
  %v5639 = vmax.f32 %v5138, 0.0
  %v5640 = vmax.f32 %v5140, 0.0
  %v5641 = vmax.f32 %v5209, 0.0
  %v5642 = vmax.f32 %v5211, 0.0
  %v5643 = vmax.f32 %v5280, 0.0
  %v5644 = vmax.f32 %v5282, 0.0
  %v5645 = vmax.f32 %v5351, 0.0
  %v5646 = vmax.f32 %v5353, 0.0
  %v5647 = vmax.f32 %v5422, 0.0
  %v5648 = vmax.f32 %v5424, 0.0
  %v5649 = vmax.f32 %v5493, 0.0
  %v5650 = vmax.f32 %v5495, 0.0
  %v5651 = vmax.f32 %v5564, 0.0
  %v5652 = vmax.f32 %v5566, 0.0
  %v5653 = vmax.f32 %v5635, 0.0
  %v5654 = vmax.f32 %v5637, 0.0
  %5655 = vrot.lane.b32.xlu0 %v5639, 33
  %v5656 = vpop.permute.xlu0 %5655
  %5657 = vrot.lane.b32.xlu0 %v5640, 33
  %v5658 = vpop.permute.xlu0 %5657
  %5659 = vrot.lane.b32.xlu0 %v5641, 33
  %v5660 = vpop.permute.xlu0 %5659
  %5661 = vrot.lane.b32.xlu0 %v5642, 33
  %v5662 = vpop.permute.xlu0 %5661
  %5663 = vrot.lane.b32.xlu0 %v5643, 33
  %v5664 = vpop.permute.xlu0 %5663
  %5665 = vrot.lane.b32.xlu0 %v5644, 33
  %v5666 = vpop.permute.xlu0 %5665
  %5667 = vrot.lane.b32.xlu0 %v5645, 33
  %v5668 = vpop.permute.xlu0 %5667
  %5669 = vrot.lane.b32.xlu0 %v5646, 33
  %v5670 = vpop.permute.xlu0 %5669
  %5671 = vrot.lane.b32.xlu0 %v5647, 33
  %v5672 = vpop.permute.xlu0 %5671
  %5673 = vrot.lane.b32.xlu0 %v5648, 33
  %v5674 = vpop.permute.xlu0 %5673
  %5675 = vrot.lane.b32.xlu0 %v5649, 33
  %v5676 = vpop.permute.xlu0 %5675
  %5677 = vrot.lane.b32.xlu0 %v5650, 33
  %v5678 = vpop.permute.xlu0 %5677
  %5679 = vrot.lane.b32.xlu0 %v5651, 33
  %v5680 = vpop.permute.xlu0 %5679
  %5681 = vrot.lane.b32.xlu0 %v5652, 33
  %v5682 = vpop.permute.xlu0 %5681
  %5683 = vrot.lane.b32.xlu0 %v5653, 33
  %v5684 = vpop.permute.xlu0 %5683
  %5685 = vrot.lane.b32.xlu0 %v5654, 33
  %v5686 = vpop.permute.xlu0 %5685
  %v5687 = vsel %vm141, %v5684, %v5686
  %v5688 = vsel %vm141, %v5682, %v5684
  %v5689 = vsel %vm141, %v5680, %v5682
  %v5690 = vsel %vm141, %v5678, %v5680
  %v5691 = vsel %vm141, %v5676, %v5678
  %v5692 = vsel %vm141, %v5674, %v5676
  %v5693 = vsel %vm141, %v5672, %v5674
  %v5694 = vsel %vm141, %v5670, %v5672
  %v5695 = vsel %vm141, %v5668, %v5670
  %v5696 = vsel %vm141, %v5666, %v5668
  %v5697 = vsel %vm141, %v5664, %v5666
  %v5698 = vsel %vm141, %v5662, %v5664
  %v5699 = vsel %vm141, %v5660, %v5662
  %v5700 = vsel %vm141, %v5658, %v5660
  %v5701 = vsel %vm141, %v5656, %v5658
  %v5702 = vsel %vm141, %v5686, %v5656
  %v5703 = vld [vmem:[%s2] sm:$0xff]
  %v5704 = vld [vmem:[%s2 + $0x8] sm:$0xff]
  %v5705 = vld [vmem:[%s2 + $0x10] sm:$0xff]
  %v5706 = vld [vmem:[%s2 + $0x18] sm:$0xff]
  %v5707 = vld [vmem:[%s2 + $0x20] sm:$0xff]
  %v5708 = vld [vmem:[%s2 + $0x28] sm:$0xff]
  %v5709 = vld [vmem:[%s2 + $0x30] sm:$0xff]
  %v5710 = vld [vmem:[%s2 + $0x38] sm:$0xff]
  %v5711 = vld [vmem:[%s2 + $0x40] sm:$0xff]
  %v5712 = vld [vmem:[%s2 + $0x48] sm:$0xff]
  %v5713 = vld [vmem:[%s2 + $0x50] sm:$0xff]
  %v5714 = vld [vmem:[%s2 + $0x58] sm:$0xff]
  %v5715 = vld [vmem:[%s2 + $0x60] sm:$0xff]
  %v5716 = vld [vmem:[%s2 + $0x68] sm:$0xff]
  %v5717 = vld [vmem:[%s2 + $0x70] sm:$0xff]
  %v5718 = vld [vmem:[%s2 + $0x78] sm:$0xff]
  %v5719 = vmul.f32 %v5702, %v5703
  %v5720 = vmul.f32 %v5701, %v5704
  %v5721 = vmul.f32 %v5700, %v5705
  %v5722 = vmul.f32 %v5699, %v5706
  %v5723 = vmul.f32 %v5698, %v5707
  %v5724 = vmul.f32 %v5697, %v5708
  %v5725 = vmul.f32 %v5696, %v5709
  %v5726 = vmul.f32 %v5695, %v5710
  %v5727 = vmul.f32 %v5694, %v5711
  %v5728 = vmul.f32 %v5693, %v5712
  %v5729 = vmul.f32 %v5692, %v5713
  %v5730 = vmul.f32 %v5691, %v5714
  %v5731 = vmul.f32 %v5690, %v5715
  %v5732 = vmul.f32 %v5689, %v5716
  %v5733 = vmul.f32 %v5688, %v5717
  %v5734 = vmul.f32 %v5687, %v5718
  %5735 = vst [vmem:[#allocation2] sm:$0xff] %v5719
  %5736 = vst [vmem:[#allocation2 + $0x8] sm:$0xff] %v5720
  %5737 = vst [vmem:[#allocation2 + $0x10] sm:$0xff] %v5721
  %5738 = vst [vmem:[#allocation2 + $0x18] sm:$0xff] %v5722
  %5739 = vst [vmem:[#allocation2 + $0x20] sm:$0xff] %v5723
  %5740 = vst [vmem:[#allocation2 + $0x28] sm:$0xff] %v5724
  %5741 = vst [vmem:[#allocation2 + $0x30] sm:$0xff] %v5725
  %5742 = vst [vmem:[#allocation2 + $0x38] sm:$0xff] %v5726
  %5743 = vst [vmem:[#allocation2 + $0x40] sm:$0xff] %v5727
  %5744 = vst [vmem:[#allocation2 + $0x48] sm:$0xff] %v5728
  %5745 = vst [vmem:[#allocation2 + $0x50] sm:$0xff] %v5729
  %5746 = vst [vmem:[#allocation2 + $0x58] sm:$0xff] %v5730
  %5747 = vst [vmem:[#allocation2 + $0x60] sm:$0xff] %v5731
  %5748 = vst [vmem:[#allocation2 + $0x68] sm:$0xff] %v5732
  %5749 = vst [vmem:[#allocation2 + $0x70] sm:$0xff] %v5733
  %5750 = vst [vmem:[#allocation2 + $0x78] sm:$0xff] %v5734
  %5751 = vrot.lane.b32.xlu0 %v5639, 32
  %v5752 = vpop.permute.xlu0 %5751
  %5753 = vrot.lane.b32.xlu0 %v5640, 32
  %v5754 = vpop.permute.xlu0 %5753
  %5755 = vrot.lane.b32.xlu0 %v5641, 32
  %v5756 = vpop.permute.xlu0 %5755
  %5757 = vrot.lane.b32.xlu0 %v5642, 32
  %v5758 = vpop.permute.xlu0 %5757
  %5759 = vrot.lane.b32.xlu0 %v5643, 32
  %v5760 = vpop.permute.xlu0 %5759
  %5761 = vrot.lane.b32.xlu0 %v5644, 32
  %v5762 = vpop.permute.xlu0 %5761
  %5763 = vrot.lane.b32.xlu0 %v5645, 32
  %v5764 = vpop.permute.xlu0 %5763
  %5765 = vrot.lane.b32.xlu0 %v5646, 32
  %v5766 = vpop.permute.xlu0 %5765
  %5767 = vrot.lane.b32.xlu0 %v5647, 32
  %v5768 = vpop.permute.xlu0 %5767
  %5769 = vrot.lane.b32.xlu0 %v5648, 32
  %v5770 = vpop.permute.xlu0 %5769
  %5771 = vrot.lane.b32.xlu0 %v5649, 32
  %v5772 = vpop.permute.xlu0 %5771
  %5773 = vrot.lane.b32.xlu0 %v5650, 32
  %v5774 = vpop.permute.xlu0 %5773
  %5775 = vrot.lane.b32.xlu0 %v5651, 32
  %v5776 = vpop.permute.xlu0 %5775
  %5777 = vrot.lane.b32.xlu0 %v5652, 32
  %v5778 = vpop.permute.xlu0 %5777
  %5779 = vrot.lane.b32.xlu0 %v5653, 32
  %v5780 = vpop.permute.xlu0 %5779
  %5781 = vrot.lane.b32.xlu0 %v5654, 32
  %v5782 = vpop.permute.xlu0 %5781
  %v5783 = vsel %vm238, %v5780, %v5782
  %v5784 = vsel %vm238, %v5778, %v5780
  %v5785 = vsel %vm238, %v5776, %v5778
  %v5786 = vsel %vm238, %v5774, %v5776
  %v5787 = vsel %vm238, %v5772, %v5774
  %v5788 = vsel %vm238, %v5770, %v5772
  %v5789 = vsel %vm238, %v5768, %v5770
  %v5790 = vsel %vm238, %v5766, %v5768
  %v5791 = vsel %vm238, %v5764, %v5766
  %v5792 = vsel %vm238, %v5762, %v5764
  %v5793 = vsel %vm238, %v5760, %v5762
  %v5794 = vsel %vm238, %v5758, %v5760
  %v5795 = vsel %vm238, %v5756, %v5758
  %v5796 = vsel %vm238, %v5754, %v5756
  %v5797 = vsel %vm238, %v5752, %v5754
  %v5798 = vsel %vm238, %v5782, %v5752
  %v5799 = vld [vmem:[%s255] sm:$0xff]
  %v5800 = vld [vmem:[%s255 + $0x8] sm:$0xff]
  %v5801 = vld [vmem:[%s255 + $0x10] sm:$0xff]
  %v5802 = vld [vmem:[%s255 + $0x18] sm:$0xff]
  %v5803 = vld [vmem:[%s255 + $0x20] sm:$0xff]
  %v5804 = vld [vmem:[%s255 + $0x28] sm:$0xff]
  %v5805 = vld [vmem:[%s255 + $0x30] sm:$0xff]
  %v5806 = vld [vmem:[%s255 + $0x38] sm:$0xff]
  %v5807 = vld [vmem:[%s255 + $0x40] sm:$0xff]
  %v5808 = vld [vmem:[%s255 + $0x48] sm:$0xff]
  %v5809 = vld [vmem:[%s255 + $0x50] sm:$0xff]
  %v5810 = vld [vmem:[%s255 + $0x58] sm:$0xff]
  %v5811 = vld [vmem:[%s255 + $0x60] sm:$0xff]
  %v5812 = vld [vmem:[%s255 + $0x68] sm:$0xff]
  %v5813 = vld [vmem:[%s255 + $0x70] sm:$0xff]
  %v5814 = vld [vmem:[%s255 + $0x78] sm:$0xff]
  %v5815 = vmul.f32 %v5798, %v5799
  %v5816 = vmul.f32 %v5797, %v5800
  %v5817 = vmul.f32 %v5796, %v5801
  %v5818 = vmul.f32 %v5795, %v5802
  %v5819 = vmul.f32 %v5794, %v5803
  %v5820 = vmul.f32 %v5793, %v5804
  %v5821 = vmul.f32 %v5792, %v5805
  %v5822 = vmul.f32 %v5791, %v5806
  %v5823 = vmul.f32 %v5790, %v5807
  %v5824 = vmul.f32 %v5789, %v5808
  %v5825 = vmul.f32 %v5788, %v5809
  %v5826 = vmul.f32 %v5787, %v5810
  %v5827 = vmul.f32 %v5786, %v5811
  %v5828 = vmul.f32 %v5785, %v5812
  %v5829 = vmul.f32 %v5784, %v5813
  %v5830 = vmul.f32 %v5783, %v5814
  %5831 = vst [vmem:[#allocation2 + $0x80] sm:$0xff] %v5815
  %5832 = vst [vmem:[#allocation2 + $0x88] sm:$0xff] %v5816
  %5833 = vst [vmem:[#allocation2 + $0x90] sm:$0xff] %v5817
  %5834 = vst [vmem:[#allocation2 + $0x98] sm:$0xff] %v5818
  %5835 = vst [vmem:[#allocation2 + $0xa0] sm:$0xff] %v5819
  %5836 = vst [vmem:[#allocation2 + $0xa8] sm:$0xff] %v5820
  %5837 = vst [vmem:[#allocation2 + $0xb0] sm:$0xff] %v5821
  %5838 = vst [vmem:[#allocation2 + $0xb8] sm:$0xff] %v5822
  %5839 = vst [vmem:[#allocation2 + $0xc0] sm:$0xff] %v5823
  %5840 = vst [vmem:[#allocation2 + $0xc8] sm:$0xff] %v5824
  %5841 = vst [vmem:[#allocation2 + $0xd0] sm:$0xff] %v5825
  %5842 = vst [vmem:[#allocation2 + $0xd8] sm:$0xff] %v5826
  %5843 = vst [vmem:[#allocation2 + $0xe0] sm:$0xff] %v5827
  %5844 = vst [vmem:[#allocation2 + $0xe8] sm:$0xff] %v5828
  %5845 = vst [vmem:[#allocation2 + $0xf0] sm:$0xff] %v5829
  %5846 = vst [vmem:[#allocation2 + $0xf8] sm:$0xff] %v5830
  %5847 = vrot.lane.b32.xlu0 %v5639, 31
  %v5848 = vpop.permute.xlu0 %5847
  %5849 = vrot.lane.b32.xlu0 %v5640, 31
  %v5850 = vpop.permute.xlu0 %5849
  %5851 = vrot.lane.b32.xlu0 %v5641, 31
  %v5852 = vpop.permute.xlu0 %5851
  %5853 = vrot.lane.b32.xlu0 %v5642, 31
  %v5854 = vpop.permute.xlu0 %5853
  %5855 = vrot.lane.b32.xlu0 %v5643, 31
  %v5856 = vpop.permute.xlu0 %5855
  %5857 = vrot.lane.b32.xlu0 %v5644, 31
  %v5858 = vpop.permute.xlu0 %5857
  %5859 = vrot.lane.b32.xlu0 %v5645, 31
  %v5860 = vpop.permute.xlu0 %5859
  %5861 = vrot.lane.b32.xlu0 %v5646, 31
  %v5862 = vpop.permute.xlu0 %5861
  %5863 = vrot.lane.b32.xlu0 %v5647, 31
  %v5864 = vpop.permute.xlu0 %5863
  %5865 = vrot.lane.b32.xlu0 %v5648, 31
  %v5866 = vpop.permute.xlu0 %5865
  %5867 = vrot.lane.b32.xlu0 %v5649, 31
  %v5868 = vpop.permute.xlu0 %5867
  %5869 = vrot.lane.b32.xlu0 %v5650, 31
  %v5870 = vpop.permute.xlu0 %5869
  %5871 = vrot.lane.b32.xlu0 %v5651, 31
  %v5872 = vpop.permute.xlu0 %5871
  %5873 = vrot.lane.b32.xlu0 %v5652, 31
  %v5874 = vpop.permute.xlu0 %5873
  %5875 = vrot.lane.b32.xlu0 %v5653, 31
  %v5876 = vpop.permute.xlu0 %5875
  %5877 = vrot.lane.b32.xlu0 %v5654, 31
  %v5878 = vpop.permute.xlu0 %5877
  %v5879 = vsel %vm336, %v5876, %v5878
  %v5880 = vsel %vm336, %v5874, %v5876
  %v5881 = vsel %vm336, %v5872, %v5874
  %v5882 = vsel %vm336, %v5870, %v5872
  %v5883 = vsel %vm336, %v5868, %v5870
  %v5884 = vsel %vm336, %v5866, %v5868
  %v5885 = vsel %vm336, %v5864, %v5866
  %v5886 = vsel %vm336, %v5862, %v5864
  %v5887 = vsel %vm336, %v5860, %v5862
  %v5888 = vsel %vm336, %v5858, %v5860
  %v5889 = vsel %vm336, %v5856, %v5858
  %v5890 = vsel %vm336, %v5854, %v5856
  %v5891 = vsel %vm336, %v5852, %v5854
  %v5892 = vsel %vm336, %v5850, %v5852
  %v5893 = vsel %vm336, %v5848, %v5850
  %v5894 = vsel %vm336, %v5878, %v5848
  %v5895 = vld [vmem:[%s353] sm:$0xff]
  %v5896 = vld [vmem:[%s353 + $0x8] sm:$0xff]
  %v5897 = vld [vmem:[%s353 + $0x10] sm:$0xff]
  %v5898 = vld [vmem:[%s353 + $0x18] sm:$0xff]
  %v5899 = vld [vmem:[%s353 + $0x20] sm:$0xff]
  %v5900 = vld [vmem:[%s353 + $0x28] sm:$0xff]
  %v5901 = vld [vmem:[%s353 + $0x30] sm:$0xff]
  %v5902 = vld [vmem:[%s353 + $0x38] sm:$0xff]
  %v5903 = vld [vmem:[%s353 + $0x40] sm:$0xff]
  %v5904 = vld [vmem:[%s353 + $0x48] sm:$0xff]
  %v5905 = vld [vmem:[%s353 + $0x50] sm:$0xff]
  %v5906 = vld [vmem:[%s353 + $0x58] sm:$0xff]
  %v5907 = vld [vmem:[%s353 + $0x60] sm:$0xff]
  %v5908 = vld [vmem:[%s353 + $0x68] sm:$0xff]
  %v5909 = vld [vmem:[%s353 + $0x70] sm:$0xff]
  %v5910 = vld [vmem:[%s353 + $0x78] sm:$0xff]
  %v5911 = vmul.f32 %v5894, %v5895
  %v5912 = vmul.f32 %v5893, %v5896
  %v5913 = vmul.f32 %v5892, %v5897
  %v5914 = vmul.f32 %v5891, %v5898
  %v5915 = vmul.f32 %v5890, %v5899
  %v5916 = vmul.f32 %v5889, %v5900
  %v5917 = vmul.f32 %v5888, %v5901
  %v5918 = vmul.f32 %v5887, %v5902
  %v5919 = vmul.f32 %v5886, %v5903
  %v5920 = vmul.f32 %v5885, %v5904
  %v5921 = vmul.f32 %v5884, %v5905
  %v5922 = vmul.f32 %v5883, %v5906
  %v5923 = vmul.f32 %v5882, %v5907
  %v5924 = vmul.f32 %v5881, %v5908
  %v5925 = vmul.f32 %v5880, %v5909
  %v5926 = vmul.f32 %v5879, %v5910
  %5927 = vst [vmem:[#allocation2 + $0x100] sm:$0xff] %v5911
  %5928 = vst [vmem:[#allocation2 + $0x108] sm:$0xff] %v5912
  %5929 = vst [vmem:[#allocation2 + $0x110] sm:$0xff] %v5913
  %5930 = vst [vmem:[#allocation2 + $0x118] sm:$0xff] %v5914
  %5931 = vst [vmem:[#allocation2 + $0x120] sm:$0xff] %v5915
  %5932 = vst [vmem:[#allocation2 + $0x128] sm:$0xff] %v5916
  %5933 = vst [vmem:[#allocation2 + $0x130] sm:$0xff] %v5917
  %5934 = vst [vmem:[#allocation2 + $0x138] sm:$0xff] %v5918
  %5935 = vst [vmem:[#allocation2 + $0x140] sm:$0xff] %v5919
  %5936 = vst [vmem:[#allocation2 + $0x148] sm:$0xff] %v5920
  %5937 = vst [vmem:[#allocation2 + $0x150] sm:$0xff] %v5921
  %5938 = vst [vmem:[#allocation2 + $0x158] sm:$0xff] %v5922
  %5939 = vst [vmem:[#allocation2 + $0x160] sm:$0xff] %v5923
  %5940 = vst [vmem:[#allocation2 + $0x168] sm:$0xff] %v5924
  %5941 = vst [vmem:[#allocation2 + $0x170] sm:$0xff] %v5925
  %5942 = vst [vmem:[#allocation2 + $0x178] sm:$0xff] %v5926
  %5943 = vrot.lane.b32.xlu0 %v5639, 1
  %v5944 = vpop.permute.xlu0 %5943
  %5945 = vrot.lane.b32.xlu0 %v5640, 1
  %v5946 = vpop.permute.xlu0 %5945
  %5947 = vrot.lane.b32.xlu0 %v5641, 1
  %v5948 = vpop.permute.xlu0 %5947
  %5949 = vrot.lane.b32.xlu0 %v5642, 1
  %v5950 = vpop.permute.xlu0 %5949
  %5951 = vrot.lane.b32.xlu0 %v5643, 1
  %v5952 = vpop.permute.xlu0 %5951
  %5953 = vrot.lane.b32.xlu0 %v5644, 1
  %v5954 = vpop.permute.xlu0 %5953
  %5955 = vrot.lane.b32.xlu0 %v5645, 1
  %v5956 = vpop.permute.xlu0 %5955
  %5957 = vrot.lane.b32.xlu0 %v5646, 1
  %v5958 = vpop.permute.xlu0 %5957
  %5959 = vrot.lane.b32.xlu0 %v5647, 1
  %v5960 = vpop.permute.xlu0 %5959
  %5961 = vrot.lane.b32.xlu0 %v5648, 1
  %v5962 = vpop.permute.xlu0 %5961
  %5963 = vrot.lane.b32.xlu0 %v5649, 1
  %v5964 = vpop.permute.xlu0 %5963
  %5965 = vrot.lane.b32.xlu0 %v5650, 1
  %v5966 = vpop.permute.xlu0 %5965
  %5967 = vrot.lane.b32.xlu0 %v5651, 1
  %v5968 = vpop.permute.xlu0 %5967
  %5969 = vrot.lane.b32.xlu0 %v5652, 1
  %v5970 = vpop.permute.xlu0 %5969
  %5971 = vrot.lane.b32.xlu0 %v5653, 1
  %v5972 = vpop.permute.xlu0 %5971
  %5973 = vrot.lane.b32.xlu0 %v5654, 1
  %v5974 = vpop.permute.xlu0 %5973
  %v5975 = vsel %vm434, %v5972, %v5974
  %v5976 = vsel %vm434, %v5970, %v5972
  %v5977 = vsel %vm434, %v5968, %v5970
  %v5978 = vsel %vm434, %v5966, %v5968
  %v5979 = vsel %vm434, %v5964, %v5966
  %v5980 = vsel %vm434, %v5962, %v5964
  %v5981 = vsel %vm434, %v5960, %v5962
  %v5982 = vsel %vm434, %v5958, %v5960
  %v5983 = vsel %vm434, %v5956, %v5958
  %v5984 = vsel %vm434, %v5954, %v5956
  %v5985 = vsel %vm434, %v5952, %v5954
  %v5986 = vsel %vm434, %v5950, %v5952
  %v5987 = vsel %vm434, %v5948, %v5950
  %v5988 = vsel %vm434, %v5946, %v5948
  %v5989 = vsel %vm434, %v5944, %v5946
  %v5990 = vsel %vm434, %v5974, %v5944
  %v5991 = vld [vmem:[%s451] sm:$0xff]
  %v5992 = vld [vmem:[%s451 + $0x8] sm:$0xff]
  %v5993 = vld [vmem:[%s451 + $0x10] sm:$0xff]
  %v5994 = vld [vmem:[%s451 + $0x18] sm:$0xff]
  %v5995 = vld [vmem:[%s451 + $0x20] sm:$0xff]
  %v5996 = vld [vmem:[%s451 + $0x28] sm:$0xff]
  %v5997 = vld [vmem:[%s451 + $0x30] sm:$0xff]
  %v5998 = vld [vmem:[%s451 + $0x38] sm:$0xff]
  %v5999 = vld [vmem:[%s451 + $0x40] sm:$0xff]
  %v6000 = vld [vmem:[%s451 + $0x48] sm:$0xff]
  %v6001 = vld [vmem:[%s451 + $0x50] sm:$0xff]
  %v6002 = vld [vmem:[%s451 + $0x58] sm:$0xff]
  %v6003 = vld [vmem:[%s451 + $0x60] sm:$0xff]
  %v6004 = vld [vmem:[%s451 + $0x68] sm:$0xff]
  %v6005 = vld [vmem:[%s451 + $0x70] sm:$0xff]
  %v6006 = vld [vmem:[%s451 + $0x78] sm:$0xff]
  %v6007 = vmul.f32 %v5990, %v5991
  %v6008 = vmul.f32 %v5989, %v5992
  %v6009 = vmul.f32 %v5988, %v5993
  %v6010 = vmul.f32 %v5987, %v5994
  %v6011 = vmul.f32 %v5986, %v5995
  %v6012 = vmul.f32 %v5985, %v5996
  %v6013 = vmul.f32 %v5984, %v5997
  %v6014 = vmul.f32 %v5983, %v5998
  %v6015 = vmul.f32 %v5982, %v5999
  %v6016 = vmul.f32 %v5981, %v6000
  %v6017 = vmul.f32 %v5980, %v6001
  %v6018 = vmul.f32 %v5979, %v6002
  %v6019 = vmul.f32 %v5978, %v6003
  %v6020 = vmul.f32 %v5977, %v6004
  %v6021 = vmul.f32 %v5976, %v6005
  %v6022 = vmul.f32 %v5975, %v6006
  %6023 = vst [vmem:[#allocation2 + $0x180] sm:$0xff] %v6007
  %6024 = vst [vmem:[#allocation2 + $0x188] sm:$0xff] %v6008
  %6025 = vst [vmem:[#allocation2 + $0x190] sm:$0xff] %v6009
  %6026 = vst [vmem:[#allocation2 + $0x198] sm:$0xff] %v6010
  %6027 = vst [vmem:[#allocation2 + $0x1a0] sm:$0xff] %v6011
  %6028 = vst [vmem:[#allocation2 + $0x1a8] sm:$0xff] %v6012
  %6029 = vst [vmem:[#allocation2 + $0x1b0] sm:$0xff] %v6013
  %6030 = vst [vmem:[#allocation2 + $0x1b8] sm:$0xff] %v6014
  %6031 = vst [vmem:[#allocation2 + $0x1c0] sm:$0xff] %v6015
  %6032 = vst [vmem:[#allocation2 + $0x1c8] sm:$0xff] %v6016
  %6033 = vst [vmem:[#allocation2 + $0x1d0] sm:$0xff] %v6017
  %6034 = vst [vmem:[#allocation2 + $0x1d8] sm:$0xff] %v6018
  %6035 = vst [vmem:[#allocation2 + $0x1e0] sm:$0xff] %v6019
  %6036 = vst [vmem:[#allocation2 + $0x1e8] sm:$0xff] %v6020
  %6037 = vst [vmem:[#allocation2 + $0x1f0] sm:$0xff] %v6021
  %6038 = vst [vmem:[#allocation2 + $0x1f8] sm:$0xff] %v6022
  %6039 = vst [vmem:[#allocation2 + $0x200] sm:$0xff] %v5639
  %6040 = vst [vmem:[#allocation2 + $0x208] sm:$0xff] %v5640
  %6041 = vst [vmem:[#allocation2 + $0x210] sm:$0xff] %v5641
  %6042 = vst [vmem:[#allocation2 + $0x218] sm:$0xff] %v5642
  %6043 = vst [vmem:[#allocation2 + $0x220] sm:$0xff] %v5643
  %6044 = vst [vmem:[#allocation2 + $0x228] sm:$0xff] %v5644
  %6045 = vst [vmem:[#allocation2 + $0x230] sm:$0xff] %v5645
  %6046 = vst [vmem:[#allocation2 + $0x238] sm:$0xff] %v5646
  %6047 = vst [vmem:[#allocation2 + $0x240] sm:$0xff] %v5647
  %6048 = vst [vmem:[#allocation2 + $0x248] sm:$0xff] %v5648
  %6049 = vst [vmem:[#allocation2 + $0x250] sm:$0xff] %v5649
  %6050 = vst [vmem:[#allocation2 + $0x258] sm:$0xff] %v5650
  %6051 = vst [vmem:[#allocation2 + $0x260] sm:$0xff] %v5651
  %6052 = vst [vmem:[#allocation2 + $0x268] sm:$0xff] %v5652
  %6053 = vst [vmem:[#allocation2 + $0x270] sm:$0xff] %v5653
  %6054 = vst [vmem:[#allocation2 + $0x278] sm:$0xff] %v5654
  %6055 = vrot.lane.b32.xlu0 %v5639, 127
  %v6056 = vpop.permute.xlu0 %6055
  %6057 = vrot.lane.b32.xlu0 %v5640, 127
  %v6058 = vpop.permute.xlu0 %6057
  %6059 = vrot.lane.b32.xlu0 %v5641, 127
  %v6060 = vpop.permute.xlu0 %6059
  %6061 = vrot.lane.b32.xlu0 %v5642, 127
  %v6062 = vpop.permute.xlu0 %6061
  %6063 = vrot.lane.b32.xlu0 %v5643, 127
  %v6064 = vpop.permute.xlu0 %6063
  %6065 = vrot.lane.b32.xlu0 %v5644, 127
  %v6066 = vpop.permute.xlu0 %6065
  %6067 = vrot.lane.b32.xlu0 %v5645, 127
  %v6068 = vpop.permute.xlu0 %6067
  %6069 = vrot.lane.b32.xlu0 %v5646, 127
  %v6070 = vpop.permute.xlu0 %6069
  %6071 = vrot.lane.b32.xlu0 %v5647, 127
  %v6072 = vpop.permute.xlu0 %6071
  %6073 = vrot.lane.b32.xlu0 %v5648, 127
  %v6074 = vpop.permute.xlu0 %6073
  %6075 = vrot.lane.b32.xlu0 %v5649, 127
  %v6076 = vpop.permute.xlu0 %6075
  %6077 = vrot.lane.b32.xlu0 %v5650, 127
  %v6078 = vpop.permute.xlu0 %6077
  %6079 = vrot.lane.b32.xlu0 %v5651, 127
  %v6080 = vpop.permute.xlu0 %6079
  %6081 = vrot.lane.b32.xlu0 %v5652, 127
  %v6082 = vpop.permute.xlu0 %6081
  %6083 = vrot.lane.b32.xlu0 %v5653, 127
  %v6084 = vpop.permute.xlu0 %6083
  %6085 = vrot.lane.b32.xlu0 %v5654, 127
  %v6086 = vpop.permute.xlu0 %6085
  %v6087 = vsel %vm548, %v6084, %v6086
  %v6088 = vsel %vm548, %v6082, %v6084
  %v6089 = vsel %vm548, %v6080, %v6082
  %v6090 = vsel %vm548, %v6078, %v6080
  %v6091 = vsel %vm548, %v6076, %v6078
  %v6092 = vsel %vm548, %v6074, %v6076
  %v6093 = vsel %vm548, %v6072, %v6074
  %v6094 = vsel %vm548, %v6070, %v6072
  %v6095 = vsel %vm548, %v6068, %v6070
  %v6096 = vsel %vm548, %v6066, %v6068
  %v6097 = vsel %vm548, %v6064, %v6066
  %v6098 = vsel %vm548, %v6062, %v6064
  %v6099 = vsel %vm548, %v6060, %v6062
  %v6100 = vsel %vm548, %v6058, %v6060
  %v6101 = vsel %vm548, %v6056, %v6058
  %v6102 = vsel %vm548, %v6086, %v6056
  %v6103 = vld [vmem:[%s565] sm:$0xff]
  %v6104 = vld [vmem:[%s565 + $0x8] sm:$0xff]
  %v6105 = vld [vmem:[%s565 + $0x10] sm:$0xff]
  %v6106 = vld [vmem:[%s565 + $0x18] sm:$0xff]
  %v6107 = vld [vmem:[%s565 + $0x20] sm:$0xff]
  %v6108 = vld [vmem:[%s565 + $0x28] sm:$0xff]
  %v6109 = vld [vmem:[%s565 + $0x30] sm:$0xff]
  %v6110 = vld [vmem:[%s565 + $0x38] sm:$0xff]
  %v6111 = vld [vmem:[%s565 + $0x40] sm:$0xff]
  %v6112 = vld [vmem:[%s565 + $0x48] sm:$0xff]
  %v6113 = vld [vmem:[%s565 + $0x50] sm:$0xff]
  %v6114 = vld [vmem:[%s565 + $0x58] sm:$0xff]
  %v6115 = vld [vmem:[%s565 + $0x60] sm:$0xff]
  %v6116 = vld [vmem:[%s565 + $0x68] sm:$0xff]
  %v6117 = vld [vmem:[%s565 + $0x70] sm:$0xff]
  %v6118 = vld [vmem:[%s565 + $0x78] sm:$0xff]
  %v6119 = vmul.f32 %v6101, %v6103
  %v6120 = vmul.f32 %v6100, %v6104
  %v6121 = vmul.f32 %v6099, %v6105
  %v6122 = vmul.f32 %v6098, %v6106
  %v6123 = vmul.f32 %v6097, %v6107
  %v6124 = vmul.f32 %v6096, %v6108
  %v6125 = vmul.f32 %v6095, %v6109
  %v6126 = vmul.f32 %v6094, %v6110
  %v6127 = vmul.f32 %v6093, %v6111
  %v6128 = vmul.f32 %v6092, %v6112
  %v6129 = vmul.f32 %v6091, %v6113
  %v6130 = vmul.f32 %v6090, %v6114
  %v6131 = vmul.f32 %v6089, %v6115
  %v6132 = vmul.f32 %v6088, %v6116
  %v6133 = vmul.f32 %v6087, %v6117
  %v6134 = vmul.f32 %v6102, %v6118
  %6135 = vst [vmem:[#allocation2 + $0x280] sm:$0xff] %v6119
  %6136 = vst [vmem:[#allocation2 + $0x288] sm:$0xff] %v6120
  %6137 = vst [vmem:[#allocation2 + $0x290] sm:$0xff] %v6121
  %6138 = vst [vmem:[#allocation2 + $0x298] sm:$0xff] %v6122
  %6139 = vst [vmem:[#allocation2 + $0x2a0] sm:$0xff] %v6123
  %6140 = vst [vmem:[#allocation2 + $0x2a8] sm:$0xff] %v6124
  %6141 = vst [vmem:[#allocation2 + $0x2b0] sm:$0xff] %v6125
  %6142 = vst [vmem:[#allocation2 + $0x2b8] sm:$0xff] %v6126
  %6143 = vst [vmem:[#allocation2 + $0x2c0] sm:$0xff] %v6127
  %6144 = vst [vmem:[#allocation2 + $0x2c8] sm:$0xff] %v6128
  %6145 = vst [vmem:[#allocation2 + $0x2d0] sm:$0xff] %v6129
  %6146 = vst [vmem:[#allocation2 + $0x2d8] sm:$0xff] %v6130
  %6147 = vst [vmem:[#allocation2 + $0x2e0] sm:$0xff] %v6131
  %6148 = vst [vmem:[#allocation2 + $0x2e8] sm:$0xff] %v6132
  %6149 = vst [vmem:[#allocation2 + $0x2f0] sm:$0xff] %v6133
  %6150 = vst [vmem:[#allocation2 + $0x2f8] sm:$0xff] %v6134
  %6151 = vrot.lane.b32.xlu0 %v5639, 97
  %v6152 = vpop.permute.xlu0 %6151
  %6153 = vrot.lane.b32.xlu0 %v5640, 97
  %v6154 = vpop.permute.xlu0 %6153
  %6155 = vrot.lane.b32.xlu0 %v5641, 97
  %v6156 = vpop.permute.xlu0 %6155
  %6157 = vrot.lane.b32.xlu0 %v5642, 97
  %v6158 = vpop.permute.xlu0 %6157
  %6159 = vrot.lane.b32.xlu0 %v5643, 97
  %v6160 = vpop.permute.xlu0 %6159
  %6161 = vrot.lane.b32.xlu0 %v5644, 97
  %v6162 = vpop.permute.xlu0 %6161
  %6163 = vrot.lane.b32.xlu0 %v5645, 97
  %v6164 = vpop.permute.xlu0 %6163
  %6165 = vrot.lane.b32.xlu0 %v5646, 97
  %v6166 = vpop.permute.xlu0 %6165
  %6167 = vrot.lane.b32.xlu0 %v5647, 97
  %v6168 = vpop.permute.xlu0 %6167
  %6169 = vrot.lane.b32.xlu0 %v5648, 97
  %v6170 = vpop.permute.xlu0 %6169
  %6171 = vrot.lane.b32.xlu0 %v5649, 97
  %v6172 = vpop.permute.xlu0 %6171
  %6173 = vrot.lane.b32.xlu0 %v5650, 97
  %v6174 = vpop.permute.xlu0 %6173
  %6175 = vrot.lane.b32.xlu0 %v5651, 97
  %v6176 = vpop.permute.xlu0 %6175
  %6177 = vrot.lane.b32.xlu0 %v5652, 97
  %v6178 = vpop.permute.xlu0 %6177
  %6179 = vrot.lane.b32.xlu0 %v5653, 97
  %v6180 = vpop.permute.xlu0 %6179
  %6181 = vrot.lane.b32.xlu0 %v5654, 97
  %v6182 = vpop.permute.xlu0 %6181
  %v6183 = vsel %vm646, %v6180, %v6182
  %v6184 = vsel %vm646, %v6178, %v6180
  %v6185 = vsel %vm646, %v6176, %v6178
  %v6186 = vsel %vm646, %v6174, %v6176
  %v6187 = vsel %vm646, %v6172, %v6174
  %v6188 = vsel %vm646, %v6170, %v6172
  %v6189 = vsel %vm646, %v6168, %v6170
  %v6190 = vsel %vm646, %v6166, %v6168
  %v6191 = vsel %vm646, %v6164, %v6166
  %v6192 = vsel %vm646, %v6162, %v6164
  %v6193 = vsel %vm646, %v6160, %v6162
  %v6194 = vsel %vm646, %v6158, %v6160
  %v6195 = vsel %vm646, %v6156, %v6158
  %v6196 = vsel %vm646, %v6154, %v6156
  %v6197 = vsel %vm646, %v6152, %v6154
  %v6198 = vsel %vm646, %v6182, %v6152
  %v6199 = vld [vmem:[%s663] sm:$0xff]
  %v6200 = vld [vmem:[%s663 + $0x8] sm:$0xff]
  %v6201 = vld [vmem:[%s663 + $0x10] sm:$0xff]
  %v6202 = vld [vmem:[%s663 + $0x18] sm:$0xff]
  %v6203 = vld [vmem:[%s663 + $0x20] sm:$0xff]
  %v6204 = vld [vmem:[%s663 + $0x28] sm:$0xff]
  %v6205 = vld [vmem:[%s663 + $0x30] sm:$0xff]
  %v6206 = vld [vmem:[%s663 + $0x38] sm:$0xff]
  %v6207 = vld [vmem:[%s663 + $0x40] sm:$0xff]
  %v6208 = vld [vmem:[%s663 + $0x48] sm:$0xff]
  %v6209 = vld [vmem:[%s663 + $0x50] sm:$0xff]
  %v6210 = vld [vmem:[%s663 + $0x58] sm:$0xff]
  %v6211 = vld [vmem:[%s663 + $0x60] sm:$0xff]
  %v6212 = vld [vmem:[%s663 + $0x68] sm:$0xff]
  %v6213 = vld [vmem:[%s663 + $0x70] sm:$0xff]
  %v6214 = vld [vmem:[%s663 + $0x78] sm:$0xff]
  %v6215 = vmul.f32 %v6197, %v6199
  %v6216 = vmul.f32 %v6196, %v6200
  %v6217 = vmul.f32 %v6195, %v6201
  %v6218 = vmul.f32 %v6194, %v6202
  %v6219 = vmul.f32 %v6193, %v6203
  %v6220 = vmul.f32 %v6192, %v6204
  %v6221 = vmul.f32 %v6191, %v6205
  %v6222 = vmul.f32 %v6190, %v6206
  %v6223 = vmul.f32 %v6189, %v6207
  %v6224 = vmul.f32 %v6188, %v6208
  %v6225 = vmul.f32 %v6187, %v6209
  %v6226 = vmul.f32 %v6186, %v6210
  %v6227 = vmul.f32 %v6185, %v6211
  %v6228 = vmul.f32 %v6184, %v6212
  %v6229 = vmul.f32 %v6183, %v6213
  %v6230 = vmul.f32 %v6198, %v6214
  %6231 = vst [vmem:[#allocation2 + $0x300] sm:$0xff] %v6215
  %6232 = vst [vmem:[#allocation2 + $0x308] sm:$0xff] %v6216
  %6233 = vst [vmem:[#allocation2 + $0x310] sm:$0xff] %v6217
  %6234 = vst [vmem:[#allocation2 + $0x318] sm:$0xff] %v6218
  %6235 = vst [vmem:[#allocation2 + $0x320] sm:$0xff] %v6219
  %6236 = vst [vmem:[#allocation2 + $0x328] sm:$0xff] %v6220
  %6237 = vst [vmem:[#allocation2 + $0x330] sm:$0xff] %v6221
  %6238 = vst [vmem:[#allocation2 + $0x338] sm:$0xff] %v6222
  %6239 = vst [vmem:[#allocation2 + $0x340] sm:$0xff] %v6223
  %6240 = vst [vmem:[#allocation2 + $0x348] sm:$0xff] %v6224
  %6241 = vst [vmem:[#allocation2 + $0x350] sm:$0xff] %v6225
  %6242 = vst [vmem:[#allocation2 + $0x358] sm:$0xff] %v6226
  %6243 = vst [vmem:[#allocation2 + $0x360] sm:$0xff] %v6227
  %6244 = vst [vmem:[#allocation2 + $0x368] sm:$0xff] %v6228
  %6245 = vst [vmem:[#allocation2 + $0x370] sm:$0xff] %v6229
  %6246 = vst [vmem:[#allocation2 + $0x378] sm:$0xff] %v6230
  %6247 = vrot.lane.b32.xlu0 %v5639, 96
  %v6248 = vpop.permute.xlu0 %6247
  %6249 = vrot.lane.b32.xlu0 %v5640, 96
  %v6250 = vpop.permute.xlu0 %6249
  %6251 = vrot.lane.b32.xlu0 %v5641, 96
  %v6252 = vpop.permute.xlu0 %6251
  %6253 = vrot.lane.b32.xlu0 %v5642, 96
  %v6254 = vpop.permute.xlu0 %6253
  %6255 = vrot.lane.b32.xlu0 %v5643, 96
  %v6256 = vpop.permute.xlu0 %6255
  %6257 = vrot.lane.b32.xlu0 %v5644, 96
  %v6258 = vpop.permute.xlu0 %6257
  %6259 = vrot.lane.b32.xlu0 %v5645, 96
  %v6260 = vpop.permute.xlu0 %6259
  %6261 = vrot.lane.b32.xlu0 %v5646, 96
  %v6262 = vpop.permute.xlu0 %6261
  %6263 = vrot.lane.b32.xlu0 %v5647, 96
  %v6264 = vpop.permute.xlu0 %6263
  %6265 = vrot.lane.b32.xlu0 %v5648, 96
  %v6266 = vpop.permute.xlu0 %6265
  %6267 = vrot.lane.b32.xlu0 %v5649, 96
  %v6268 = vpop.permute.xlu0 %6267
  %6269 = vrot.lane.b32.xlu0 %v5650, 96
  %v6270 = vpop.permute.xlu0 %6269
  %6271 = vrot.lane.b32.xlu0 %v5651, 96
  %v6272 = vpop.permute.xlu0 %6271
  %6273 = vrot.lane.b32.xlu0 %v5652, 96
  %v6274 = vpop.permute.xlu0 %6273
  %6275 = vrot.lane.b32.xlu0 %v5653, 96
  %v6276 = vpop.permute.xlu0 %6275
  %6277 = vrot.lane.b32.xlu0 %v5654, 96
  %v6278 = vpop.permute.xlu0 %6277
  %v6279 = vsel %vm744, %v6276, %v6278
  %v6280 = vsel %vm744, %v6274, %v6276
  %v6281 = vsel %vm744, %v6272, %v6274
  %v6282 = vsel %vm744, %v6270, %v6272
  %v6283 = vsel %vm744, %v6268, %v6270
  %v6284 = vsel %vm744, %v6266, %v6268
  %v6285 = vsel %vm744, %v6264, %v6266
  %v6286 = vsel %vm744, %v6262, %v6264
  %v6287 = vsel %vm744, %v6260, %v6262
  %v6288 = vsel %vm744, %v6258, %v6260
  %v6289 = vsel %vm744, %v6256, %v6258
  %v6290 = vsel %vm744, %v6254, %v6256
  %v6291 = vsel %vm744, %v6252, %v6254
  %v6292 = vsel %vm744, %v6250, %v6252
  %v6293 = vsel %vm744, %v6248, %v6250
  %v6294 = vsel %vm744, %v6278, %v6248
  %v6295 = vld [vmem:[%s761] sm:$0xff]
  %v6296 = vld [vmem:[%s761 + $0x8] sm:$0xff]
  %v6297 = vld [vmem:[%s761 + $0x10] sm:$0xff]
  %v6298 = vld [vmem:[%s761 + $0x18] sm:$0xff]
  %v6299 = vld [vmem:[%s761 + $0x20] sm:$0xff]
  %v6300 = vld [vmem:[%s761 + $0x28] sm:$0xff]
  %v6301 = vld [vmem:[%s761 + $0x30] sm:$0xff]
  %v6302 = vld [vmem:[%s761 + $0x38] sm:$0xff]
  %v6303 = vld [vmem:[%s761 + $0x40] sm:$0xff]
  %v6304 = vld [vmem:[%s761 + $0x48] sm:$0xff]
  %v6305 = vld [vmem:[%s761 + $0x50] sm:$0xff]
  %v6306 = vld [vmem:[%s761 + $0x58] sm:$0xff]
  %v6307 = vld [vmem:[%s761 + $0x60] sm:$0xff]
  %v6308 = vld [vmem:[%s761 + $0x68] sm:$0xff]
  %v6309 = vld [vmem:[%s761 + $0x70] sm:$0xff]
  %v6310 = vld [vmem:[%s761 + $0x78] sm:$0xff]
  %v6311 = vmul.f32 %v6293, %v6295
  %v6312 = vmul.f32 %v6292, %v6296
  %v6313 = vmul.f32 %v6291, %v6297
  %v6314 = vmul.f32 %v6290, %v6298
  %v6315 = vmul.f32 %v6289, %v6299
  %v6316 = vmul.f32 %v6288, %v6300
  %v6317 = vmul.f32 %v6287, %v6301
  %v6318 = vmul.f32 %v6286, %v6302
  %v6319 = vmul.f32 %v6285, %v6303
  %v6320 = vmul.f32 %v6284, %v6304
  %v6321 = vmul.f32 %v6283, %v6305
  %v6322 = vmul.f32 %v6282, %v6306
  %v6323 = vmul.f32 %v6281, %v6307
  %v6324 = vmul.f32 %v6280, %v6308
  %v6325 = vmul.f32 %v6279, %v6309
  %v6326 = vmul.f32 %v6294, %v6310
  %6327 = vst [vmem:[#allocation2 + $0x380] sm:$0xff] %v6311
  %6328 = vst [vmem:[#allocation2 + $0x388] sm:$0xff] %v6312
  %6329 = vst [vmem:[#allocation2 + $0x390] sm:$0xff] %v6313
  %6330 = vst [vmem:[#allocation2 + $0x398] sm:$0xff] %v6314
  %6331 = vst [vmem:[#allocation2 + $0x3a0] sm:$0xff] %v6315
  %6332 = vst [vmem:[#allocation2 + $0x3a8] sm:$0xff] %v6316
  %6333 = vst [vmem:[#allocation2 + $0x3b0] sm:$0xff] %v6317
  %6334 = vst [vmem:[#allocation2 + $0x3b8] sm:$0xff] %v6318
  %6335 = vst [vmem:[#allocation2 + $0x3c0] sm:$0xff] %v6319
  %6336 = vst [vmem:[#allocation2 + $0x3c8] sm:$0xff] %v6320
  %6337 = vst [vmem:[#allocation2 + $0x3d0] sm:$0xff] %v6321
  %6338 = vst [vmem:[#allocation2 + $0x3d8] sm:$0xff] %v6322
  %6339 = vst [vmem:[#allocation2 + $0x3e0] sm:$0xff] %v6323
  %6340 = vst [vmem:[#allocation2 + $0x3e8] sm:$0xff] %v6324
  %6341 = vst [vmem:[#allocation2 + $0x3f0] sm:$0xff] %v6325
  %6342 = vst [vmem:[#allocation2 + $0x3f8] sm:$0xff] %v6326
  %6343 = vrot.lane.b32.xlu0 %v5639, 95
  %v6344 = vpop.permute.xlu0 %6343
  %6345 = vrot.lane.b32.xlu0 %v5640, 95
  %v6346 = vpop.permute.xlu0 %6345
  %6347 = vrot.lane.b32.xlu0 %v5641, 95
  %v6348 = vpop.permute.xlu0 %6347
  %6349 = vrot.lane.b32.xlu0 %v5642, 95
  %v6350 = vpop.permute.xlu0 %6349
  %6351 = vrot.lane.b32.xlu0 %v5643, 95
  %v6352 = vpop.permute.xlu0 %6351
  %6353 = vrot.lane.b32.xlu0 %v5644, 95
  %v6354 = vpop.permute.xlu0 %6353
  %6355 = vrot.lane.b32.xlu0 %v5645, 95
  %v6356 = vpop.permute.xlu0 %6355
  %6357 = vrot.lane.b32.xlu0 %v5646, 95
  %v6358 = vpop.permute.xlu0 %6357
  %6359 = vrot.lane.b32.xlu0 %v5647, 95
  %v6360 = vpop.permute.xlu0 %6359
  %6361 = vrot.lane.b32.xlu0 %v5648, 95
  %v6362 = vpop.permute.xlu0 %6361
  %6363 = vrot.lane.b32.xlu0 %v5649, 95
  %v6364 = vpop.permute.xlu0 %6363
  %6365 = vrot.lane.b32.xlu0 %v5650, 95
  %v6366 = vpop.permute.xlu0 %6365
  %6367 = vrot.lane.b32.xlu0 %v5651, 95
  %v6368 = vpop.permute.xlu0 %6367
  %6369 = vrot.lane.b32.xlu0 %v5652, 95
  %v6370 = vpop.permute.xlu0 %6369
  %6371 = vrot.lane.b32.xlu0 %v5653, 95
  %v6372 = vpop.permute.xlu0 %6371
  %6373 = vrot.lane.b32.xlu0 %v5654, 95
  %v6374 = vpop.permute.xlu0 %6373
  %v6375 = vsel %vm842, %v6372, %v6374
  %v6376 = vsel %vm842, %v6370, %v6372
  %v6377 = vsel %vm842, %v6368, %v6370
  %v6378 = vsel %vm842, %v6366, %v6368
  %v6379 = vsel %vm842, %v6364, %v6366
  %v6380 = vsel %vm842, %v6362, %v6364
  %v6381 = vsel %vm842, %v6360, %v6362
  %v6382 = vsel %vm842, %v6358, %v6360
  %v6383 = vsel %vm842, %v6356, %v6358
  %v6384 = vsel %vm842, %v6354, %v6356
  %v6385 = vsel %vm842, %v6352, %v6354
  %v6386 = vsel %vm842, %v6350, %v6352
  %v6387 = vsel %vm842, %v6348, %v6350
  %v6388 = vsel %vm842, %v6346, %v6348
  %v6389 = vsel %vm842, %v6344, %v6346
  %v6390 = vsel %vm842, %v6374, %v6344
  %v6391 = vld [vmem:[%s859] sm:$0xff]
  %v6392 = vld [vmem:[%s859 + $0x8] sm:$0xff]
  %v6393 = vld [vmem:[%s859 + $0x10] sm:$0xff]
  %v6394 = vld [vmem:[%s859 + $0x18] sm:$0xff]
  %v6395 = vld [vmem:[%s859 + $0x20] sm:$0xff]
  %v6396 = vld [vmem:[%s859 + $0x28] sm:$0xff]
  %v6397 = vld [vmem:[%s859 + $0x30] sm:$0xff]
  %v6398 = vld [vmem:[%s859 + $0x38] sm:$0xff]
  %v6399 = vld [vmem:[%s859 + $0x40] sm:$0xff]
  %v6400 = vld [vmem:[%s859 + $0x48] sm:$0xff]
  %v6401 = vld [vmem:[%s859 + $0x50] sm:$0xff]
  %v6402 = vld [vmem:[%s859 + $0x58] sm:$0xff]
  %v6403 = vld [vmem:[%s859 + $0x60] sm:$0xff]
  %v6404 = vld [vmem:[%s859 + $0x68] sm:$0xff]
  %v6405 = vld [vmem:[%s859 + $0x70] sm:$0xff]
  %v6406 = vld [vmem:[%s859 + $0x78] sm:$0xff]
  %v6407 = vmul.f32 %v6389, %v6391
  %v6408 = vmul.f32 %v6388, %v6392
  %v6409 = vmul.f32 %v6387, %v6393
  %v6410 = vmul.f32 %v6386, %v6394
  %v6411 = vmul.f32 %v6385, %v6395
  %v6412 = vmul.f32 %v6384, %v6396
  %v6413 = vmul.f32 %v6383, %v6397
  %v6414 = vmul.f32 %v6382, %v6398
  %v6415 = vmul.f32 %v6381, %v6399
  %v6416 = vmul.f32 %v6380, %v6400
  %v6417 = vmul.f32 %v6379, %v6401
  %v6418 = vmul.f32 %v6378, %v6402
  %v6419 = vmul.f32 %v6377, %v6403
  %v6420 = vmul.f32 %v6376, %v6404
  %v6421 = vmul.f32 %v6375, %v6405
  %v6422 = vmul.f32 %v6390, %v6406
  %6423 = vst [vmem:[#allocation2 + $0x400] sm:$0xff] %v6407
  %6424 = vst [vmem:[#allocation2 + $0x408] sm:$0xff] %v6408
  %6425 = vst [vmem:[#allocation2 + $0x410] sm:$0xff] %v6409
  %6426 = vst [vmem:[#allocation2 + $0x418] sm:$0xff] %v6410
  %6427 = vst [vmem:[#allocation2 + $0x420] sm:$0xff] %v6411
  %6428 = vst [vmem:[#allocation2 + $0x428] sm:$0xff] %v6412
  %6429 = vst [vmem:[#allocation2 + $0x430] sm:$0xff] %v6413
  %6430 = vst [vmem:[#allocation2 + $0x438] sm:$0xff] %v6414
  %6431 = vst [vmem:[#allocation2 + $0x440] sm:$0xff] %v6415
  %6432 = vst [vmem:[#allocation2 + $0x448] sm:$0xff] %v6416
  %6433 = vst [vmem:[#allocation2 + $0x450] sm:$0xff] %v6417
  %6434 = vst [vmem:[#allocation2 + $0x458] sm:$0xff] %v6418
  %6435 = vst [vmem:[#allocation2 + $0x460] sm:$0xff] %v6419
  %6436 = vst [vmem:[#allocation2 + $0x468] sm:$0xff] %v6420
  %6437 = vst [vmem:[#allocation2 + $0x470] sm:$0xff] %v6421
  %6438 = vst [vmem:[#allocation2 + $0x478] sm:$0xff] %v6422
  %s6439 = scalar_lea.vmem %s5, 24
  %v6440 = vld [vmem:[%s6439] sm:$0xff]
  %v6441 = vld [vmem:[#allocation2] sm:$0xff]
  %v6442 = vld [vmem:[#allocation2 + $0x8] sm:$0xff]
  %v6443 = vld [vmem:[#allocation2 + $0x10] sm:$0xff]
  %v6444 = vld [vmem:[#allocation2 + $0x18] sm:$0xff]
  %v6445 = vld [vmem:[#allocation2 + $0x20] sm:$0xff]
  %v6446 = vld [vmem:[#allocation2 + $0x28] sm:$0xff]
  %v6447 = vld [vmem:[#allocation2 + $0x30] sm:$0xff]
  %v6448 = vld [vmem:[#allocation2 + $0x38] sm:$0xff]
  %v6449 = vld [vmem:[#allocation2 + $0x40] sm:$0xff]
  %v6450 = vld [vmem:[#allocation2 + $0x48] sm:$0xff]
  %v6451 = vld [vmem:[#allocation2 + $0x50] sm:$0xff]
  %v6452 = vld [vmem:[#allocation2 + $0x58] sm:$0xff]
  %v6453 = vld [vmem:[#allocation2 + $0x60] sm:$0xff]
  %v6454 = vld [vmem:[#allocation2 + $0x68] sm:$0xff]
  %v6455 = vld [vmem:[#allocation2 + $0x70] sm:$0xff]
  %v6456 = vld [vmem:[#allocation2 + $0x78] sm:$0xff]
  %v6457 = vld [vmem:[#allocation2 + $0x80] sm:$0xff]
  %v6458 = vld [vmem:[#allocation2 + $0x88] sm:$0xff]
  %v6459 = vld [vmem:[#allocation2 + $0x90] sm:$0xff]
  %v6460 = vld [vmem:[#allocation2 + $0x98] sm:$0xff]
  %v6461 = vld [vmem:[#allocation2 + $0xa0] sm:$0xff]
  %v6462 = vld [vmem:[#allocation2 + $0xa8] sm:$0xff]
  %v6463 = vld [vmem:[#allocation2 + $0xb0] sm:$0xff]
  %v6464 = vld [vmem:[#allocation2 + $0xb8] sm:$0xff]
  %v6465 = vld [vmem:[#allocation2 + $0xc0] sm:$0xff]
  %v6466 = vld [vmem:[#allocation2 + $0xc8] sm:$0xff]
  %v6467 = vld [vmem:[#allocation2 + $0xd0] sm:$0xff]
  %v6468 = vld [vmem:[#allocation2 + $0xd8] sm:$0xff]
  %v6469 = vld [vmem:[#allocation2 + $0xe0] sm:$0xff]
  %v6470 = vld [vmem:[#allocation2 + $0xe8] sm:$0xff]
  %v6471 = vld [vmem:[#allocation2 + $0xf0] sm:$0xff]
  %v6472 = vld [vmem:[#allocation2 + $0xf8] sm:$0xff]
  %v6473 = vld [vmem:[#allocation2 + $0x100] sm:$0xff]
  %v6474 = vld [vmem:[#allocation2 + $0x108] sm:$0xff]
  %v6475 = vld [vmem:[#allocation2 + $0x110] sm:$0xff]
  %v6476 = vld [vmem:[#allocation2 + $0x118] sm:$0xff]
  %v6477 = vld [vmem:[#allocation2 + $0x120] sm:$0xff]
  %v6478 = vld [vmem:[#allocation2 + $0x128] sm:$0xff]
  %v6479 = vld [vmem:[#allocation2 + $0x130] sm:$0xff]
  %v6480 = vld [vmem:[#allocation2 + $0x138] sm:$0xff]
  %v6481 = vld [vmem:[#allocation2 + $0x140] sm:$0xff]
  %v6482 = vld [vmem:[#allocation2 + $0x148] sm:$0xff]
  %v6483 = vld [vmem:[#allocation2 + $0x150] sm:$0xff]
  %v6484 = vld [vmem:[#allocation2 + $0x158] sm:$0xff]
  %v6485 = vld [vmem:[#allocation2 + $0x160] sm:$0xff]
  %v6486 = vld [vmem:[#allocation2 + $0x168] sm:$0xff]
  %v6487 = vld [vmem:[#allocation2 + $0x170] sm:$0xff]
  %v6488 = vld [vmem:[#allocation2 + $0x178] sm:$0xff]
  %v6489 = vld [vmem:[#allocation2 + $0x180] sm:$0xff]
  %v6490 = vld [vmem:[#allocation2 + $0x188] sm:$0xff]
  %v6491 = vld [vmem:[#allocation2 + $0x190] sm:$0xff]
  %v6492 = vld [vmem:[#allocation2 + $0x198] sm:$0xff]
  %v6493 = vld [vmem:[#allocation2 + $0x1a0] sm:$0xff]
  %v6494 = vld [vmem:[#allocation2 + $0x1a8] sm:$0xff]
  %v6495 = vld [vmem:[#allocation2 + $0x1b0] sm:$0xff]
  %v6496 = vld [vmem:[#allocation2 + $0x1b8] sm:$0xff]
  %v6497 = vld [vmem:[#allocation2 + $0x1c0] sm:$0xff]
  %v6498 = vld [vmem:[#allocation2 + $0x1c8] sm:$0xff]
  %v6499 = vld [vmem:[#allocation2 + $0x1d0] sm:$0xff]
  %v6500 = vld [vmem:[#allocation2 + $0x1d8] sm:$0xff]
  %v6501 = vld [vmem:[#allocation2 + $0x1e0] sm:$0xff]
  %v6502 = vld [vmem:[#allocation2 + $0x1e8] sm:$0xff]
  %v6503 = vld [vmem:[#allocation2 + $0x1f0] sm:$0xff]
  %v6504 = vld [vmem:[#allocation2 + $0x1f8] sm:$0xff]
  %v6505 = vld [vmem:[#allocation2 + $0x200] sm:$0xff]
  %v6506 = vld [vmem:[#allocation2 + $0x208] sm:$0xff]
  %v6507 = vld [vmem:[#allocation2 + $0x210] sm:$0xff]
  %v6508 = vld [vmem:[#allocation2 + $0x218] sm:$0xff]
  %v6509 = vld [vmem:[#allocation2 + $0x220] sm:$0xff]
  %v6510 = vld [vmem:[#allocation2 + $0x228] sm:$0xff]
  %v6511 = vld [vmem:[#allocation2 + $0x230] sm:$0xff]
  %v6512 = vld [vmem:[#allocation2 + $0x238] sm:$0xff]
  %v6513 = vld [vmem:[#allocation2 + $0x240] sm:$0xff]
  %v6514 = vld [vmem:[#allocation2 + $0x248] sm:$0xff]
  %v6515 = vld [vmem:[#allocation2 + $0x250] sm:$0xff]
  %v6516 = vld [vmem:[#allocation2 + $0x258] sm:$0xff]
  %v6517 = vld [vmem:[#allocation2 + $0x260] sm:$0xff]
  %v6518 = vld [vmem:[#allocation2 + $0x268] sm:$0xff]
  %v6519 = vld [vmem:[#allocation2 + $0x270] sm:$0xff]
  %v6520 = vld [vmem:[#allocation2 + $0x278] sm:$0xff]
  %v6521 = vld [vmem:[#allocation2 + $0x280] sm:$0xff]
  %v6522 = vld [vmem:[#allocation2 + $0x288] sm:$0xff]
  %v6523 = vld [vmem:[#allocation2 + $0x290] sm:$0xff]
  %v6524 = vld [vmem:[#allocation2 + $0x298] sm:$0xff]
  %v6525 = vld [vmem:[#allocation2 + $0x2a0] sm:$0xff]
  %v6526 = vld [vmem:[#allocation2 + $0x2a8] sm:$0xff]
  %v6527 = vld [vmem:[#allocation2 + $0x2b0] sm:$0xff]
  %v6528 = vld [vmem:[#allocation2 + $0x2b8] sm:$0xff]
  %v6529 = vld [vmem:[#allocation2 + $0x2c0] sm:$0xff]
  %v6530 = vld [vmem:[#allocation2 + $0x2c8] sm:$0xff]
  %v6531 = vld [vmem:[#allocation2 + $0x2d0] sm:$0xff]
  %v6532 = vld [vmem:[#allocation2 + $0x2d8] sm:$0xff]
  %v6533 = vld [vmem:[#allocation2 + $0x2e0] sm:$0xff]
  %v6534 = vld [vmem:[#allocation2 + $0x2e8] sm:$0xff]
  %v6535 = vld [vmem:[#allocation2 + $0x2f0] sm:$0xff]
  %v6536 = vld [vmem:[#allocation2 + $0x2f8] sm:$0xff]
  %v6537 = vld [vmem:[#allocation2 + $0x300] sm:$0xff]
  %v6538 = vld [vmem:[#allocation2 + $0x308] sm:$0xff]
  %v6539 = vld [vmem:[#allocation2 + $0x310] sm:$0xff]
  %v6540 = vld [vmem:[#allocation2 + $0x318] sm:$0xff]
  %v6541 = vld [vmem:[#allocation2 + $0x320] sm:$0xff]
  %v6542 = vld [vmem:[#allocation2 + $0x328] sm:$0xff]
  %v6543 = vld [vmem:[#allocation2 + $0x330] sm:$0xff]
  %v6544 = vld [vmem:[#allocation2 + $0x338] sm:$0xff]
  %v6545 = vld [vmem:[#allocation2 + $0x340] sm:$0xff]
  %v6546 = vld [vmem:[#allocation2 + $0x348] sm:$0xff]
  %v6547 = vld [vmem:[#allocation2 + $0x350] sm:$0xff]
  %v6548 = vld [vmem:[#allocation2 + $0x358] sm:$0xff]
  %v6549 = vld [vmem:[#allocation2 + $0x360] sm:$0xff]
  %v6550 = vld [vmem:[#allocation2 + $0x368] sm:$0xff]
  %v6551 = vld [vmem:[#allocation2 + $0x370] sm:$0xff]
  %v6552 = vld [vmem:[#allocation2 + $0x378] sm:$0xff]
  %v6553 = vld [vmem:[#allocation2 + $0x380] sm:$0xff]
  %v6554 = vld [vmem:[#allocation2 + $0x388] sm:$0xff]
  %v6555 = vld [vmem:[#allocation2 + $0x390] sm:$0xff]
  %v6556 = vld [vmem:[#allocation2 + $0x398] sm:$0xff]
  %v6557 = vld [vmem:[#allocation2 + $0x3a0] sm:$0xff]
  %v6558 = vld [vmem:[#allocation2 + $0x3a8] sm:$0xff]
  %v6559 = vld [vmem:[#allocation2 + $0x3b0] sm:$0xff]
  %v6560 = vld [vmem:[#allocation2 + $0x3b8] sm:$0xff]
  %v6561 = vld [vmem:[#allocation2 + $0x3c0] sm:$0xff]
  %v6562 = vld [vmem:[#allocation2 + $0x3c8] sm:$0xff]
  %v6563 = vld [vmem:[#allocation2 + $0x3d0] sm:$0xff]
  %v6564 = vld [vmem:[#allocation2 + $0x3d8] sm:$0xff]
  %v6565 = vld [vmem:[#allocation2 + $0x3e0] sm:$0xff]
  %v6566 = vld [vmem:[#allocation2 + $0x3e8] sm:$0xff]
  %v6567 = vld [vmem:[#allocation2 + $0x3f0] sm:$0xff]
  %v6568 = vld [vmem:[#allocation2 + $0x3f8] sm:$0xff]
  %v6569 = vld [vmem:[#allocation2 + $0x400] sm:$0xff]
  %v6570 = vld [vmem:[#allocation2 + $0x408] sm:$0xff]
  %v6571 = vld [vmem:[#allocation2 + $0x410] sm:$0xff]
  %v6572 = vld [vmem:[#allocation2 + $0x418] sm:$0xff]
  %v6573 = vld [vmem:[#allocation2 + $0x420] sm:$0xff]
  %v6574 = vld [vmem:[#allocation2 + $0x428] sm:$0xff]
  %v6575 = vld [vmem:[#allocation2 + $0x430] sm:$0xff]
  %v6576 = vld [vmem:[#allocation2 + $0x438] sm:$0xff]
  %v6577 = vld [vmem:[#allocation2 + $0x440] sm:$0xff]
  %v6578 = vld [vmem:[#allocation2 + $0x448] sm:$0xff]
  %v6579 = vld [vmem:[#allocation2 + $0x450] sm:$0xff]
  %v6580 = vld [vmem:[#allocation2 + $0x458] sm:$0xff]
  %v6581 = vld [vmem:[#allocation2 + $0x460] sm:$0xff]
  %v6582 = vld [vmem:[#allocation2 + $0x468] sm:$0xff]
  %v6583 = vld [vmem:[#allocation2 + $0x470] sm:$0xff]
  %v6584 = vld [vmem:[#allocation2 + $0x478] sm:$0xff]
  %s6585 = scalar_lea.vmem %s6, 24
  %v6586 = vld [vmem:[%s6585] sm:$0xff]
  %6588 = vset.pattern.permute.xlu0 0
  %6589 = vperm.xlu0 %6588, %v6586
  %v6590 = vpop.permute.xlu0 %6589
  %v6593 = vsel %vm1059, %v6440, 0
  %6595 = vmatprep.subr.mxu0 %v6442
  %6596 = vmatpush1.msra.mxu0 %v6441
  %6597 = vmatprep.subr.mxu0 %v6458
  %6598 = vmatpush1.msra.mxu0 %v6457
  %6599 = vmatprep.subr.mxu0 %v6474
  %6600 = vmatpush1.msra.mxu0 %v6473
  %6601 = vmatprep.subr.mxu0 %v6490
  %6602 = vmatpush1.msra.mxu0 %v6489
  %6603 = vmatprep.subr.mxu0 %v6506
  %6604 = vmatpush1.msra.mxu0 %v6505
  %6605 = vmatprep.subr.mxu0 %v6522
  %6606 = vmatpush1.msra.mxu0 %v6521
  %6607 = vmatprep.subr.mxu0 %v6538
  %6608 = vmatpush1.msra.mxu0 %v6537
  %6609 = vmatprep.subr.mxu0 %v6554
  %6610 = vmatpush1.msra.mxu0 %v6553
  %6611 = vmatprep.subr.mxu0 %v6570
  %6612 = vmatpush1.msra.mxu0 %v6569
  %6613 = vmatprep.subr.mxu0 0.0
  %6614 = vmatpush1.msra.mxu0 0.0
  %6615 = vmatprep.subr.mxu0 0.0
  %6616 = vmatpush1.msra.mxu0 0.0
  %6617 = vmatprep.subr.mxu0 0.0
  %6618 = vmatpush1.msra.mxu0 0.0
  %6619 = vmatprep.subr.mxu0 0.0
  %6620 = vmatpush1.msra.mxu0 0.0
  %6621 = vmatprep.subr.mxu0 0.0
  %6622 = vmatpush1.msra.mxu0 0.0
  %6623 = vmatprep.subr.mxu0 0.0
  %6624 = vmatpush1.msra.mxu0 0.0
  %6625 = vmatprep.subr.mxu0 0.0
  %6626 = vmatpush1.msra.mxu0 0.0
  %6627 = vmatprep.subr.mxu0 0.0
  %6628 = vmatpush1.msra.mxu0 0.0
  %6629 = vmatprep.subr.mxu0 0.0
  %6630 = vmatpush1.msra.mxu0 0.0
  %6631 = vmatprep.subr.mxu0 0.0
  %6632 = vmatpush1.msra.mxu0 0.0
  %6633 = vmatprep.subr.mxu0 0.0
  %6634 = vmatpush1.msra.mxu0 0.0
  %6635 = vmatprep.subr.mxu0 0.0
  %6636 = vmatpush1.msra.mxu0 0.0
  %6637 = vmatprep.subr.mxu0 0.0
  %6638 = vmatpush1.msra.mxu0 0.0
  %6639 = vmatprep.subr.mxu0 0.0
  %6640 = vmatpush1.msra.mxu0 0.0
  %6641 = vmatprep.subr.mxu0 0.0
  %6642 = vmatpush1.msra.mxu0 0.0
  %6643 = vmatprep.subr.mxu0 0.0
  %6644 = vmatpush1.msra.mxu0 0.0
  %6645 = vmatprep.subr.mxu0 0.0
  %6646 = vmatpush1.msra.mxu0 0.0
  %6647 = vmatprep.subr.mxu0 0.0
  %6648 = vmatpush1.msra.mxu0 0.0
  %6649 = vmatprep.subr.mxu0 0.0
  %6650 = vmatpush1.msra.mxu0 0.0
  %6651 = vmatprep.subr.mxu0 0.0
  %6652 = vmatpush1.msra.mxu0 0.0
  %6653 = vmatprep.subr.mxu0 0.0
  %6654 = vmatpush1.msra.mxu0 0.0
  %6655 = vmatprep.subr.mxu0 0.0
  %6656 = vmatpush1.msra.mxu0 0.0
  %6657 = vmatprep.subr.mxu0 0.0
  %6658 = vmatpush1.msra.mxu0 0.0
  %6659 = vmatprep.mubr.f32.mxu0 0.0
  %6660 = vmatmul.mubr.f32.gmra.mrb[0].mxu0 %v6593
  %v6661 = vpop.f32.mrb[0].mxu0
  %v6662 = vadd.f32 %v6590, %v6661
  %v6663 = vpop.f32.mrb[0].mxu0
  %v6664 = vadd.f32 %v6590, %v6663
  %6665 = vdwg.mxu0
  %6666 = vmatprep.subr.mxu0 %v6444
  %6667 = vmatpush1.msra.mxu0 %v6443
  %6668 = vmatprep.subr.mxu0 %v6460
  %6669 = vmatpush1.msra.mxu0 %v6459
  %6670 = vmatprep.subr.mxu0 %v6476
  %6671 = vmatpush1.msra.mxu0 %v6475
  %6672 = vmatprep.subr.mxu0 %v6492
  %6673 = vmatpush1.msra.mxu0 %v6491
  %6674 = vmatprep.subr.mxu0 %v6508
  %6675 = vmatpush1.msra.mxu0 %v6507
  %6676 = vmatprep.subr.mxu0 %v6524
  %6677 = vmatpush1.msra.mxu0 %v6523
  %6678 = vmatprep.subr.mxu0 %v6540
  %6679 = vmatpush1.msra.mxu0 %v6539
  %6680 = vmatprep.subr.mxu0 %v6556
  %6681 = vmatpush1.msra.mxu0 %v6555
  %6682 = vmatprep.subr.mxu0 %v6572
  %6683 = vmatpush1.msra.mxu0 %v6571
  %6684 = vmatprep.subr.mxu0 0.0
  %6685 = vmatpush1.msra.mxu0 0.0
  %6686 = vmatprep.subr.mxu0 0.0
  %6687 = vmatpush1.msra.mxu0 0.0
  %6688 = vmatprep.subr.mxu0 0.0
  %6689 = vmatpush1.msra.mxu0 0.0
  %6690 = vmatprep.subr.mxu0 0.0
  %6691 = vmatpush1.msra.mxu0 0.0
  %6692 = vmatprep.subr.mxu0 0.0
  %6693 = vmatpush1.msra.mxu0 0.0
  %6694 = vmatprep.subr.mxu0 0.0
  %6695 = vmatpush1.msra.mxu0 0.0
  %6696 = vmatprep.subr.mxu0 0.0
  %6697 = vmatpush1.msra.mxu0 0.0
  %6698 = vmatprep.subr.mxu0 0.0
  %6699 = vmatpush1.msra.mxu0 0.0
  %6700 = vmatprep.subr.mxu0 0.0
  %6701 = vmatpush1.msra.mxu0 0.0
  %6702 = vmatprep.subr.mxu0 0.0
  %6703 = vmatpush1.msra.mxu0 0.0
  %6704 = vmatprep.subr.mxu0 0.0
  %6705 = vmatpush1.msra.mxu0 0.0
  %6706 = vmatprep.subr.mxu0 0.0
  %6707 = vmatpush1.msra.mxu0 0.0
  %6708 = vmatprep.subr.mxu0 0.0
  %6709 = vmatpush1.msra.mxu0 0.0
  %6710 = vmatprep.subr.mxu0 0.0
  %6711 = vmatpush1.msra.mxu0 0.0
  %6712 = vmatprep.subr.mxu0 0.0
  %6713 = vmatpush1.msra.mxu0 0.0
  %6714 = vmatprep.subr.mxu0 0.0
  %6715 = vmatpush1.msra.mxu0 0.0
  %6716 = vmatprep.subr.mxu0 0.0
  %6717 = vmatpush1.msra.mxu0 0.0
  %6718 = vmatprep.subr.mxu0 0.0
  %6719 = vmatpush1.msra.mxu0 0.0
  %6720 = vmatprep.subr.mxu0 0.0
  %6721 = vmatpush1.msra.mxu0 0.0
  %6722 = vmatprep.subr.mxu0 0.0
  %6723 = vmatpush1.msra.mxu0 0.0
  %6724 = vmatprep.subr.mxu0 0.0
  %6725 = vmatpush1.msra.mxu0 0.0
  %6726 = vmatprep.subr.mxu0 0.0
  %6727 = vmatpush1.msra.mxu0 0.0
  %6728 = vmatprep.subr.mxu0 0.0
  %6729 = vmatpush1.msra.mxu0 0.0
  %6730 = vmatprep.mubr.f32.mxu0 0.0
  %6731 = vmatmul.mubr.f32.gmra.mrb[0].mxu0 %v6593
  %v6732 = vpop.f32.mrb[0].mxu0
  %v6733 = vadd.f32 %v6590, %v6732
  %v6734 = vpop.f32.mrb[0].mxu0
  %v6735 = vadd.f32 %v6590, %v6734
  %6736 = vdwg.mxu0
  %6737 = vmatprep.subr.mxu0 %v6446
  %6738 = vmatpush1.msra.mxu0 %v6445
  %6739 = vmatprep.subr.mxu0 %v6462
  %6740 = vmatpush1.msra.mxu0 %v6461
  %6741 = vmatprep.subr.mxu0 %v6478
  %6742 = vmatpush1.msra.mxu0 %v6477
  %6743 = vmatprep.subr.mxu0 %v6494
  %6744 = vmatpush1.msra.mxu0 %v6493
  %6745 = vmatprep.subr.mxu0 %v6510
  %6746 = vmatpush1.msra.mxu0 %v6509
  %6747 = vmatprep.subr.mxu0 %v6526
  %6748 = vmatpush1.msra.mxu0 %v6525
  %6749 = vmatprep.subr.mxu0 %v6542
  %6750 = vmatpush1.msra.mxu0 %v6541
  %6751 = vmatprep.subr.mxu0 %v6558
  %6752 = vmatpush1.msra.mxu0 %v6557
  %6753 = vmatprep.subr.mxu0 %v6574
  %6754 = vmatpush1.msra.mxu0 %v6573
  %6755 = vmatprep.subr.mxu0 0.0
  %6756 = vmatpush1.msra.mxu0 0.0
  %6757 = vmatprep.subr.mxu0 0.0
  %6758 = vmatpush1.msra.mxu0 0.0
  %6759 = vmatprep.subr.mxu0 0.0
  %6760 = vmatpush1.msra.mxu0 0.0
  %6761 = vmatprep.subr.mxu0 0.0
  %6762 = vmatpush1.msra.mxu0 0.0
  %6763 = vmatprep.subr.mxu0 0.0
  %6764 = vmatpush1.msra.mxu0 0.0
  %6765 = vmatprep.subr.mxu0 0.0
  %6766 = vmatpush1.msra.mxu0 0.0
  %6767 = vmatprep.subr.mxu0 0.0
  %6768 = vmatpush1.msra.mxu0 0.0
  %6769 = vmatprep.subr.mxu0 0.0
  %6770 = vmatpush1.msra.mxu0 0.0
  %6771 = vmatprep.subr.mxu0 0.0
  %6772 = vmatpush1.msra.mxu0 0.0
  %6773 = vmatprep.subr.mxu0 0.0
  %6774 = vmatpush1.msra.mxu0 0.0
  %6775 = vmatprep.subr.mxu0 0.0
  %6776 = vmatpush1.msra.mxu0 0.0
  %6777 = vmatprep.subr.mxu0 0.0
  %6778 = vmatpush1.msra.mxu0 0.0
  %6779 = vmatprep.subr.mxu0 0.0
  %6780 = vmatpush1.msra.mxu0 0.0
  %6781 = vmatprep.subr.mxu0 0.0
  %6782 = vmatpush1.msra.mxu0 0.0
  %6783 = vmatprep.subr.mxu0 0.0
  %6784 = vmatpush1.msra.mxu0 0.0
  %6785 = vmatprep.subr.mxu0 0.0
  %6786 = vmatpush1.msra.mxu0 0.0
  %6787 = vmatprep.subr.mxu0 0.0
  %6788 = vmatpush1.msra.mxu0 0.0
  %6789 = vmatprep.subr.mxu0 0.0
  %6790 = vmatpush1.msra.mxu0 0.0
  %6791 = vmatprep.subr.mxu0 0.0
  %6792 = vmatpush1.msra.mxu0 0.0
  %6793 = vmatprep.subr.mxu0 0.0
  %6794 = vmatpush1.msra.mxu0 0.0
  %6795 = vmatprep.subr.mxu0 0.0
  %6796 = vmatpush1.msra.mxu0 0.0
  %6797 = vmatprep.subr.mxu0 0.0
  %6798 = vmatpush1.msra.mxu0 0.0
  %6799 = vmatprep.subr.mxu0 0.0
  %6800 = vmatpush1.msra.mxu0 0.0
  %6801 = vmatprep.mubr.f32.mxu0 0.0
  %6802 = vmatmul.mubr.f32.gmra.mrb[0].mxu0 %v6593
  %v6803 = vpop.f32.mrb[0].mxu0
  %v6804 = vadd.f32 %v6590, %v6803
  %v6805 = vpop.f32.mrb[0].mxu0
  %v6806 = vadd.f32 %v6590, %v6805
  %6807 = vdwg.mxu0
  %6808 = vmatprep.subr.mxu0 %v6448
  %6809 = vmatpush1.msra.mxu0 %v6447
  %6810 = vmatprep.subr.mxu0 %v6464
  %6811 = vmatpush1.msra.mxu0 %v6463
  %6812 = vmatprep.subr.mxu0 %v6480
  %6813 = vmatpush1.msra.mxu0 %v6479
  %6814 = vmatprep.subr.mxu0 %v6496
  %6815 = vmatpush1.msra.mxu0 %v6495
  %6816 = vmatprep.subr.mxu0 %v6512
  %6817 = vmatpush1.msra.mxu0 %v6511
  %6818 = vmatprep.subr.mxu0 %v6528
  %6819 = vmatpush1.msra.mxu0 %v6527
  %6820 = vmatprep.subr.mxu0 %v6544
  %6821 = vmatpush1.msra.mxu0 %v6543
  %6822 = vmatprep.subr.mxu0 %v6560
  %6823 = vmatpush1.msra.mxu0 %v6559
  %6824 = vmatprep.subr.mxu0 %v6576
  %6825 = vmatpush1.msra.mxu0 %v6575
  %6826 = vmatprep.subr.mxu0 0.0
  %6827 = vmatpush1.msra.mxu0 0.0
  %6828 = vmatprep.subr.mxu0 0.0
  %6829 = vmatpush1.msra.mxu0 0.0
  %6830 = vmatprep.subr.mxu0 0.0
  %6831 = vmatpush1.msra.mxu0 0.0
  %6832 = vmatprep.subr.mxu0 0.0
  %6833 = vmatpush1.msra.mxu0 0.0
  %6834 = vmatprep.subr.mxu0 0.0
  %6835 = vmatpush1.msra.mxu0 0.0
  %6836 = vmatprep.subr.mxu0 0.0
  %6837 = vmatpush1.msra.mxu0 0.0
  %6838 = vmatprep.subr.mxu0 0.0
  %6839 = vmatpush1.msra.mxu0 0.0
  %6840 = vmatprep.subr.mxu0 0.0
  %6841 = vmatpush1.msra.mxu0 0.0
  %6842 = vmatprep.subr.mxu0 0.0
  %6843 = vmatpush1.msra.mxu0 0.0
  %6844 = vmatprep.subr.mxu0 0.0
  %6845 = vmatpush1.msra.mxu0 0.0
  %6846 = vmatprep.subr.mxu0 0.0
  %6847 = vmatpush1.msra.mxu0 0.0
  %6848 = vmatprep.subr.mxu0 0.0
  %6849 = vmatpush1.msra.mxu0 0.0
  %6850 = vmatprep.subr.mxu0 0.0
  %6851 = vmatpush1.msra.mxu0 0.0
  %6852 = vmatprep.subr.mxu0 0.0
  %6853 = vmatpush1.msra.mxu0 0.0
  %6854 = vmatprep.subr.mxu0 0.0
  %6855 = vmatpush1.msra.mxu0 0.0
  %6856 = vmatprep.subr.mxu0 0.0
  %6857 = vmatpush1.msra.mxu0 0.0
  %6858 = vmatprep.subr.mxu0 0.0
  %6859 = vmatpush1.msra.mxu0 0.0
  %6860 = vmatprep.subr.mxu0 0.0
  %6861 = vmatpush1.msra.mxu0 0.0
  %6862 = vmatprep.subr.mxu0 0.0
  %6863 = vmatpush1.msra.mxu0 0.0
  %6864 = vmatprep.subr.mxu0 0.0
  %6865 = vmatpush1.msra.mxu0 0.0
  %6866 = vmatprep.subr.mxu0 0.0
  %6867 = vmatpush1.msra.mxu0 0.0
  %6868 = vmatprep.subr.mxu0 0.0
  %6869 = vmatpush1.msra.mxu0 0.0
  %6870 = vmatprep.subr.mxu0 0.0
  %6871 = vmatpush1.msra.mxu0 0.0
  %6872 = vmatprep.mubr.f32.mxu0 0.0
  %6873 = vmatmul.mubr.f32.gmra.mrb[0].mxu0 %v6593
  %v6874 = vpop.f32.mrb[0].mxu0
  %v6875 = vadd.f32 %v6590, %v6874
  %v6876 = vpop.f32.mrb[0].mxu0
  %v6877 = vadd.f32 %v6590, %v6876
  %6878 = vdwg.mxu0
  %6879 = vmatprep.subr.mxu0 %v6450
  %6880 = vmatpush1.msra.mxu0 %v6449
  %6881 = vmatprep.subr.mxu0 %v6466
  %6882 = vmatpush1.msra.mxu0 %v6465
  %6883 = vmatprep.subr.mxu0 %v6482
  %6884 = vmatpush1.msra.mxu0 %v6481
  %6885 = vmatprep.subr.mxu0 %v6498
  %6886 = vmatpush1.msra.mxu0 %v6497
  %6887 = vmatprep.subr.mxu0 %v6514
  %6888 = vmatpush1.msra.mxu0 %v6513
  %6889 = vmatprep.subr.mxu0 %v6530
  %6890 = vmatpush1.msra.mxu0 %v6529
  %6891 = vmatprep.subr.mxu0 %v6546
  %6892 = vmatpush1.msra.mxu0 %v6545
  %6893 = vmatprep.subr.mxu0 %v6562
  %6894 = vmatpush1.msra.mxu0 %v6561
  %6895 = vmatprep.subr.mxu0 %v6578
  %6896 = vmatpush1.msra.mxu0 %v6577
  %6897 = vmatprep.subr.mxu0 0.0
  %6898 = vmatpush1.msra.mxu0 0.0
  %6899 = vmatprep.subr.mxu0 0.0
  %6900 = vmatpush1.msra.mxu0 0.0
  %6901 = vmatprep.subr.mxu0 0.0
  %6902 = vmatpush1.msra.mxu0 0.0
  %6903 = vmatprep.subr.mxu0 0.0
  %6904 = vmatpush1.msra.mxu0 0.0
  %6905 = vmatprep.subr.mxu0 0.0
  %6906 = vmatpush1.msra.mxu0 0.0
  %6907 = vmatprep.subr.mxu0 0.0
  %6908 = vmatpush1.msra.mxu0 0.0
  %6909 = vmatprep.subr.mxu0 0.0
  %6910 = vmatpush1.msra.mxu0 0.0
  %6911 = vmatprep.subr.mxu0 0.0
  %6912 = vmatpush1.msra.mxu0 0.0
  %6913 = vmatprep.subr.mxu0 0.0
  %6914 = vmatpush1.msra.mxu0 0.0
  %6915 = vmatprep.subr.mxu0 0.0
  %6916 = vmatpush1.msra.mxu0 0.0
  %6917 = vmatprep.subr.mxu0 0.0
  %6918 = vmatpush1.msra.mxu0 0.0
  %6919 = vmatprep.subr.mxu0 0.0
  %6920 = vmatpush1.msra.mxu0 0.0
  %6921 = vmatprep.subr.mxu0 0.0
  %6922 = vmatpush1.msra.mxu0 0.0
  %6923 = vmatprep.subr.mxu0 0.0
  %6924 = vmatpush1.msra.mxu0 0.0
  %6925 = vmatprep.subr.mxu0 0.0
  %6926 = vmatpush1.msra.mxu0 0.0
  %6927 = vmatprep.subr.mxu0 0.0
  %6928 = vmatpush1.msra.mxu0 0.0
  %6929 = vmatprep.subr.mxu0 0.0
  %6930 = vmatpush1.msra.mxu0 0.0
  %6931 = vmatprep.subr.mxu0 0.0
  %6932 = vmatpush1.msra.mxu0 0.0
  %6933 = vmatprep.subr.mxu0 0.0
  %6934 = vmatpush1.msra.mxu0 0.0
  %6935 = vmatprep.subr.mxu0 0.0
  %6936 = vmatpush1.msra.mxu0 0.0
  %6937 = vmatprep.subr.mxu0 0.0
  %6938 = vmatpush1.msra.mxu0 0.0
  %6939 = vmatprep.subr.mxu0 0.0
  %6940 = vmatpush1.msra.mxu0 0.0
  %6941 = vmatprep.subr.mxu0 0.0
  %6942 = vmatpush1.msra.mxu0 0.0
  %6943 = vmatprep.mubr.f32.mxu0 0.0
  %6944 = vmatmul.mubr.f32.gmra.mrb[0].mxu0 %v6593
  %v6945 = vpop.f32.mrb[0].mxu0
  %v6946 = vadd.f32 %v6590, %v6945
  %v6947 = vpop.f32.mrb[0].mxu0
  %v6948 = vadd.f32 %v6590, %v6947
  %6949 = vdwg.mxu0
  %6950 = vmatprep.subr.mxu0 %v6452
  %6951 = vmatpush1.msra.mxu0 %v6451
  %6952 = vmatprep.subr.mxu0 %v6468
  %6953 = vmatpush1.msra.mxu0 %v6467
  %6954 = vmatprep.subr.mxu0 %v6484
  %6955 = vmatpush1.msra.mxu0 %v6483
  %6956 = vmatprep.subr.mxu0 %v6500
  %6957 = vmatpush1.msra.mxu0 %v6499
  %6958 = vmatprep.subr.mxu0 %v6516
  %6959 = vmatpush1.msra.mxu0 %v6515
  %6960 = vmatprep.subr.mxu0 %v6532
  %6961 = vmatpush1.msra.mxu0 %v6531
  %6962 = vmatprep.subr.mxu0 %v6548
  %6963 = vmatpush1.msra.mxu0 %v6547
  %6964 = vmatprep.subr.mxu0 %v6564
  %6965 = vmatpush1.msra.mxu0 %v6563
  %6966 = vmatprep.subr.mxu0 %v6580
  %6967 = vmatpush1.msra.mxu0 %v6579
  %6968 = vmatprep.subr.mxu0 0.0
  %6969 = vmatpush1.msra.mxu0 0.0
  %6970 = vmatprep.subr.mxu0 0.0
  %6971 = vmatpush1.msra.mxu0 0.0
  %6972 = vmatprep.subr.mxu0 0.0
  %6973 = vmatpush1.msra.mxu0 0.0
  %6974 = vmatprep.subr.mxu0 0.0
  %6975 = vmatpush1.msra.mxu0 0.0
  %6976 = vmatprep.subr.mxu0 0.0
  %6977 = vmatpush1.msra.mxu0 0.0
  %6978 = vmatprep.subr.mxu0 0.0
  %6979 = vmatpush1.msra.mxu0 0.0
  %6980 = vmatprep.subr.mxu0 0.0
  %6981 = vmatpush1.msra.mxu0 0.0
  %6982 = vmatprep.subr.mxu0 0.0
  %6983 = vmatpush1.msra.mxu0 0.0
  %6984 = vmatprep.subr.mxu0 0.0
  %6985 = vmatpush1.msra.mxu0 0.0
  %6986 = vmatprep.subr.mxu0 0.0
  %6987 = vmatpush1.msra.mxu0 0.0
  %6988 = vmatprep.subr.mxu0 0.0
  %6989 = vmatpush1.msra.mxu0 0.0
  %6990 = vmatprep.subr.mxu0 0.0
  %6991 = vmatpush1.msra.mxu0 0.0
  %6992 = vmatprep.subr.mxu0 0.0
  %6993 = vmatpush1.msra.mxu0 0.0
  %6994 = vmatprep.subr.mxu0 0.0
  %6995 = vmatpush1.msra.mxu0 0.0
  %6996 = vmatprep.subr.mxu0 0.0
  %6997 = vmatpush1.msra.mxu0 0.0
  %6998 = vmatprep.subr.mxu0 0.0
  %6999 = vmatpush1.msra.mxu0 0.0
  %7000 = vmatprep.subr.mxu0 0.0
  %7001 = vmatpush1.msra.mxu0 0.0
  %7002 = vmatprep.subr.mxu0 0.0
  %7003 = vmatpush1.msra.mxu0 0.0
  %7004 = vmatprep.subr.mxu0 0.0
  %7005 = vmatpush1.msra.mxu0 0.0
  %7006 = vmatprep.subr.mxu0 0.0
  %7007 = vmatpush1.msra.mxu0 0.0
  %7008 = vmatprep.subr.mxu0 0.0
  %7009 = vmatpush1.msra.mxu0 0.0
  %7010 = vmatprep.subr.mxu0 0.0
  %7011 = vmatpush1.msra.mxu0 0.0
  %7012 = vmatprep.subr.mxu0 0.0
  %7013 = vmatpush1.msra.mxu0 0.0
  %7014 = vmatprep.mubr.f32.mxu0 0.0
  %7015 = vmatmul.mubr.f32.gmra.mrb[0].mxu0 %v6593
  %v7016 = vpop.f32.mrb[0].mxu0
  %v7017 = vadd.f32 %v6590, %v7016
  %v7018 = vpop.f32.mrb[0].mxu0
  %v7019 = vadd.f32 %v6590, %v7018
  %7020 = vdwg.mxu0
  %7021 = vmatprep.subr.mxu0 %v6454
  %7022 = vmatpush1.msra.mxu0 %v6453
  %7023 = vmatprep.subr.mxu0 %v6470
  %7024 = vmatpush1.msra.mxu0 %v6469
  %7025 = vmatprep.subr.mxu0 %v6486
  %7026 = vmatpush1.msra.mxu0 %v6485
  %7027 = vmatprep.subr.mxu0 %v6502
  %7028 = vmatpush1.msra.mxu0 %v6501
  %7029 = vmatprep.subr.mxu0 %v6518
  %7030 = vmatpush1.msra.mxu0 %v6517
  %7031 = vmatprep.subr.mxu0 %v6534
  %7032 = vmatpush1.msra.mxu0 %v6533
  %7033 = vmatprep.subr.mxu0 %v6550
  %7034 = vmatpush1.msra.mxu0 %v6549
  %7035 = vmatprep.subr.mxu0 %v6566
  %7036 = vmatpush1.msra.mxu0 %v6565
  %7037 = vmatprep.subr.mxu0 %v6582
  %7038 = vmatpush1.msra.mxu0 %v6581
  %7039 = vmatprep.subr.mxu0 0.0
  %7040 = vmatpush1.msra.mxu0 0.0
  %7041 = vmatprep.subr.mxu0 0.0
  %7042 = vmatpush1.msra.mxu0 0.0
  %7043 = vmatprep.subr.mxu0 0.0
  %7044 = vmatpush1.msra.mxu0 0.0
  %7045 = vmatprep.subr.mxu0 0.0
  %7046 = vmatpush1.msra.mxu0 0.0
  %7047 = vmatprep.subr.mxu0 0.0
  %7048 = vmatpush1.msra.mxu0 0.0
  %7049 = vmatprep.subr.mxu0 0.0
  %7050 = vmatpush1.msra.mxu0 0.0
  %7051 = vmatprep.subr.mxu0 0.0
  %7052 = vmatpush1.msra.mxu0 0.0
  %7053 = vmatprep.subr.mxu0 0.0
  %7054 = vmatpush1.msra.mxu0 0.0
  %7055 = vmatprep.subr.mxu0 0.0
  %7056 = vmatpush1.msra.mxu0 0.0
  %7057 = vmatprep.subr.mxu0 0.0
  %7058 = vmatpush1.msra.mxu0 0.0
  %7059 = vmatprep.subr.mxu0 0.0
  %7060 = vmatpush1.msra.mxu0 0.0
  %7061 = vmatprep.subr.mxu0 0.0
  %7062 = vmatpush1.msra.mxu0 0.0
  %7063 = vmatprep.subr.mxu0 0.0
  %7064 = vmatpush1.msra.mxu0 0.0
  %7065 = vmatprep.subr.mxu0 0.0
  %7066 = vmatpush1.msra.mxu0 0.0
  %7067 = vmatprep.subr.mxu0 0.0
  %7068 = vmatpush1.msra.mxu0 0.0
  %7069 = vmatprep.subr.mxu0 0.0
  %7070 = vmatpush1.msra.mxu0 0.0
  %7071 = vmatprep.subr.mxu0 0.0
  %7072 = vmatpush1.msra.mxu0 0.0
  %7073 = vmatprep.subr.mxu0 0.0
  %7074 = vmatpush1.msra.mxu0 0.0
  %7075 = vmatprep.subr.mxu0 0.0
  %7076 = vmatpush1.msra.mxu0 0.0
  %7077 = vmatprep.subr.mxu0 0.0
  %7078 = vmatpush1.msra.mxu0 0.0
  %7079 = vmatprep.subr.mxu0 0.0
  %7080 = vmatpush1.msra.mxu0 0.0
  %7081 = vmatprep.subr.mxu0 0.0
  %7082 = vmatpush1.msra.mxu0 0.0
  %7083 = vmatprep.subr.mxu0 0.0
  %7084 = vmatpush1.msra.mxu0 0.0
  %7085 = vmatprep.mubr.f32.mxu0 0.0
  %7086 = vmatmul.mubr.f32.gmra.mrb[0].mxu0 %v6593
  %v7087 = vpop.f32.mrb[0].mxu0
  %v7088 = vadd.f32 %v6590, %v7087
  %v7089 = vpop.f32.mrb[0].mxu0
  %v7090 = vadd.f32 %v6590, %v7089
  %7091 = vdwg.mxu0
  %7092 = vmatprep.subr.mxu0 %v6456
  %7093 = vmatpush1.msra.mxu0 %v6455
  %7094 = vmatprep.subr.mxu0 %v6472
  %7095 = vmatpush1.msra.mxu0 %v6471
  %7096 = vmatprep.subr.mxu0 %v6488
  %7097 = vmatpush1.msra.mxu0 %v6487
  %7098 = vmatprep.subr.mxu0 %v6504
  %7099 = vmatpush1.msra.mxu0 %v6503
  %7100 = vmatprep.subr.mxu0 %v6520
  %7101 = vmatpush1.msra.mxu0 %v6519
  %7102 = vmatprep.subr.mxu0 %v6536
  %7103 = vmatpush1.msra.mxu0 %v6535
  %7104 = vmatprep.subr.mxu0 %v6552
  %7105 = vmatpush1.msra.mxu0 %v6551
  %7106 = vmatprep.subr.mxu0 %v6568
  %7107 = vmatpush1.msra.mxu0 %v6567
  %7108 = vmatprep.subr.mxu0 %v6584
  %7109 = vmatpush1.msra.mxu0 %v6583
  %7110 = vmatprep.subr.mxu0 0.0
  %7111 = vmatpush1.msra.mxu0 0.0
  %7112 = vmatprep.subr.mxu0 0.0
  %7113 = vmatpush1.msra.mxu0 0.0
  %7114 = vmatprep.subr.mxu0 0.0
  %7115 = vmatpush1.msra.mxu0 0.0
  %7116 = vmatprep.subr.mxu0 0.0
  %7117 = vmatpush1.msra.mxu0 0.0
  %7118 = vmatprep.subr.mxu0 0.0
  %7119 = vmatpush1.msra.mxu0 0.0
  %7120 = vmatprep.subr.mxu0 0.0
  %7121 = vmatpush1.msra.mxu0 0.0
  %7122 = vmatprep.subr.mxu0 0.0
  %7123 = vmatpush1.msra.mxu0 0.0
  %7124 = vmatprep.subr.mxu0 0.0
  %7125 = vmatpush1.msra.mxu0 0.0
  %7126 = vmatprep.subr.mxu0 0.0
  %7127 = vmatpush1.msra.mxu0 0.0
  %7128 = vmatprep.subr.mxu0 0.0
  %7129 = vmatpush1.msra.mxu0 0.0
  %7130 = vmatprep.subr.mxu0 0.0
  %7131 = vmatpush1.msra.mxu0 0.0
  %7132 = vmatprep.subr.mxu0 0.0
  %7133 = vmatpush1.msra.mxu0 0.0
  %7134 = vmatprep.subr.mxu0 0.0
  %7135 = vmatpush1.msra.mxu0 0.0
  %7136 = vmatprep.subr.mxu0 0.0
  %7137 = vmatpush1.msra.mxu0 0.0
  %7138 = vmatprep.subr.mxu0 0.0
  %7139 = vmatpush1.msra.mxu0 0.0
  %7140 = vmatprep.subr.mxu0 0.0
  %7141 = vmatpush1.msra.mxu0 0.0
  %7142 = vmatprep.subr.mxu0 0.0
  %7143 = vmatpush1.msra.mxu0 0.0
  %7144 = vmatprep.subr.mxu0 0.0
  %7145 = vmatpush1.msra.mxu0 0.0
  %7146 = vmatprep.subr.mxu0 0.0
  %7147 = vmatpush1.msra.mxu0 0.0
  %7148 = vmatprep.subr.mxu0 0.0
  %7149 = vmatpush1.msra.mxu0 0.0
  %7150 = vmatprep.subr.mxu0 0.0
  %7151 = vmatpush1.msra.mxu0 0.0
  %7152 = vmatprep.subr.mxu0 0.0
  %7153 = vmatpush1.msra.mxu0 0.0
  %7154 = vmatprep.subr.mxu0 0.0
  %7155 = vmatpush1.msra.mxu0 0.0
  %7156 = vmatprep.mubr.f32.mxu0 0.0
  %7157 = vmatmul.mubr.f32.gmra.mrb[0].mxu0 %v6593
  %v7158 = vpop.f32.mrb[0].mxu0
  %v7159 = vadd.f32 %v6590, %v7158
  %v7160 = vpop.f32.mrb[0].mxu0
  %v7161 = vadd.f32 %v6590, %v7160
  %7162 = vdwg.mxu0
  %v7163 = vadd.f32 %v3630, %v6662
  %v7164 = vadd.f32 %v3632, %v6664
  %v7165 = vadd.f32 %v3701, %v6733
  %v7166 = vadd.f32 %v3703, %v6735
  %v7167 = vadd.f32 %v3772, %v6804
  %v7168 = vadd.f32 %v3774, %v6806
  %v7169 = vadd.f32 %v3843, %v6875
  %v7170 = vadd.f32 %v3845, %v6877
  %v7171 = vadd.f32 %v3914, %v6946
  %v7172 = vadd.f32 %v3916, %v6948
  %v7173 = vadd.f32 %v3985, %v7017
  %v7174 = vadd.f32 %v3987, %v7019
  %v7175 = vadd.f32 %v4056, %v7088
  %v7176 = vadd.f32 %v4058, %v7090
  %v7177 = vadd.f32 %v4127, %v7159
  %v7178 = vadd.f32 %v4129, %v7161
  %v7187 = vcombine.low %v7163, %v7164
  %v7188 = vcombine.low %v7165, %v7166
  %v7189 = vcombine.low %v7167, %v7168
  %v7190 = vcombine.low %v7169, %v7170
  %7195 = vst [vmem:[%s7] sm:$0xff] %v7187
  %7196 = vst [vmem:[%s7 + $0x8] sm:$0xff] %v7188
  %7197 = vst [vmem:[%s7 + $0x10] sm:$0xff] %v7189
  %7198 = vst [vmem:[%s7 + $0x18] sm:$0xff] %v7190
  %v7207 = vcombine.low %v7171, %v7172
  %v7208 = vcombine.low %v7173, %v7174
  %v7209 = vcombine.low %v7175, %v7176
  %v7210 = vcombine.low %v7177, %v7178
  %s7215 = scalar_lea.vmem %s7, 32
  %7216 = vst [vmem:[%s7215] sm:$0xff] %v7207
  %7217 = vst [vmem:[%s7215 + $0x8] sm:$0xff] %v7208
  %7218 = vst [vmem:[%s7215 + $0x10] sm:$0xff] %v7209
  %7219 = vst [vmem:[%s7215 + $0x18] sm:$0xff] %v7210
  // Predicated region
  $region30: #{grad_block_pallas.1} parent=0 // pred_check
    _
  $region31: #{grad_block_pallas.1} parent=0 // pred_check_branch
    %7221 = sbr.rel (0) target = $region33
  $region32: #{grad_block_pallas.1} parent=0 // pred_region
    _
  $region33: #{grad_block_pallas.1} parent=0 // pred_fallthru
    _
  // Predicated region
  $region34: #{grad_block_pallas.1} parent=0 // pred_check
    _
  $region35: #{grad_block_pallas.1} parent=0 // pred_check_branch
    %7223 = sbr.rel (0) target = $region37
  $region36: #{grad_block_pallas.1} parent=0 // pred_region
    _
  $region37: #{grad_block_pallas.1} parent=0 // pred_fallthru
    _

</llo_original>
